<compile_context>
chip_gen: v7x
topology: tpu7x:2x2x1
jax: 0.10.0
libtpu: 0.0.40
codegen_flags: <defaults>
</compile_context>

<pallas_src>
import functools

import jax
import jax.numpy as jnp
from jax import lax
from jax.experimental import pallas as pl
from jax.experimental.pallas import tpu as pltpu

IN_FEATURES = 25088
OUT_FEATURES = 4096
DROPOUT_P = 0.5


def _hash_u32(x):
    """lowbias32-style avalanche hash on uint32 (pure VPU ops, free here)."""
    x = (x ^ (x >> 16)) * jnp.uint32(0x7FEB352D)
    x = (x ^ (x >> 15)) * jnp.uint32(0x846CA68B)
    x = x ^ (x >> 16)
    return x


def _linear_relu_dropout_kernel(
    seed_ref, x_ref, w_ref, b_ref, o_ref, acc_ref,
    *, n_total, keep_threshold_i31, scale,
):
    # All grid-position / scalar reads happen OUTSIDE pl.when bodies.
    i = pl.program_id(0)
    j = pl.program_id(1)
    k = pl.program_id(2)
    k_last = pl.num_programs(2) - 1
    seed_u32 = seed_ref[0].astype(jnp.uint32) * jnp.uint32(0x9E3779B1)

    @pl.when(k == 0)
    def _():
        acc_ref[...] = jnp.zeros_like(acc_ref)

    acc_ref[...] += jnp.dot(
        x_ref[...], w_ref[...], preferred_element_type=jnp.float32
    )

    @pl.when(k == k_last)
    def _():
        y = acc_ref[...] + b_ref[...]          # bias add (broadcast over rows)
        y = jnp.maximum(y, 0.0)                # ReLU

        # Dropout(p), training mode: keep with prob (1 - p), scale kept by
        # 1/(1-p).  Mask = hash(global element index ^ seed) < threshold.
        tm, tn = y.shape
        row = lax.broadcasted_iota(jnp.int32, (tm, tn), 0) + i * tm
        col = lax.broadcasted_iota(jnp.int32, (tm, tn), 1) + j * tn
        elem = (row * n_total + col).astype(jnp.uint32)
        r = _hash_u32(elem ^ seed_u32)
        r_i31 = (r >> 1).astype(jnp.int32)            # uniform in [0, 2^31)
        keep = r_i31 < keep_threshold_i31             # P(keep) = 1 - p
        o_ref[...] = jnp.where(
            keep, y * jnp.float32(scale), jnp.float32(0.0)
        ).astype(o_ref.dtype)


@functools.partial(jax.jit, static_argnames=("tn", "tk", "p"))
def linear_relu_dropout(x, w_t, b_row, seed, *, tn=2048, tk=1792, p=DROPOUT_P):
    """x: (M, K) f32, w_t: (K, N) f32 (pre-transposed), b_row: (1, N) f32."""
    M, K = x.shape
    Kw, N = w_t.shape
    assert K == Kw and K % tk == 0 and N % tn == 0
    assert tk % 128 == 0 and tn % 128 == 0

    keep_prob = 1.0 - p
    keep_threshold_i31 = min(int(round(keep_prob * (2 ** 31))), 2 ** 31 - 1)
    scale = 1.0 / keep_prob

    kernel = functools.partial(
        _linear_relu_dropout_kernel,
        n_total=N,
        keep_threshold_i31=keep_threshold_i31,
        scale=scale,
    )

    # M is tiny -> one row tile of height M; j gives >=2 output tiles so a
    # megacore chip (v7x) can shard the "parallel" j axis; k is the reduction.
    grid = (1, N // tn, K // tk)

    return pl.pallas_call(
        kernel,
        out_shape=jax.ShapeDtypeStruct((M, N), x.dtype),
        grid_spec=pltpu.PrefetchScalarGridSpec(
            num_scalar_prefetch=1,
            grid=grid,
            in_specs=[
                pl.BlockSpec((M, tk), lambda i, j, k, seed: (i, k)),
                pl.BlockSpec((tk, tn), lambda i, j, k, seed: (k, j)),
                pl.BlockSpec((1, tn), lambda i, j, k, seed: (0, j)),
            ],
            out_specs=pl.BlockSpec((M, tn), lambda i, j, k, seed: (i, j)),
            scratch_shapes=[pltpu.VMEM((M, tn), jnp.float32)],
        ),
        compiler_params=pltpu.CompilerParams(
            dimension_semantics=("parallel", "parallel", "arbitrary"),
            vmem_limit_bytes=48 << 20,  # ~28 MiB actually used (double-buffered 14 MiB weight tiles)
        ),
    )(seed, x, w_t, b_row)


if __name__ == "__main__":
    key = jax.random.PRNGKey(0)
    kx, kw, kb = jax.random.split(key, 3)

    batch = 8  # module's example is (1, 25088); any M works, 8 keeps tiles aligned

    # Deterministic synthetic parameters (shapes from the module's __init__).
    bound = 1.0 / (IN_FEATURES ** 0.5)
    weight = jax.random.uniform(
        kw, (OUT_FEATURES, IN_FEATURES), jnp.float32, -bound, bound
    )  # PyTorch Linear weight layout: (out_features, in_features)
    bias = jax.random.uniform(kb, (OUT_FEATURES,), jnp.float32, -bound, bound)
    x = jax.random.normal(kx, (batch, IN_FEATURES), jnp.float32)

    # Pre-transpose ONCE outside the hot path (per-step transpose of the
    # 392 MiB weight would cost more HBM traffic than the kernel itself).
    w_t = jnp.transpose(weight)            # (K, N)
    b_row = bias.reshape(1, OUT_FEATURES)  # (1, N)
    seed = jnp.array([1234], dtype=jnp.int32)

    out = linear_relu_dropout(x, w_t, b_row, seed)
    out = jax.block_until_ready(out)

    assert out.shape == (batch, OUT_FEATURES)
    assert out.dtype == jnp.float32
    assert bool(jnp.all(out >= 0.0))

    # Correctness: every element is either dropped (0) or equals 2*relu(x@W+b).
    ref = jnp.maximum(x @ w_t + b_row, 0.0)
    kept = out != 0.0
    ok = jnp.where(
        kept,
        jnp.abs(out - 2.0 * ref) <= 2e-3 * (1.0 + jnp.abs(2.0 * ref)),
        True,
    )
    assert bool(jnp.all(ok))

    # Roughly half of ReLU-positive values survive dropout.
    frac_zero = float(jnp.mean((out == 0.0).astype(jnp.float32)))
    assert 0.3 < frac_zero < 0.95

    print("KERNEL_OK")
</pallas_src>

<mosaic_0001>
module attributes {stable_mosaic.version = 11 : i64} {
  func.func @_linear_relu_dropout_kernel(%arg0: i32, %arg1: i32, %arg2: i32, %arg3: memref<1xi32, #tpu.memory_space<smem>>, %arg4: memref<8x1792xf32, #tpu.memory_space<vmem>>, %arg5: memref<1792x2048xf32, #tpu.memory_space<vmem>>, %arg6: memref<1x2048xf32, #tpu.memory_space<vmem>>, %arg7: memref<8x2048xf32, #tpu.memory_space<vmem>>, %arg8: memref<8x2048xf32, #tpu.memory_space<vmem>>) attributes {dimension_semantics = [#tpu.dimension_semantics<parallel>, #tpu.dimension_semantics<parallel>, #tpu.dimension_semantics<arbitrary>], iteration_bounds = array<i64: 1, 2, 14>, scalar_prefetch = 1 : i64, scratch_operands = 1 : i64, tpu.core_type = #tpu.core_type<tc>, window_params = [{transform_indices = @transform_0, window_bounds = array<i64: 8, 1792>}, {transform_indices = @transform_1, window_bounds = array<i64: 1792, 2048>}, {transform_indices = @transform_2, window_bounds = array<i64: 1, 2048>}, {transform_indices = @transform_3, window_bounds = array<i64: 8, 2048>}]} {
    %c0 = arith.constant 0 : index
    %0 = memref.load %arg3[%c0] : memref<1xi32, #tpu.memory_space<smem>>
    %c-1640531535_i32 = arith.constant -1640531535 : i32
    %1 = arith.muli %0, %c-1640531535_i32 : i32
    %c0_i32 = arith.constant 0 : i32
    %2 = arith.cmpi eq, %arg2, %c0_i32 : i32
    %3 = arith.extui %2 : i1 to i32
    %c0_i32_0 = arith.constant 0 : i32
    %4 = arith.cmpi ne, %3, %c0_i32_0 : i32
    scf.if %4 {
      %cst_10 = arith.constant 0.000000e+00 : f32
      %14 = vector.broadcast %cst_10 : f32 to vector<8x2048xf32>
      %c0_11 = arith.constant 0 : index
      %c0_12 = arith.constant 0 : index
      %15 = vector.load %arg8[%c0_11, %c0_12] : memref<8x2048xf32, #tpu.memory_space<vmem>>, vector<8x2048xf32>
      tpu.vector_store %arg8[%c0_11, %c0_12], %14 {strides = array<i32>} : memref<8x2048xf32, #tpu.memory_space<vmem>>, vector<8x2048xf32>,
    } else {
    }
    %c0_1 = arith.constant 0 : index
    %c0_2 = arith.constant 0 : index
    %5 = vector.load %arg8[%c0_1, %c0_2] : memref<8x2048xf32, #tpu.memory_space<vmem>>, vector<8x2048xf32>
    %c0_3 = arith.constant 0 : index
    %c0_4 = arith.constant 0 : index
    %6 = vector.load %arg4[%c0_3, %c0_4] : memref<8x1792xf32, #tpu.memory_space<vmem>>, vector<8x1792xf32>
    %c0_5 = arith.constant 0 : index
    %c0_6 = arith.constant 0 : index
    %7 = vector.load %arg5[%c0_5, %c0_6] : memref<1792x2048xf32, #tpu.memory_space<vmem>>, vector<1792x2048xf32>
    %cst = arith.constant dense<0.000000e+00> : vector<8x2048xf32>
    %8 = tpu.matmul %6, %7, %cst {dimension_numbers = #tpu.dot_dimension_numbers<[1], [0], [0], [1], [0, 0, 1, 1], [], []>} : vector<8x1792xf32>, vector<1792x2048xf32>, vector<8x2048xf32> -> vector<8x2048xf32>
    %9 = arith.addf %5, %8 : vector<8x2048xf32>
    %c0_7 = arith.constant 0 : index
    %c0_8 = arith.constant 0 : index
    %10 = vector.load %arg8[%c0_7, %c0_8] : memref<8x2048xf32, #tpu.memory_space<vmem>>, vector<8x2048xf32>
    tpu.vector_store %arg8[%c0_7, %c0_8], %9 {strides = array<i32>} : memref<8x2048xf32, #tpu.memory_space<vmem>>, vector<8x2048xf32>,
    %c13_i32 = arith.constant 13 : i32
    %11 = arith.cmpi eq, %arg2, %c13_i32 : i32
    %12 = arith.extui %11 : i1 to i32
    %c0_i32_9 = arith.constant 0 : i32
    %13 = arith.cmpi ne, %12, %c0_i32_9 : i32
    scf.if %13 {
      %c0_10 = arith.constant 0 : index
      %c0_11 = arith.constant 0 : index
      %14 = vector.load %arg8[%c0_10, %c0_11] : memref<8x2048xf32, #tpu.memory_space<vmem>>, vector<8x2048xf32>
      %c0_12 = arith.constant 0 : index
      %c0_13 = arith.constant 0 : index
      %15 = vector.load %arg6[%c0_12, %c0_13] : memref<1x2048xf32, #tpu.memory_space<vmem>>, vector<1x2048xf32>
      %16 = vector.broadcast %15 : vector<1x2048xf32> to vector<8x2048xf32>
      %17 = arith.addf %14, %16 : vector<8x2048xf32>
      %cst_14 = arith.constant 0.000000e+00 : f32
      %18 = vector.broadcast %cst_14 : f32 to vector<8x2048xf32>
      %19 = arith.maximumf %17, %18 : vector<8x2048xf32>
      %20 = tpu.iota {dimensions = array<i32: 0>} : vector<8x2048xi32>
      %c8_i32 = arith.constant 8 : i32
      %21 = arith.muli %arg0, %c8_i32 : i32
      %22 = vector.broadcast %21 : i32 to vector<8x2048xi32>
      %23 = arith.addi %20, %22 : vector<8x2048xi32>
      %24 = tpu.iota {dimensions = array<i32: 1>} : vector<8x2048xi32>
      %c2048_i32 = arith.constant 2048 : i32
      %25 = arith.muli %arg1, %c2048_i32 : i32
      %26 = vector.broadcast %25 : i32 to vector<8x2048xi32>
      %27 = arith.addi %24, %26 : vector<8x2048xi32>
      %c4096_i32 = arith.constant 4096 : i32
      %28 = vector.broadcast %c4096_i32 : i32 to vector<8x2048xi32>
      %29 = arith.muli %23, %28 : vector<8x2048xi32>
      %30 = arith.addi %29, %27 : vector<8x2048xi32>
      %31 = vector.broadcast %1 : i32 to vector<8x2048xi32>
      %32 = arith.xori %30, %31 : vector<8x2048xi32>
      %c16_i32 = arith.constant 16 : i32
      %33 = vector.broadcast %c16_i32 : i32 to vector<8x2048xi32>
      %34 = arith.shrui %32, %33 : vector<8x2048xi32>
      %35 = arith.xori %32, %34 : vector<8x2048xi32>
      %c2146121005_i32 = arith.constant 2146121005 : i32
      %36 = vector.broadcast %c2146121005_i32 : i32 to vector<8x2048xi32>
      %37 = arith.muli %35, %36 : vector<8x2048xi32>
      %c15_i32 = arith.constant 15 : i32
      %38 = vector.broadcast %c15_i32 : i32 to vector<8x2048xi32>
      %39 = arith.shrui %37, %38 : vector<8x2048xi32>
      %40 = arith.xori %37, %39 : vector<8x2048xi32>
      %c-2073254261_i32 = arith.constant -2073254261 : i32
      %41 = vector.broadcast %c-2073254261_i32 : i32 to vector<8x2048xi32>
      %42 = arith.muli %40, %41 : vector<8x2048xi32>
      %c16_i32_15 = arith.constant 16 : i32
      %43 = vector.broadcast %c16_i32_15 : i32 to vector<8x2048xi32>
      %44 = arith.shrui %42, %43 : vector<8x2048xi32>
      %45 = arith.xori %42, %44 : vector<8x2048xi32>
      %c1_i32 = arith.constant 1 : i32
      %46 = vector.broadcast %c1_i32 : i32 to vector<8x2048xi32>
      %47 = arith.shrui %45, %46 : vector<8x2048xi32>
      %c1073741824_i32 = arith.constant 1073741824 : i32
      %48 = vector.broadcast %c1073741824_i32 : i32 to vector<8x2048xi32>
      %49 = arith.cmpi slt, %47, %48 : vector<8x2048xi32>
      %cst_16 = arith.constant 2.000000e+00 : f32
      %50 = vector.broadcast %cst_16 : f32 to vector<8x2048xf32>
      %51 = arith.mulf %19, %50 : vector<8x2048xf32>
      %cst_17 = arith.constant 0.000000e+00 : f32
      %52 = vector.broadcast %cst_17 : f32 to vector<8x2048xf32>
      %53 = arith.select %49, %51, %52 : vector<8x2048xi1>, vector<8x2048xf32>
      %c0_18 = arith.constant 0 : index
      %c0_19 = arith.constant 0 : index
      %54 = vector.load %arg7[%c0_18, %c0_19] : memref<8x2048xf32, #tpu.memory_space<vmem>>, vector<8x2048xf32>
      tpu.vector_store %arg7[%c0_18, %c0_19], %53 {strides = array<i32>} : memref<8x2048xf32, #tpu.memory_space<vmem>>, vector<8x2048xf32>,
    } else {
    }
    return
  }
  func.func @transform_0(%arg0: i32, %arg1: i32, %arg2: i32, %arg3: memref<1xi32, #tpu.memory_space<smem>>) -> (i32, i32) {
    %c0_i32 = arith.constant 0 : i32
    return %arg0, %arg2 : i32, i32
  }
  func.func @transform_1(%arg0: i32, %arg1: i32, %arg2: i32, %arg3: memref<1xi32, #tpu.memory_space<smem>>) -> (i32, i32) {
    %c0_i32 = arith.constant 0 : i32
    return %arg2, %arg1 : i32, i32
  }
  func.func @transform_2(%arg0: i32, %arg1: i32, %arg2: i32, %arg3: memref<1xi32, #tpu.memory_space<smem>>) -> (i32, i32) {
    %c0_i32 = arith.constant 0 : i32
    %c0_i32_0 = arith.constant 0 : i32
    return %c0_i32, %arg1 : i32, i32
  }
  func.func @transform_3(%arg0: i32, %arg1: i32, %arg2: i32, %arg3: memref<1xi32, #tpu.memory_space<smem>>) -> (i32, i32) {
    %c0_i32 = arith.constant 0 : i32
    return %arg0, %arg1 : i32, i32
  }
}

</mosaic_0001>

<llo_original>
// kernel: linear_relu_dropout.1
$region0: #{linear_relu_dropout.1}
  #allocation0 [shape = 'u32[]', space=smem, size = 0x4, offset = 0x4, fixed_abs, tag = 'smem constant byte address 0x4 - core index']
  #allocation1 [shape = 'u32[144,128]{1,0:T(1,128)}', space=vmem, size = 0x12000, scoped, tag = 'internal scratch']
  #allocation2 [shape = 'f32[8,2048]{1,0:T(8,128)}', space=vmem, size = 0x10000, scoped, tag = 'scratch operand']
  #allocation3 [shape = 's32[1]{0}', space=sflag, size = 0x4, scoped, tag = 'scoped memory for linear_relu_dropout.1']
  #allocation4 [shape = 's32[1]{0:T(128)S(6)}', space=smem, size = 0x200, scoped, tag = 'prefetched SMEM operand 0']
  %s0 = inlined_call_operand.<no memory space> [shape: s32[1], index: 0, kind: input, shape index: {}]
  %s1 = inlined_call_operand.hbm [shape: f32[8,25088], index: 1, kind: input, shape index: {}]
  %s2 = inlined_call_operand.hbm [shape: f32[25088,4096], index: 2, kind: input, shape index: {}]
  %s3 = inlined_call_operand.hbm [shape: f32[1,4096], index: 3, kind: input, shape index: {}]
  %s4 = inlined_call_operand.hbm [shape: f32[8,4096], index: 4, kind: output, shape index: {}]
  %s5 = sld [smem:[#allocation0]]
  $region65: #{linear_relu_dropout.1} parent=0
    _
  %s7 = ssub.s32 1, %s5
  %s8 = scalar_select 0, %s7, %s5
  %9 = sst [smem:[#allocation4]] %s0
  $region1: #{linear_relu_dropout.1} parent=0
    #allocation5 [shape = 'u8[114688]{0}', space=vmem, size = 0x1c000, scoped, tag = 'input window, operand 1']
    #allocation6 [shape = 's32[2]{0}', space=sflag, size = 0x8, scoped, tag = 'scoped memory for linear_relu_dropout.1']
    #allocation7 [shape = 's32[2]{0}', space=sflag, size = 0x8, scoped, tag = 'scoped memory for linear_relu_dropout.1']
    #allocation8 [shape = 'u8[29360128]{0}', space=vmem, size = 0x1c00000, scoped, tag = 'input window, operand 2']
    #allocation9 [shape = 's32[2]{0}', space=sflag, size = 0x8, scoped, tag = 'scoped memory for linear_relu_dropout.1']
    #allocation10 [shape = 'u8[16384]{0}', space=vmem, size = 0x4000, scoped, tag = 'input window, operand 3']
    #allocation11 [shape = 'u8[131072]{0}', space=vmem, size = 0x20000, scoped, tag = 'output window, operand 0']
    %10 = vsyncpa [#allocation6], 0
    %s11 = scalar_lea.sflag [#allocation6], 1
    %12 = vsyncpa %s11, 0
    %13 = vsyncpa [#allocation9], 0
    %s14 = scalar_lea.sflag [#allocation9], 1
    %15 = vsyncpa %s14, 0
    %16 = vsyncpa [#allocation7], 0
    %s17 = scalar_lea.sflag [#allocation7], 1
    %18 = vsyncpa %s17, 0
    loop: start=0, step=1, limit=30
    $region2: #{linear_relu_dropout.1} parent=1 // loop_pre_header
      _
    $region3: #{linear_relu_dropout.1} parent=1 // loop_header
      %s20 = sphi 0, %s24
      %p21 = scmp.ge.s32.totalorder %s20, 30
      %s27 = sphi 0, %s46
      %s28 = sphi 0, %s42
      %s29 = sphi 0, %s38
      %s30 = sphi 0, %s27
      %s31 = sphi 0, %s28
      %s32 = sphi 0, %s29
      %s33 = sphi 0, %s30
      %s34 = sphi 0, %s31
      %s35 = sphi 0, %s32
      %s51 = sphi 0, %s53
      %s54 = sphi 0, %s51
      %s55 = sphi 0, %s54
      %s71 = sphi 0, %s55
      %s79 = sphi 0, %s81
      %s82 = sphi 0, %s79
      %s83 = sphi 0, %s82
      %s99 = sphi 0, %s83
      %s105 = sphi 0, %s107
      %s108 = sphi 0, %s105
      %s109 = sphi 0, %s108
      %s125 = sphi 0, %s109
      %s133 = sphi 0, %s135
      %s136 = sphi 0, %s133
      %s137 = sphi 0, %s136
      %s153 = sphi 0, %s137
    $region4: #{linear_relu_dropout.1} parent=1 // loop_header_branch
      %23 = sbr.rel (%p21) target = $region8
    $region5: #{linear_relu_dropout.1} parent=1 // loop_body
      %s25 = ssub.s32 %s20, 1
      %s26 = ssub.s32 %s20, 2
      %s36 = sadd.s32 1, %s29
      %p37 = scmp.ge.s32.totalorder %s36, 14
      %s38 = scalar_select %p37, 0, %s36
      %s39 = sadd.s32 1, %s28
      %s40 = scalar_select %p37, %s39, %s28
      %p41 = scmp.ge.s32.totalorder %s40, 2
      %s42 = scalar_select %p41, 0, %s40
      %s43 = sadd.s32 1, %s27
      %s44 = scalar_select %p41, %s43, %s27
      %p45 = scmp.ge.s32.totalorder %s44, 1
      %s46 = scalar_select %p45, 0, %s44
      %s47 = ssub.s32 %s27, %s46
      %s48 = ssub.s32 %s29, %s38
      %s49 = sor.u32 %s47, %s48
      %p50 = scmp.eq.s32.totalorder %s49, 0
      %s52 = sadd.s32 %s51, 1
      %s53 = scalar_select %p50, %s51, %s52
      %p56 = pneg %p50
      %p57 = scmp.eq.s32.totalorder %s20, 27
      %p58 = por %p56, %p57
      %p59 = scmp.ne.s32.totalorder %s51, %s54
      %p60 = scmp.eq.s32.totalorder %s20, 0
      %p61 = por %p59, %p60
      %p62 = scmp.ne.s32.totalorder %s51, %s54
      %p63 = scmp.eq.s32.totalorder %s25, 27
      %p64 = por %p62, %p63
      %p65 = scmp.ne.s32.totalorder %s54, %s55
      %p66 = scmp.eq.s32.totalorder %s25, 0
      %p67 = por %p65, %p66
      %p68 = scmp.ne.s32.totalorder %s54, %s55
      %p69 = scmp.eq.s32.totalorder %s26, 27
      %p70 = por %p68, %p69
      %p72 = scmp.ne.s32.totalorder %s55, %s71
      %p73 = scmp.eq.s32.totalorder %s26, 0
      %p74 = por %p72, %p73
      %s75 = ssub.s32 %s29, %s38
      %s76 = ssub.s32 %s28, %s42
      %s77 = sor.u32 %s75, %s76
      %p78 = scmp.eq.s32.totalorder %s77, 0
      %s80 = sadd.s32 %s79, 1
      %s81 = scalar_select %p78, %s79, %s80
      %p84 = pneg %p78
      %p85 = scmp.eq.s32.totalorder %s20, 27
      %p86 = por %p84, %p85
      %p87 = scmp.ne.s32.totalorder %s79, %s82
      %p88 = scmp.eq.s32.totalorder %s20, 0
      %p89 = por %p87, %p88
      %p90 = scmp.ne.s32.totalorder %s79, %s82
      %p91 = scmp.eq.s32.totalorder %s25, 27
      %p92 = por %p90, %p91
      %p93 = scmp.ne.s32.totalorder %s82, %s83
      %p94 = scmp.eq.s32.totalorder %s25, 0
      %p95 = por %p93, %p94
      %p96 = scmp.ne.s32.totalorder %s82, %s83
      %p97 = scmp.eq.s32.totalorder %s26, 27
      %p98 = por %p96, %p97
      %p100 = scmp.ne.s32.totalorder %s83, %s99
      %p101 = scmp.eq.s32.totalorder %s26, 0
      %p102 = por %p100, %p101
      %s103 = ssub.s32 %s28, %s42
      %p104 = scmp.eq.s32.totalorder %s103, 0
      %s106 = sadd.s32 %s105, 1
      %s107 = scalar_select %p104, %s105, %s106
      %p110 = pneg %p104
      %p111 = scmp.eq.s32.totalorder %s20, 27
      %p112 = por %p110, %p111
      %p113 = scmp.ne.s32.totalorder %s105, %s108
      %p114 = scmp.eq.s32.totalorder %s20, 0
      %p115 = por %p113, %p114
      %p116 = scmp.ne.s32.totalorder %s105, %s108
      %p117 = scmp.eq.s32.totalorder %s25, 27
      %p118 = por %p116, %p117
      %p119 = scmp.ne.s32.totalorder %s108, %s109
      %p120 = scmp.eq.s32.totalorder %s25, 0
      %p121 = por %p119, %p120
      %p122 = scmp.ne.s32.totalorder %s108, %s109
      %p123 = scmp.eq.s32.totalorder %s26, 27
      %p124 = por %p122, %p123
      %p126 = scmp.ne.s32.totalorder %s109, %s125
      %p127 = scmp.eq.s32.totalorder %s26, 0
      %p128 = por %p126, %p127
      %s129 = ssub.s32 %s27, %s46
      %s130 = ssub.s32 %s28, %s42
      %s131 = sor.u32 %s129, %s130
      %p132 = scmp.eq.s32.totalorder %s131, 0
      %s134 = sadd.s32 %s133, 1
      %s135 = scalar_select %p132, %s133, %s134
      %p138 = pneg %p132
      %p139 = scmp.eq.s32.totalorder %s20, 27
      %p140 = por %p138, %p139
      %p141 = scmp.ne.s32.totalorder %s133, %s136
      %p142 = scmp.eq.s32.totalorder %s20, 0
      %p143 = por %p141, %p142
      %p144 = scmp.ne.s32.totalorder %s133, %s136
      %p145 = scmp.eq.s32.totalorder %s25, 27
      %p146 = por %p144, %p145
      %p147 = scmp.ne.s32.totalorder %s136, %s137
      %p148 = scmp.eq.s32.totalorder %s25, 0
      %p149 = por %p147, %p148
      %p150 = scmp.ne.s32.totalorder %s136, %s137
      %p151 = scmp.eq.s32.totalorder %s26, 27
      %p152 = por %p150, %p151
      %p154 = scmp.ne.s32.totalorder %s137, %s153
      %p155 = scmp.eq.s32.totalorder %s26, 0
      %p156 = por %p154, %p155
      %p157 = scmp.le.s32.totalorder 1, %s20
      %p158 = scmp.lt.s32.totalorder %s20, 29
      %p159 = pnand %p157, %p158
      %p160 = pneg %p159
      // Predicated region
      $region9: #{linear_relu_dropout.1} parent=5 // pred_check
        _
      $region10: #{linear_relu_dropout.1} parent=5 // pred_check_branch
        %162 = sbr.rel (%p159) target = $region12
      $region11: #{linear_relu_dropout.1} parent=5 // pred_region
        %s163 = ssub.s32 %s20, 1
      $region12: #{linear_relu_dropout.1} parent=5 // pred_fallthru
        _
      %p164 = scmp.lt.s32.totalorder %s20, 28
      // Predicated region
      $region13: #{linear_relu_dropout.1} parent=5 // pred_check
        %p165 = pneg %p164
      $region14: #{linear_relu_dropout.1} parent=5 // pred_check_branch
        %167 = sbr.rel (%p165) target = $region16
      $region15: #{linear_relu_dropout.1} parent=5 // pred_region
        // Predicated region
        $region17: #{linear_relu_dropout.1} parent=15 // pred_check
          %p168 = pneg %p61
        $region18: #{linear_relu_dropout.1} parent=15 // pred_check_branch
          %170 = sbr.rel (%p168) target = $region20
        $region19: #{linear_relu_dropout.1} parent=15 // pred_region
          %s171 = sand.u32 %s51, 1
          %s172 = scalar_lea.sflag [#allocation6], %s171
          %s173 = sand.u32 %s51, 1
          %s174 = smul.addr %s173, 112
          %s175 = scalar_lea.vmem [#allocation5], %s174
          %s176 = smul.u32 14, %s29
          %s178 = ssub.s32 1792, 1792
          %179 = vsyncadd %s172, %s178
          %s180 = smul.addr %s27, 196
          %s181 = sadd.s32 %s176, %s180
          %s182 = smul.addr %s181, 128
          %s183 = scalar_lea.hbm %s1, %s182
          %s185 = sshll.u32 %s175, 4
          %s186 = int_to_ptr.vmem [resolvable:$true] %s185
          %188 = dma.hbm_to_vmem [thread:$0]  %s183, 1792, %s186, %s172
        $region20: #{linear_relu_dropout.1} parent=15 // pred_fallthru
          _
        // Predicated region
        $region21: #{linear_relu_dropout.1} parent=15 // pred_check
          %p189 = pneg %p89
        $region22: #{linear_relu_dropout.1} parent=15 // pred_check_branch
          %191 = sbr.rel (%p189) target = $region24
        $region23: #{linear_relu_dropout.1} parent=15 // pred_region
          %s192 = sand.u32 %s20, 1
          %s193 = scalar_lea.sflag [#allocation9], %s192
          %s194 = sand.u32 %s79, 1
          %s195 = smul.addr %s194, 28672
          %s196 = scalar_lea.vmem [#allocation8], %s195
          %s197 = smul.u32 224, %s29
          %s198 = smul.u32 16, %s28
          %s200 = ssub.s32 458752, 458752
          %201 = vsyncadd %s193, %s200
          %s202 = smul.addr %s197, 32
          %s203 = sadd.s32 %s198, %s202
          %s204 = smul.addr %s203, 128
          %s205 = scalar_lea.hbm %s2, %s204
          %s206 = sshll.u32 %s196, 4
          %s207 = int_to_ptr.vmem [resolvable:$true] %s206
          %212 = dma.hbm_to_vmem [thread:$0]  %s205, 458752, %s207, %s193, 4096, 2048, 128
        $region24: #{linear_relu_dropout.1} parent=15 // pred_fallthru
          _
        // Predicated region
        $region25: #{linear_relu_dropout.1} parent=15 // pred_check
          %p213 = pneg %p115
        $region26: #{linear_relu_dropout.1} parent=15 // pred_check_branch
          %215 = sbr.rel (%p213) target = $region28
        $region27: #{linear_relu_dropout.1} parent=15 // pred_region
          %s216 = sand.u32 %s20, 1
          %s217 = scalar_lea.sflag [#allocation9], %s216
          %s218 = sand.u32 %s105, 1
          %s219 = smul.addr %s218, 16
          %s220 = scalar_lea.vmem [#allocation10], %s219
          %s221 = smul.u32 16, %s28
          %s223 = ssub.s32 256, 256
          %224 = vsyncadd %s217, %s223
          %s225 = smul.addr %s221, 16
          %s226 = scalar_lea.hbm %s3, %s225
          %s228 = sshll.u32 %s220, 4
          %s229 = int_to_ptr.vmem [resolvable:$true] %s228
          %231 = dma.hbm_to_vmem [thread:$0]  %s226, 256, %s229, %s217
        $region28: #{linear_relu_dropout.1} parent=15 // pred_fallthru
          _
      $region16: #{linear_relu_dropout.1} parent=5 // pred_fallthru
        _
      %p232 = scmp.le.s32.totalorder 1, %s20
      %p233 = scmp.lt.s32.totalorder %s20, 29
      %p234 = pnand %p232, %p233
      %p235 = pneg %p234
      // Predicated region
      $region29: #{linear_relu_dropout.1} parent=5 // pred_check
        _
      $region30: #{linear_relu_dropout.1} parent=5 // pred_check_branch
        %237 = sbr.rel (%p234) target = $region32
      $region31: #{linear_relu_dropout.1} parent=5 // pred_region
        %s238 = ssub.s32 %s20, 1
        %s239 = sand.u32 %s54, 1
        %s240 = scalar_lea.sflag [#allocation6], %s239
        %s241 = sand.u32 %s54, 1
        %s242 = smul.addr %s241, 112
        %s243 = scalar_lea.vmem [#allocation5], %s242
        // Predicated region
        $region33: #{linear_relu_dropout.1} parent=31 // pred_check
          %p244 = pneg %p67
        $region34: #{linear_relu_dropout.1} parent=31 // pred_check_branch
          %246 = sbr.rel (%p244) target = $region36
        $region35: #{linear_relu_dropout.1} parent=31 // pred_region
          %247 = dma.done %s240, 1792
        $region36: #{linear_relu_dropout.1} parent=31 // pred_fallthru
          _
        %s248 = sand.u32 %s25, 1
        %s249 = scalar_lea.sflag [#allocation9], %s248
        %s250 = sand.u32 %s82, 1
        %s251 = smul.addr %s250, 28672
        %s252 = scalar_lea.vmem [#allocation8], %s251
        // Predicated region
        $region37: #{linear_relu_dropout.1} parent=31 // pred_check
          %p253 = pneg %p95
        $region38: #{linear_relu_dropout.1} parent=31 // pred_check_branch
          %255 = sbr.rel (%p253) target = $region40
        $region39: #{linear_relu_dropout.1} parent=31 // pred_region
          %256 = dma.done %s249, 458752
        $region40: #{linear_relu_dropout.1} parent=31 // pred_fallthru
          _
        %s257 = sand.u32 %s25, 1
        %s258 = scalar_lea.sflag [#allocation9], %s257
        %s259 = sand.u32 %s108, 1
        %s260 = smul.addr %s259, 16
        %s261 = scalar_lea.vmem [#allocation10], %s260
        // Predicated region
        $region41: #{linear_relu_dropout.1} parent=31 // pred_check
          %p262 = pneg %p121
        $region42: #{linear_relu_dropout.1} parent=31 // pred_check_branch
          %264 = sbr.rel (%p262) target = $region44
        $region43: #{linear_relu_dropout.1} parent=31 // pred_region
          %265 = dma.done %s258, 256
        $region44: #{linear_relu_dropout.1} parent=31 // pred_fallthru
          _
        %s266 = sand.u32 %s54, 1
        %s267 = scalar_lea.sflag [#allocation6], %s266
        %s268 = sand.u32 %s54, 1
        %s269 = smul.addr %s268, 112
        %s270 = scalar_lea.vmem [#allocation5], %s269
        %p271 = pneg %p67
        %p272 = pneg %p64
        %s273 = sand.u32 %s25, 1
        %s274 = scalar_lea.sflag [#allocation9], %s273
        %s275 = sand.u32 %s82, 1
        %s276 = smul.addr %s275, 28672
        %s277 = scalar_lea.vmem [#allocation8], %s276
        %p278 = pneg %p95
        %p279 = pneg %p92
        %s280 = sand.u32 %s25, 1
        %s281 = scalar_lea.sflag [#allocation9], %s280
        %s282 = sand.u32 %s108, 1
        %s283 = smul.addr %s282, 16
        %s284 = scalar_lea.vmem [#allocation10], %s283
        %p285 = pneg %p121
        %p286 = pneg %p118
        %p287 = pneg %p149
        %p288 = pneg %p146
        %s289 = sand.u32 %s136, 1
        %s290 = scalar_lea.sflag [#allocation7], %s289
        %s291 = sand.u32 %s136, 1
        %s292 = smul.addr %s291, 128
        %s293 = scalar_lea.vmem [#allocation11], %s292
        %s294 = smul.u32 14, %s32
        %s295 = smul.u32 224, %s32
        %s296 = smul.u32 16, %s31
        %s297 = smul.u32 16, %s31
        %s298 = smul.u32 16, %s31
        %s299 = sld [smem:[#allocation4]]
        %s300 = smul.u32 %s299, 2654435761
        %p301 = scmp.eq.s32.totalorder %s32, 0
        // Predicated region
        $region45: #{linear_relu_dropout.1} parent=31 // pred_check
          %p302 = pneg %p301
        $region46: #{linear_relu_dropout.1} parent=31 // pred_check_branch
          %304 = sbr.rel (%p302) target = $region48
        $region47: #{linear_relu_dropout.1} parent=31 // pred_region
          %305 = vst [vmem:[#allocation2] sm:$0xff] 0.0
          %306 = vst [vmem:[#allocation2 + $0x8] sm:$0xff] 0.0
          %307 = vst [vmem:[#allocation2 + $0x10] sm:$0xff] 0.0
          %308 = vst [vmem:[#allocation2 + $0x18] sm:$0xff] 0.0
          %309 = vst [vmem:[#allocation2 + $0x20] sm:$0xff] 0.0
          %310 = vst [vmem:[#allocation2 + $0x28] sm:$0xff] 0.0
          %311 = vst [vmem:[#allocation2 + $0x30] sm:$0xff] 0.0
          %312 = vst [vmem:[#allocation2 + $0x38] sm:$0xff] 0.0
          %313 = vst [vmem:[#allocation2 + $0x40] sm:$0xff] 0.0
          %314 = vst [vmem:[#allocation2 + $0x48] sm:$0xff] 0.0
          %315 = vst [vmem:[#allocation2 + $0x50] sm:$0xff] 0.0
          %316 = vst [vmem:[#allocation2 + $0x58] sm:$0xff] 0.0
          %317 = vst [vmem:[#allocation2 + $0x60] sm:$0xff] 0.0
          %318 = vst [vmem:[#allocation2 + $0x68] sm:$0xff] 0.0
          %319 = vst [vmem:[#allocation2 + $0x70] sm:$0xff] 0.0
          %320 = vst [vmem:[#allocation2 + $0x78] sm:$0xff] 0.0
        $region48: #{linear_relu_dropout.1} parent=31 // pred_fallthru
          _
        %v321 = vld [vmem:[#allocation2] sm:$0xff]
        %v322 = vld [vmem:[#allocation2 + $0x8] sm:$0xff]
        %v323 = vld [vmem:[#allocation2 + $0x10] sm:$0xff]
        %v324 = vld [vmem:[#allocation2 + $0x18] sm:$0xff]
        %v325 = vld [vmem:[#allocation2 + $0x20] sm:$0xff]
        %v326 = vld [vmem:[#allocation2 + $0x28] sm:$0xff]
        %v327 = vld [vmem:[#allocation2 + $0x30] sm:$0xff]
        %v328 = vld [vmem:[#allocation2 + $0x38] sm:$0xff]
        %v329 = vld [vmem:[#allocation2 + $0x40] sm:$0xff]
        %v330 = vld [vmem:[#allocation2 + $0x48] sm:$0xff]
        %v331 = vld [vmem:[#allocation2 + $0x50] sm:$0xff]
        %v332 = vld [vmem:[#allocation2 + $0x58] sm:$0xff]
        %v333 = vld [vmem:[#allocation2 + $0x60] sm:$0xff]
        %v334 = vld [vmem:[#allocation2 + $0x68] sm:$0xff]
        %v335 = vld [vmem:[#allocation2 + $0x70] sm:$0xff]
        %v336 = vld [vmem:[#allocation2 + $0x78] sm:$0xff]
        %v337 = vld [vmem:[%s243] sm:$0xff]
        %v338 = vld [vmem:[%s243 + $0x8] sm:$0xff]
        %v339 = vld [vmem:[%s243 + $0x10] sm:$0xff]
        %v340 = vld [vmem:[%s243 + $0x18] sm:$0xff]
        %v341 = vld [vmem:[%s243 + $0x20] sm:$0xff]
        %v342 = vld [vmem:[%s243 + $0x28] sm:$0xff]
        %v343 = vld [vmem:[%s243 + $0x30] sm:$0xff]
        %v344 = vld [vmem:[%s243 + $0x38] sm:$0xff]
        %v345 = vld [vmem:[%s243 + $0x40] sm:$0xff]
        %v346 = vld [vmem:[%s243 + $0x48] sm:$0xff]
        %v347 = vld [vmem:[%s243 + $0x50] sm:$0xff]
        %v348 = vld [vmem:[%s243 + $0x58] sm:$0xff]
        %v349 = vld [vmem:[%s243 + $0x60] sm:$0xff]
        %v350 = vld [vmem:[%s243 + $0x68] sm:$0xff]
        %v351 = vld [vmem:[%s252] sm:$0xff]
        %v352 = vld [vmem:[%s252 + $0x8] sm:$0xff]
        %v353 = vld [vmem:[%s252 + $0x10] sm:$0xff]
        %v354 = vld [vmem:[%s252 + $0x18] sm:$0xff]
        %v355 = vld [vmem:[%s252 + $0x20] sm:$0xff]
        %v356 = vld [vmem:[%s252 + $0x28] sm:$0xff]
        %v357 = vld [vmem:[%s252 + $0x30] sm:$0xff]
        %v358 = vld [vmem:[%s252 + $0x38] sm:$0xff]
        %v359 = vld [vmem:[%s252 + $0x40] sm:$0xff]
        %v360 = vld [vmem:[%s252 + $0x48] sm:$0xff]
        %v361 = vld [vmem:[%s252 + $0x50] sm:$0xff]
        %v362 = vld [vmem:[%s252 + $0x58] sm:$0xff]
        %v363 = vld [vmem:[%s252 + $0x60] sm:$0xff]
        %v364 = vld [vmem:[%s252 + $0x68] sm:$0xff]
        %v365 = vld [vmem:[%s252 + $0x70] sm:$0xff]
        %v366 = vld [vmem:[%s252 + $0x78] sm:$0xff]
        %v367 = vld [vmem:[%s252 + $0x80] sm:$0xff]
        %v368 = vld [vmem:[%s252 + $0x88] sm:$0xff]
        %v369 = vld [vmem:[%s252 + $0x90] sm:$0xff]
        %v370 = vld [vmem:[%s252 + $0x98] sm:$0xff]
        %v371 = vld [vmem:[%s252 + $0xa0] sm:$0xff]
        %v372 = vld [vmem:[%s252 + $0xa8] sm:$0xff]
        %v373 = vld [vmem:[%s252 + $0xb0] sm:$0xff]
        %v374 = vld [vmem:[%s252 + $0xb8] sm:$0xff]
        %v375 = vld [vmem:[%s252 + $0xc0] sm:$0xff]
        %v376 = vld [vmem:[%s252 + $0xc8] sm:$0xff]
        %v377 = vld [vmem:[%s252 + $0xd0] sm:$0xff]
        %v378 = vld [vmem:[%s252 + $0xd8] sm:$0xff]
        %v379 = vld [vmem:[%s252 + $0xe0] sm:$0xff]
        %v380 = vld [vmem:[%s252 + $0xe8] sm:$0xff]
        %v381 = vld [vmem:[%s252 + $0xf0] sm:$0xff]
        %v382 = vld [vmem:[%s252 + $0xf8] sm:$0xff]
        %v383 = vld [vmem:[%s252 + $0x100] sm:$0xff]
        %v384 = vld [vmem:[%s252 + $0x108] sm:$0xff]
        %v385 = vld [vmem:[%s252 + $0x110] sm:$0xff]
        %v386 = vld [vmem:[%s252 + $0x118] sm:$0xff]
        %v387 = vld [vmem:[%s252 + $0x120] sm:$0xff]
        %v388 = vld [vmem:[%s252 + $0x128] sm:$0xff]
        %v389 = vld [vmem:[%s252 + $0x130] sm:$0xff]
        %v390 = vld [vmem:[%s252 + $0x138] sm:$0xff]
        %v391 = vld [vmem:[%s252 + $0x140] sm:$0xff]
        %v392 = vld [vmem:[%s252 + $0x148] sm:$0xff]
        %v393 = vld [vmem:[%s252 + $0x150] sm:$0xff]
        %v394 = vld [vmem:[%s252 + $0x158] sm:$0xff]
        %v395 = vld [vmem:[%s252 + $0x160] sm:$0xff]
        %v396 = vld [vmem:[%s252 + $0x168] sm:$0xff]
        %v397 = vld [vmem:[%s252 + $0x170] sm:$0xff]
        %v398 = vld [vmem:[%s252 + $0x178] sm:$0xff]
        %v399 = vld [vmem:[%s252 + $0x180] sm:$0xff]
        %v400 = vld [vmem:[%s252 + $0x188] sm:$0xff]
        %v401 = vld [vmem:[%s252 + $0x190] sm:$0xff]
        %v402 = vld [vmem:[%s252 + $0x198] sm:$0xff]
        %v403 = vld [vmem:[%s252 + $0x1a0] sm:$0xff]
        %v404 = vld [vmem:[%s252 + $0x1a8] sm:$0xff]
        %v405 = vld [vmem:[%s252 + $0x1b0] sm:$0xff]
        %v406 = vld [vmem:[%s252 + $0x1b8] sm:$0xff]
        %v407 = vld [vmem:[%s252 + $0x1c0] sm:$0xff]
        %v408 = vld [vmem:[%s252 + $0x1c8] sm:$0xff]
        %v409 = vld [vmem:[%s252 + $0x1d0] sm:$0xff]
        %v410 = vld [vmem:[%s252 + $0x1d8] sm:$0xff]
        %v411 = vld [vmem:[%s252 + $0x1e0] sm:$0xff]
        %v412 = vld [vmem:[%s252 + $0x1e8] sm:$0xff]
        %v413 = vld [vmem:[%s252 + $0x1f0] sm:$0xff]
        %v414 = vld [vmem:[%s252 + $0x1f8] sm:$0xff]
        %v415 = vld [vmem:[%s252 + $0x200] sm:$0xff]
        %v416 = vld [vmem:[%s252 + $0x208] sm:$0xff]
        %v417 = vld [vmem:[%s252 + $0x210] sm:$0xff]
        %v418 = vld [vmem:[%s252 + $0x218] sm:$0xff]
        %v419 = vld [vmem:[%s252 + $0x220] sm:$0xff]
        %v420 = vld [vmem:[%s252 + $0x228] sm:$0xff]
        %v421 = vld [vmem:[%s252 + $0x230] sm:$0xff]
        %v422 = vld [vmem:[%s252 + $0x238] sm:$0xff]
        %v423 = vld [vmem:[%s252 + $0x240] sm:$0xff]
        %v424 = vld [vmem:[%s252 + $0x248] sm:$0xff]
        %v425 = vld [vmem:[%s252 + $0x250] sm:$0xff]
        %v426 = vld [vmem:[%s252 + $0x258] sm:$0xff]
        %v427 = vld [vmem:[%s252 + $0x260] sm:$0xff]
        %v428 = vld [vmem:[%s252 + $0x268] sm:$0xff]
        %v429 = vld [vmem:[%s252 + $0x270] sm:$0xff]
        %v430 = vld [vmem:[%s252 + $0x278] sm:$0xff]
        %v431 = vld [vmem:[%s252 + $0x280] sm:$0xff]
        %v432 = vld [vmem:[%s252 + $0x288] sm:$0xff]
        %v433 = vld [vmem:[%s252 + $0x290] sm:$0xff]
        %v434 = vld [vmem:[%s252 + $0x298] sm:$0xff]
        %v435 = vld [vmem:[%s252 + $0x2a0] sm:$0xff]
        %v436 = vld [vmem:[%s252 + $0x2a8] sm:$0xff]
        %v437 = vld [vmem:[%s252 + $0x2b0] sm:$0xff]
        %v438 = vld [vmem:[%s252 + $0x2b8] sm:$0xff]
        %v439 = vld [vmem:[%s252 + $0x2c0] sm:$0xff]
        %v440 = vld [vmem:[%s252 + $0x2c8] sm:$0xff]
        %v441 = vld [vmem:[%s252 + $0x2d0] sm:$0xff]
        %v442 = vld [vmem:[%s252 + $0x2d8] sm:$0xff]
        %v443 = vld [vmem:[%s252 + $0x2e0] sm:$0xff]
        %v444 = vld [vmem:[%s252 + $0x2e8] sm:$0xff]
        %v445 = vld [vmem:[%s252 + $0x2f0] sm:$0xff]
        %v446 = vld [vmem:[%s252 + $0x2f8] sm:$0xff]
        %v447 = vld [vmem:[%s252 + $0x300] sm:$0xff]
        %v448 = vld [vmem:[%s252 + $0x308] sm:$0xff]
        %v449 = vld [vmem:[%s252 + $0x310] sm:$0xff]
        %v450 = vld [vmem:[%s252 + $0x318] sm:$0xff]
        %v451 = vld [vmem:[%s252 + $0x320] sm:$0xff]
        %v452 = vld [vmem:[%s252 + $0x328] sm:$0xff]
        %v453 = vld [vmem:[%s252 + $0x330] sm:$0xff]
        %v454 = vld [vmem:[%s252 + $0x338] sm:$0xff]
        %v455 = vld [vmem:[%s252 + $0x340] sm:$0xff]
        %v456 = vld [vmem:[%s252 + $0x348] sm:$0xff]
        %v457 = vld [vmem:[%s252 + $0x350] sm:$0xff]
        %v458 = vld [vmem:[%s252 + $0x358] sm:$0xff]
        %v459 = vld [vmem:[%s252 + $0x360] sm:$0xff]
        %v460 = vld [vmem:[%s252 + $0x368] sm:$0xff]
        %v461 = vld [vmem:[%s252 + $0x370] sm:$0xff]
        %v462 = vld [vmem:[%s252 + $0x378] sm:$0xff]
        %v463 = vld [vmem:[%s252 + $0x380] sm:$0xff]
        %v464 = vld [vmem:[%s252 + $0x388] sm:$0xff]
        %v465 = vld [vmem:[%s252 + $0x390] sm:$0xff]
        %v466 = vld [vmem:[%s252 + $0x398] sm:$0xff]
        %v467 = vld [vmem:[%s252 + $0x3a0] sm:$0xff]
        %v468 = vld [vmem:[%s252 + $0x3a8] sm:$0xff]
        %v469 = vld [vmem:[%s252 + $0x3b0] sm:$0xff]
        %v470 = vld [vmem:[%s252 + $0x3b8] sm:$0xff]
        %v471 = vld [vmem:[%s252 + $0x3c0] sm:$0xff]
        %v472 = vld [vmem:[%s252 + $0x3c8] sm:$0xff]
        %v473 = vld [vmem:[%s252 + $0x3d0] sm:$0xff]
        %v474 = vld [vmem:[%s252 + $0x3d8] sm:$0xff]
        %v475 = vld [vmem:[%s252 + $0x3e0] sm:$0xff]
        %v476 = vld [vmem:[%s252 + $0x3e8] sm:$0xff]
        %v477 = vld [vmem:[%s252 + $0x3f0] sm:$0xff]
        %v478 = vld [vmem:[%s252 + $0x3f8] sm:$0xff]
        %v479 = vld [vmem:[%s252 + $0x400] sm:$0xff]
        %v480 = vld [vmem:[%s252 + $0x408] sm:$0xff]
        %v481 = vld [vmem:[%s252 + $0x410] sm:$0xff]
        %v482 = vld [vmem:[%s252 + $0x418] sm:$0xff]
        %v483 = vld [vmem:[%s252 + $0x420] sm:$0xff]
        %v484 = vld [vmem:[%s252 + $0x428] sm:$0xff]
        %v485 = vld [vmem:[%s252 + $0x430] sm:$0xff]
        %v486 = vld [vmem:[%s252 + $0x438] sm:$0xff]
        %v487 = vld [vmem:[%s252 + $0x440] sm:$0xff]
        %v488 = vld [vmem:[%s252 + $0x448] sm:$0xff]
        %v489 = vld [vmem:[%s252 + $0x450] sm:$0xff]
        %v490 = vld [vmem:[%s252 + $0x458] sm:$0xff]
        %v491 = vld [vmem:[%s252 + $0x460] sm:$0xff]
        %v492 = vld [vmem:[%s252 + $0x468] sm:$0xff]
        %v493 = vld [vmem:[%s252 + $0x470] sm:$0xff]
        %v494 = vld [vmem:[%s252 + $0x478] sm:$0xff]
        %v495 = vld [vmem:[%s252 + $0x480] sm:$0xff]
        %v496 = vld [vmem:[%s252 + $0x488] sm:$0xff]
        %v497 = vld [vmem:[%s252 + $0x490] sm:$0xff]
        %v498 = vld [vmem:[%s252 + $0x498] sm:$0xff]
        %v499 = vld [vmem:[%s252 + $0x4a0] sm:$0xff]
        %v500 = vld [vmem:[%s252 + $0x4a8] sm:$0xff]
        %v501 = vld [vmem:[%s252 + $0x4b0] sm:$0xff]
        %v502 = vld [vmem:[%s252 + $0x4b8] sm:$0xff]
        %v503 = vld [vmem:[%s252 + $0x4c0] sm:$0xff]
        %v504 = vld [vmem:[%s252 + $0x4c8] sm:$0xff]
        %v505 = vld [vmem:[%s252 + $0x4d0] sm:$0xff]
        %v506 = vld [vmem:[%s252 + $0x4d8] sm:$0xff]
        %v507 = vld [vmem:[%s252 + $0x4e0] sm:$0xff]
        %v508 = vld [vmem:[%s252 + $0x4e8] sm:$0xff]
        %v509 = vld [vmem:[%s252 + $0x4f0] sm:$0xff]
        %v510 = vld [vmem:[%s252 + $0x4f8] sm:$0xff]
        %v511 = vld [vmem:[%s252 + $0x500] sm:$0xff]
        %v512 = vld [vmem:[%s252 + $0x508] sm:$0xff]
        %v513 = vld [vmem:[%s252 + $0x510] sm:$0xff]
        %v514 = vld [vmem:[%s252 + $0x518] sm:$0xff]
        %v515 = vld [vmem:[%s252 + $0x520] sm:$0xff]
        %v516 = vld [vmem:[%s252 + $0x528] sm:$0xff]
        %v517 = vld [vmem:[%s252 + $0x530] sm:$0xff]
        %v518 = vld [vmem:[%s252 + $0x538] sm:$0xff]
        %v519 = vld [vmem:[%s252 + $0x540] sm:$0xff]
        %v520 = vld [vmem:[%s252 + $0x548] sm:$0xff]
        %v521 = vld [vmem:[%s252 + $0x550] sm:$0xff]
        %v522 = vld [vmem:[%s252 + $0x558] sm:$0xff]
        %v523 = vld [vmem:[%s252 + $0x560] sm:$0xff]
        %v524 = vld [vmem:[%s252 + $0x568] sm:$0xff]
        %v525 = vld [vmem:[%s252 + $0x570] sm:$0xff]
        %v526 = vld [vmem:[%s252 + $0x578] sm:$0xff]
        %v527 = vld [vmem:[%s252 + $0x580] sm:$0xff]
        %v528 = vld [vmem:[%s252 + $0x588] sm:$0xff]
        %v529 = vld [vmem:[%s252 + $0x590] sm:$0xff]
        %v530 = vld [vmem:[%s252 + $0x598] sm:$0xff]
        %v531 = vld [vmem:[%s252 + $0x5a0] sm:$0xff]
        %v532 = vld [vmem:[%s252 + $0x5a8] sm:$0xff]
        %v533 = vld [vmem:[%s252 + $0x5b0] sm:$0xff]
        %v534 = vld [vmem:[%s252 + $0x5b8] sm:$0xff]
        %v535 = vld [vmem:[%s252 + $0x5c0] sm:$0xff]
        %v536 = vld [vmem:[%s252 + $0x5c8] sm:$0xff]
        %v537 = vld [vmem:[%s252 + $0x5d0] sm:$0xff]
        %v538 = vld [vmem:[%s252 + $0x5d8] sm:$0xff]
        %v539 = vld [vmem:[%s252 + $0x5e0] sm:$0xff]
        %v540 = vld [vmem:[%s252 + $0x5e8] sm:$0xff]
        %v541 = vld [vmem:[%s252 + $0x5f0] sm:$0xff]
        %v542 = vld [vmem:[%s252 + $0x5f8] sm:$0xff]
        %v543 = vld [vmem:[%s252 + $0x600] sm:$0xff]
        %v544 = vld [vmem:[%s252 + $0x608] sm:$0xff]
        %v545 = vld [vmem:[%s252 + $0x610] sm:$0xff]
        %v546 = vld [vmem:[%s252 + $0x618] sm:$0xff]
        %v547 = vld [vmem:[%s252 + $0x620] sm:$0xff]
        %v548 = vld [vmem:[%s252 + $0x628] sm:$0xff]
        %v549 = vld [vmem:[%s252 + $0x630] sm:$0xff]
        %v550 = vld [vmem:[%s252 + $0x638] sm:$0xff]
        %v551 = vld [vmem:[%s252 + $0x640] sm:$0xff]
        %v552 = vld [vmem:[%s252 + $0x648] sm:$0xff]
        %v553 = vld [vmem:[%s252 + $0x650] sm:$0xff]
        %v554 = vld [vmem:[%s252 + $0x658] sm:$0xff]
        %v555 = vld [vmem:[%s252 + $0x660] sm:$0xff]
        %v556 = vld [vmem:[%s252 + $0x668] sm:$0xff]
        %v557 = vld [vmem:[%s252 + $0x670] sm:$0xff]
        %v558 = vld [vmem:[%s252 + $0x678] sm:$0xff]
        %v559 = vld [vmem:[%s252 + $0x680] sm:$0xff]
        %v560 = vld [vmem:[%s252 + $0x688] sm:$0xff]
        %v561 = vld [vmem:[%s252 + $0x690] sm:$0xff]
        %v562 = vld [vmem:[%s252 + $0x698] sm:$0xff]
        %v563 = vld [vmem:[%s252 + $0x6a0] sm:$0xff]
        %v564 = vld [vmem:[%s252 + $0x6a8] sm:$0xff]
        %v565 = vld [vmem:[%s252 + $0x6b0] sm:$0xff]
        %v566 = vld [vmem:[%s252 + $0x6b8] sm:$0xff]
        %v567 = vld [vmem:[%s252 + $0x6c0] sm:$0xff]
        %v568 = vld [vmem:[%s252 + $0x6c8] sm:$0xff]
        %v569 = vld [vmem:[%s252 + $0x6d0] sm:$0xff]
        %v570 = vld [vmem:[%s252 + $0x6d8] sm:$0xff]
        %v571 = vld [vmem:[%s252 + $0x6e0] sm:$0xff]
        %v572 = vld [vmem:[%s252 + $0x6e8] sm:$0xff]
        %v573 = vld [vmem:[%s252 + $0x6f0] sm:$0xff]
        %v574 = vld [vmem:[%s252 + $0x6f8] sm:$0xff]
        %v575 = vld [vmem:[%s252 + $0x700] sm:$0xff]
        %v576 = vld [vmem:[%s252 + $0x708] sm:$0xff]
        %v577 = vld [vmem:[%s252 + $0x710] sm:$0xff]
        %v578 = vld [vmem:[%s252 + $0x718] sm:$0xff]
        %v579 = vld [vmem:[%s252 + $0x720] sm:$0xff]
        %v580 = vld [vmem:[%s252 + $0x728] sm:$0xff]
        %v581 = vld [vmem:[%s252 + $0x730] sm:$0xff]
        %v582 = vld [vmem:[%s252 + $0x738] sm:$0xff]
        %v583 = vld [vmem:[%s252 + $0x740] sm:$0xff]
        %v584 = vld [vmem:[%s252 + $0x748] sm:$0xff]
        %v585 = vld [vmem:[%s252 + $0x750] sm:$0xff]
        %v586 = vld [vmem:[%s252 + $0x758] sm:$0xff]
        %v587 = vld [vmem:[%s252 + $0x760] sm:$0xff]
        %v588 = vld [vmem:[%s252 + $0x768] sm:$0xff]
        %v589 = vld [vmem:[%s252 + $0x770] sm:$0xff]
        %v590 = vld [vmem:[%s252 + $0x778] sm:$0xff]
        %v591 = vld [vmem:[%s252 + $0x780] sm:$0xff]
        %v592 = vld [vmem:[%s252 + $0x788] sm:$0xff]
        %v593 = vld [vmem:[%s252 + $0x790] sm:$0xff]
        %v594 = vld [vmem:[%s252 + $0x798] sm:$0xff]
        %v595 = vld [vmem:[%s252 + $0x7a0] sm:$0xff]
        %v596 = vld [vmem:[%s252 + $0x7a8] sm:$0xff]
        %v597 = vld [vmem:[%s252 + $0x7b0] sm:$0xff]
        %v598 = vld [vmem:[%s252 + $0x7b8] sm:$0xff]
        %v599 = vld [vmem:[%s252 + $0x7c0] sm:$0xff]
        %v600 = vld [vmem:[%s252 + $0x7c8] sm:$0xff]
        %v601 = vld [vmem:[%s252 + $0x7d0] sm:$0xff]
        %v602 = vld [vmem:[%s252 + $0x7d8] sm:$0xff]
        %v603 = vld [vmem:[%s252 + $0x7e0] sm:$0xff]
        %v604 = vld [vmem:[%s252 + $0x7e8] sm:$0xff]
        %v605 = vld [vmem:[%s252 + $0x7f0] sm:$0xff]
        %v606 = vld [vmem:[%s252 + $0x7f8] sm:$0xff]
        %v607 = vld [vmem:[%s252 + $0x800] sm:$0xff]
        %v608 = vld [vmem:[%s252 + $0x808] sm:$0xff]
        %v609 = vld [vmem:[%s252 + $0x810] sm:$0xff]
        %v610 = vld [vmem:[%s252 + $0x818] sm:$0xff]
        %v611 = vld [vmem:[%s252 + $0x820] sm:$0xff]
        %v612 = vld [vmem:[%s252 + $0x828] sm:$0xff]
        %v613 = vld [vmem:[%s252 + $0x830] sm:$0xff]
        %v614 = vld [vmem:[%s252 + $0x838] sm:$0xff]
        %v615 = vld [vmem:[%s252 + $0x840] sm:$0xff]
        %v616 = vld [vmem:[%s252 + $0x848] sm:$0xff]
        %v617 = vld [vmem:[%s252 + $0x850] sm:$0xff]
        %v618 = vld [vmem:[%s252 + $0x858] sm:$0xff]
        %v619 = vld [vmem:[%s252 + $0x860] sm:$0xff]
        %v620 = vld [vmem:[%s252 + $0x868] sm:$0xff]
        %v621 = vld [vmem:[%s252 + $0x870] sm:$0xff]
        %v622 = vld [vmem:[%s252 + $0x878] sm:$0xff]
        %v623 = vld [vmem:[%s252 + $0x880] sm:$0xff]
        %v624 = vld [vmem:[%s252 + $0x888] sm:$0xff]
        %v625 = vld [vmem:[%s252 + $0x890] sm:$0xff]
        %v626 = vld [vmem:[%s252 + $0x898] sm:$0xff]
        %v627 = vld [vmem:[%s252 + $0x8a0] sm:$0xff]
        %v628 = vld [vmem:[%s252 + $0x8a8] sm:$0xff]
        %v629 = vld [vmem:[%s252 + $0x8b0] sm:$0xff]
        %v630 = vld [vmem:[%s252 + $0x8b8] sm:$0xff]
        %v631 = vld [vmem:[%s252 + $0x8c0] sm:$0xff]
        %v632 = vld [vmem:[%s252 + $0x8c8] sm:$0xff]
        %v633 = vld [vmem:[%s252 + $0x8d0] sm:$0xff]
        %v634 = vld [vmem:[%s252 + $0x8d8] sm:$0xff]
        %v635 = vld [vmem:[%s252 + $0x8e0] sm:$0xff]
        %v636 = vld [vmem:[%s252 + $0x8e8] sm:$0xff]
        %v637 = vld [vmem:[%s252 + $0x8f0] sm:$0xff]
        %v638 = vld [vmem:[%s252 + $0x8f8] sm:$0xff]
        %v639 = vld [vmem:[%s252 + $0x900] sm:$0xff]
        %v640 = vld [vmem:[%s252 + $0x908] sm:$0xff]
        %v641 = vld [vmem:[%s252 + $0x910] sm:$0xff]
        %v642 = vld [vmem:[%s252 + $0x918] sm:$0xff]
        %v643 = vld [vmem:[%s252 + $0x920] sm:$0xff]
        %v644 = vld [vmem:[%s252 + $0x928] sm:$0xff]
        %v645 = vld [vmem:[%s252 + $0x930] sm:$0xff]
        %v646 = vld [vmem:[%s252 + $0x938] sm:$0xff]
        %v647 = vld [vmem:[%s252 + $0x940] sm:$0xff]
        %v648 = vld [vmem:[%s252 + $0x948] sm:$0xff]
        %v649 = vld [vmem:[%s252 + $0x950] sm:$0xff]
        %v650 = vld [vmem:[%s252 + $0x958] sm:$0xff]
        %v651 = vld [vmem:[%s252 + $0x960] sm:$0xff]
        %v652 = vld [vmem:[%s252 + $0x968] sm:$0xff]
        %v653 = vld [vmem:[%s252 + $0x970] sm:$0xff]
        %v654 = vld [vmem:[%s252 + $0x978] sm:$0xff]
        %v655 = vld [vmem:[%s252 + $0x980] sm:$0xff]
        %v656 = vld [vmem:[%s252 + $0x988] sm:$0xff]
        %v657 = vld [vmem:[%s252 + $0x990] sm:$0xff]
        %v658 = vld [vmem:[%s252 + $0x998] sm:$0xff]
        %v659 = vld [vmem:[%s252 + $0x9a0] sm:$0xff]
        %v660 = vld [vmem:[%s252 + $0x9a8] sm:$0xff]
        %v661 = vld [vmem:[%s252 + $0x9b0] sm:$0xff]
        %v662 = vld [vmem:[%s252 + $0x9b8] sm:$0xff]
        %v663 = vld [vmem:[%s252 + $0x9c0] sm:$0xff]
        %v664 = vld [vmem:[%s252 + $0x9c8] sm:$0xff]
        %v665 = vld [vmem:[%s252 + $0x9d0] sm:$0xff]
        %v666 = vld [vmem:[%s252 + $0x9d8] sm:$0xff]
        %v667 = vld [vmem:[%s252 + $0x9e0] sm:$0xff]
        %v668 = vld [vmem:[%s252 + $0x9e8] sm:$0xff]
        %v669 = vld [vmem:[%s252 + $0x9f0] sm:$0xff]
        %v670 = vld [vmem:[%s252 + $0x9f8] sm:$0xff]
        %v671 = vld [vmem:[%s252 + $0xa00] sm:$0xff]
        %v672 = vld [vmem:[%s252 + $0xa08] sm:$0xff]
        %v673 = vld [vmem:[%s252 + $0xa10] sm:$0xff]
        %v674 = vld [vmem:[%s252 + $0xa18] sm:$0xff]
        %v675 = vld [vmem:[%s252 + $0xa20] sm:$0xff]
        %v676 = vld [vmem:[%s252 + $0xa28] sm:$0xff]
        %v677 = vld [vmem:[%s252 + $0xa30] sm:$0xff]
        %v678 = vld [vmem:[%s252 + $0xa38] sm:$0xff]
        %v679 = vld [vmem:[%s252 + $0xa40] sm:$0xff]
        %v680 = vld [vmem:[%s252 + $0xa48] sm:$0xff]
        %v681 = vld [vmem:[%s252 + $0xa50] sm:$0xff]
        %v682 = vld [vmem:[%s252 + $0xa58] sm:$0xff]
        %v683 = vld [vmem:[%s252 + $0xa60] sm:$0xff]
        %v684 = vld [vmem:[%s252 + $0xa68] sm:$0xff]
        %v685 = vld [vmem:[%s252 + $0xa70] sm:$0xff]
        %v686 = vld [vmem:[%s252 + $0xa78] sm:$0xff]
        %v687 = vld [vmem:[%s252 + $0xa80] sm:$0xff]
        %v688 = vld [vmem:[%s252 + $0xa88] sm:$0xff]
        %v689 = vld [vmem:[%s252 + $0xa90] sm:$0xff]
        %v690 = vld [vmem:[%s252 + $0xa98] sm:$0xff]
        %v691 = vld [vmem:[%s252 + $0xaa0] sm:$0xff]
        %v692 = vld [vmem:[%s252 + $0xaa8] sm:$0xff]
        %v693 = vld [vmem:[%s252 + $0xab0] sm:$0xff]
        %v694 = vld [vmem:[%s252 + $0xab8] sm:$0xff]
        %v695 = vld [vmem:[%s252 + $0xac0] sm:$0xff]
        %v696 = vld [vmem:[%s252 + $0xac8] sm:$0xff]
        %v697 = vld [vmem:[%s252 + $0xad0] sm:$0xff]
        %v698 = vld [vmem:[%s252 + $0xad8] sm:$0xff]
        %v699 = vld [vmem:[%s252 + $0xae0] sm:$0xff]
        %v700 = vld [vmem:[%s252 + $0xae8] sm:$0xff]
        %v701 = vld [vmem:[%s252 + $0xaf0] sm:$0xff]
        %v702 = vld [vmem:[%s252 + $0xaf8] sm:$0xff]
        %v703 = vld [vmem:[%s252 + $0xb00] sm:$0xff]
        %v704 = vld [vmem:[%s252 + $0xb08] sm:$0xff]
        %v705 = vld [vmem:[%s252 + $0xb10] sm:$0xff]
        %v706 = vld [vmem:[%s252 + $0xb18] sm:$0xff]
        %v707 = vld [vmem:[%s252 + $0xb20] sm:$0xff]
        %v708 = vld [vmem:[%s252 + $0xb28] sm:$0xff]
        %v709 = vld [vmem:[%s252 + $0xb30] sm:$0xff]
        %v710 = vld [vmem:[%s252 + $0xb38] sm:$0xff]
        %v711 = vld [vmem:[%s252 + $0xb40] sm:$0xff]
        %v712 = vld [vmem:[%s252 + $0xb48] sm:$0xff]
        %v713 = vld [vmem:[%s252 + $0xb50] sm:$0xff]
        %v714 = vld [vmem:[%s252 + $0xb58] sm:$0xff]
        %v715 = vld [vmem:[%s252 + $0xb60] sm:$0xff]
        %v716 = vld [vmem:[%s252 + $0xb68] sm:$0xff]
        %v717 = vld [vmem:[%s252 + $0xb70] sm:$0xff]
        %v718 = vld [vmem:[%s252 + $0xb78] sm:$0xff]
        %v719 = vld [vmem:[%s252 + $0xb80] sm:$0xff]
        %v720 = vld [vmem:[%s252 + $0xb88] sm:$0xff]
        %v721 = vld [vmem:[%s252 + $0xb90] sm:$0xff]
        %v722 = vld [vmem:[%s252 + $0xb98] sm:$0xff]
        %v723 = vld [vmem:[%s252 + $0xba0] sm:$0xff]
        %v724 = vld [vmem:[%s252 + $0xba8] sm:$0xff]
        %v725 = vld [vmem:[%s252 + $0xbb0] sm:$0xff]
        %v726 = vld [vmem:[%s252 + $0xbb8] sm:$0xff]
        %v727 = vld [vmem:[%s252 + $0xbc0] sm:$0xff]
        %v728 = vld [vmem:[%s252 + $0xbc8] sm:$0xff]
        %v729 = vld [vmem:[%s252 + $0xbd0] sm:$0xff]
        %v730 = vld [vmem:[%s252 + $0xbd8] sm:$0xff]
        %v731 = vld [vmem:[%s252 + $0xbe0] sm:$0xff]
        %v732 = vld [vmem:[%s252 + $0xbe8] sm:$0xff]
        %v733 = vld [vmem:[%s252 + $0xbf0] sm:$0xff]
        %v734 = vld [vmem:[%s252 + $0xbf8] sm:$0xff]
        %v735 = vld [vmem:[%s252 + $0xc00] sm:$0xff]
        %v736 = vld [vmem:[%s252 + $0xc08] sm:$0xff]
        %v737 = vld [vmem:[%s252 + $0xc10] sm:$0xff]
        %v738 = vld [vmem:[%s252 + $0xc18] sm:$0xff]
        %v739 = vld [vmem:[%s252 + $0xc20] sm:$0xff]
        %v740 = vld [vmem:[%s252 + $0xc28] sm:$0xff]
        %v741 = vld [vmem:[%s252 + $0xc30] sm:$0xff]
        %v742 = vld [vmem:[%s252 + $0xc38] sm:$0xff]
        %v743 = vld [vmem:[%s252 + $0xc40] sm:$0xff]
        %v744 = vld [vmem:[%s252 + $0xc48] sm:$0xff]
        %v745 = vld [vmem:[%s252 + $0xc50] sm:$0xff]
        %v746 = vld [vmem:[%s252 + $0xc58] sm:$0xff]
        %v747 = vld [vmem:[%s252 + $0xc60] sm:$0xff]
        %v748 = vld [vmem:[%s252 + $0xc68] sm:$0xff]
        %v749 = vld [vmem:[%s252 + $0xc70] sm:$0xff]
        %v750 = vld [vmem:[%s252 + $0xc78] sm:$0xff]
        %v751 = vld [vmem:[%s252 + $0xc80] sm:$0xff]
        %v752 = vld [vmem:[%s252 + $0xc88] sm:$0xff]
        %v753 = vld [vmem:[%s252 + $0xc90] sm:$0xff]
        %v754 = vld [vmem:[%s252 + $0xc98] sm:$0xff]
        %v755 = vld [vmem:[%s252 + $0xca0] sm:$0xff]
        %v756 = vld [vmem:[%s252 + $0xca8] sm:$0xff]
        %v757 = vld [vmem:[%s252 + $0xcb0] sm:$0xff]
        %v758 = vld [vmem:[%s252 + $0xcb8] sm:$0xff]
        %v759 = vld [vmem:[%s252 + $0xcc0] sm:$0xff]
        %v760 = vld [vmem:[%s252 + $0xcc8] sm:$0xff]
        %v761 = vld [vmem:[%s252 + $0xcd0] sm:$0xff]
        %v762 = vld [vmem:[%s252 + $0xcd8] sm:$0xff]
        %v763 = vld [vmem:[%s252 + $0xce0] sm:$0xff]
        %v764 = vld [vmem:[%s252 + $0xce8] sm:$0xff]
        %v765 = vld [vmem:[%s252 + $0xcf0] sm:$0xff]
        %v766 = vld [vmem:[%s252 + $0xcf8] sm:$0xff]
        %v767 = vld [vmem:[%s252 + $0xd00] sm:$0xff]
        %v768 = vld [vmem:[%s252 + $0xd08] sm:$0xff]
        %v769 = vld [vmem:[%s252 + $0xd10] sm:$0xff]
        %v770 = vld [vmem:[%s252 + $0xd18] sm:$0xff]
        %v771 = vld [vmem:[%s252 + $0xd20] sm:$0xff]
        %v772 = vld [vmem:[%s252 + $0xd28] sm:$0xff]
        %v773 = vld [vmem:[%s252 + $0xd30] sm:$0xff]
        %v774 = vld [vmem:[%s252 + $0xd38] sm:$0xff]
        %v775 = vld [vmem:[%s252 + $0xd40] sm:$0xff]
        %v776 = vld [vmem:[%s252 + $0xd48] sm:$0xff]
        %v777 = vld [vmem:[%s252 + $0xd50] sm:$0xff]
        %v778 = vld [vmem:[%s252 + $0xd58] sm:$0xff]
        %v779 = vld [vmem:[%s252 + $0xd60] sm:$0xff]
        %v780 = vld [vmem:[%s252 + $0xd68] sm:$0xff]
        %v781 = vld [vmem:[%s252 + $0xd70] sm:$0xff]
        %v782 = vld [vmem:[%s252 + $0xd78] sm:$0xff]
        %v783 = vld [vmem:[%s252 + $0xd80] sm:$0xff]
        %v784 = vld [vmem:[%s252 + $0xd88] sm:$0xff]
        %v785 = vld [vmem:[%s252 + $0xd90] sm:$0xff]
        %v786 = vld [vmem:[%s252 + $0xd98] sm:$0xff]
        %v787 = vld [vmem:[%s252 + $0xda0] sm:$0xff]
        %v788 = vld [vmem:[%s252 + $0xda8] sm:$0xff]
        %v789 = vld [vmem:[%s252 + $0xdb0] sm:$0xff]
        %v790 = vld [vmem:[%s252 + $0xdb8] sm:$0xff]
        %v791 = vld [vmem:[%s252 + $0xdc0] sm:$0xff]
        %v792 = vld [vmem:[%s252 + $0xdc8] sm:$0xff]
        %v793 = vld [vmem:[%s252 + $0xdd0] sm:$0xff]
        %v794 = vld [vmem:[%s252 + $0xdd8] sm:$0xff]
        %v795 = vld [vmem:[%s252 + $0xde0] sm:$0xff]
        %v796 = vld [vmem:[%s252 + $0xde8] sm:$0xff]
        %v797 = vld [vmem:[%s252 + $0xdf0] sm:$0xff]
        %v798 = vld [vmem:[%s252 + $0xdf8] sm:$0xff]
        %v799 = vld [vmem:[%s252 + $0xe00] sm:$0xff]
        %v800 = vld [vmem:[%s252 + $0xe08] sm:$0xff]
        %v801 = vld [vmem:[%s252 + $0xe10] sm:$0xff]
        %v802 = vld [vmem:[%s252 + $0xe18] sm:$0xff]
        %v803 = vld [vmem:[%s252 + $0xe20] sm:$0xff]
        %v804 = vld [vmem:[%s252 + $0xe28] sm:$0xff]
        %v805 = vld [vmem:[%s252 + $0xe30] sm:$0xff]
        %v806 = vld [vmem:[%s252 + $0xe38] sm:$0xff]
        %v807 = vld [vmem:[%s252 + $0xe40] sm:$0xff]
        %v808 = vld [vmem:[%s252 + $0xe48] sm:$0xff]
        %v809 = vld [vmem:[%s252 + $0xe50] sm:$0xff]
        %v810 = vld [vmem:[%s252 + $0xe58] sm:$0xff]
        %v811 = vld [vmem:[%s252 + $0xe60] sm:$0xff]
        %v812 = vld [vmem:[%s252 + $0xe68] sm:$0xff]
        %v813 = vld [vmem:[%s252 + $0xe70] sm:$0xff]
        %v814 = vld [vmem:[%s252 + $0xe78] sm:$0xff]
        %v815 = vld [vmem:[%s252 + $0xe80] sm:$0xff]
        %v816 = vld [vmem:[%s252 + $0xe88] sm:$0xff]
        %v817 = vld [vmem:[%s252 + $0xe90] sm:$0xff]
        %v818 = vld [vmem:[%s252 + $0xe98] sm:$0xff]
        %v819 = vld [vmem:[%s252 + $0xea0] sm:$0xff]
        %v820 = vld [vmem:[%s252 + $0xea8] sm:$0xff]
        %v821 = vld [vmem:[%s252 + $0xeb0] sm:$0xff]
        %v822 = vld [vmem:[%s252 + $0xeb8] sm:$0xff]
        %v823 = vld [vmem:[%s252 + $0xec0] sm:$0xff]
        %v824 = vld [vmem:[%s252 + $0xec8] sm:$0xff]
        %v825 = vld [vmem:[%s252 + $0xed0] sm:$0xff]
        %v826 = vld [vmem:[%s252 + $0xed8] sm:$0xff]
        %v827 = vld [vmem:[%s252 + $0xee0] sm:$0xff]
        %v828 = vld [vmem:[%s252 + $0xee8] sm:$0xff]
        %v829 = vld [vmem:[%s252 + $0xef0] sm:$0xff]
        %v830 = vld [vmem:[%s252 + $0xef8] sm:$0xff]
        %v831 = vld [vmem:[%s252 + $0xf00] sm:$0xff]
        %v832 = vld [vmem:[%s252 + $0xf08] sm:$0xff]
        %v833 = vld [vmem:[%s252 + $0xf10] sm:$0xff]
        %v834 = vld [vmem:[%s252 + $0xf18] sm:$0xff]
        %v835 = vld [vmem:[%s252 + $0xf20] sm:$0xff]
        %v836 = vld [vmem:[%s252 + $0xf28] sm:$0xff]
        %v837 = vld [vmem:[%s252 + $0xf30] sm:$0xff]
        %v838 = vld [vmem:[%s252 + $0xf38] sm:$0xff]
        %v839 = vld [vmem:[%s252 + $0xf40] sm:$0xff]
        %v840 = vld [vmem:[%s252 + $0xf48] sm:$0xff]
        %v841 = vld [vmem:[%s252 + $0xf50] sm:$0xff]
        %v842 = vld [vmem:[%s252 + $0xf58] sm:$0xff]
        %v843 = vld [vmem:[%s252 + $0xf60] sm:$0xff]
        %v844 = vld [vmem:[%s252 + $0xf68] sm:$0xff]
        %v845 = vld [vmem:[%s252 + $0xf70] sm:$0xff]
        %v846 = vld [vmem:[%s252 + $0xf78] sm:$0xff]
        %v847 = vld [vmem:[%s252 + $0xf80] sm:$0xff]
        %v848 = vld [vmem:[%s252 + $0xf88] sm:$0xff]
        %v849 = vld [vmem:[%s252 + $0xf90] sm:$0xff]
        %v850 = vld [vmem:[%s252 + $0xf98] sm:$0xff]
        %v851 = vld [vmem:[%s252 + $0xfa0] sm:$0xff]
        %v852 = vld [vmem:[%s252 + $0xfa8] sm:$0xff]
        %v853 = vld [vmem:[%s252 + $0xfb0] sm:$0xff]
        %v854 = vld [vmem:[%s252 + $0xfb8] sm:$0xff]
        %v855 = vld [vmem:[%s252 + $0xfc0] sm:$0xff]
        %v856 = vld [vmem:[%s252 + $0xfc8] sm:$0xff]
        %v857 = vld [vmem:[%s252 + $0xfd0] sm:$0xff]
        %v858 = vld [vmem:[%s252 + $0xfd8] sm:$0xff]
        %v859 = vld [vmem:[%s252 + $0xfe0] sm:$0xff]
        %v860 = vld [vmem:[%s252 + $0xfe8] sm:$0xff]
        %v861 = vld [vmem:[%s252 + $0xff0] sm:$0xff]
        %v862 = vld [vmem:[%s252 + $0xff8] sm:$0xff]
        %v863 = vld [vmem:[%s252 + $0x1000] sm:$0xff]
        %v864 = vld [vmem:[%s252 + $0x1008] sm:$0xff]
        %v865 = vld [vmem:[%s252 + $0x1010] sm:$0xff]
        %v866 = vld [vmem:[%s252 + $0x1018] sm:$0xff]
        %v867 = vld [vmem:[%s252 + $0x1020] sm:$0xff]
        %v868 = vld [vmem:[%s252 + $0x1028] sm:$0xff]
        %v869 = vld [vmem:[%s252 + $0x1030] sm:$0xff]
        %v870 = vld [vmem:[%s252 + $0x1038] sm:$0xff]
        %v871 = vld [vmem:[%s252 + $0x1040] sm:$0xff]
        %v872 = vld [vmem:[%s252 + $0x1048] sm:$0xff]
        %v873 = vld [vmem:[%s252 + $0x1050] sm:$0xff]
        %v874 = vld [vmem:[%s252 + $0x1058] sm:$0xff]
        %v875 = vld [vmem:[%s252 + $0x1060] sm:$0xff]
        %v876 = vld [vmem:[%s252 + $0x1068] sm:$0xff]
        %v877 = vld [vmem:[%s252 + $0x1070] sm:$0xff]
        %v878 = vld [vmem:[%s252 + $0x1078] sm:$0xff]
        %v879 = vld [vmem:[%s252 + $0x1080] sm:$0xff]
        %v880 = vld [vmem:[%s252 + $0x1088] sm:$0xff]
        %v881 = vld [vmem:[%s252 + $0x1090] sm:$0xff]
        %v882 = vld [vmem:[%s252 + $0x1098] sm:$0xff]
        %v883 = vld [vmem:[%s252 + $0x10a0] sm:$0xff]
        %v884 = vld [vmem:[%s252 + $0x10a8] sm:$0xff]
        %v885 = vld [vmem:[%s252 + $0x10b0] sm:$0xff]
        %v886 = vld [vmem:[%s252 + $0x10b8] sm:$0xff]
        %v887 = vld [vmem:[%s252 + $0x10c0] sm:$0xff]
        %v888 = vld [vmem:[%s252 + $0x10c8] sm:$0xff]
        %v889 = vld [vmem:[%s252 + $0x10d0] sm:$0xff]
        %v890 = vld [vmem:[%s252 + $0x10d8] sm:$0xff]
        %v891 = vld [vmem:[%s252 + $0x10e0] sm:$0xff]
        %v892 = vld [vmem:[%s252 + $0x10e8] sm:$0xff]
        %v893 = vld [vmem:[%s252 + $0x10f0] sm:$0xff]
        %v894 = vld [vmem:[%s252 + $0x10f8] sm:$0xff]
        %v895 = vld [vmem:[%s252 + $0x1100] sm:$0xff]
        %v896 = vld [vmem:[%s252 + $0x1108] sm:$0xff]
        %v897 = vld [vmem:[%s252 + $0x1110] sm:$0xff]
        %v898 = vld [vmem:[%s252 + $0x1118] sm:$0xff]
        %v899 = vld [vmem:[%s252 + $0x1120] sm:$0xff]
        %v900 = vld [vmem:[%s252 + $0x1128] sm:$0xff]
        %v901 = vld [vmem:[%s252 + $0x1130] sm:$0xff]
        %v902 = vld [vmem:[%s252 + $0x1138] sm:$0xff]
        %v903 = vld [vmem:[%s252 + $0x1140] sm:$0xff]
        %v904 = vld [vmem:[%s252 + $0x1148] sm:$0xff]
        %v905 = vld [vmem:[%s252 + $0x1150] sm:$0xff]
        %v906 = vld [vmem:[%s252 + $0x1158] sm:$0xff]
        %v907 = vld [vmem:[%s252 + $0x1160] sm:$0xff]
        %v908 = vld [vmem:[%s252 + $0x1168] sm:$0xff]
        %v909 = vld [vmem:[%s252 + $0x1170] sm:$0xff]
        %v910 = vld [vmem:[%s252 + $0x1178] sm:$0xff]
        %v911 = vld [vmem:[%s252 + $0x1180] sm:$0xff]
        %v912 = vld [vmem:[%s252 + $0x1188] sm:$0xff]
        %v913 = vld [vmem:[%s252 + $0x1190] sm:$0xff]
        %v914 = vld [vmem:[%s252 + $0x1198] sm:$0xff]
        %v915 = vld [vmem:[%s252 + $0x11a0] sm:$0xff]
        %v916 = vld [vmem:[%s252 + $0x11a8] sm:$0xff]
        %v917 = vld [vmem:[%s252 + $0x11b0] sm:$0xff]
        %v918 = vld [vmem:[%s252 + $0x11b8] sm:$0xff]
        %v919 = vld [vmem:[%s252 + $0x11c0] sm:$0xff]
        %v920 = vld [vmem:[%s252 + $0x11c8] sm:$0xff]
        %v921 = vld [vmem:[%s252 + $0x11d0] sm:$0xff]
        %v922 = vld [vmem:[%s252 + $0x11d8] sm:$0xff]
        %v923 = vld [vmem:[%s252 + $0x11e0] sm:$0xff]
        %v924 = vld [vmem:[%s252 + $0x11e8] sm:$0xff]
        %v925 = vld [vmem:[%s252 + $0x11f0] sm:$0xff]
        %v926 = vld [vmem:[%s252 + $0x11f8] sm:$0xff]
        %v927 = vld [vmem:[%s252 + $0x1200] sm:$0xff]
        %v928 = vld [vmem:[%s252 + $0x1208] sm:$0xff]
        %v929 = vld [vmem:[%s252 + $0x1210] sm:$0xff]
        %v930 = vld [vmem:[%s252 + $0x1218] sm:$0xff]
        %v931 = vld [vmem:[%s252 + $0x1220] sm:$0xff]
        %v932 = vld [vmem:[%s252 + $0x1228] sm:$0xff]
        %v933 = vld [vmem:[%s252 + $0x1230] sm:$0xff]
        %v934 = vld [vmem:[%s252 + $0x1238] sm:$0xff]
        %v935 = vld [vmem:[%s252 + $0x1240] sm:$0xff]
        %v936 = vld [vmem:[%s252 + $0x1248] sm:$0xff]
        %v937 = vld [vmem:[%s252 + $0x1250] sm:$0xff]
        %v938 = vld [vmem:[%s252 + $0x1258] sm:$0xff]
        %v939 = vld [vmem:[%s252 + $0x1260] sm:$0xff]
        %v940 = vld [vmem:[%s252 + $0x1268] sm:$0xff]
        %v941 = vld [vmem:[%s252 + $0x1270] sm:$0xff]
        %v942 = vld [vmem:[%s252 + $0x1278] sm:$0xff]
        %v943 = vld [vmem:[%s252 + $0x1280] sm:$0xff]
        %v944 = vld [vmem:[%s252 + $0x1288] sm:$0xff]
        %v945 = vld [vmem:[%s252 + $0x1290] sm:$0xff]
        %v946 = vld [vmem:[%s252 + $0x1298] sm:$0xff]
        %v947 = vld [vmem:[%s252 + $0x12a0] sm:$0xff]
        %v948 = vld [vmem:[%s252 + $0x12a8] sm:$0xff]
        %v949 = vld [vmem:[%s252 + $0x12b0] sm:$0xff]
        %v950 = vld [vmem:[%s252 + $0x12b8] sm:$0xff]
        %v951 = vld [vmem:[%s252 + $0x12c0] sm:$0xff]
        %v952 = vld [vmem:[%s252 + $0x12c8] sm:$0xff]
        %v953 = vld [vmem:[%s252 + $0x12d0] sm:$0xff]
        %v954 = vld [vmem:[%s252 + $0x12d8] sm:$0xff]
        %v955 = vld [vmem:[%s252 + $0x12e0] sm:$0xff]
        %v956 = vld [vmem:[%s252 + $0x12e8] sm:$0xff]
        %v957 = vld [vmem:[%s252 + $0x12f0] sm:$0xff]
        %v958 = vld [vmem:[%s252 + $0x12f8] sm:$0xff]
        %v959 = vld [vmem:[%s252 + $0x1300] sm:$0xff]
        %v960 = vld [vmem:[%s252 + $0x1308] sm:$0xff]
        %v961 = vld [vmem:[%s252 + $0x1310] sm:$0xff]
        %v962 = vld [vmem:[%s252 + $0x1318] sm:$0xff]
        %v963 = vld [vmem:[%s252 + $0x1320] sm:$0xff]
        %v964 = vld [vmem:[%s252 + $0x1328] sm:$0xff]
        %v965 = vld [vmem:[%s252 + $0x1330] sm:$0xff]
        %v966 = vld [vmem:[%s252 + $0x1338] sm:$0xff]
        %v967 = vld [vmem:[%s252 + $0x1340] sm:$0xff]
        %v968 = vld [vmem:[%s252 + $0x1348] sm:$0xff]
        %v969 = vld [vmem:[%s252 + $0x1350] sm:$0xff]
        %v970 = vld [vmem:[%s252 + $0x1358] sm:$0xff]
        %v971 = vld [vmem:[%s252 + $0x1360] sm:$0xff]
        %v972 = vld [vmem:[%s252 + $0x1368] sm:$0xff]
        %v973 = vld [vmem:[%s252 + $0x1370] sm:$0xff]
        %v974 = vld [vmem:[%s252 + $0x1378] sm:$0xff]
        %v975 = vld [vmem:[%s252 + $0x1380] sm:$0xff]
        %v976 = vld [vmem:[%s252 + $0x1388] sm:$0xff]
        %v977 = vld [vmem:[%s252 + $0x1390] sm:$0xff]
        %v978 = vld [vmem:[%s252 + $0x1398] sm:$0xff]
        %v979 = vld [vmem:[%s252 + $0x13a0] sm:$0xff]
        %v980 = vld [vmem:[%s252 + $0x13a8] sm:$0xff]
        %v981 = vld [vmem:[%s252 + $0x13b0] sm:$0xff]
        %v982 = vld [vmem:[%s252 + $0x13b8] sm:$0xff]
        %v983 = vld [vmem:[%s252 + $0x13c0] sm:$0xff]
        %v984 = vld [vmem:[%s252 + $0x13c8] sm:$0xff]
        %v985 = vld [vmem:[%s252 + $0x13d0] sm:$0xff]
        %v986 = vld [vmem:[%s252 + $0x13d8] sm:$0xff]
        %v987 = vld [vmem:[%s252 + $0x13e0] sm:$0xff]
        %v988 = vld [vmem:[%s252 + $0x13e8] sm:$0xff]
        %v989 = vld [vmem:[%s252 + $0x13f0] sm:$0xff]
        %v990 = vld [vmem:[%s252 + $0x13f8] sm:$0xff]
        %v991 = vld [vmem:[%s252 + $0x1400] sm:$0xff]
        %v992 = vld [vmem:[%s252 + $0x1408] sm:$0xff]
        %v993 = vld [vmem:[%s252 + $0x1410] sm:$0xff]
        %v994 = vld [vmem:[%s252 + $0x1418] sm:$0xff]
        %v995 = vld [vmem:[%s252 + $0x1420] sm:$0xff]
        %v996 = vld [vmem:[%s252 + $0x1428] sm:$0xff]
        %v997 = vld [vmem:[%s252 + $0x1430] sm:$0xff]
        %v998 = vld [vmem:[%s252 + $0x1438] sm:$0xff]
        %v999 = vld [vmem:[%s252 + $0x1440] sm:$0xff]
        %v1000 = vld [vmem:[%s252 + $0x1448] sm:$0xff]
        %v1001 = vld [vmem:[%s252 + $0x1450] sm:$0xff]
        %v1002 = vld [vmem:[%s252 + $0x1458] sm:$0xff]
        %v1003 = vld [vmem:[%s252 + $0x1460] sm:$0xff]
        %v1004 = vld [vmem:[%s252 + $0x1468] sm:$0xff]
        %v1005 = vld [vmem:[%s252 + $0x1470] sm:$0xff]
        %v1006 = vld [vmem:[%s252 + $0x1478] sm:$0xff]
        %v1007 = vld [vmem:[%s252 + $0x1480] sm:$0xff]
        %v1008 = vld [vmem:[%s252 + $0x1488] sm:$0xff]
        %v1009 = vld [vmem:[%s252 + $0x1490] sm:$0xff]
        %v1010 = vld [vmem:[%s252 + $0x1498] sm:$0xff]
        %v1011 = vld [vmem:[%s252 + $0x14a0] sm:$0xff]
        %v1012 = vld [vmem:[%s252 + $0x14a8] sm:$0xff]
        %v1013 = vld [vmem:[%s252 + $0x14b0] sm:$0xff]
        %v1014 = vld [vmem:[%s252 + $0x14b8] sm:$0xff]
        %v1015 = vld [vmem:[%s252 + $0x14c0] sm:$0xff]
        %v1016 = vld [vmem:[%s252 + $0x14c8] sm:$0xff]
        %v1017 = vld [vmem:[%s252 + $0x14d0] sm:$0xff]
        %v1018 = vld [vmem:[%s252 + $0x14d8] sm:$0xff]
        %v1019 = vld [vmem:[%s252 + $0x14e0] sm:$0xff]
        %v1020 = vld [vmem:[%s252 + $0x14e8] sm:$0xff]
        %v1021 = vld [vmem:[%s252 + $0x14f0] sm:$0xff]
        %v1022 = vld [vmem:[%s252 + $0x14f8] sm:$0xff]
        %v1023 = vld [vmem:[%s252 + $0x1500] sm:$0xff]
        %v1024 = vld [vmem:[%s252 + $0x1508] sm:$0xff]
        %v1025 = vld [vmem:[%s252 + $0x1510] sm:$0xff]
        %v1026 = vld [vmem:[%s252 + $0x1518] sm:$0xff]
        %v1027 = vld [vmem:[%s252 + $0x1520] sm:$0xff]
        %v1028 = vld [vmem:[%s252 + $0x1528] sm:$0xff]
        %v1029 = vld [vmem:[%s252 + $0x1530] sm:$0xff]
        %v1030 = vld [vmem:[%s252 + $0x1538] sm:$0xff]
        %v1031 = vld [vmem:[%s252 + $0x1540] sm:$0xff]
        %v1032 = vld [vmem:[%s252 + $0x1548] sm:$0xff]
        %v1033 = vld [vmem:[%s252 + $0x1550] sm:$0xff]
        %v1034 = vld [vmem:[%s252 + $0x1558] sm:$0xff]
        %v1035 = vld [vmem:[%s252 + $0x1560] sm:$0xff]
        %v1036 = vld [vmem:[%s252 + $0x1568] sm:$0xff]
        %v1037 = vld [vmem:[%s252 + $0x1570] sm:$0xff]
        %v1038 = vld [vmem:[%s252 + $0x1578] sm:$0xff]
        %v1039 = vld [vmem:[%s252 + $0x1580] sm:$0xff]
        %v1040 = vld [vmem:[%s252 + $0x1588] sm:$0xff]
        %v1041 = vld [vmem:[%s252 + $0x1590] sm:$0xff]
        %v1042 = vld [vmem:[%s252 + $0x1598] sm:$0xff]
        %v1043 = vld [vmem:[%s252 + $0x15a0] sm:$0xff]
        %v1044 = vld [vmem:[%s252 + $0x15a8] sm:$0xff]
        %v1045 = vld [vmem:[%s252 + $0x15b0] sm:$0xff]
        %v1046 = vld [vmem:[%s252 + $0x15b8] sm:$0xff]
        %v1047 = vld [vmem:[%s252 + $0x15c0] sm:$0xff]
        %v1048 = vld [vmem:[%s252 + $0x15c8] sm:$0xff]
        %v1049 = vld [vmem:[%s252 + $0x15d0] sm:$0xff]
        %v1050 = vld [vmem:[%s252 + $0x15d8] sm:$0xff]
        %v1051 = vld [vmem:[%s252 + $0x15e0] sm:$0xff]
        %v1052 = vld [vmem:[%s252 + $0x15e8] sm:$0xff]
        %v1053 = vld [vmem:[%s252 + $0x15f0] sm:$0xff]
        %v1054 = vld [vmem:[%s252 + $0x15f8] sm:$0xff]
        %v1055 = vld [vmem:[%s252 + $0x1600] sm:$0xff]
        %v1056 = vld [vmem:[%s252 + $0x1608] sm:$0xff]
        %v1057 = vld [vmem:[%s252 + $0x1610] sm:$0xff]
        %v1058 = vld [vmem:[%s252 + $0x1618] sm:$0xff]
        %v1059 = vld [vmem:[%s252 + $0x1620] sm:$0xff]
        %v1060 = vld [vmem:[%s252 + $0x1628] sm:$0xff]
        %v1061 = vld [vmem:[%s252 + $0x1630] sm:$0xff]
        %v1062 = vld [vmem:[%s252 + $0x1638] sm:$0xff]
        %v1063 = vld [vmem:[%s252 + $0x1640] sm:$0xff]
        %v1064 = vld [vmem:[%s252 + $0x1648] sm:$0xff]
        %v1065 = vld [vmem:[%s252 + $0x1650] sm:$0xff]
        %v1066 = vld [vmem:[%s252 + $0x1658] sm:$0xff]
        %v1067 = vld [vmem:[%s252 + $0x1660] sm:$0xff]
        %v1068 = vld [vmem:[%s252 + $0x1668] sm:$0xff]
        %v1069 = vld [vmem:[%s252 + $0x1670] sm:$0xff]
        %v1070 = vld [vmem:[%s252 + $0x1678] sm:$0xff]
        %v1071 = vld [vmem:[%s252 + $0x1680] sm:$0xff]
        %v1072 = vld [vmem:[%s252 + $0x1688] sm:$0xff]
        %v1073 = vld [vmem:[%s252 + $0x1690] sm:$0xff]
        %v1074 = vld [vmem:[%s252 + $0x1698] sm:$0xff]
        %v1075 = vld [vmem:[%s252 + $0x16a0] sm:$0xff]
        %v1076 = vld [vmem:[%s252 + $0x16a8] sm:$0xff]
        %v1077 = vld [vmem:[%s252 + $0x16b0] sm:$0xff]
        %v1078 = vld [vmem:[%s252 + $0x16b8] sm:$0xff]
        %v1079 = vld [vmem:[%s252 + $0x16c0] sm:$0xff]
        %v1080 = vld [vmem:[%s252 + $0x16c8] sm:$0xff]
        %v1081 = vld [vmem:[%s252 + $0x16d0] sm:$0xff]
        %v1082 = vld [vmem:[%s252 + $0x16d8] sm:$0xff]
        %v1083 = vld [vmem:[%s252 + $0x16e0] sm:$0xff]
        %v1084 = vld [vmem:[%s252 + $0x16e8] sm:$0xff]
        %v1085 = vld [vmem:[%s252 + $0x16f0] sm:$0xff]
        %v1086 = vld [vmem:[%s252 + $0x16f8] sm:$0xff]
        %v1087 = vld [vmem:[%s252 + $0x1700] sm:$0xff]
        %v1088 = vld [vmem:[%s252 + $0x1708] sm:$0xff]
        %v1089 = vld [vmem:[%s252 + $0x1710] sm:$0xff]
        %v1090 = vld [vmem:[%s252 + $0x1718] sm:$0xff]
        %v1091 = vld [vmem:[%s252 + $0x1720] sm:$0xff]
        %v1092 = vld [vmem:[%s252 + $0x1728] sm:$0xff]
        %v1093 = vld [vmem:[%s252 + $0x1730] sm:$0xff]
        %v1094 = vld [vmem:[%s252 + $0x1738] sm:$0xff]
        %v1095 = vld [vmem:[%s252 + $0x1740] sm:$0xff]
        %v1096 = vld [vmem:[%s252 + $0x1748] sm:$0xff]
        %v1097 = vld [vmem:[%s252 + $0x1750] sm:$0xff]
        %v1098 = vld [vmem:[%s252 + $0x1758] sm:$0xff]
        %v1099 = vld [vmem:[%s252 + $0x1760] sm:$0xff]
        %v1100 = vld [vmem:[%s252 + $0x1768] sm:$0xff]
        %v1101 = vld [vmem:[%s252 + $0x1770] sm:$0xff]
        %v1102 = vld [vmem:[%s252 + $0x1778] sm:$0xff]
        %v1103 = vld [vmem:[%s252 + $0x1780] sm:$0xff]
        %v1104 = vld [vmem:[%s252 + $0x1788] sm:$0xff]
        %v1105 = vld [vmem:[%s252 + $0x1790] sm:$0xff]
        %v1106 = vld [vmem:[%s252 + $0x1798] sm:$0xff]
        %v1107 = vld [vmem:[%s252 + $0x17a0] sm:$0xff]
        %v1108 = vld [vmem:[%s252 + $0x17a8] sm:$0xff]
        %v1109 = vld [vmem:[%s252 + $0x17b0] sm:$0xff]
        %v1110 = vld [vmem:[%s252 + $0x17b8] sm:$0xff]
        %v1111 = vld [vmem:[%s252 + $0x17c0] sm:$0xff]
        %v1112 = vld [vmem:[%s252 + $0x17c8] sm:$0xff]
        %v1113 = vld [vmem:[%s252 + $0x17d0] sm:$0xff]
        %v1114 = vld [vmem:[%s252 + $0x17d8] sm:$0xff]
        %v1115 = vld [vmem:[%s252 + $0x17e0] sm:$0xff]
        %v1116 = vld [vmem:[%s252 + $0x17e8] sm:$0xff]
        %v1117 = vld [vmem:[%s252 + $0x17f0] sm:$0xff]
        %v1118 = vld [vmem:[%s252 + $0x17f8] sm:$0xff]
        %v1119 = vld [vmem:[%s252 + $0x1800] sm:$0xff]
        %v1120 = vld [vmem:[%s252 + $0x1808] sm:$0xff]
        %v1121 = vld [vmem:[%s252 + $0x1810] sm:$0xff]
        %v1122 = vld [vmem:[%s252 + $0x1818] sm:$0xff]
        %v1123 = vld [vmem:[%s252 + $0x1820] sm:$0xff]
        %v1124 = vld [vmem:[%s252 + $0x1828] sm:$0xff]
        %v1125 = vld [vmem:[%s252 + $0x1830] sm:$0xff]
        %v1126 = vld [vmem:[%s252 + $0x1838] sm:$0xff]
        %v1127 = vld [vmem:[%s252 + $0x1840] sm:$0xff]
        %v1128 = vld [vmem:[%s252 + $0x1848] sm:$0xff]
        %v1129 = vld [vmem:[%s252 + $0x1850] sm:$0xff]
        %v1130 = vld [vmem:[%s252 + $0x1858] sm:$0xff]
        %v1131 = vld [vmem:[%s252 + $0x1860] sm:$0xff]
        %v1132 = vld [vmem:[%s252 + $0x1868] sm:$0xff]
        %v1133 = vld [vmem:[%s252 + $0x1870] sm:$0xff]
        %v1134 = vld [vmem:[%s252 + $0x1878] sm:$0xff]
        %v1135 = vld [vmem:[%s252 + $0x1880] sm:$0xff]
        %v1136 = vld [vmem:[%s252 + $0x1888] sm:$0xff]
        %v1137 = vld [vmem:[%s252 + $0x1890] sm:$0xff]
        %v1138 = vld [vmem:[%s252 + $0x1898] sm:$0xff]
        %v1139 = vld [vmem:[%s252 + $0x18a0] sm:$0xff]
        %v1140 = vld [vmem:[%s252 + $0x18a8] sm:$0xff]
        %v1141 = vld [vmem:[%s252 + $0x18b0] sm:$0xff]
        %v1142 = vld [vmem:[%s252 + $0x18b8] sm:$0xff]
        %v1143 = vld [vmem:[%s252 + $0x18c0] sm:$0xff]
        %v1144 = vld [vmem:[%s252 + $0x18c8] sm:$0xff]
        %v1145 = vld [vmem:[%s252 + $0x18d0] sm:$0xff]
        %v1146 = vld [vmem:[%s252 + $0x18d8] sm:$0xff]
        %v1147 = vld [vmem:[%s252 + $0x18e0] sm:$0xff]
        %v1148 = vld [vmem:[%s252 + $0x18e8] sm:$0xff]
        %v1149 = vld [vmem:[%s252 + $0x18f0] sm:$0xff]
        %v1150 = vld [vmem:[%s252 + $0x18f8] sm:$0xff]
        %v1151 = vld [vmem:[%s252 + $0x1900] sm:$0xff]
        %v1152 = vld [vmem:[%s252 + $0x1908] sm:$0xff]
        %v1153 = vld [vmem:[%s252 + $0x1910] sm:$0xff]
        %v1154 = vld [vmem:[%s252 + $0x1918] sm:$0xff]
        %v1155 = vld [vmem:[%s252 + $0x1920] sm:$0xff]
        %v1156 = vld [vmem:[%s252 + $0x1928] sm:$0xff]
        %v1157 = vld [vmem:[%s252 + $0x1930] sm:$0xff]
        %v1158 = vld [vmem:[%s252 + $0x1938] sm:$0xff]
        %v1159 = vld [vmem:[%s252 + $0x1940] sm:$0xff]
        %v1160 = vld [vmem:[%s252 + $0x1948] sm:$0xff]
        %v1161 = vld [vmem:[%s252 + $0x1950] sm:$0xff]
        %v1162 = vld [vmem:[%s252 + $0x1958] sm:$0xff]
        %v1163 = vld [vmem:[%s252 + $0x1960] sm:$0xff]
        %v1164 = vld [vmem:[%s252 + $0x1968] sm:$0xff]
        %v1165 = vld [vmem:[%s252 + $0x1970] sm:$0xff]
        %v1166 = vld [vmem:[%s252 + $0x1978] sm:$0xff]
        %v1167 = vld [vmem:[%s252 + $0x1980] sm:$0xff]
        %v1168 = vld [vmem:[%s252 + $0x1988] sm:$0xff]
        %v1169 = vld [vmem:[%s252 + $0x1990] sm:$0xff]
        %v1170 = vld [vmem:[%s252 + $0x1998] sm:$0xff]
        %v1171 = vld [vmem:[%s252 + $0x19a0] sm:$0xff]
        %v1172 = vld [vmem:[%s252 + $0x19a8] sm:$0xff]
        %v1173 = vld [vmem:[%s252 + $0x19b0] sm:$0xff]
        %v1174 = vld [vmem:[%s252 + $0x19b8] sm:$0xff]
        %v1175 = vld [vmem:[%s252 + $0x19c0] sm:$0xff]
        %v1176 = vld [vmem:[%s252 + $0x19c8] sm:$0xff]
        %v1177 = vld [vmem:[%s252 + $0x19d0] sm:$0xff]
        %v1178 = vld [vmem:[%s252 + $0x19d8] sm:$0xff]
        %v1179 = vld [vmem:[%s252 + $0x19e0] sm:$0xff]
        %v1180 = vld [vmem:[%s252 + $0x19e8] sm:$0xff]
        %v1181 = vld [vmem:[%s252 + $0x19f0] sm:$0xff]
        %v1182 = vld [vmem:[%s252 + $0x19f8] sm:$0xff]
        %v1183 = vld [vmem:[%s252 + $0x1a00] sm:$0xff]
        %v1184 = vld [vmem:[%s252 + $0x1a08] sm:$0xff]
        %v1185 = vld [vmem:[%s252 + $0x1a10] sm:$0xff]
        %v1186 = vld [vmem:[%s252 + $0x1a18] sm:$0xff]
        %v1187 = vld [vmem:[%s252 + $0x1a20] sm:$0xff]
        %v1188 = vld [vmem:[%s252 + $0x1a28] sm:$0xff]
        %v1189 = vld [vmem:[%s252 + $0x1a30] sm:$0xff]
        %v1190 = vld [vmem:[%s252 + $0x1a38] sm:$0xff]
        %v1191 = vld [vmem:[%s252 + $0x1a40] sm:$0xff]
        %v1192 = vld [vmem:[%s252 + $0x1a48] sm:$0xff]
        %v1193 = vld [vmem:[%s252 + $0x1a50] sm:$0xff]
        %v1194 = vld [vmem:[%s252 + $0x1a58] sm:$0xff]
        %v1195 = vld [vmem:[%s252 + $0x1a60] sm:$0xff]
        %v1196 = vld [vmem:[%s252 + $0x1a68] sm:$0xff]
        %v1197 = vld [vmem:[%s252 + $0x1a70] sm:$0xff]
        %v1198 = vld [vmem:[%s252 + $0x1a78] sm:$0xff]
        %v1199 = vld [vmem:[%s252 + $0x1a80] sm:$0xff]
        %v1200 = vld [vmem:[%s252 + $0x1a88] sm:$0xff]
        %v1201 = vld [vmem:[%s252 + $0x1a90] sm:$0xff]
        %v1202 = vld [vmem:[%s252 + $0x1a98] sm:$0xff]
        %v1203 = vld [vmem:[%s252 + $0x1aa0] sm:$0xff]
        %v1204 = vld [vmem:[%s252 + $0x1aa8] sm:$0xff]
        %v1205 = vld [vmem:[%s252 + $0x1ab0] sm:$0xff]
        %v1206 = vld [vmem:[%s252 + $0x1ab8] sm:$0xff]
        %v1207 = vld [vmem:[%s252 + $0x1ac0] sm:$0xff]
        %v1208 = vld [vmem:[%s252 + $0x1ac8] sm:$0xff]
        %v1209 = vld [vmem:[%s252 + $0x1ad0] sm:$0xff]
        %v1210 = vld [vmem:[%s252 + $0x1ad8] sm:$0xff]
        %v1211 = vld [vmem:[%s252 + $0x1ae0] sm:$0xff]
        %v1212 = vld [vmem:[%s252 + $0x1ae8] sm:$0xff]
        %v1213 = vld [vmem:[%s252 + $0x1af0] sm:$0xff]
        %v1214 = vld [vmem:[%s252 + $0x1af8] sm:$0xff]
        %v1215 = vld [vmem:[%s252 + $0x1b00] sm:$0xff]
        %v1216 = vld [vmem:[%s252 + $0x1b08] sm:$0xff]
        %v1217 = vld [vmem:[%s252 + $0x1b10] sm:$0xff]
        %v1218 = vld [vmem:[%s252 + $0x1b18] sm:$0xff]
        %v1219 = vld [vmem:[%s252 + $0x1b20] sm:$0xff]
        %v1220 = vld [vmem:[%s252 + $0x1b28] sm:$0xff]
        %v1221 = vld [vmem:[%s252 + $0x1b30] sm:$0xff]
        %v1222 = vld [vmem:[%s252 + $0x1b38] sm:$0xff]
        %v1223 = vld [vmem:[%s252 + $0x1b40] sm:$0xff]
        %v1224 = vld [vmem:[%s252 + $0x1b48] sm:$0xff]
        %v1225 = vld [vmem:[%s252 + $0x1b50] sm:$0xff]
        %v1226 = vld [vmem:[%s252 + $0x1b58] sm:$0xff]
        %v1227 = vld [vmem:[%s252 + $0x1b60] sm:$0xff]
        %v1228 = vld [vmem:[%s252 + $0x1b68] sm:$0xff]
        %v1229 = vld [vmem:[%s252 + $0x1b70] sm:$0xff]
        %v1230 = vld [vmem:[%s252 + $0x1b78] sm:$0xff]
        %v1231 = vld [vmem:[%s252 + $0x1b80] sm:$0xff]
        %v1232 = vld [vmem:[%s252 + $0x1b88] sm:$0xff]
        %v1233 = vld [vmem:[%s252 + $0x1b90] sm:$0xff]
        %v1234 = vld [vmem:[%s252 + $0x1b98] sm:$0xff]
        %v1235 = vld [vmem:[%s252 + $0x1ba0] sm:$0xff]
        %v1236 = vld [vmem:[%s252 + $0x1ba8] sm:$0xff]
        %v1237 = vld [vmem:[%s252 + $0x1bb0] sm:$0xff]
        %v1238 = vld [vmem:[%s252 + $0x1bb8] sm:$0xff]
        %v1239 = vld [vmem:[%s252 + $0x1bc0] sm:$0xff]
        %v1240 = vld [vmem:[%s252 + $0x1bc8] sm:$0xff]
        %v1241 = vld [vmem:[%s252 + $0x1bd0] sm:$0xff]
        %v1242 = vld [vmem:[%s252 + $0x1bd8] sm:$0xff]
        %v1243 = vld [vmem:[%s252 + $0x1be0] sm:$0xff]
        %v1244 = vld [vmem:[%s252 + $0x1be8] sm:$0xff]
        %v1245 = vld [vmem:[%s252 + $0x1bf0] sm:$0xff]
        %v1246 = vld [vmem:[%s252 + $0x1bf8] sm:$0xff]
        %v1247 = vld [vmem:[%s252 + $0x1c00] sm:$0xff]
        %v1248 = vld [vmem:[%s252 + $0x1c08] sm:$0xff]
        %v1249 = vld [vmem:[%s252 + $0x1c10] sm:$0xff]
        %v1250 = vld [vmem:[%s252 + $0x1c18] sm:$0xff]
        %v1251 = vld [vmem:[%s252 + $0x1c20] sm:$0xff]
        %v1252 = vld [vmem:[%s252 + $0x1c28] sm:$0xff]
        %v1253 = vld [vmem:[%s252 + $0x1c30] sm:$0xff]
        %v1254 = vld [vmem:[%s252 + $0x1c38] sm:$0xff]
        %v1255 = vld [vmem:[%s252 + $0x1c40] sm:$0xff]
        %v1256 = vld [vmem:[%s252 + $0x1c48] sm:$0xff]
        %v1257 = vld [vmem:[%s252 + $0x1c50] sm:$0xff]
        %v1258 = vld [vmem:[%s252 + $0x1c58] sm:$0xff]
        %v1259 = vld [vmem:[%s252 + $0x1c60] sm:$0xff]
        %v1260 = vld [vmem:[%s252 + $0x1c68] sm:$0xff]
        %v1261 = vld [vmem:[%s252 + $0x1c70] sm:$0xff]
        %v1262 = vld [vmem:[%s252 + $0x1c78] sm:$0xff]
        %v1263 = vld [vmem:[%s252 + $0x1c80] sm:$0xff]
        %v1264 = vld [vmem:[%s252 + $0x1c88] sm:$0xff]
        %v1265 = vld [vmem:[%s252 + $0x1c90] sm:$0xff]
        %v1266 = vld [vmem:[%s252 + $0x1c98] sm:$0xff]
        %v1267 = vld [vmem:[%s252 + $0x1ca0] sm:$0xff]
        %v1268 = vld [vmem:[%s252 + $0x1ca8] sm:$0xff]
        %v1269 = vld [vmem:[%s252 + $0x1cb0] sm:$0xff]
        %v1270 = vld [vmem:[%s252 + $0x1cb8] sm:$0xff]
        %v1271 = vld [vmem:[%s252 + $0x1cc0] sm:$0xff]
        %v1272 = vld [vmem:[%s252 + $0x1cc8] sm:$0xff]
        %v1273 = vld [vmem:[%s252 + $0x1cd0] sm:$0xff]
        %v1274 = vld [vmem:[%s252 + $0x1cd8] sm:$0xff]
        %v1275 = vld [vmem:[%s252 + $0x1ce0] sm:$0xff]
        %v1276 = vld [vmem:[%s252 + $0x1ce8] sm:$0xff]
        %v1277 = vld [vmem:[%s252 + $0x1cf0] sm:$0xff]
        %v1278 = vld [vmem:[%s252 + $0x1cf8] sm:$0xff]
        %v1279 = vld [vmem:[%s252 + $0x1d00] sm:$0xff]
        %v1280 = vld [vmem:[%s252 + $0x1d08] sm:$0xff]
        %v1281 = vld [vmem:[%s252 + $0x1d10] sm:$0xff]
        %v1282 = vld [vmem:[%s252 + $0x1d18] sm:$0xff]
        %v1283 = vld [vmem:[%s252 + $0x1d20] sm:$0xff]
        %v1284 = vld [vmem:[%s252 + $0x1d28] sm:$0xff]
        %v1285 = vld [vmem:[%s252 + $0x1d30] sm:$0xff]
        %v1286 = vld [vmem:[%s252 + $0x1d38] sm:$0xff]
        %v1287 = vld [vmem:[%s252 + $0x1d40] sm:$0xff]
        %v1288 = vld [vmem:[%s252 + $0x1d48] sm:$0xff]
        %v1289 = vld [vmem:[%s252 + $0x1d50] sm:$0xff]
        %v1290 = vld [vmem:[%s252 + $0x1d58] sm:$0xff]
        %v1291 = vld [vmem:[%s252 + $0x1d60] sm:$0xff]
        %v1292 = vld [vmem:[%s252 + $0x1d68] sm:$0xff]
        %v1293 = vld [vmem:[%s252 + $0x1d70] sm:$0xff]
        %v1294 = vld [vmem:[%s252 + $0x1d78] sm:$0xff]
        %v1295 = vld [vmem:[%s252 + $0x1d80] sm:$0xff]
        %v1296 = vld [vmem:[%s252 + $0x1d88] sm:$0xff]
        %v1297 = vld [vmem:[%s252 + $0x1d90] sm:$0xff]
        %v1298 = vld [vmem:[%s252 + $0x1d98] sm:$0xff]
        %v1299 = vld [vmem:[%s252 + $0x1da0] sm:$0xff]
        %v1300 = vld [vmem:[%s252 + $0x1da8] sm:$0xff]
        %v1301 = vld [vmem:[%s252 + $0x1db0] sm:$0xff]
        %v1302 = vld [vmem:[%s252 + $0x1db8] sm:$0xff]
        %v1303 = vld [vmem:[%s252 + $0x1dc0] sm:$0xff]
        %v1304 = vld [vmem:[%s252 + $0x1dc8] sm:$0xff]
        %v1305 = vld [vmem:[%s252 + $0x1dd0] sm:$0xff]
        %v1306 = vld [vmem:[%s252 + $0x1dd8] sm:$0xff]
        %v1307 = vld [vmem:[%s252 + $0x1de0] sm:$0xff]
        %v1308 = vld [vmem:[%s252 + $0x1de8] sm:$0xff]
        %v1309 = vld [vmem:[%s252 + $0x1df0] sm:$0xff]
        %v1310 = vld [vmem:[%s252 + $0x1df8] sm:$0xff]
        %v1311 = vld [vmem:[%s252 + $0x1e00] sm:$0xff]
        %v1312 = vld [vmem:[%s252 + $0x1e08] sm:$0xff]
        %v1313 = vld [vmem:[%s252 + $0x1e10] sm:$0xff]
        %v1314 = vld [vmem:[%s252 + $0x1e18] sm:$0xff]
        %v1315 = vld [vmem:[%s252 + $0x1e20] sm:$0xff]
        %v1316 = vld [vmem:[%s252 + $0x1e28] sm:$0xff]
        %v1317 = vld [vmem:[%s252 + $0x1e30] sm:$0xff]
        %v1318 = vld [vmem:[%s252 + $0x1e38] sm:$0xff]
        %v1319 = vld [vmem:[%s252 + $0x1e40] sm:$0xff]
        %v1320 = vld [vmem:[%s252 + $0x1e48] sm:$0xff]
        %v1321 = vld [vmem:[%s252 + $0x1e50] sm:$0xff]
        %v1322 = vld [vmem:[%s252 + $0x1e58] sm:$0xff]
        %v1323 = vld [vmem:[%s252 + $0x1e60] sm:$0xff]
        %v1324 = vld [vmem:[%s252 + $0x1e68] sm:$0xff]
        %v1325 = vld [vmem:[%s252 + $0x1e70] sm:$0xff]
        %v1326 = vld [vmem:[%s252 + $0x1e78] sm:$0xff]
        %v1327 = vld [vmem:[%s252 + $0x1e80] sm:$0xff]
        %v1328 = vld [vmem:[%s252 + $0x1e88] sm:$0xff]
        %v1329 = vld [vmem:[%s252 + $0x1e90] sm:$0xff]
        %v1330 = vld [vmem:[%s252 + $0x1e98] sm:$0xff]
        %v1331 = vld [vmem:[%s252 + $0x1ea0] sm:$0xff]
        %v1332 = vld [vmem:[%s252 + $0x1ea8] sm:$0xff]
        %v1333 = vld [vmem:[%s252 + $0x1eb0] sm:$0xff]
        %v1334 = vld [vmem:[%s252 + $0x1eb8] sm:$0xff]
        %v1335 = vld [vmem:[%s252 + $0x1ec0] sm:$0xff]
        %v1336 = vld [vmem:[%s252 + $0x1ec8] sm:$0xff]
        %v1337 = vld [vmem:[%s252 + $0x1ed0] sm:$0xff]
        %v1338 = vld [vmem:[%s252 + $0x1ed8] sm:$0xff]
        %v1339 = vld [vmem:[%s252 + $0x1ee0] sm:$0xff]
        %v1340 = vld [vmem:[%s252 + $0x1ee8] sm:$0xff]
        %v1341 = vld [vmem:[%s252 + $0x1ef0] sm:$0xff]
        %v1342 = vld [vmem:[%s252 + $0x1ef8] sm:$0xff]
        %v1343 = vld [vmem:[%s252 + $0x1f00] sm:$0xff]
        %v1344 = vld [vmem:[%s252 + $0x1f08] sm:$0xff]
        %v1345 = vld [vmem:[%s252 + $0x1f10] sm:$0xff]
        %v1346 = vld [vmem:[%s252 + $0x1f18] sm:$0xff]
        %v1347 = vld [vmem:[%s252 + $0x1f20] sm:$0xff]
        %v1348 = vld [vmem:[%s252 + $0x1f28] sm:$0xff]
        %v1349 = vld [vmem:[%s252 + $0x1f30] sm:$0xff]
        %v1350 = vld [vmem:[%s252 + $0x1f38] sm:$0xff]
        %v1351 = vld [vmem:[%s252 + $0x1f40] sm:$0xff]
        %v1352 = vld [vmem:[%s252 + $0x1f48] sm:$0xff]
        %v1353 = vld [vmem:[%s252 + $0x1f50] sm:$0xff]
        %v1354 = vld [vmem:[%s252 + $0x1f58] sm:$0xff]
        %v1355 = vld [vmem:[%s252 + $0x1f60] sm:$0xff]
        %v1356 = vld [vmem:[%s252 + $0x1f68] sm:$0xff]
        %v1357 = vld [vmem:[%s252 + $0x1f70] sm:$0xff]
        %v1358 = vld [vmem:[%s252 + $0x1f78] sm:$0xff]
        %v1359 = vld [vmem:[%s252 + $0x1f80] sm:$0xff]
        %v1360 = vld [vmem:[%s252 + $0x1f88] sm:$0xff]
        %v1361 = vld [vmem:[%s252 + $0x1f90] sm:$0xff]
        %v1362 = vld [vmem:[%s252 + $0x1f98] sm:$0xff]
        %v1363 = vld [vmem:[%s252 + $0x1fa0] sm:$0xff]
        %v1364 = vld [vmem:[%s252 + $0x1fa8] sm:$0xff]
        %v1365 = vld [vmem:[%s252 + $0x1fb0] sm:$0xff]
        %v1366 = vld [vmem:[%s252 + $0x1fb8] sm:$0xff]
        %v1367 = vld [vmem:[%s252 + $0x1fc0] sm:$0xff]
        %v1368 = vld [vmem:[%s252 + $0x1fc8] sm:$0xff]
        %v1369 = vld [vmem:[%s252 + $0x1fd0] sm:$0xff]
        %v1370 = vld [vmem:[%s252 + $0x1fd8] sm:$0xff]
        %v1371 = vld [vmem:[%s252 + $0x1fe0] sm:$0xff]
        %v1372 = vld [vmem:[%s252 + $0x1fe8] sm:$0xff]
        %v1373 = vld [vmem:[%s252 + $0x1ff0] sm:$0xff]
        %v1374 = vld [vmem:[%s252 + $0x1ff8] sm:$0xff]
        %v1375 = vld [vmem:[%s252 + $0x2000] sm:$0xff]
        %v1376 = vld [vmem:[%s252 + $0x2008] sm:$0xff]
        %v1377 = vld [vmem:[%s252 + $0x2010] sm:$0xff]
        %v1378 = vld [vmem:[%s252 + $0x2018] sm:$0xff]
        %v1379 = vld [vmem:[%s252 + $0x2020] sm:$0xff]
        %v1380 = vld [vmem:[%s252 + $0x2028] sm:$0xff]
        %v1381 = vld [vmem:[%s252 + $0x2030] sm:$0xff]
        %v1382 = vld [vmem:[%s252 + $0x2038] sm:$0xff]
        %v1383 = vld [vmem:[%s252 + $0x2040] sm:$0xff]
        %v1384 = vld [vmem:[%s252 + $0x2048] sm:$0xff]
        %v1385 = vld [vmem:[%s252 + $0x2050] sm:$0xff]
        %v1386 = vld [vmem:[%s252 + $0x2058] sm:$0xff]
        %v1387 = vld [vmem:[%s252 + $0x2060] sm:$0xff]
        %v1388 = vld [vmem:[%s252 + $0x2068] sm:$0xff]
        %v1389 = vld [vmem:[%s252 + $0x2070] sm:$0xff]
        %v1390 = vld [vmem:[%s252 + $0x2078] sm:$0xff]
        %v1391 = vld [vmem:[%s252 + $0x2080] sm:$0xff]
        %v1392 = vld [vmem:[%s252 + $0x2088] sm:$0xff]
        %v1393 = vld [vmem:[%s252 + $0x2090] sm:$0xff]
        %v1394 = vld [vmem:[%s252 + $0x2098] sm:$0xff]
        %v1395 = vld [vmem:[%s252 + $0x20a0] sm:$0xff]
        %v1396 = vld [vmem:[%s252 + $0x20a8] sm:$0xff]
        %v1397 = vld [vmem:[%s252 + $0x20b0] sm:$0xff]
        %v1398 = vld [vmem:[%s252 + $0x20b8] sm:$0xff]
        %v1399 = vld [vmem:[%s252 + $0x20c0] sm:$0xff]
        %v1400 = vld [vmem:[%s252 + $0x20c8] sm:$0xff]
        %v1401 = vld [vmem:[%s252 + $0x20d0] sm:$0xff]
        %v1402 = vld [vmem:[%s252 + $0x20d8] sm:$0xff]
        %v1403 = vld [vmem:[%s252 + $0x20e0] sm:$0xff]
        %v1404 = vld [vmem:[%s252 + $0x20e8] sm:$0xff]
        %v1405 = vld [vmem:[%s252 + $0x20f0] sm:$0xff]
        %v1406 = vld [vmem:[%s252 + $0x20f8] sm:$0xff]
        %v1407 = vld [vmem:[%s252 + $0x2100] sm:$0xff]
        %v1408 = vld [vmem:[%s252 + $0x2108] sm:$0xff]
        %v1409 = vld [vmem:[%s252 + $0x2110] sm:$0xff]
        %v1410 = vld [vmem:[%s252 + $0x2118] sm:$0xff]
        %v1411 = vld [vmem:[%s252 + $0x2120] sm:$0xff]
        %v1412 = vld [vmem:[%s252 + $0x2128] sm:$0xff]
        %v1413 = vld [vmem:[%s252 + $0x2130] sm:$0xff]
        %v1414 = vld [vmem:[%s252 + $0x2138] sm:$0xff]
        %v1415 = vld [vmem:[%s252 + $0x2140] sm:$0xff]
        %v1416 = vld [vmem:[%s252 + $0x2148] sm:$0xff]
        %v1417 = vld [vmem:[%s252 + $0x2150] sm:$0xff]
        %v1418 = vld [vmem:[%s252 + $0x2158] sm:$0xff]
        %v1419 = vld [vmem:[%s252 + $0x2160] sm:$0xff]
        %v1420 = vld [vmem:[%s252 + $0x2168] sm:$0xff]
        %v1421 = vld [vmem:[%s252 + $0x2170] sm:$0xff]
        %v1422 = vld [vmem:[%s252 + $0x2178] sm:$0xff]
        %v1423 = vld [vmem:[%s252 + $0x2180] sm:$0xff]
        %v1424 = vld [vmem:[%s252 + $0x2188] sm:$0xff]
        %v1425 = vld [vmem:[%s252 + $0x2190] sm:$0xff]
        %v1426 = vld [vmem:[%s252 + $0x2198] sm:$0xff]
        %v1427 = vld [vmem:[%s252 + $0x21a0] sm:$0xff]
        %v1428 = vld [vmem:[%s252 + $0x21a8] sm:$0xff]
        %v1429 = vld [vmem:[%s252 + $0x21b0] sm:$0xff]
        %v1430 = vld [vmem:[%s252 + $0x21b8] sm:$0xff]
        %v1431 = vld [vmem:[%s252 + $0x21c0] sm:$0xff]
        %v1432 = vld [vmem:[%s252 + $0x21c8] sm:$0xff]
        %v1433 = vld [vmem:[%s252 + $0x21d0] sm:$0xff]
        %v1434 = vld [vmem:[%s252 + $0x21d8] sm:$0xff]
        %v1435 = vld [vmem:[%s252 + $0x21e0] sm:$0xff]
        %v1436 = vld [vmem:[%s252 + $0x21e8] sm:$0xff]
        %v1437 = vld [vmem:[%s252 + $0x21f0] sm:$0xff]
        %v1438 = vld [vmem:[%s252 + $0x21f8] sm:$0xff]
        %v1439 = vld [vmem:[%s252 + $0x2200] sm:$0xff]
        %v1440 = vld [vmem:[%s252 + $0x2208] sm:$0xff]
        %v1441 = vld [vmem:[%s252 + $0x2210] sm:$0xff]
        %v1442 = vld [vmem:[%s252 + $0x2218] sm:$0xff]
        %v1443 = vld [vmem:[%s252 + $0x2220] sm:$0xff]
        %v1444 = vld [vmem:[%s252 + $0x2228] sm:$0xff]
        %v1445 = vld [vmem:[%s252 + $0x2230] sm:$0xff]
        %v1446 = vld [vmem:[%s252 + $0x2238] sm:$0xff]
        %v1447 = vld [vmem:[%s252 + $0x2240] sm:$0xff]
        %v1448 = vld [vmem:[%s252 + $0x2248] sm:$0xff]
        %v1449 = vld [vmem:[%s252 + $0x2250] sm:$0xff]
        %v1450 = vld [vmem:[%s252 + $0x2258] sm:$0xff]
        %v1451 = vld [vmem:[%s252 + $0x2260] sm:$0xff]
        %v1452 = vld [vmem:[%s252 + $0x2268] sm:$0xff]
        %v1453 = vld [vmem:[%s252 + $0x2270] sm:$0xff]
        %v1454 = vld [vmem:[%s252 + $0x2278] sm:$0xff]
        %v1455 = vld [vmem:[%s252 + $0x2280] sm:$0xff]
        %v1456 = vld [vmem:[%s252 + $0x2288] sm:$0xff]
        %v1457 = vld [vmem:[%s252 + $0x2290] sm:$0xff]
        %v1458 = vld [vmem:[%s252 + $0x2298] sm:$0xff]
        %v1459 = vld [vmem:[%s252 + $0x22a0] sm:$0xff]
        %v1460 = vld [vmem:[%s252 + $0x22a8] sm:$0xff]
        %v1461 = vld [vmem:[%s252 + $0x22b0] sm:$0xff]
        %v1462 = vld [vmem:[%s252 + $0x22b8] sm:$0xff]
        %v1463 = vld [vmem:[%s252 + $0x22c0] sm:$0xff]
        %v1464 = vld [vmem:[%s252 + $0x22c8] sm:$0xff]
        %v1465 = vld [vmem:[%s252 + $0x22d0] sm:$0xff]
        %v1466 = vld [vmem:[%s252 + $0x22d8] sm:$0xff]
        %v1467 = vld [vmem:[%s252 + $0x22e0] sm:$0xff]
        %v1468 = vld [vmem:[%s252 + $0x22e8] sm:$0xff]
        %v1469 = vld [vmem:[%s252 + $0x22f0] sm:$0xff]
        %v1470 = vld [vmem:[%s252 + $0x22f8] sm:$0xff]
        %v1471 = vld [vmem:[%s252 + $0x2300] sm:$0xff]
        %v1472 = vld [vmem:[%s252 + $0x2308] sm:$0xff]
        %v1473 = vld [vmem:[%s252 + $0x2310] sm:$0xff]
        %v1474 = vld [vmem:[%s252 + $0x2318] sm:$0xff]
        %v1475 = vld [vmem:[%s252 + $0x2320] sm:$0xff]
        %v1476 = vld [vmem:[%s252 + $0x2328] sm:$0xff]
        %v1477 = vld [vmem:[%s252 + $0x2330] sm:$0xff]
        %v1478 = vld [vmem:[%s252 + $0x2338] sm:$0xff]
        %v1479 = vld [vmem:[%s252 + $0x2340] sm:$0xff]
        %v1480 = vld [vmem:[%s252 + $0x2348] sm:$0xff]
        %v1481 = vld [vmem:[%s252 + $0x2350] sm:$0xff]
        %v1482 = vld [vmem:[%s252 + $0x2358] sm:$0xff]
        %v1483 = vld [vmem:[%s252 + $0x2360] sm:$0xff]
        %v1484 = vld [vmem:[%s252 + $0x2368] sm:$0xff]
        %v1485 = vld [vmem:[%s252 + $0x2370] sm:$0xff]
        %v1486 = vld [vmem:[%s252 + $0x2378] sm:$0xff]
        %v1487 = vld [vmem:[%s252 + $0x2380] sm:$0xff]
        %v1488 = vld [vmem:[%s252 + $0x2388] sm:$0xff]
        %v1489 = vld [vmem:[%s252 + $0x2390] sm:$0xff]
        %v1490 = vld [vmem:[%s252 + $0x2398] sm:$0xff]
        %v1491 = vld [vmem:[%s252 + $0x23a0] sm:$0xff]
        %v1492 = vld [vmem:[%s252 + $0x23a8] sm:$0xff]
        %v1493 = vld [vmem:[%s252 + $0x23b0] sm:$0xff]
        %v1494 = vld [vmem:[%s252 + $0x23b8] sm:$0xff]
        %v1495 = vld [vmem:[%s252 + $0x23c0] sm:$0xff]
        %v1496 = vld [vmem:[%s252 + $0x23c8] sm:$0xff]
        %v1497 = vld [vmem:[%s252 + $0x23d0] sm:$0xff]
        %v1498 = vld [vmem:[%s252 + $0x23d8] sm:$0xff]
        %v1499 = vld [vmem:[%s252 + $0x23e0] sm:$0xff]
        %v1500 = vld [vmem:[%s252 + $0x23e8] sm:$0xff]
        %v1501 = vld [vmem:[%s252 + $0x23f0] sm:$0xff]
        %v1502 = vld [vmem:[%s252 + $0x23f8] sm:$0xff]
        %v1503 = vld [vmem:[%s252 + $0x2400] sm:$0xff]
        %v1504 = vld [vmem:[%s252 + $0x2408] sm:$0xff]
        %v1505 = vld [vmem:[%s252 + $0x2410] sm:$0xff]
        %v1506 = vld [vmem:[%s252 + $0x2418] sm:$0xff]
        %v1507 = vld [vmem:[%s252 + $0x2420] sm:$0xff]
        %v1508 = vld [vmem:[%s252 + $0x2428] sm:$0xff]
        %v1509 = vld [vmem:[%s252 + $0x2430] sm:$0xff]
        %v1510 = vld [vmem:[%s252 + $0x2438] sm:$0xff]
        %v1511 = vld [vmem:[%s252 + $0x2440] sm:$0xff]
        %v1512 = vld [vmem:[%s252 + $0x2448] sm:$0xff]
        %v1513 = vld [vmem:[%s252 + $0x2450] sm:$0xff]
        %v1514 = vld [vmem:[%s252 + $0x2458] sm:$0xff]
        %v1515 = vld [vmem:[%s252 + $0x2460] sm:$0xff]
        %v1516 = vld [vmem:[%s252 + $0x2468] sm:$0xff]
        %v1517 = vld [vmem:[%s252 + $0x2470] sm:$0xff]
        %v1518 = vld [vmem:[%s252 + $0x2478] sm:$0xff]
        %v1519 = vld [vmem:[%s252 + $0x2480] sm:$0xff]
        %v1520 = vld [vmem:[%s252 + $0x2488] sm:$0xff]
        %v1521 = vld [vmem:[%s252 + $0x2490] sm:$0xff]
        %v1522 = vld [vmem:[%s252 + $0x2498] sm:$0xff]
        %v1523 = vld [vmem:[%s252 + $0x24a0] sm:$0xff]
        %v1524 = vld [vmem:[%s252 + $0x24a8] sm:$0xff]
        %v1525 = vld [vmem:[%s252 + $0x24b0] sm:$0xff]
        %v1526 = vld [vmem:[%s252 + $0x24b8] sm:$0xff]
        %v1527 = vld [vmem:[%s252 + $0x24c0] sm:$0xff]
        %v1528 = vld [vmem:[%s252 + $0x24c8] sm:$0xff]
        %v1529 = vld [vmem:[%s252 + $0x24d0] sm:$0xff]
        %v1530 = vld [vmem:[%s252 + $0x24d8] sm:$0xff]
        %v1531 = vld [vmem:[%s252 + $0x24e0] sm:$0xff]
        %v1532 = vld [vmem:[%s252 + $0x24e8] sm:$0xff]
        %v1533 = vld [vmem:[%s252 + $0x24f0] sm:$0xff]
        %v1534 = vld [vmem:[%s252 + $0x24f8] sm:$0xff]
        %v1535 = vld [vmem:[%s252 + $0x2500] sm:$0xff]
        %v1536 = vld [vmem:[%s252 + $0x2508] sm:$0xff]
        %v1537 = vld [vmem:[%s252 + $0x2510] sm:$0xff]
        %v1538 = vld [vmem:[%s252 + $0x2518] sm:$0xff]
        %v1539 = vld [vmem:[%s252 + $0x2520] sm:$0xff]
        %v1540 = vld [vmem:[%s252 + $0x2528] sm:$0xff]
        %v1541 = vld [vmem:[%s252 + $0x2530] sm:$0xff]
        %v1542 = vld [vmem:[%s252 + $0x2538] sm:$0xff]
        %v1543 = vld [vmem:[%s252 + $0x2540] sm:$0xff]
        %v1544 = vld [vmem:[%s252 + $0x2548] sm:$0xff]
        %v1545 = vld [vmem:[%s252 + $0x2550] sm:$0xff]
        %v1546 = vld [vmem:[%s252 + $0x2558] sm:$0xff]
        %v1547 = vld [vmem:[%s252 + $0x2560] sm:$0xff]
        %v1548 = vld [vmem:[%s252 + $0x2568] sm:$0xff]
        %v1549 = vld [vmem:[%s252 + $0x2570] sm:$0xff]
        %v1550 = vld [vmem:[%s252 + $0x2578] sm:$0xff]
        %v1551 = vld [vmem:[%s252 + $0x2580] sm:$0xff]
        %v1552 = vld [vmem:[%s252 + $0x2588] sm:$0xff]
        %v1553 = vld [vmem:[%s252 + $0x2590] sm:$0xff]
        %v1554 = vld [vmem:[%s252 + $0x2598] sm:$0xff]
        %v1555 = vld [vmem:[%s252 + $0x25a0] sm:$0xff]
        %v1556 = vld [vmem:[%s252 + $0x25a8] sm:$0xff]
        %v1557 = vld [vmem:[%s252 + $0x25b0] sm:$0xff]
        %v1558 = vld [vmem:[%s252 + $0x25b8] sm:$0xff]
        %v1559 = vld [vmem:[%s252 + $0x25c0] sm:$0xff]
        %v1560 = vld [vmem:[%s252 + $0x25c8] sm:$0xff]
        %v1561 = vld [vmem:[%s252 + $0x25d0] sm:$0xff]
        %v1562 = vld [vmem:[%s252 + $0x25d8] sm:$0xff]
        %v1563 = vld [vmem:[%s252 + $0x25e0] sm:$0xff]
        %v1564 = vld [vmem:[%s252 + $0x25e8] sm:$0xff]
        %v1565 = vld [vmem:[%s252 + $0x25f0] sm:$0xff]
        %v1566 = vld [vmem:[%s252 + $0x25f8] sm:$0xff]
        %v1567 = vld [vmem:[%s252 + $0x2600] sm:$0xff]
        %v1568 = vld [vmem:[%s252 + $0x2608] sm:$0xff]
        %v1569 = vld [vmem:[%s252 + $0x2610] sm:$0xff]
        %v1570 = vld [vmem:[%s252 + $0x2618] sm:$0xff]
        %v1571 = vld [vmem:[%s252 + $0x2620] sm:$0xff]
        %v1572 = vld [vmem:[%s252 + $0x2628] sm:$0xff]
        %v1573 = vld [vmem:[%s252 + $0x2630] sm:$0xff]
        %v1574 = vld [vmem:[%s252 + $0x2638] sm:$0xff]
        %v1575 = vld [vmem:[%s252 + $0x2640] sm:$0xff]
        %v1576 = vld [vmem:[%s252 + $0x2648] sm:$0xff]
        %v1577 = vld [vmem:[%s252 + $0x2650] sm:$0xff]
        %v1578 = vld [vmem:[%s252 + $0x2658] sm:$0xff]
        %v1579 = vld [vmem:[%s252 + $0x2660] sm:$0xff]
        %v1580 = vld [vmem:[%s252 + $0x2668] sm:$0xff]
        %v1581 = vld [vmem:[%s252 + $0x2670] sm:$0xff]
        %v1582 = vld [vmem:[%s252 + $0x2678] sm:$0xff]
        %v1583 = vld [vmem:[%s252 + $0x2680] sm:$0xff]
        %v1584 = vld [vmem:[%s252 + $0x2688] sm:$0xff]
        %v1585 = vld [vmem:[%s252 + $0x2690] sm:$0xff]
        %v1586 = vld [vmem:[%s252 + $0x2698] sm:$0xff]
        %v1587 = vld [vmem:[%s252 + $0x26a0] sm:$0xff]
        %v1588 = vld [vmem:[%s252 + $0x26a8] sm:$0xff]
        %v1589 = vld [vmem:[%s252 + $0x26b0] sm:$0xff]
        %v1590 = vld [vmem:[%s252 + $0x26b8] sm:$0xff]
        %v1591 = vld [vmem:[%s252 + $0x26c0] sm:$0xff]
        %v1592 = vld [vmem:[%s252 + $0x26c8] sm:$0xff]
        %v1593 = vld [vmem:[%s252 + $0x26d0] sm:$0xff]
        %v1594 = vld [vmem:[%s252 + $0x26d8] sm:$0xff]
        %v1595 = vld [vmem:[%s252 + $0x26e0] sm:$0xff]
        %v1596 = vld [vmem:[%s252 + $0x26e8] sm:$0xff]
        %v1597 = vld [vmem:[%s252 + $0x26f0] sm:$0xff]
        %v1598 = vld [vmem:[%s252 + $0x26f8] sm:$0xff]
        %v1599 = vld [vmem:[%s252 + $0x2700] sm:$0xff]
        %v1600 = vld [vmem:[%s252 + $0x2708] sm:$0xff]
        %v1601 = vld [vmem:[%s252 + $0x2710] sm:$0xff]
        %v1602 = vld [vmem:[%s252 + $0x2718] sm:$0xff]
        %v1603 = vld [vmem:[%s252 + $0x2720] sm:$0xff]
        %v1604 = vld [vmem:[%s252 + $0x2728] sm:$0xff]
        %v1605 = vld [vmem:[%s252 + $0x2730] sm:$0xff]
        %v1606 = vld [vmem:[%s252 + $0x2738] sm:$0xff]
        %v1607 = vld [vmem:[%s252 + $0x2740] sm:$0xff]
        %v1608 = vld [vmem:[%s252 + $0x2748] sm:$0xff]
        %v1609 = vld [vmem:[%s252 + $0x2750] sm:$0xff]
        %v1610 = vld [vmem:[%s252 + $0x2758] sm:$0xff]
        %v1611 = vld [vmem:[%s252 + $0x2760] sm:$0xff]
        %v1612 = vld [vmem:[%s252 + $0x2768] sm:$0xff]
        %v1613 = vld [vmem:[%s252 + $0x2770] sm:$0xff]
        %v1614 = vld [vmem:[%s252 + $0x2778] sm:$0xff]
        %v1615 = vld [vmem:[%s252 + $0x2780] sm:$0xff]
        %v1616 = vld [vmem:[%s252 + $0x2788] sm:$0xff]
        %v1617 = vld [vmem:[%s252 + $0x2790] sm:$0xff]
        %v1618 = vld [vmem:[%s252 + $0x2798] sm:$0xff]
        %v1619 = vld [vmem:[%s252 + $0x27a0] sm:$0xff]
        %v1620 = vld [vmem:[%s252 + $0x27a8] sm:$0xff]
        %v1621 = vld [vmem:[%s252 + $0x27b0] sm:$0xff]
        %v1622 = vld [vmem:[%s252 + $0x27b8] sm:$0xff]
        %v1623 = vld [vmem:[%s252 + $0x27c0] sm:$0xff]
        %v1624 = vld [vmem:[%s252 + $0x27c8] sm:$0xff]
        %v1625 = vld [vmem:[%s252 + $0x27d0] sm:$0xff]
        %v1626 = vld [vmem:[%s252 + $0x27d8] sm:$0xff]
        %v1627 = vld [vmem:[%s252 + $0x27e0] sm:$0xff]
        %v1628 = vld [vmem:[%s252 + $0x27e8] sm:$0xff]
        %v1629 = vld [vmem:[%s252 + $0x27f0] sm:$0xff]
        %v1630 = vld [vmem:[%s252 + $0x27f8] sm:$0xff]
        %v1631 = vld [vmem:[%s252 + $0x2800] sm:$0xff]
        %v1632 = vld [vmem:[%s252 + $0x2808] sm:$0xff]
        %v1633 = vld [vmem:[%s252 + $0x2810] sm:$0xff]
        %v1634 = vld [vmem:[%s252 + $0x2818] sm:$0xff]
        %v1635 = vld [vmem:[%s252 + $0x2820] sm:$0xff]
        %v1636 = vld [vmem:[%s252 + $0x2828] sm:$0xff]
        %v1637 = vld [vmem:[%s252 + $0x2830] sm:$0xff]
        %v1638 = vld [vmem:[%s252 + $0x2838] sm:$0xff]
        %v1639 = vld [vmem:[%s252 + $0x2840] sm:$0xff]
        %v1640 = vld [vmem:[%s252 + $0x2848] sm:$0xff]
        %v1641 = vld [vmem:[%s252 + $0x2850] sm:$0xff]
        %v1642 = vld [vmem:[%s252 + $0x2858] sm:$0xff]
        %v1643 = vld [vmem:[%s252 + $0x2860] sm:$0xff]
        %v1644 = vld [vmem:[%s252 + $0x2868] sm:$0xff]
        %v1645 = vld [vmem:[%s252 + $0x2870] sm:$0xff]
        %v1646 = vld [vmem:[%s252 + $0x2878] sm:$0xff]
        %v1647 = vld [vmem:[%s252 + $0x2880] sm:$0xff]
        %v1648 = vld [vmem:[%s252 + $0x2888] sm:$0xff]
        %v1649 = vld [vmem:[%s252 + $0x2890] sm:$0xff]
        %v1650 = vld [vmem:[%s252 + $0x2898] sm:$0xff]
        %v1651 = vld [vmem:[%s252 + $0x28a0] sm:$0xff]
        %v1652 = vld [vmem:[%s252 + $0x28a8] sm:$0xff]
        %v1653 = vld [vmem:[%s252 + $0x28b0] sm:$0xff]
        %v1654 = vld [vmem:[%s252 + $0x28b8] sm:$0xff]
        %v1655 = vld [vmem:[%s252 + $0x28c0] sm:$0xff]
        %v1656 = vld [vmem:[%s252 + $0x28c8] sm:$0xff]
        %v1657 = vld [vmem:[%s252 + $0x28d0] sm:$0xff]
        %v1658 = vld [vmem:[%s252 + $0x28d8] sm:$0xff]
        %v1659 = vld [vmem:[%s252 + $0x28e0] sm:$0xff]
        %v1660 = vld [vmem:[%s252 + $0x28e8] sm:$0xff]
        %v1661 = vld [vmem:[%s252 + $0x28f0] sm:$0xff]
        %v1662 = vld [vmem:[%s252 + $0x28f8] sm:$0xff]
        %v1663 = vld [vmem:[%s252 + $0x2900] sm:$0xff]
        %v1664 = vld [vmem:[%s252 + $0x2908] sm:$0xff]
        %v1665 = vld [vmem:[%s252 + $0x2910] sm:$0xff]
        %v1666 = vld [vmem:[%s252 + $0x2918] sm:$0xff]
        %v1667 = vld [vmem:[%s252 + $0x2920] sm:$0xff]
        %v1668 = vld [vmem:[%s252 + $0x2928] sm:$0xff]
        %v1669 = vld [vmem:[%s252 + $0x2930] sm:$0xff]
        %v1670 = vld [vmem:[%s252 + $0x2938] sm:$0xff]
        %v1671 = vld [vmem:[%s252 + $0x2940] sm:$0xff]
        %v1672 = vld [vmem:[%s252 + $0x2948] sm:$0xff]
        %v1673 = vld [vmem:[%s252 + $0x2950] sm:$0xff]
        %v1674 = vld [vmem:[%s252 + $0x2958] sm:$0xff]
        %v1675 = vld [vmem:[%s252 + $0x2960] sm:$0xff]
        %v1676 = vld [vmem:[%s252 + $0x2968] sm:$0xff]
        %v1677 = vld [vmem:[%s252 + $0x2970] sm:$0xff]
        %v1678 = vld [vmem:[%s252 + $0x2978] sm:$0xff]
        %v1679 = vld [vmem:[%s252 + $0x2980] sm:$0xff]
        %v1680 = vld [vmem:[%s252 + $0x2988] sm:$0xff]
        %v1681 = vld [vmem:[%s252 + $0x2990] sm:$0xff]
        %v1682 = vld [vmem:[%s252 + $0x2998] sm:$0xff]
        %v1683 = vld [vmem:[%s252 + $0x29a0] sm:$0xff]
        %v1684 = vld [vmem:[%s252 + $0x29a8] sm:$0xff]
        %v1685 = vld [vmem:[%s252 + $0x29b0] sm:$0xff]
        %v1686 = vld [vmem:[%s252 + $0x29b8] sm:$0xff]
        %v1687 = vld [vmem:[%s252 + $0x29c0] sm:$0xff]
        %v1688 = vld [vmem:[%s252 + $0x29c8] sm:$0xff]
        %v1689 = vld [vmem:[%s252 + $0x29d0] sm:$0xff]
        %v1690 = vld [vmem:[%s252 + $0x29d8] sm:$0xff]
        %v1691 = vld [vmem:[%s252 + $0x29e0] sm:$0xff]
        %v1692 = vld [vmem:[%s252 + $0x29e8] sm:$0xff]
        %v1693 = vld [vmem:[%s252 + $0x29f0] sm:$0xff]
        %v1694 = vld [vmem:[%s252 + $0x29f8] sm:$0xff]
        %v1695 = vld [vmem:[%s252 + $0x2a00] sm:$0xff]
        %v1696 = vld [vmem:[%s252 + $0x2a08] sm:$0xff]
        %v1697 = vld [vmem:[%s252 + $0x2a10] sm:$0xff]
        %v1698 = vld [vmem:[%s252 + $0x2a18] sm:$0xff]
        %v1699 = vld [vmem:[%s252 + $0x2a20] sm:$0xff]
        %v1700 = vld [vmem:[%s252 + $0x2a28] sm:$0xff]
        %v1701 = vld [vmem:[%s252 + $0x2a30] sm:$0xff]
        %v1702 = vld [vmem:[%s252 + $0x2a38] sm:$0xff]
        %v1703 = vld [vmem:[%s252 + $0x2a40] sm:$0xff]
        %v1704 = vld [vmem:[%s252 + $0x2a48] sm:$0xff]
        %v1705 = vld [vmem:[%s252 + $0x2a50] sm:$0xff]
        %v1706 = vld [vmem:[%s252 + $0x2a58] sm:$0xff]
        %v1707 = vld [vmem:[%s252 + $0x2a60] sm:$0xff]
        %v1708 = vld [vmem:[%s252 + $0x2a68] sm:$0xff]
        %v1709 = vld [vmem:[%s252 + $0x2a70] sm:$0xff]
        %v1710 = vld [vmem:[%s252 + $0x2a78] sm:$0xff]
        %v1711 = vld [vmem:[%s252 + $0x2a80] sm:$0xff]
        %v1712 = vld [vmem:[%s252 + $0x2a88] sm:$0xff]
        %v1713 = vld [vmem:[%s252 + $0x2a90] sm:$0xff]
        %v1714 = vld [vmem:[%s252 + $0x2a98] sm:$0xff]
        %v1715 = vld [vmem:[%s252 + $0x2aa0] sm:$0xff]
        %v1716 = vld [vmem:[%s252 + $0x2aa8] sm:$0xff]
        %v1717 = vld [vmem:[%s252 + $0x2ab0] sm:$0xff]
        %v1718 = vld [vmem:[%s252 + $0x2ab8] sm:$0xff]
        %v1719 = vld [vmem:[%s252 + $0x2ac0] sm:$0xff]
        %v1720 = vld [vmem:[%s252 + $0x2ac8] sm:$0xff]
        %v1721 = vld [vmem:[%s252 + $0x2ad0] sm:$0xff]
        %v1722 = vld [vmem:[%s252 + $0x2ad8] sm:$0xff]
        %v1723 = vld [vmem:[%s252 + $0x2ae0] sm:$0xff]
        %v1724 = vld [vmem:[%s252 + $0x2ae8] sm:$0xff]
        %v1725 = vld [vmem:[%s252 + $0x2af0] sm:$0xff]
        %v1726 = vld [vmem:[%s252 + $0x2af8] sm:$0xff]
        %v1727 = vld [vmem:[%s252 + $0x2b00] sm:$0xff]
        %v1728 = vld [vmem:[%s252 + $0x2b08] sm:$0xff]
        %v1729 = vld [vmem:[%s252 + $0x2b10] sm:$0xff]
        %v1730 = vld [vmem:[%s252 + $0x2b18] sm:$0xff]
        %v1731 = vld [vmem:[%s252 + $0x2b20] sm:$0xff]
        %v1732 = vld [vmem:[%s252 + $0x2b28] sm:$0xff]
        %v1733 = vld [vmem:[%s252 + $0x2b30] sm:$0xff]
        %v1734 = vld [vmem:[%s252 + $0x2b38] sm:$0xff]
        %v1735 = vld [vmem:[%s252 + $0x2b40] sm:$0xff]
        %v1736 = vld [vmem:[%s252 + $0x2b48] sm:$0xff]
        %v1737 = vld [vmem:[%s252 + $0x2b50] sm:$0xff]
        %v1738 = vld [vmem:[%s252 + $0x2b58] sm:$0xff]
        %v1739 = vld [vmem:[%s252 + $0x2b60] sm:$0xff]
        %v1740 = vld [vmem:[%s252 + $0x2b68] sm:$0xff]
        %v1741 = vld [vmem:[%s252 + $0x2b70] sm:$0xff]
        %v1742 = vld [vmem:[%s252 + $0x2b78] sm:$0xff]
        %v1743 = vld [vmem:[%s252 + $0x2b80] sm:$0xff]
        %v1744 = vld [vmem:[%s252 + $0x2b88] sm:$0xff]
        %v1745 = vld [vmem:[%s252 + $0x2b90] sm:$0xff]
        %v1746 = vld [vmem:[%s252 + $0x2b98] sm:$0xff]
        %v1747 = vld [vmem:[%s252 + $0x2ba0] sm:$0xff]
        %v1748 = vld [vmem:[%s252 + $0x2ba8] sm:$0xff]
        %v1749 = vld [vmem:[%s252 + $0x2bb0] sm:$0xff]
        %v1750 = vld [vmem:[%s252 + $0x2bb8] sm:$0xff]
        %v1751 = vld [vmem:[%s252 + $0x2bc0] sm:$0xff]
        %v1752 = vld [vmem:[%s252 + $0x2bc8] sm:$0xff]
        %v1753 = vld [vmem:[%s252 + $0x2bd0] sm:$0xff]
        %v1754 = vld [vmem:[%s252 + $0x2bd8] sm:$0xff]
        %v1755 = vld [vmem:[%s252 + $0x2be0] sm:$0xff]
        %v1756 = vld [vmem:[%s252 + $0x2be8] sm:$0xff]
        %v1757 = vld [vmem:[%s252 + $0x2bf0] sm:$0xff]
        %v1758 = vld [vmem:[%s252 + $0x2bf8] sm:$0xff]
        %v1759 = vld [vmem:[%s252 + $0x2c00] sm:$0xff]
        %v1760 = vld [vmem:[%s252 + $0x2c08] sm:$0xff]
        %v1761 = vld [vmem:[%s252 + $0x2c10] sm:$0xff]
        %v1762 = vld [vmem:[%s252 + $0x2c18] sm:$0xff]
        %v1763 = vld [vmem:[%s252 + $0x2c20] sm:$0xff]
        %v1764 = vld [vmem:[%s252 + $0x2c28] sm:$0xff]
        %v1765 = vld [vmem:[%s252 + $0x2c30] sm:$0xff]
        %v1766 = vld [vmem:[%s252 + $0x2c38] sm:$0xff]
        %v1767 = vld [vmem:[%s252 + $0x2c40] sm:$0xff]
        %v1768 = vld [vmem:[%s252 + $0x2c48] sm:$0xff]
        %v1769 = vld [vmem:[%s252 + $0x2c50] sm:$0xff]
        %v1770 = vld [vmem:[%s252 + $0x2c58] sm:$0xff]
        %v1771 = vld [vmem:[%s252 + $0x2c60] sm:$0xff]
        %v1772 = vld [vmem:[%s252 + $0x2c68] sm:$0xff]
        %v1773 = vld [vmem:[%s252 + $0x2c70] sm:$0xff]
        %v1774 = vld [vmem:[%s252 + $0x2c78] sm:$0xff]
        %v1775 = vld [vmem:[%s252 + $0x2c80] sm:$0xff]
        %v1776 = vld [vmem:[%s252 + $0x2c88] sm:$0xff]
        %v1777 = vld [vmem:[%s252 + $0x2c90] sm:$0xff]
        %v1778 = vld [vmem:[%s252 + $0x2c98] sm:$0xff]
        %v1779 = vld [vmem:[%s252 + $0x2ca0] sm:$0xff]
        %v1780 = vld [vmem:[%s252 + $0x2ca8] sm:$0xff]
        %v1781 = vld [vmem:[%s252 + $0x2cb0] sm:$0xff]
        %v1782 = vld [vmem:[%s252 + $0x2cb8] sm:$0xff]
        %v1783 = vld [vmem:[%s252 + $0x2cc0] sm:$0xff]
        %v1784 = vld [vmem:[%s252 + $0x2cc8] sm:$0xff]
        %v1785 = vld [vmem:[%s252 + $0x2cd0] sm:$0xff]
        %v1786 = vld [vmem:[%s252 + $0x2cd8] sm:$0xff]
        %v1787 = vld [vmem:[%s252 + $0x2ce0] sm:$0xff]
        %v1788 = vld [vmem:[%s252 + $0x2ce8] sm:$0xff]
        %v1789 = vld [vmem:[%s252 + $0x2cf0] sm:$0xff]
        %v1790 = vld [vmem:[%s252 + $0x2cf8] sm:$0xff]
        %v1791 = vld [vmem:[%s252 + $0x2d00] sm:$0xff]
        %v1792 = vld [vmem:[%s252 + $0x2d08] sm:$0xff]
        %v1793 = vld [vmem:[%s252 + $0x2d10] sm:$0xff]
        %v1794 = vld [vmem:[%s252 + $0x2d18] sm:$0xff]
        %v1795 = vld [vmem:[%s252 + $0x2d20] sm:$0xff]
        %v1796 = vld [vmem:[%s252 + $0x2d28] sm:$0xff]
        %v1797 = vld [vmem:[%s252 + $0x2d30] sm:$0xff]
        %v1798 = vld [vmem:[%s252 + $0x2d38] sm:$0xff]
        %v1799 = vld [vmem:[%s252 + $0x2d40] sm:$0xff]
        %v1800 = vld [vmem:[%s252 + $0x2d48] sm:$0xff]
        %v1801 = vld [vmem:[%s252 + $0x2d50] sm:$0xff]
        %v1802 = vld [vmem:[%s252 + $0x2d58] sm:$0xff]
        %v1803 = vld [vmem:[%s252 + $0x2d60] sm:$0xff]
        %v1804 = vld [vmem:[%s252 + $0x2d68] sm:$0xff]
        %v1805 = vld [vmem:[%s252 + $0x2d70] sm:$0xff]
        %v1806 = vld [vmem:[%s252 + $0x2d78] sm:$0xff]
        %v1807 = vld [vmem:[%s252 + $0x2d80] sm:$0xff]
        %v1808 = vld [vmem:[%s252 + $0x2d88] sm:$0xff]
        %v1809 = vld [vmem:[%s252 + $0x2d90] sm:$0xff]
        %v1810 = vld [vmem:[%s252 + $0x2d98] sm:$0xff]
        %v1811 = vld [vmem:[%s252 + $0x2da0] sm:$0xff]
        %v1812 = vld [vmem:[%s252 + $0x2da8] sm:$0xff]
        %v1813 = vld [vmem:[%s252 + $0x2db0] sm:$0xff]
        %v1814 = vld [vmem:[%s252 + $0x2db8] sm:$0xff]
        %v1815 = vld [vmem:[%s252 + $0x2dc0] sm:$0xff]
        %v1816 = vld [vmem:[%s252 + $0x2dc8] sm:$0xff]
        %v1817 = vld [vmem:[%s252 + $0x2dd0] sm:$0xff]
        %v1818 = vld [vmem:[%s252 + $0x2dd8] sm:$0xff]
        %v1819 = vld [vmem:[%s252 + $0x2de0] sm:$0xff]
        %v1820 = vld [vmem:[%s252 + $0x2de8] sm:$0xff]
        %v1821 = vld [vmem:[%s252 + $0x2df0] sm:$0xff]
        %v1822 = vld [vmem:[%s252 + $0x2df8] sm:$0xff]
        %v1823 = vld [vmem:[%s252 + $0x2e00] sm:$0xff]
        %v1824 = vld [vmem:[%s252 + $0x2e08] sm:$0xff]
        %v1825 = vld [vmem:[%s252 + $0x2e10] sm:$0xff]
        %v1826 = vld [vmem:[%s252 + $0x2e18] sm:$0xff]
        %v1827 = vld [vmem:[%s252 + $0x2e20] sm:$0xff]
        %v1828 = vld [vmem:[%s252 + $0x2e28] sm:$0xff]
        %v1829 = vld [vmem:[%s252 + $0x2e30] sm:$0xff]
        %v1830 = vld [vmem:[%s252 + $0x2e38] sm:$0xff]
        %v1831 = vld [vmem:[%s252 + $0x2e40] sm:$0xff]
        %v1832 = vld [vmem:[%s252 + $0x2e48] sm:$0xff]
        %v1833 = vld [vmem:[%s252 + $0x2e50] sm:$0xff]
        %v1834 = vld [vmem:[%s252 + $0x2e58] sm:$0xff]
        %v1835 = vld [vmem:[%s252 + $0x2e60] sm:$0xff]
        %v1836 = vld [vmem:[%s252 + $0x2e68] sm:$0xff]
        %v1837 = vld [vmem:[%s252 + $0x2e70] sm:$0xff]
        %v1838 = vld [vmem:[%s252 + $0x2e78] sm:$0xff]
        %v1839 = vld [vmem:[%s252 + $0x2e80] sm:$0xff]
        %v1840 = vld [vmem:[%s252 + $0x2e88] sm:$0xff]
        %v1841 = vld [vmem:[%s252 + $0x2e90] sm:$0xff]
        %v1842 = vld [vmem:[%s252 + $0x2e98] sm:$0xff]
        %v1843 = vld [vmem:[%s252 + $0x2ea0] sm:$0xff]
        %v1844 = vld [vmem:[%s252 + $0x2ea8] sm:$0xff]
        %v1845 = vld [vmem:[%s252 + $0x2eb0] sm:$0xff]
        %v1846 = vld [vmem:[%s252 + $0x2eb8] sm:$0xff]
        %v1847 = vld [vmem:[%s252 + $0x2ec0] sm:$0xff]
        %v1848 = vld [vmem:[%s252 + $0x2ec8] sm:$0xff]
        %v1849 = vld [vmem:[%s252 + $0x2ed0] sm:$0xff]
        %v1850 = vld [vmem:[%s252 + $0x2ed8] sm:$0xff]
        %v1851 = vld [vmem:[%s252 + $0x2ee0] sm:$0xff]
        %v1852 = vld [vmem:[%s252 + $0x2ee8] sm:$0xff]
        %v1853 = vld [vmem:[%s252 + $0x2ef0] sm:$0xff]
        %v1854 = vld [vmem:[%s252 + $0x2ef8] sm:$0xff]
        %v1855 = vld [vmem:[%s252 + $0x2f00] sm:$0xff]
        %v1856 = vld [vmem:[%s252 + $0x2f08] sm:$0xff]
        %v1857 = vld [vmem:[%s252 + $0x2f10] sm:$0xff]
        %v1858 = vld [vmem:[%s252 + $0x2f18] sm:$0xff]
        %v1859 = vld [vmem:[%s252 + $0x2f20] sm:$0xff]
        %v1860 = vld [vmem:[%s252 + $0x2f28] sm:$0xff]
        %v1861 = vld [vmem:[%s252 + $0x2f30] sm:$0xff]
        %v1862 = vld [vmem:[%s252 + $0x2f38] sm:$0xff]
        %v1863 = vld [vmem:[%s252 + $0x2f40] sm:$0xff]
        %v1864 = vld [vmem:[%s252 + $0x2f48] sm:$0xff]
        %v1865 = vld [vmem:[%s252 + $0x2f50] sm:$0xff]
        %v1866 = vld [vmem:[%s252 + $0x2f58] sm:$0xff]
        %v1867 = vld [vmem:[%s252 + $0x2f60] sm:$0xff]
        %v1868 = vld [vmem:[%s252 + $0x2f68] sm:$0xff]
        %v1869 = vld [vmem:[%s252 + $0x2f70] sm:$0xff]
        %v1870 = vld [vmem:[%s252 + $0x2f78] sm:$0xff]
        %v1871 = vld [vmem:[%s252 + $0x2f80] sm:$0xff]
        %v1872 = vld [vmem:[%s252 + $0x2f88] sm:$0xff]
        %v1873 = vld [vmem:[%s252 + $0x2f90] sm:$0xff]
        %v1874 = vld [vmem:[%s252 + $0x2f98] sm:$0xff]
        %v1875 = vld [vmem:[%s252 + $0x2fa0] sm:$0xff]
        %v1876 = vld [vmem:[%s252 + $0x2fa8] sm:$0xff]
        %v1877 = vld [vmem:[%s252 + $0x2fb0] sm:$0xff]
        %v1878 = vld [vmem:[%s252 + $0x2fb8] sm:$0xff]
        %v1879 = vld [vmem:[%s252 + $0x2fc0] sm:$0xff]
        %v1880 = vld [vmem:[%s252 + $0x2fc8] sm:$0xff]
        %v1881 = vld [vmem:[%s252 + $0x2fd0] sm:$0xff]
        %v1882 = vld [vmem:[%s252 + $0x2fd8] sm:$0xff]
        %v1883 = vld [vmem:[%s252 + $0x2fe0] sm:$0xff]
        %v1884 = vld [vmem:[%s252 + $0x2fe8] sm:$0xff]
        %v1885 = vld [vmem:[%s252 + $0x2ff0] sm:$0xff]
        %v1886 = vld [vmem:[%s252 + $0x2ff8] sm:$0xff]
        %v1887 = vld [vmem:[%s252 + $0x3000] sm:$0xff]
        %v1888 = vld [vmem:[%s252 + $0x3008] sm:$0xff]
        %v1889 = vld [vmem:[%s252 + $0x3010] sm:$0xff]
        %v1890 = vld [vmem:[%s252 + $0x3018] sm:$0xff]
        %v1891 = vld [vmem:[%s252 + $0x3020] sm:$0xff]
        %v1892 = vld [vmem:[%s252 + $0x3028] sm:$0xff]
        %v1893 = vld [vmem:[%s252 + $0x3030] sm:$0xff]
        %v1894 = vld [vmem:[%s252 + $0x3038] sm:$0xff]
        %v1895 = vld [vmem:[%s252 + $0x3040] sm:$0xff]
        %v1896 = vld [vmem:[%s252 + $0x3048] sm:$0xff]
        %v1897 = vld [vmem:[%s252 + $0x3050] sm:$0xff]
        %v1898 = vld [vmem:[%s252 + $0x3058] sm:$0xff]
        %v1899 = vld [vmem:[%s252 + $0x3060] sm:$0xff]
        %v1900 = vld [vmem:[%s252 + $0x3068] sm:$0xff]
        %v1901 = vld [vmem:[%s252 + $0x3070] sm:$0xff]
        %v1902 = vld [vmem:[%s252 + $0x3078] sm:$0xff]
        %v1903 = vld [vmem:[%s252 + $0x3080] sm:$0xff]
        %v1904 = vld [vmem:[%s252 + $0x3088] sm:$0xff]
        %v1905 = vld [vmem:[%s252 + $0x3090] sm:$0xff]
        %v1906 = vld [vmem:[%s252 + $0x3098] sm:$0xff]
        %v1907 = vld [vmem:[%s252 + $0x30a0] sm:$0xff]
        %v1908 = vld [vmem:[%s252 + $0x30a8] sm:$0xff]
        %v1909 = vld [vmem:[%s252 + $0x30b0] sm:$0xff]
        %v1910 = vld [vmem:[%s252 + $0x30b8] sm:$0xff]
        %v1911 = vld [vmem:[%s252 + $0x30c0] sm:$0xff]
        %v1912 = vld [vmem:[%s252 + $0x30c8] sm:$0xff]
        %v1913 = vld [vmem:[%s252 + $0x30d0] sm:$0xff]
        %v1914 = vld [vmem:[%s252 + $0x30d8] sm:$0xff]
        %v1915 = vld [vmem:[%s252 + $0x30e0] sm:$0xff]
        %v1916 = vld [vmem:[%s252 + $0x30e8] sm:$0xff]
        %v1917 = vld [vmem:[%s252 + $0x30f0] sm:$0xff]
        %v1918 = vld [vmem:[%s252 + $0x30f8] sm:$0xff]
        %v1919 = vld [vmem:[%s252 + $0x3100] sm:$0xff]
        %v1920 = vld [vmem:[%s252 + $0x3108] sm:$0xff]
        %v1921 = vld [vmem:[%s252 + $0x3110] sm:$0xff]
        %v1922 = vld [vmem:[%s252 + $0x3118] sm:$0xff]
        %v1923 = vld [vmem:[%s252 + $0x3120] sm:$0xff]
        %v1924 = vld [vmem:[%s252 + $0x3128] sm:$0xff]
        %v1925 = vld [vmem:[%s252 + $0x3130] sm:$0xff]
        %v1926 = vld [vmem:[%s252 + $0x3138] sm:$0xff]
        %v1927 = vld [vmem:[%s252 + $0x3140] sm:$0xff]
        %v1928 = vld [vmem:[%s252 + $0x3148] sm:$0xff]
        %v1929 = vld [vmem:[%s252 + $0x3150] sm:$0xff]
        %v1930 = vld [vmem:[%s252 + $0x3158] sm:$0xff]
        %v1931 = vld [vmem:[%s252 + $0x3160] sm:$0xff]
        %v1932 = vld [vmem:[%s252 + $0x3168] sm:$0xff]
        %v1933 = vld [vmem:[%s252 + $0x3170] sm:$0xff]
        %v1934 = vld [vmem:[%s252 + $0x3178] sm:$0xff]
        %v1935 = vld [vmem:[%s252 + $0x3180] sm:$0xff]
        %v1936 = vld [vmem:[%s252 + $0x3188] sm:$0xff]
        %v1937 = vld [vmem:[%s252 + $0x3190] sm:$0xff]
        %v1938 = vld [vmem:[%s252 + $0x3198] sm:$0xff]
        %v1939 = vld [vmem:[%s252 + $0x31a0] sm:$0xff]
        %v1940 = vld [vmem:[%s252 + $0x31a8] sm:$0xff]
        %v1941 = vld [vmem:[%s252 + $0x31b0] sm:$0xff]
        %v1942 = vld [vmem:[%s252 + $0x31b8] sm:$0xff]
        %v1943 = vld [vmem:[%s252 + $0x31c0] sm:$0xff]
        %v1944 = vld [vmem:[%s252 + $0x31c8] sm:$0xff]
        %v1945 = vld [vmem:[%s252 + $0x31d0] sm:$0xff]
        %v1946 = vld [vmem:[%s252 + $0x31d8] sm:$0xff]
        %v1947 = vld [vmem:[%s252 + $0x31e0] sm:$0xff]
        %v1948 = vld [vmem:[%s252 + $0x31e8] sm:$0xff]
        %v1949 = vld [vmem:[%s252 + $0x31f0] sm:$0xff]
        %v1950 = vld [vmem:[%s252 + $0x31f8] sm:$0xff]
        %v1951 = vld [vmem:[%s252 + $0x3200] sm:$0xff]
        %v1952 = vld [vmem:[%s252 + $0x3208] sm:$0xff]
        %v1953 = vld [vmem:[%s252 + $0x3210] sm:$0xff]
        %v1954 = vld [vmem:[%s252 + $0x3218] sm:$0xff]
        %v1955 = vld [vmem:[%s252 + $0x3220] sm:$0xff]
        %v1956 = vld [vmem:[%s252 + $0x3228] sm:$0xff]
        %v1957 = vld [vmem:[%s252 + $0x3230] sm:$0xff]
        %v1958 = vld [vmem:[%s252 + $0x3238] sm:$0xff]
        %v1959 = vld [vmem:[%s252 + $0x3240] sm:$0xff]
        %v1960 = vld [vmem:[%s252 + $0x3248] sm:$0xff]
        %v1961 = vld [vmem:[%s252 + $0x3250] sm:$0xff]
        %v1962 = vld [vmem:[%s252 + $0x3258] sm:$0xff]
        %v1963 = vld [vmem:[%s252 + $0x3260] sm:$0xff]
        %v1964 = vld [vmem:[%s252 + $0x3268] sm:$0xff]
        %v1965 = vld [vmem:[%s252 + $0x3270] sm:$0xff]
        %v1966 = vld [vmem:[%s252 + $0x3278] sm:$0xff]
        %v1967 = vld [vmem:[%s252 + $0x3280] sm:$0xff]
        %v1968 = vld [vmem:[%s252 + $0x3288] sm:$0xff]
        %v1969 = vld [vmem:[%s252 + $0x3290] sm:$0xff]
        %v1970 = vld [vmem:[%s252 + $0x3298] sm:$0xff]
        %v1971 = vld [vmem:[%s252 + $0x32a0] sm:$0xff]
        %v1972 = vld [vmem:[%s252 + $0x32a8] sm:$0xff]
        %v1973 = vld [vmem:[%s252 + $0x32b0] sm:$0xff]
        %v1974 = vld [vmem:[%s252 + $0x32b8] sm:$0xff]
        %v1975 = vld [vmem:[%s252 + $0x32c0] sm:$0xff]
        %v1976 = vld [vmem:[%s252 + $0x32c8] sm:$0xff]
        %v1977 = vld [vmem:[%s252 + $0x32d0] sm:$0xff]
        %v1978 = vld [vmem:[%s252 + $0x32d8] sm:$0xff]
        %v1979 = vld [vmem:[%s252 + $0x32e0] sm:$0xff]
        %v1980 = vld [vmem:[%s252 + $0x32e8] sm:$0xff]
        %v1981 = vld [vmem:[%s252 + $0x32f0] sm:$0xff]
        %v1982 = vld [vmem:[%s252 + $0x32f8] sm:$0xff]
        %v1983 = vld [vmem:[%s252 + $0x3300] sm:$0xff]
        %v1984 = vld [vmem:[%s252 + $0x3308] sm:$0xff]
        %v1985 = vld [vmem:[%s252 + $0x3310] sm:$0xff]
        %v1986 = vld [vmem:[%s252 + $0x3318] sm:$0xff]
        %v1987 = vld [vmem:[%s252 + $0x3320] sm:$0xff]
        %v1988 = vld [vmem:[%s252 + $0x3328] sm:$0xff]
        %v1989 = vld [vmem:[%s252 + $0x3330] sm:$0xff]
        %v1990 = vld [vmem:[%s252 + $0x3338] sm:$0xff]
        %v1991 = vld [vmem:[%s252 + $0x3340] sm:$0xff]
        %v1992 = vld [vmem:[%s252 + $0x3348] sm:$0xff]
        %v1993 = vld [vmem:[%s252 + $0x3350] sm:$0xff]
        %v1994 = vld [vmem:[%s252 + $0x3358] sm:$0xff]
        %v1995 = vld [vmem:[%s252 + $0x3360] sm:$0xff]
        %v1996 = vld [vmem:[%s252 + $0x3368] sm:$0xff]
        %v1997 = vld [vmem:[%s252 + $0x3370] sm:$0xff]
        %v1998 = vld [vmem:[%s252 + $0x3378] sm:$0xff]
        %v1999 = vld [vmem:[%s252 + $0x3380] sm:$0xff]
        %v2000 = vld [vmem:[%s252 + $0x3388] sm:$0xff]
        %v2001 = vld [vmem:[%s252 + $0x3390] sm:$0xff]
        %v2002 = vld [vmem:[%s252 + $0x3398] sm:$0xff]
        %v2003 = vld [vmem:[%s252 + $0x33a0] sm:$0xff]
        %v2004 = vld [vmem:[%s252 + $0x33a8] sm:$0xff]
        %v2005 = vld [vmem:[%s252 + $0x33b0] sm:$0xff]
        %v2006 = vld [vmem:[%s252 + $0x33b8] sm:$0xff]
        %v2007 = vld [vmem:[%s252 + $0x33c0] sm:$0xff]
        %v2008 = vld [vmem:[%s252 + $0x33c8] sm:$0xff]
        %v2009 = vld [vmem:[%s252 + $0x33d0] sm:$0xff]
        %v2010 = vld [vmem:[%s252 + $0x33d8] sm:$0xff]
        %v2011 = vld [vmem:[%s252 + $0x33e0] sm:$0xff]
        %v2012 = vld [vmem:[%s252 + $0x33e8] sm:$0xff]
        %v2013 = vld [vmem:[%s252 + $0x33f0] sm:$0xff]
        %v2014 = vld [vmem:[%s252 + $0x33f8] sm:$0xff]
        %v2015 = vld [vmem:[%s252 + $0x3400] sm:$0xff]
        %v2016 = vld [vmem:[%s252 + $0x3408] sm:$0xff]
        %v2017 = vld [vmem:[%s252 + $0x3410] sm:$0xff]
        %v2018 = vld [vmem:[%s252 + $0x3418] sm:$0xff]
        %v2019 = vld [vmem:[%s252 + $0x3420] sm:$0xff]
        %v2020 = vld [vmem:[%s252 + $0x3428] sm:$0xff]
        %v2021 = vld [vmem:[%s252 + $0x3430] sm:$0xff]
        %v2022 = vld [vmem:[%s252 + $0x3438] sm:$0xff]
        %v2023 = vld [vmem:[%s252 + $0x3440] sm:$0xff]
        %v2024 = vld [vmem:[%s252 + $0x3448] sm:$0xff]
        %v2025 = vld [vmem:[%s252 + $0x3450] sm:$0xff]
        %v2026 = vld [vmem:[%s252 + $0x3458] sm:$0xff]
        %v2027 = vld [vmem:[%s252 + $0x3460] sm:$0xff]
        %v2028 = vld [vmem:[%s252 + $0x3468] sm:$0xff]
        %v2029 = vld [vmem:[%s252 + $0x3470] sm:$0xff]
        %v2030 = vld [vmem:[%s252 + $0x3478] sm:$0xff]
        %v2031 = vld [vmem:[%s252 + $0x3480] sm:$0xff]
        %v2032 = vld [vmem:[%s252 + $0x3488] sm:$0xff]
        %v2033 = vld [vmem:[%s252 + $0x3490] sm:$0xff]
        %v2034 = vld [vmem:[%s252 + $0x3498] sm:$0xff]
        %v2035 = vld [vmem:[%s252 + $0x34a0] sm:$0xff]
        %v2036 = vld [vmem:[%s252 + $0x34a8] sm:$0xff]
        %v2037 = vld [vmem:[%s252 + $0x34b0] sm:$0xff]
        %v2038 = vld [vmem:[%s252 + $0x34b8] sm:$0xff]
        %v2039 = vld [vmem:[%s252 + $0x34c0] sm:$0xff]
        %v2040 = vld [vmem:[%s252 + $0x34c8] sm:$0xff]
        %v2041 = vld [vmem:[%s252 + $0x34d0] sm:$0xff]
        %v2042 = vld [vmem:[%s252 + $0x34d8] sm:$0xff]
        %v2043 = vld [vmem:[%s252 + $0x34e0] sm:$0xff]
        %v2044 = vld [vmem:[%s252 + $0x34e8] sm:$0xff]
        %v2045 = vld [vmem:[%s252 + $0x34f0] sm:$0xff]
        %v2046 = vld [vmem:[%s252 + $0x34f8] sm:$0xff]
        %v2047 = vld [vmem:[%s252 + $0x3500] sm:$0xff]
        %v2048 = vld [vmem:[%s252 + $0x3508] sm:$0xff]
        %v2049 = vld [vmem:[%s252 + $0x3510] sm:$0xff]
        %v2050 = vld [vmem:[%s252 + $0x3518] sm:$0xff]
        %v2051 = vld [vmem:[%s252 + $0x3520] sm:$0xff]
        %v2052 = vld [vmem:[%s252 + $0x3528] sm:$0xff]
        %v2053 = vld [vmem:[%s252 + $0x3530] sm:$0xff]
        %v2054 = vld [vmem:[%s252 + $0x3538] sm:$0xff]
        %v2055 = vld [vmem:[%s252 + $0x3540] sm:$0xff]
        %v2056 = vld [vmem:[%s252 + $0x3548] sm:$0xff]
        %v2057 = vld [vmem:[%s252 + $0x3550] sm:$0xff]
        %v2058 = vld [vmem:[%s252 + $0x3558] sm:$0xff]
        %v2059 = vld [vmem:[%s252 + $0x3560] sm:$0xff]
        %v2060 = vld [vmem:[%s252 + $0x3568] sm:$0xff]
        %v2061 = vld [vmem:[%s252 + $0x3570] sm:$0xff]
        %v2062 = vld [vmem:[%s252 + $0x3578] sm:$0xff]
        %v2063 = vld [vmem:[%s252 + $0x3580] sm:$0xff]
        %v2064 = vld [vmem:[%s252 + $0x3588] sm:$0xff]
        %v2065 = vld [vmem:[%s252 + $0x3590] sm:$0xff]
        %v2066 = vld [vmem:[%s252 + $0x3598] sm:$0xff]
        %v2067 = vld [vmem:[%s252 + $0x35a0] sm:$0xff]
        %v2068 = vld [vmem:[%s252 + $0x35a8] sm:$0xff]
        %v2069 = vld [vmem:[%s252 + $0x35b0] sm:$0xff]
        %v2070 = vld [vmem:[%s252 + $0x35b8] sm:$0xff]
        %v2071 = vld [vmem:[%s252 + $0x35c0] sm:$0xff]
        %v2072 = vld [vmem:[%s252 + $0x35c8] sm:$0xff]
        %v2073 = vld [vmem:[%s252 + $0x35d0] sm:$0xff]
        %v2074 = vld [vmem:[%s252 + $0x35d8] sm:$0xff]
        %v2075 = vld [vmem:[%s252 + $0x35e0] sm:$0xff]
        %v2076 = vld [vmem:[%s252 + $0x35e8] sm:$0xff]
        %v2077 = vld [vmem:[%s252 + $0x35f0] sm:$0xff]
        %v2078 = vld [vmem:[%s252 + $0x35f8] sm:$0xff]
        %v2079 = vld [vmem:[%s252 + $0x3600] sm:$0xff]
        %v2080 = vld [vmem:[%s252 + $0x3608] sm:$0xff]
        %v2081 = vld [vmem:[%s252 + $0x3610] sm:$0xff]
        %v2082 = vld [vmem:[%s252 + $0x3618] sm:$0xff]
        %v2083 = vld [vmem:[%s252 + $0x3620] sm:$0xff]
        %v2084 = vld [vmem:[%s252 + $0x3628] sm:$0xff]
        %v2085 = vld [vmem:[%s252 + $0x3630] sm:$0xff]
        %v2086 = vld [vmem:[%s252 + $0x3638] sm:$0xff]
        %v2087 = vld [vmem:[%s252 + $0x3640] sm:$0xff]
        %v2088 = vld [vmem:[%s252 + $0x3648] sm:$0xff]
        %v2089 = vld [vmem:[%s252 + $0x3650] sm:$0xff]
        %v2090 = vld [vmem:[%s252 + $0x3658] sm:$0xff]
        %v2091 = vld [vmem:[%s252 + $0x3660] sm:$0xff]
        %v2092 = vld [vmem:[%s252 + $0x3668] sm:$0xff]
        %v2093 = vld [vmem:[%s252 + $0x3670] sm:$0xff]
        %v2094 = vld [vmem:[%s252 + $0x3678] sm:$0xff]
        %v2095 = vld [vmem:[%s252 + $0x3680] sm:$0xff]
        %v2096 = vld [vmem:[%s252 + $0x3688] sm:$0xff]
        %v2097 = vld [vmem:[%s252 + $0x3690] sm:$0xff]
        %v2098 = vld [vmem:[%s252 + $0x3698] sm:$0xff]
        %v2099 = vld [vmem:[%s252 + $0x36a0] sm:$0xff]
        %v2100 = vld [vmem:[%s252 + $0x36a8] sm:$0xff]
        %v2101 = vld [vmem:[%s252 + $0x36b0] sm:$0xff]
        %v2102 = vld [vmem:[%s252 + $0x36b8] sm:$0xff]
        %v2103 = vld [vmem:[%s252 + $0x36c0] sm:$0xff]
        %v2104 = vld [vmem:[%s252 + $0x36c8] sm:$0xff]
        %v2105 = vld [vmem:[%s252 + $0x36d0] sm:$0xff]
        %v2106 = vld [vmem:[%s252 + $0x36d8] sm:$0xff]
        %v2107 = vld [vmem:[%s252 + $0x36e0] sm:$0xff]
        %v2108 = vld [vmem:[%s252 + $0x36e8] sm:$0xff]
        %v2109 = vld [vmem:[%s252 + $0x36f0] sm:$0xff]
        %v2110 = vld [vmem:[%s252 + $0x36f8] sm:$0xff]
        %v2111 = vld [vmem:[%s252 + $0x3700] sm:$0xff]
        %v2112 = vld [vmem:[%s252 + $0x3708] sm:$0xff]
        %v2113 = vld [vmem:[%s252 + $0x3710] sm:$0xff]
        %v2114 = vld [vmem:[%s252 + $0x3718] sm:$0xff]
        %v2115 = vld [vmem:[%s252 + $0x3720] sm:$0xff]
        %v2116 = vld [vmem:[%s252 + $0x3728] sm:$0xff]
        %v2117 = vld [vmem:[%s252 + $0x3730] sm:$0xff]
        %v2118 = vld [vmem:[%s252 + $0x3738] sm:$0xff]
        %v2119 = vld [vmem:[%s252 + $0x3740] sm:$0xff]
        %v2120 = vld [vmem:[%s252 + $0x3748] sm:$0xff]
        %v2121 = vld [vmem:[%s252 + $0x3750] sm:$0xff]
        %v2122 = vld [vmem:[%s252 + $0x3758] sm:$0xff]
        %v2123 = vld [vmem:[%s252 + $0x3760] sm:$0xff]
        %v2124 = vld [vmem:[%s252 + $0x3768] sm:$0xff]
        %v2125 = vld [vmem:[%s252 + $0x3770] sm:$0xff]
        %v2126 = vld [vmem:[%s252 + $0x3778] sm:$0xff]
        %v2127 = vld [vmem:[%s252 + $0x3780] sm:$0xff]
        %v2128 = vld [vmem:[%s252 + $0x3788] sm:$0xff]
        %v2129 = vld [vmem:[%s252 + $0x3790] sm:$0xff]
        %v2130 = vld [vmem:[%s252 + $0x3798] sm:$0xff]
        %v2131 = vld [vmem:[%s252 + $0x37a0] sm:$0xff]
        %v2132 = vld [vmem:[%s252 + $0x37a8] sm:$0xff]
        %v2133 = vld [vmem:[%s252 + $0x37b0] sm:$0xff]
        %v2134 = vld [vmem:[%s252 + $0x37b8] sm:$0xff]
        %v2135 = vld [vmem:[%s252 + $0x37c0] sm:$0xff]
        %v2136 = vld [vmem:[%s252 + $0x37c8] sm:$0xff]
        %v2137 = vld [vmem:[%s252 + $0x37d0] sm:$0xff]
        %v2138 = vld [vmem:[%s252 + $0x37d8] sm:$0xff]
        %v2139 = vld [vmem:[%s252 + $0x37e0] sm:$0xff]
        %v2140 = vld [vmem:[%s252 + $0x37e8] sm:$0xff]
        %v2141 = vld [vmem:[%s252 + $0x37f0] sm:$0xff]
        %v2142 = vld [vmem:[%s252 + $0x37f8] sm:$0xff]
        %v2143 = vld [vmem:[%s252 + $0x3800] sm:$0xff]
        %v2144 = vld [vmem:[%s252 + $0x3808] sm:$0xff]
        %v2145 = vld [vmem:[%s252 + $0x3810] sm:$0xff]
        %v2146 = vld [vmem:[%s252 + $0x3818] sm:$0xff]
        %v2147 = vld [vmem:[%s252 + $0x3820] sm:$0xff]
        %v2148 = vld [vmem:[%s252 + $0x3828] sm:$0xff]
        %v2149 = vld [vmem:[%s252 + $0x3830] sm:$0xff]
        %v2150 = vld [vmem:[%s252 + $0x3838] sm:$0xff]
        %v2151 = vld [vmem:[%s252 + $0x3840] sm:$0xff]
        %v2152 = vld [vmem:[%s252 + $0x3848] sm:$0xff]
        %v2153 = vld [vmem:[%s252 + $0x3850] sm:$0xff]
        %v2154 = vld [vmem:[%s252 + $0x3858] sm:$0xff]
        %v2155 = vld [vmem:[%s252 + $0x3860] sm:$0xff]
        %v2156 = vld [vmem:[%s252 + $0x3868] sm:$0xff]
        %v2157 = vld [vmem:[%s252 + $0x3870] sm:$0xff]
        %v2158 = vld [vmem:[%s252 + $0x3878] sm:$0xff]
        %v2159 = vld [vmem:[%s252 + $0x3880] sm:$0xff]
        %v2160 = vld [vmem:[%s252 + $0x3888] sm:$0xff]
        %v2161 = vld [vmem:[%s252 + $0x3890] sm:$0xff]
        %v2162 = vld [vmem:[%s252 + $0x3898] sm:$0xff]
        %v2163 = vld [vmem:[%s252 + $0x38a0] sm:$0xff]
        %v2164 = vld [vmem:[%s252 + $0x38a8] sm:$0xff]
        %v2165 = vld [vmem:[%s252 + $0x38b0] sm:$0xff]
        %v2166 = vld [vmem:[%s252 + $0x38b8] sm:$0xff]
        %v2167 = vld [vmem:[%s252 + $0x38c0] sm:$0xff]
        %v2168 = vld [vmem:[%s252 + $0x38c8] sm:$0xff]
        %v2169 = vld [vmem:[%s252 + $0x38d0] sm:$0xff]
        %v2170 = vld [vmem:[%s252 + $0x38d8] sm:$0xff]
        %v2171 = vld [vmem:[%s252 + $0x38e0] sm:$0xff]
        %v2172 = vld [vmem:[%s252 + $0x38e8] sm:$0xff]
        %v2173 = vld [vmem:[%s252 + $0x38f0] sm:$0xff]
        %v2174 = vld [vmem:[%s252 + $0x38f8] sm:$0xff]
        %v2175 = vld [vmem:[%s252 + $0x3900] sm:$0xff]
        %v2176 = vld [vmem:[%s252 + $0x3908] sm:$0xff]
        %v2177 = vld [vmem:[%s252 + $0x3910] sm:$0xff]
        %v2178 = vld [vmem:[%s252 + $0x3918] sm:$0xff]
        %v2179 = vld [vmem:[%s252 + $0x3920] sm:$0xff]
        %v2180 = vld [vmem:[%s252 + $0x3928] sm:$0xff]
        %v2181 = vld [vmem:[%s252 + $0x3930] sm:$0xff]
        %v2182 = vld [vmem:[%s252 + $0x3938] sm:$0xff]
        %v2183 = vld [vmem:[%s252 + $0x3940] sm:$0xff]
        %v2184 = vld [vmem:[%s252 + $0x3948] sm:$0xff]
        %v2185 = vld [vmem:[%s252 + $0x3950] sm:$0xff]
        %v2186 = vld [vmem:[%s252 + $0x3958] sm:$0xff]
        %v2187 = vld [vmem:[%s252 + $0x3960] sm:$0xff]
        %v2188 = vld [vmem:[%s252 + $0x3968] sm:$0xff]
        %v2189 = vld [vmem:[%s252 + $0x3970] sm:$0xff]
        %v2190 = vld [vmem:[%s252 + $0x3978] sm:$0xff]
        %v2191 = vld [vmem:[%s252 + $0x3980] sm:$0xff]
        %v2192 = vld [vmem:[%s252 + $0x3988] sm:$0xff]
        %v2193 = vld [vmem:[%s252 + $0x3990] sm:$0xff]
        %v2194 = vld [vmem:[%s252 + $0x3998] sm:$0xff]
        %v2195 = vld [vmem:[%s252 + $0x39a0] sm:$0xff]
        %v2196 = vld [vmem:[%s252 + $0x39a8] sm:$0xff]
        %v2197 = vld [vmem:[%s252 + $0x39b0] sm:$0xff]
        %v2198 = vld [vmem:[%s252 + $0x39b8] sm:$0xff]
        %v2199 = vld [vmem:[%s252 + $0x39c0] sm:$0xff]
        %v2200 = vld [vmem:[%s252 + $0x39c8] sm:$0xff]
        %v2201 = vld [vmem:[%s252 + $0x39d0] sm:$0xff]
        %v2202 = vld [vmem:[%s252 + $0x39d8] sm:$0xff]
        %v2203 = vld [vmem:[%s252 + $0x39e0] sm:$0xff]
        %v2204 = vld [vmem:[%s252 + $0x39e8] sm:$0xff]
        %v2205 = vld [vmem:[%s252 + $0x39f0] sm:$0xff]
        %v2206 = vld [vmem:[%s252 + $0x39f8] sm:$0xff]
        %v2207 = vld [vmem:[%s252 + $0x3a00] sm:$0xff]
        %v2208 = vld [vmem:[%s252 + $0x3a08] sm:$0xff]
        %v2209 = vld [vmem:[%s252 + $0x3a10] sm:$0xff]
        %v2210 = vld [vmem:[%s252 + $0x3a18] sm:$0xff]
        %v2211 = vld [vmem:[%s252 + $0x3a20] sm:$0xff]
        %v2212 = vld [vmem:[%s252 + $0x3a28] sm:$0xff]
        %v2213 = vld [vmem:[%s252 + $0x3a30] sm:$0xff]
        %v2214 = vld [vmem:[%s252 + $0x3a38] sm:$0xff]
        %v2215 = vld [vmem:[%s252 + $0x3a40] sm:$0xff]
        %v2216 = vld [vmem:[%s252 + $0x3a48] sm:$0xff]
        %v2217 = vld [vmem:[%s252 + $0x3a50] sm:$0xff]
        %v2218 = vld [vmem:[%s252 + $0x3a58] sm:$0xff]
        %v2219 = vld [vmem:[%s252 + $0x3a60] sm:$0xff]
        %v2220 = vld [vmem:[%s252 + $0x3a68] sm:$0xff]
        %v2221 = vld [vmem:[%s252 + $0x3a70] sm:$0xff]
        %v2222 = vld [vmem:[%s252 + $0x3a78] sm:$0xff]
        %v2223 = vld [vmem:[%s252 + $0x3a80] sm:$0xff]
        %v2224 = vld [vmem:[%s252 + $0x3a88] sm:$0xff]
        %v2225 = vld [vmem:[%s252 + $0x3a90] sm:$0xff]
        %v2226 = vld [vmem:[%s252 + $0x3a98] sm:$0xff]
        %v2227 = vld [vmem:[%s252 + $0x3aa0] sm:$0xff]
        %v2228 = vld [vmem:[%s252 + $0x3aa8] sm:$0xff]
        %v2229 = vld [vmem:[%s252 + $0x3ab0] sm:$0xff]
        %v2230 = vld [vmem:[%s252 + $0x3ab8] sm:$0xff]
        %v2231 = vld [vmem:[%s252 + $0x3ac0] sm:$0xff]
        %v2232 = vld [vmem:[%s252 + $0x3ac8] sm:$0xff]
        %v2233 = vld [vmem:[%s252 + $0x3ad0] sm:$0xff]
        %v2234 = vld [vmem:[%s252 + $0x3ad8] sm:$0xff]
        %v2235 = vld [vmem:[%s252 + $0x3ae0] sm:$0xff]
        %v2236 = vld [vmem:[%s252 + $0x3ae8] sm:$0xff]
        %v2237 = vld [vmem:[%s252 + $0x3af0] sm:$0xff]
        %v2238 = vld [vmem:[%s252 + $0x3af8] sm:$0xff]
        %v2239 = vld [vmem:[%s252 + $0x3b00] sm:$0xff]
        %v2240 = vld [vmem:[%s252 + $0x3b08] sm:$0xff]
        %v2241 = vld [vmem:[%s252 + $0x3b10] sm:$0xff]
        %v2242 = vld [vmem:[%s252 + $0x3b18] sm:$0xff]
        %v2243 = vld [vmem:[%s252 + $0x3b20] sm:$0xff]
        %v2244 = vld [vmem:[%s252 + $0x3b28] sm:$0xff]
        %v2245 = vld [vmem:[%s252 + $0x3b30] sm:$0xff]
        %v2246 = vld [vmem:[%s252 + $0x3b38] sm:$0xff]
        %v2247 = vld [vmem:[%s252 + $0x3b40] sm:$0xff]
        %v2248 = vld [vmem:[%s252 + $0x3b48] sm:$0xff]
        %v2249 = vld [vmem:[%s252 + $0x3b50] sm:$0xff]
        %v2250 = vld [vmem:[%s252 + $0x3b58] sm:$0xff]
        %v2251 = vld [vmem:[%s252 + $0x3b60] sm:$0xff]
        %v2252 = vld [vmem:[%s252 + $0x3b68] sm:$0xff]
        %v2253 = vld [vmem:[%s252 + $0x3b70] sm:$0xff]
        %v2254 = vld [vmem:[%s252 + $0x3b78] sm:$0xff]
        %v2255 = vld [vmem:[%s252 + $0x3b80] sm:$0xff]
        %v2256 = vld [vmem:[%s252 + $0x3b88] sm:$0xff]
        %v2257 = vld [vmem:[%s252 + $0x3b90] sm:$0xff]
        %v2258 = vld [vmem:[%s252 + $0x3b98] sm:$0xff]
        %v2259 = vld [vmem:[%s252 + $0x3ba0] sm:$0xff]
        %v2260 = vld [vmem:[%s252 + $0x3ba8] sm:$0xff]
        %v2261 = vld [vmem:[%s252 + $0x3bb0] sm:$0xff]
        %v2262 = vld [vmem:[%s252 + $0x3bb8] sm:$0xff]
        %v2263 = vld [vmem:[%s252 + $0x3bc0] sm:$0xff]
        %v2264 = vld [vmem:[%s252 + $0x3bc8] sm:$0xff]
        %v2265 = vld [vmem:[%s252 + $0x3bd0] sm:$0xff]
        %v2266 = vld [vmem:[%s252 + $0x3bd8] sm:$0xff]
        %v2267 = vld [vmem:[%s252 + $0x3be0] sm:$0xff]
        %v2268 = vld [vmem:[%s252 + $0x3be8] sm:$0xff]
        %v2269 = vld [vmem:[%s252 + $0x3bf0] sm:$0xff]
        %v2270 = vld [vmem:[%s252 + $0x3bf8] sm:$0xff]
        %v2271 = vld [vmem:[%s252 + $0x3c00] sm:$0xff]
        %v2272 = vld [vmem:[%s252 + $0x3c08] sm:$0xff]
        %v2273 = vld [vmem:[%s252 + $0x3c10] sm:$0xff]
        %v2274 = vld [vmem:[%s252 + $0x3c18] sm:$0xff]
        %v2275 = vld [vmem:[%s252 + $0x3c20] sm:$0xff]
        %v2276 = vld [vmem:[%s252 + $0x3c28] sm:$0xff]
        %v2277 = vld [vmem:[%s252 + $0x3c30] sm:$0xff]
        %v2278 = vld [vmem:[%s252 + $0x3c38] sm:$0xff]
        %v2279 = vld [vmem:[%s252 + $0x3c40] sm:$0xff]
        %v2280 = vld [vmem:[%s252 + $0x3c48] sm:$0xff]
        %v2281 = vld [vmem:[%s252 + $0x3c50] sm:$0xff]
        %v2282 = vld [vmem:[%s252 + $0x3c58] sm:$0xff]
        %v2283 = vld [vmem:[%s252 + $0x3c60] sm:$0xff]
        %v2284 = vld [vmem:[%s252 + $0x3c68] sm:$0xff]
        %v2285 = vld [vmem:[%s252 + $0x3c70] sm:$0xff]
        %v2286 = vld [vmem:[%s252 + $0x3c78] sm:$0xff]
        %v2287 = vld [vmem:[%s252 + $0x3c80] sm:$0xff]
        %v2288 = vld [vmem:[%s252 + $0x3c88] sm:$0xff]
        %v2289 = vld [vmem:[%s252 + $0x3c90] sm:$0xff]
        %v2290 = vld [vmem:[%s252 + $0x3c98] sm:$0xff]
        %v2291 = vld [vmem:[%s252 + $0x3ca0] sm:$0xff]
        %v2292 = vld [vmem:[%s252 + $0x3ca8] sm:$0xff]
        %v2293 = vld [vmem:[%s252 + $0x3cb0] sm:$0xff]
        %v2294 = vld [vmem:[%s252 + $0x3cb8] sm:$0xff]
        %v2295 = vld [vmem:[%s252 + $0x3cc0] sm:$0xff]
        %v2296 = vld [vmem:[%s252 + $0x3cc8] sm:$0xff]
        %v2297 = vld [vmem:[%s252 + $0x3cd0] sm:$0xff]
        %v2298 = vld [vmem:[%s252 + $0x3cd8] sm:$0xff]
        %v2299 = vld [vmem:[%s252 + $0x3ce0] sm:$0xff]
        %v2300 = vld [vmem:[%s252 + $0x3ce8] sm:$0xff]
        %v2301 = vld [vmem:[%s252 + $0x3cf0] sm:$0xff]
        %v2302 = vld [vmem:[%s252 + $0x3cf8] sm:$0xff]
        %v2303 = vld [vmem:[%s252 + $0x3d00] sm:$0xff]
        %v2304 = vld [vmem:[%s252 + $0x3d08] sm:$0xff]
        %v2305 = vld [vmem:[%s252 + $0x3d10] sm:$0xff]
        %v2306 = vld [vmem:[%s252 + $0x3d18] sm:$0xff]
        %v2307 = vld [vmem:[%s252 + $0x3d20] sm:$0xff]
        %v2308 = vld [vmem:[%s252 + $0x3d28] sm:$0xff]
        %v2309 = vld [vmem:[%s252 + $0x3d30] sm:$0xff]
        %v2310 = vld [vmem:[%s252 + $0x3d38] sm:$0xff]
        %v2311 = vld [vmem:[%s252 + $0x3d40] sm:$0xff]
        %v2312 = vld [vmem:[%s252 + $0x3d48] sm:$0xff]
        %v2313 = vld [vmem:[%s252 + $0x3d50] sm:$0xff]
        %v2314 = vld [vmem:[%s252 + $0x3d58] sm:$0xff]
        %v2315 = vld [vmem:[%s252 + $0x3d60] sm:$0xff]
        %v2316 = vld [vmem:[%s252 + $0x3d68] sm:$0xff]
        %v2317 = vld [vmem:[%s252 + $0x3d70] sm:$0xff]
        %v2318 = vld [vmem:[%s252 + $0x3d78] sm:$0xff]
        %v2319 = vld [vmem:[%s252 + $0x3d80] sm:$0xff]
        %v2320 = vld [vmem:[%s252 + $0x3d88] sm:$0xff]
        %v2321 = vld [vmem:[%s252 + $0x3d90] sm:$0xff]
        %v2322 = vld [vmem:[%s252 + $0x3d98] sm:$0xff]
        %v2323 = vld [vmem:[%s252 + $0x3da0] sm:$0xff]
        %v2324 = vld [vmem:[%s252 + $0x3da8] sm:$0xff]
        %v2325 = vld [vmem:[%s252 + $0x3db0] sm:$0xff]
        %v2326 = vld [vmem:[%s252 + $0x3db8] sm:$0xff]
        %v2327 = vld [vmem:[%s252 + $0x3dc0] sm:$0xff]
        %v2328 = vld [vmem:[%s252 + $0x3dc8] sm:$0xff]
        %v2329 = vld [vmem:[%s252 + $0x3dd0] sm:$0xff]
        %v2330 = vld [vmem:[%s252 + $0x3dd8] sm:$0xff]
        %v2331 = vld [vmem:[%s252 + $0x3de0] sm:$0xff]
        %v2332 = vld [vmem:[%s252 + $0x3de8] sm:$0xff]
        %v2333 = vld [vmem:[%s252 + $0x3df0] sm:$0xff]
        %v2334 = vld [vmem:[%s252 + $0x3df8] sm:$0xff]
        %v2335 = vld [vmem:[%s252 + $0x3e00] sm:$0xff]
        %v2336 = vld [vmem:[%s252 + $0x3e08] sm:$0xff]
        %v2337 = vld [vmem:[%s252 + $0x3e10] sm:$0xff]
        %v2338 = vld [vmem:[%s252 + $0x3e18] sm:$0xff]
        %v2339 = vld [vmem:[%s252 + $0x3e20] sm:$0xff]
        %v2340 = vld [vmem:[%s252 + $0x3e28] sm:$0xff]
        %v2341 = vld [vmem:[%s252 + $0x3e30] sm:$0xff]
        %v2342 = vld [vmem:[%s252 + $0x3e38] sm:$0xff]
        %v2343 = vld [vmem:[%s252 + $0x3e40] sm:$0xff]
        %v2344 = vld [vmem:[%s252 + $0x3e48] sm:$0xff]
        %v2345 = vld [vmem:[%s252 + $0x3e50] sm:$0xff]
        %v2346 = vld [vmem:[%s252 + $0x3e58] sm:$0xff]
        %v2347 = vld [vmem:[%s252 + $0x3e60] sm:$0xff]
        %v2348 = vld [vmem:[%s252 + $0x3e68] sm:$0xff]
        %v2349 = vld [vmem:[%s252 + $0x3e70] sm:$0xff]
        %v2350 = vld [vmem:[%s252 + $0x3e78] sm:$0xff]
        %v2351 = vld [vmem:[%s252 + $0x3e80] sm:$0xff]
        %v2352 = vld [vmem:[%s252 + $0x3e88] sm:$0xff]
        %v2353 = vld [vmem:[%s252 + $0x3e90] sm:$0xff]
        %v2354 = vld [vmem:[%s252 + $0x3e98] sm:$0xff]
        %v2355 = vld [vmem:[%s252 + $0x3ea0] sm:$0xff]
        %v2356 = vld [vmem:[%s252 + $0x3ea8] sm:$0xff]
        %v2357 = vld [vmem:[%s252 + $0x3eb0] sm:$0xff]
        %v2358 = vld [vmem:[%s252 + $0x3eb8] sm:$0xff]
        %v2359 = vld [vmem:[%s252 + $0x3ec0] sm:$0xff]
        %v2360 = vld [vmem:[%s252 + $0x3ec8] sm:$0xff]
        %v2361 = vld [vmem:[%s252 + $0x3ed0] sm:$0xff]
        %v2362 = vld [vmem:[%s252 + $0x3ed8] sm:$0xff]
        %v2363 = vld [vmem:[%s252 + $0x3ee0] sm:$0xff]
        %v2364 = vld [vmem:[%s252 + $0x3ee8] sm:$0xff]
        %v2365 = vld [vmem:[%s252 + $0x3ef0] sm:$0xff]
        %v2366 = vld [vmem:[%s252 + $0x3ef8] sm:$0xff]
        %v2367 = vld [vmem:[%s252 + $0x3f00] sm:$0xff]
        %v2368 = vld [vmem:[%s252 + $0x3f08] sm:$0xff]
        %v2369 = vld [vmem:[%s252 + $0x3f10] sm:$0xff]
        %v2370 = vld [vmem:[%s252 + $0x3f18] sm:$0xff]
        %v2371 = vld [vmem:[%s252 + $0x3f20] sm:$0xff]
        %v2372 = vld [vmem:[%s252 + $0x3f28] sm:$0xff]
        %v2373 = vld [vmem:[%s252 + $0x3f30] sm:$0xff]
        %v2374 = vld [vmem:[%s252 + $0x3f38] sm:$0xff]
        %v2375 = vld [vmem:[%s252 + $0x3f40] sm:$0xff]
        %v2376 = vld [vmem:[%s252 + $0x3f48] sm:$0xff]
        %v2377 = vld [vmem:[%s252 + $0x3f50] sm:$0xff]
        %v2378 = vld [vmem:[%s252 + $0x3f58] sm:$0xff]
        %v2379 = vld [vmem:[%s252 + $0x3f60] sm:$0xff]
        %v2380 = vld [vmem:[%s252 + $0x3f68] sm:$0xff]
        %v2381 = vld [vmem:[%s252 + $0x3f70] sm:$0xff]
        %v2382 = vld [vmem:[%s252 + $0x3f78] sm:$0xff]
        %v2383 = vld [vmem:[%s252 + $0x3f80] sm:$0xff]
        %v2384 = vld [vmem:[%s252 + $0x3f88] sm:$0xff]
        %v2385 = vld [vmem:[%s252 + $0x3f90] sm:$0xff]
        %v2386 = vld [vmem:[%s252 + $0x3f98] sm:$0xff]
        %v2387 = vld [vmem:[%s252 + $0x3fa0] sm:$0xff]
        %v2388 = vld [vmem:[%s252 + $0x3fa8] sm:$0xff]
        %v2389 = vld [vmem:[%s252 + $0x3fb0] sm:$0xff]
        %v2390 = vld [vmem:[%s252 + $0x3fb8] sm:$0xff]
        %v2391 = vld [vmem:[%s252 + $0x3fc0] sm:$0xff]
        %v2392 = vld [vmem:[%s252 + $0x3fc8] sm:$0xff]
        %v2393 = vld [vmem:[%s252 + $0x3fd0] sm:$0xff]
        %v2394 = vld [vmem:[%s252 + $0x3fd8] sm:$0xff]
        %v2395 = vld [vmem:[%s252 + $0x3fe0] sm:$0xff]
        %v2396 = vld [vmem:[%s252 + $0x3fe8] sm:$0xff]
        %v2397 = vld [vmem:[%s252 + $0x3ff0] sm:$0xff]
        %v2398 = vld [vmem:[%s252 + $0x3ff8] sm:$0xff]
        %v2399 = vld [vmem:[%s252 + $0x4000] sm:$0xff]
        %v2400 = vld [vmem:[%s252 + $0x4008] sm:$0xff]
        %v2401 = vld [vmem:[%s252 + $0x4010] sm:$0xff]
        %v2402 = vld [vmem:[%s252 + $0x4018] sm:$0xff]
        %v2403 = vld [vmem:[%s252 + $0x4020] sm:$0xff]
        %v2404 = vld [vmem:[%s252 + $0x4028] sm:$0xff]
        %v2405 = vld [vmem:[%s252 + $0x4030] sm:$0xff]
        %v2406 = vld [vmem:[%s252 + $0x4038] sm:$0xff]
        %v2407 = vld [vmem:[%s252 + $0x4040] sm:$0xff]
        %v2408 = vld [vmem:[%s252 + $0x4048] sm:$0xff]
        %v2409 = vld [vmem:[%s252 + $0x4050] sm:$0xff]
        %v2410 = vld [vmem:[%s252 + $0x4058] sm:$0xff]
        %v2411 = vld [vmem:[%s252 + $0x4060] sm:$0xff]
        %v2412 = vld [vmem:[%s252 + $0x4068] sm:$0xff]
        %v2413 = vld [vmem:[%s252 + $0x4070] sm:$0xff]
        %v2414 = vld [vmem:[%s252 + $0x4078] sm:$0xff]
        %v2415 = vld [vmem:[%s252 + $0x4080] sm:$0xff]
        %v2416 = vld [vmem:[%s252 + $0x4088] sm:$0xff]
        %v2417 = vld [vmem:[%s252 + $0x4090] sm:$0xff]
        %v2418 = vld [vmem:[%s252 + $0x4098] sm:$0xff]
        %v2419 = vld [vmem:[%s252 + $0x40a0] sm:$0xff]
        %v2420 = vld [vmem:[%s252 + $0x40a8] sm:$0xff]
        %v2421 = vld [vmem:[%s252 + $0x40b0] sm:$0xff]
        %v2422 = vld [vmem:[%s252 + $0x40b8] sm:$0xff]
        %v2423 = vld [vmem:[%s252 + $0x40c0] sm:$0xff]
        %v2424 = vld [vmem:[%s252 + $0x40c8] sm:$0xff]
        %v2425 = vld [vmem:[%s252 + $0x40d0] sm:$0xff]
        %v2426 = vld [vmem:[%s252 + $0x40d8] sm:$0xff]
        %v2427 = vld [vmem:[%s252 + $0x40e0] sm:$0xff]
        %v2428 = vld [vmem:[%s252 + $0x40e8] sm:$0xff]
        %v2429 = vld [vmem:[%s252 + $0x40f0] sm:$0xff]
        %v2430 = vld [vmem:[%s252 + $0x40f8] sm:$0xff]
        %v2431 = vld [vmem:[%s252 + $0x4100] sm:$0xff]
        %v2432 = vld [vmem:[%s252 + $0x4108] sm:$0xff]
        %v2433 = vld [vmem:[%s252 + $0x4110] sm:$0xff]
        %v2434 = vld [vmem:[%s252 + $0x4118] sm:$0xff]
        %v2435 = vld [vmem:[%s252 + $0x4120] sm:$0xff]
        %v2436 = vld [vmem:[%s252 + $0x4128] sm:$0xff]
        %v2437 = vld [vmem:[%s252 + $0x4130] sm:$0xff]
        %v2438 = vld [vmem:[%s252 + $0x4138] sm:$0xff]
        %v2439 = vld [vmem:[%s252 + $0x4140] sm:$0xff]
        %v2440 = vld [vmem:[%s252 + $0x4148] sm:$0xff]
        %v2441 = vld [vmem:[%s252 + $0x4150] sm:$0xff]
        %v2442 = vld [vmem:[%s252 + $0x4158] sm:$0xff]
        %v2443 = vld [vmem:[%s252 + $0x4160] sm:$0xff]
        %v2444 = vld [vmem:[%s252 + $0x4168] sm:$0xff]
        %v2445 = vld [vmem:[%s252 + $0x4170] sm:$0xff]
        %v2446 = vld [vmem:[%s252 + $0x4178] sm:$0xff]
        %v2447 = vld [vmem:[%s252 + $0x4180] sm:$0xff]
        %v2448 = vld [vmem:[%s252 + $0x4188] sm:$0xff]
        %v2449 = vld [vmem:[%s252 + $0x4190] sm:$0xff]
        %v2450 = vld [vmem:[%s252 + $0x4198] sm:$0xff]
        %v2451 = vld [vmem:[%s252 + $0x41a0] sm:$0xff]
        %v2452 = vld [vmem:[%s252 + $0x41a8] sm:$0xff]
        %v2453 = vld [vmem:[%s252 + $0x41b0] sm:$0xff]
        %v2454 = vld [vmem:[%s252 + $0x41b8] sm:$0xff]
        %v2455 = vld [vmem:[%s252 + $0x41c0] sm:$0xff]
        %v2456 = vld [vmem:[%s252 + $0x41c8] sm:$0xff]
        %v2457 = vld [vmem:[%s252 + $0x41d0] sm:$0xff]
        %v2458 = vld [vmem:[%s252 + $0x41d8] sm:$0xff]
        %v2459 = vld [vmem:[%s252 + $0x41e0] sm:$0xff]
        %v2460 = vld [vmem:[%s252 + $0x41e8] sm:$0xff]
        %v2461 = vld [vmem:[%s252 + $0x41f0] sm:$0xff]
        %v2462 = vld [vmem:[%s252 + $0x41f8] sm:$0xff]
        %v2463 = vld [vmem:[%s252 + $0x4200] sm:$0xff]
        %v2464 = vld [vmem:[%s252 + $0x4208] sm:$0xff]
        %v2465 = vld [vmem:[%s252 + $0x4210] sm:$0xff]
        %v2466 = vld [vmem:[%s252 + $0x4218] sm:$0xff]
        %v2467 = vld [vmem:[%s252 + $0x4220] sm:$0xff]
        %v2468 = vld [vmem:[%s252 + $0x4228] sm:$0xff]
        %v2469 = vld [vmem:[%s252 + $0x4230] sm:$0xff]
        %v2470 = vld [vmem:[%s252 + $0x4238] sm:$0xff]
        %v2471 = vld [vmem:[%s252 + $0x4240] sm:$0xff]
        %v2472 = vld [vmem:[%s252 + $0x4248] sm:$0xff]
        %v2473 = vld [vmem:[%s252 + $0x4250] sm:$0xff]
        %v2474 = vld [vmem:[%s252 + $0x4258] sm:$0xff]
        %v2475 = vld [vmem:[%s252 + $0x4260] sm:$0xff]
        %v2476 = vld [vmem:[%s252 + $0x4268] sm:$0xff]
        %v2477 = vld [vmem:[%s252 + $0x4270] sm:$0xff]
        %v2478 = vld [vmem:[%s252 + $0x4278] sm:$0xff]
        %v2479 = vld [vmem:[%s252 + $0x4280] sm:$0xff]
        %v2480 = vld [vmem:[%s252 + $0x4288] sm:$0xff]
        %v2481 = vld [vmem:[%s252 + $0x4290] sm:$0xff]
        %v2482 = vld [vmem:[%s252 + $0x4298] sm:$0xff]
        %v2483 = vld [vmem:[%s252 + $0x42a0] sm:$0xff]
        %v2484 = vld [vmem:[%s252 + $0x42a8] sm:$0xff]
        %v2485 = vld [vmem:[%s252 + $0x42b0] sm:$0xff]
        %v2486 = vld [vmem:[%s252 + $0x42b8] sm:$0xff]
        %v2487 = vld [vmem:[%s252 + $0x42c0] sm:$0xff]
        %v2488 = vld [vmem:[%s252 + $0x42c8] sm:$0xff]
        %v2489 = vld [vmem:[%s252 + $0x42d0] sm:$0xff]
        %v2490 = vld [vmem:[%s252 + $0x42d8] sm:$0xff]
        %v2491 = vld [vmem:[%s252 + $0x42e0] sm:$0xff]
        %v2492 = vld [vmem:[%s252 + $0x42e8] sm:$0xff]
        %v2493 = vld [vmem:[%s252 + $0x42f0] sm:$0xff]
        %v2494 = vld [vmem:[%s252 + $0x42f8] sm:$0xff]
        %v2495 = vld [vmem:[%s252 + $0x4300] sm:$0xff]
        %v2496 = vld [vmem:[%s252 + $0x4308] sm:$0xff]
        %v2497 = vld [vmem:[%s252 + $0x4310] sm:$0xff]
        %v2498 = vld [vmem:[%s252 + $0x4318] sm:$0xff]
        %v2499 = vld [vmem:[%s252 + $0x4320] sm:$0xff]
        %v2500 = vld [vmem:[%s252 + $0x4328] sm:$0xff]
        %v2501 = vld [vmem:[%s252 + $0x4330] sm:$0xff]
        %v2502 = vld [vmem:[%s252 + $0x4338] sm:$0xff]
        %v2503 = vld [vmem:[%s252 + $0x4340] sm:$0xff]
        %v2504 = vld [vmem:[%s252 + $0x4348] sm:$0xff]
        %v2505 = vld [vmem:[%s252 + $0x4350] sm:$0xff]
        %v2506 = vld [vmem:[%s252 + $0x4358] sm:$0xff]
        %v2507 = vld [vmem:[%s252 + $0x4360] sm:$0xff]
        %v2508 = vld [vmem:[%s252 + $0x4368] sm:$0xff]
        %v2509 = vld [vmem:[%s252 + $0x4370] sm:$0xff]
        %v2510 = vld [vmem:[%s252 + $0x4378] sm:$0xff]
        %v2511 = vld [vmem:[%s252 + $0x4380] sm:$0xff]
        %v2512 = vld [vmem:[%s252 + $0x4388] sm:$0xff]
        %v2513 = vld [vmem:[%s252 + $0x4390] sm:$0xff]
        %v2514 = vld [vmem:[%s252 + $0x4398] sm:$0xff]
        %v2515 = vld [vmem:[%s252 + $0x43a0] sm:$0xff]
        %v2516 = vld [vmem:[%s252 + $0x43a8] sm:$0xff]
        %v2517 = vld [vmem:[%s252 + $0x43b0] sm:$0xff]
        %v2518 = vld [vmem:[%s252 + $0x43b8] sm:$0xff]
        %v2519 = vld [vmem:[%s252 + $0x43c0] sm:$0xff]
        %v2520 = vld [vmem:[%s252 + $0x43c8] sm:$0xff]
        %v2521 = vld [vmem:[%s252 + $0x43d0] sm:$0xff]
        %v2522 = vld [vmem:[%s252 + $0x43d8] sm:$0xff]
        %v2523 = vld [vmem:[%s252 + $0x43e0] sm:$0xff]
        %v2524 = vld [vmem:[%s252 + $0x43e8] sm:$0xff]
        %v2525 = vld [vmem:[%s252 + $0x43f0] sm:$0xff]
        %v2526 = vld [vmem:[%s252 + $0x43f8] sm:$0xff]
        %v2527 = vld [vmem:[%s252 + $0x4400] sm:$0xff]
        %v2528 = vld [vmem:[%s252 + $0x4408] sm:$0xff]
        %v2529 = vld [vmem:[%s252 + $0x4410] sm:$0xff]
        %v2530 = vld [vmem:[%s252 + $0x4418] sm:$0xff]
        %v2531 = vld [vmem:[%s252 + $0x4420] sm:$0xff]
        %v2532 = vld [vmem:[%s252 + $0x4428] sm:$0xff]
        %v2533 = vld [vmem:[%s252 + $0x4430] sm:$0xff]
        %v2534 = vld [vmem:[%s252 + $0x4438] sm:$0xff]
        %v2535 = vld [vmem:[%s252 + $0x4440] sm:$0xff]
        %v2536 = vld [vmem:[%s252 + $0x4448] sm:$0xff]
        %v2537 = vld [vmem:[%s252 + $0x4450] sm:$0xff]
        %v2538 = vld [vmem:[%s252 + $0x4458] sm:$0xff]
        %v2539 = vld [vmem:[%s252 + $0x4460] sm:$0xff]
        %v2540 = vld [vmem:[%s252 + $0x4468] sm:$0xff]
        %v2541 = vld [vmem:[%s252 + $0x4470] sm:$0xff]
        %v2542 = vld [vmem:[%s252 + $0x4478] sm:$0xff]
        %v2543 = vld [vmem:[%s252 + $0x4480] sm:$0xff]
        %v2544 = vld [vmem:[%s252 + $0x4488] sm:$0xff]
        %v2545 = vld [vmem:[%s252 + $0x4490] sm:$0xff]
        %v2546 = vld [vmem:[%s252 + $0x4498] sm:$0xff]
        %v2547 = vld [vmem:[%s252 + $0x44a0] sm:$0xff]
        %v2548 = vld [vmem:[%s252 + $0x44a8] sm:$0xff]
        %v2549 = vld [vmem:[%s252 + $0x44b0] sm:$0xff]
        %v2550 = vld [vmem:[%s252 + $0x44b8] sm:$0xff]
        %v2551 = vld [vmem:[%s252 + $0x44c0] sm:$0xff]
        %v2552 = vld [vmem:[%s252 + $0x44c8] sm:$0xff]
        %v2553 = vld [vmem:[%s252 + $0x44d0] sm:$0xff]
        %v2554 = vld [vmem:[%s252 + $0x44d8] sm:$0xff]
        %v2555 = vld [vmem:[%s252 + $0x44e0] sm:$0xff]
        %v2556 = vld [vmem:[%s252 + $0x44e8] sm:$0xff]
        %v2557 = vld [vmem:[%s252 + $0x44f0] sm:$0xff]
        %v2558 = vld [vmem:[%s252 + $0x44f8] sm:$0xff]
        %v2559 = vld [vmem:[%s252 + $0x4500] sm:$0xff]
        %v2560 = vld [vmem:[%s252 + $0x4508] sm:$0xff]
        %v2561 = vld [vmem:[%s252 + $0x4510] sm:$0xff]
        %v2562 = vld [vmem:[%s252 + $0x4518] sm:$0xff]
        %v2563 = vld [vmem:[%s252 + $0x4520] sm:$0xff]
        %v2564 = vld [vmem:[%s252 + $0x4528] sm:$0xff]
        %v2565 = vld [vmem:[%s252 + $0x4530] sm:$0xff]
        %v2566 = vld [vmem:[%s252 + $0x4538] sm:$0xff]
        %v2567 = vld [vmem:[%s252 + $0x4540] sm:$0xff]
        %v2568 = vld [vmem:[%s252 + $0x4548] sm:$0xff]
        %v2569 = vld [vmem:[%s252 + $0x4550] sm:$0xff]
        %v2570 = vld [vmem:[%s252 + $0x4558] sm:$0xff]
        %v2571 = vld [vmem:[%s252 + $0x4560] sm:$0xff]
        %v2572 = vld [vmem:[%s252 + $0x4568] sm:$0xff]
        %v2573 = vld [vmem:[%s252 + $0x4570] sm:$0xff]
        %v2574 = vld [vmem:[%s252 + $0x4578] sm:$0xff]
        %v2575 = vld [vmem:[%s252 + $0x4580] sm:$0xff]
        %v2576 = vld [vmem:[%s252 + $0x4588] sm:$0xff]
        %v2577 = vld [vmem:[%s252 + $0x4590] sm:$0xff]
        %v2578 = vld [vmem:[%s252 + $0x4598] sm:$0xff]
        %v2579 = vld [vmem:[%s252 + $0x45a0] sm:$0xff]
        %v2580 = vld [vmem:[%s252 + $0x45a8] sm:$0xff]
        %v2581 = vld [vmem:[%s252 + $0x45b0] sm:$0xff]
        %v2582 = vld [vmem:[%s252 + $0x45b8] sm:$0xff]
        %v2583 = vld [vmem:[%s252 + $0x45c0] sm:$0xff]
        %v2584 = vld [vmem:[%s252 + $0x45c8] sm:$0xff]
        %v2585 = vld [vmem:[%s252 + $0x45d0] sm:$0xff]
        %v2586 = vld [vmem:[%s252 + $0x45d8] sm:$0xff]
        %v2587 = vld [vmem:[%s252 + $0x45e0] sm:$0xff]
        %v2588 = vld [vmem:[%s252 + $0x45e8] sm:$0xff]
        %v2589 = vld [vmem:[%s252 + $0x45f0] sm:$0xff]
        %v2590 = vld [vmem:[%s252 + $0x45f8] sm:$0xff]
        %v2591 = vld [vmem:[%s252 + $0x4600] sm:$0xff]
        %v2592 = vld [vmem:[%s252 + $0x4608] sm:$0xff]
        %v2593 = vld [vmem:[%s252 + $0x4610] sm:$0xff]
        %v2594 = vld [vmem:[%s252 + $0x4618] sm:$0xff]
        %v2595 = vld [vmem:[%s252 + $0x4620] sm:$0xff]
        %v2596 = vld [vmem:[%s252 + $0x4628] sm:$0xff]
        %v2597 = vld [vmem:[%s252 + $0x4630] sm:$0xff]
        %v2598 = vld [vmem:[%s252 + $0x4638] sm:$0xff]
        %v2599 = vld [vmem:[%s252 + $0x4640] sm:$0xff]
        %v2600 = vld [vmem:[%s252 + $0x4648] sm:$0xff]
        %v2601 = vld [vmem:[%s252 + $0x4650] sm:$0xff]
        %v2602 = vld [vmem:[%s252 + $0x4658] sm:$0xff]
        %v2603 = vld [vmem:[%s252 + $0x4660] sm:$0xff]
        %v2604 = vld [vmem:[%s252 + $0x4668] sm:$0xff]
        %v2605 = vld [vmem:[%s252 + $0x4670] sm:$0xff]
        %v2606 = vld [vmem:[%s252 + $0x4678] sm:$0xff]
        %v2607 = vld [vmem:[%s252 + $0x4680] sm:$0xff]
        %v2608 = vld [vmem:[%s252 + $0x4688] sm:$0xff]
        %v2609 = vld [vmem:[%s252 + $0x4690] sm:$0xff]
        %v2610 = vld [vmem:[%s252 + $0x4698] sm:$0xff]
        %v2611 = vld [vmem:[%s252 + $0x46a0] sm:$0xff]
        %v2612 = vld [vmem:[%s252 + $0x46a8] sm:$0xff]
        %v2613 = vld [vmem:[%s252 + $0x46b0] sm:$0xff]
        %v2614 = vld [vmem:[%s252 + $0x46b8] sm:$0xff]
        %v2615 = vld [vmem:[%s252 + $0x46c0] sm:$0xff]
        %v2616 = vld [vmem:[%s252 + $0x46c8] sm:$0xff]
        %v2617 = vld [vmem:[%s252 + $0x46d0] sm:$0xff]
        %v2618 = vld [vmem:[%s252 + $0x46d8] sm:$0xff]
        %v2619 = vld [vmem:[%s252 + $0x46e0] sm:$0xff]
        %v2620 = vld [vmem:[%s252 + $0x46e8] sm:$0xff]
        %v2621 = vld [vmem:[%s252 + $0x46f0] sm:$0xff]
        %v2622 = vld [vmem:[%s252 + $0x46f8] sm:$0xff]
        %v2623 = vld [vmem:[%s252 + $0x4700] sm:$0xff]
        %v2624 = vld [vmem:[%s252 + $0x4708] sm:$0xff]
        %v2625 = vld [vmem:[%s252 + $0x4710] sm:$0xff]
        %v2626 = vld [vmem:[%s252 + $0x4718] sm:$0xff]
        %v2627 = vld [vmem:[%s252 + $0x4720] sm:$0xff]
        %v2628 = vld [vmem:[%s252 + $0x4728] sm:$0xff]
        %v2629 = vld [vmem:[%s252 + $0x4730] sm:$0xff]
        %v2630 = vld [vmem:[%s252 + $0x4738] sm:$0xff]
        %v2631 = vld [vmem:[%s252 + $0x4740] sm:$0xff]
        %v2632 = vld [vmem:[%s252 + $0x4748] sm:$0xff]
        %v2633 = vld [vmem:[%s252 + $0x4750] sm:$0xff]
        %v2634 = vld [vmem:[%s252 + $0x4758] sm:$0xff]
        %v2635 = vld [vmem:[%s252 + $0x4760] sm:$0xff]
        %v2636 = vld [vmem:[%s252 + $0x4768] sm:$0xff]
        %v2637 = vld [vmem:[%s252 + $0x4770] sm:$0xff]
        %v2638 = vld [vmem:[%s252 + $0x4778] sm:$0xff]
        %v2639 = vld [vmem:[%s252 + $0x4780] sm:$0xff]
        %v2640 = vld [vmem:[%s252 + $0x4788] sm:$0xff]
        %v2641 = vld [vmem:[%s252 + $0x4790] sm:$0xff]
        %v2642 = vld [vmem:[%s252 + $0x4798] sm:$0xff]
        %v2643 = vld [vmem:[%s252 + $0x47a0] sm:$0xff]
        %v2644 = vld [vmem:[%s252 + $0x47a8] sm:$0xff]
        %v2645 = vld [vmem:[%s252 + $0x47b0] sm:$0xff]
        %v2646 = vld [vmem:[%s252 + $0x47b8] sm:$0xff]
        %v2647 = vld [vmem:[%s252 + $0x47c0] sm:$0xff]
        %v2648 = vld [vmem:[%s252 + $0x47c8] sm:$0xff]
        %v2649 = vld [vmem:[%s252 + $0x47d0] sm:$0xff]
        %v2650 = vld [vmem:[%s252 + $0x47d8] sm:$0xff]
        %v2651 = vld [vmem:[%s252 + $0x47e0] sm:$0xff]
        %v2652 = vld [vmem:[%s252 + $0x47e8] sm:$0xff]
        %v2653 = vld [vmem:[%s252 + $0x47f0] sm:$0xff]
        %v2654 = vld [vmem:[%s252 + $0x47f8] sm:$0xff]
        %v2655 = vld [vmem:[%s252 + $0x4800] sm:$0xff]
        %v2656 = vld [vmem:[%s252 + $0x4808] sm:$0xff]
        %v2657 = vld [vmem:[%s252 + $0x4810] sm:$0xff]
        %v2658 = vld [vmem:[%s252 + $0x4818] sm:$0xff]
        %v2659 = vld [vmem:[%s252 + $0x4820] sm:$0xff]
        %v2660 = vld [vmem:[%s252 + $0x4828] sm:$0xff]
        %v2661 = vld [vmem:[%s252 + $0x4830] sm:$0xff]
        %v2662 = vld [vmem:[%s252 + $0x4838] sm:$0xff]
        %v2663 = vld [vmem:[%s252 + $0x4840] sm:$0xff]
        %v2664 = vld [vmem:[%s252 + $0x4848] sm:$0xff]
        %v2665 = vld [vmem:[%s252 + $0x4850] sm:$0xff]
        %v2666 = vld [vmem:[%s252 + $0x4858] sm:$0xff]
        %v2667 = vld [vmem:[%s252 + $0x4860] sm:$0xff]
        %v2668 = vld [vmem:[%s252 + $0x4868] sm:$0xff]
        %v2669 = vld [vmem:[%s252 + $0x4870] sm:$0xff]
        %v2670 = vld [vmem:[%s252 + $0x4878] sm:$0xff]
        %v2671 = vld [vmem:[%s252 + $0x4880] sm:$0xff]
        %v2672 = vld [vmem:[%s252 + $0x4888] sm:$0xff]
        %v2673 = vld [vmem:[%s252 + $0x4890] sm:$0xff]
        %v2674 = vld [vmem:[%s252 + $0x4898] sm:$0xff]
        %v2675 = vld [vmem:[%s252 + $0x48a0] sm:$0xff]
        %v2676 = vld [vmem:[%s252 + $0x48a8] sm:$0xff]
        %v2677 = vld [vmem:[%s252 + $0x48b0] sm:$0xff]
        %v2678 = vld [vmem:[%s252 + $0x48b8] sm:$0xff]
        %v2679 = vld [vmem:[%s252 + $0x48c0] sm:$0xff]
        %v2680 = vld [vmem:[%s252 + $0x48c8] sm:$0xff]
        %v2681 = vld [vmem:[%s252 + $0x48d0] sm:$0xff]
        %v2682 = vld [vmem:[%s252 + $0x48d8] sm:$0xff]
        %v2683 = vld [vmem:[%s252 + $0x48e0] sm:$0xff]
        %v2684 = vld [vmem:[%s252 + $0x48e8] sm:$0xff]
        %v2685 = vld [vmem:[%s252 + $0x48f0] sm:$0xff]
        %v2686 = vld [vmem:[%s252 + $0x48f8] sm:$0xff]
        %v2687 = vld [vmem:[%s252 + $0x4900] sm:$0xff]
        %v2688 = vld [vmem:[%s252 + $0x4908] sm:$0xff]
        %v2689 = vld [vmem:[%s252 + $0x4910] sm:$0xff]
        %v2690 = vld [vmem:[%s252 + $0x4918] sm:$0xff]
        %v2691 = vld [vmem:[%s252 + $0x4920] sm:$0xff]
        %v2692 = vld [vmem:[%s252 + $0x4928] sm:$0xff]
        %v2693 = vld [vmem:[%s252 + $0x4930] sm:$0xff]
        %v2694 = vld [vmem:[%s252 + $0x4938] sm:$0xff]
        %v2695 = vld [vmem:[%s252 + $0x4940] sm:$0xff]
        %v2696 = vld [vmem:[%s252 + $0x4948] sm:$0xff]
        %v2697 = vld [vmem:[%s252 + $0x4950] sm:$0xff]
        %v2698 = vld [vmem:[%s252 + $0x4958] sm:$0xff]
        %v2699 = vld [vmem:[%s252 + $0x4960] sm:$0xff]
        %v2700 = vld [vmem:[%s252 + $0x4968] sm:$0xff]
        %v2701 = vld [vmem:[%s252 + $0x4970] sm:$0xff]
        %v2702 = vld [vmem:[%s252 + $0x4978] sm:$0xff]
        %v2703 = vld [vmem:[%s252 + $0x4980] sm:$0xff]
        %v2704 = vld [vmem:[%s252 + $0x4988] sm:$0xff]
        %v2705 = vld [vmem:[%s252 + $0x4990] sm:$0xff]
        %v2706 = vld [vmem:[%s252 + $0x4998] sm:$0xff]
        %v2707 = vld [vmem:[%s252 + $0x49a0] sm:$0xff]
        %v2708 = vld [vmem:[%s252 + $0x49a8] sm:$0xff]
        %v2709 = vld [vmem:[%s252 + $0x49b0] sm:$0xff]
        %v2710 = vld [vmem:[%s252 + $0x49b8] sm:$0xff]
        %v2711 = vld [vmem:[%s252 + $0x49c0] sm:$0xff]
        %v2712 = vld [vmem:[%s252 + $0x49c8] sm:$0xff]
        %v2713 = vld [vmem:[%s252 + $0x49d0] sm:$0xff]
        %v2714 = vld [vmem:[%s252 + $0x49d8] sm:$0xff]
        %v2715 = vld [vmem:[%s252 + $0x49e0] sm:$0xff]
        %v2716 = vld [vmem:[%s252 + $0x49e8] sm:$0xff]
        %v2717 = vld [vmem:[%s252 + $0x49f0] sm:$0xff]
        %v2718 = vld [vmem:[%s252 + $0x49f8] sm:$0xff]
        %v2719 = vld [vmem:[%s252 + $0x4a00] sm:$0xff]
        %v2720 = vld [vmem:[%s252 + $0x4a08] sm:$0xff]
        %v2721 = vld [vmem:[%s252 + $0x4a10] sm:$0xff]
        %v2722 = vld [vmem:[%s252 + $0x4a18] sm:$0xff]
        %v2723 = vld [vmem:[%s252 + $0x4a20] sm:$0xff]
        %v2724 = vld [vmem:[%s252 + $0x4a28] sm:$0xff]
        %v2725 = vld [vmem:[%s252 + $0x4a30] sm:$0xff]
        %v2726 = vld [vmem:[%s252 + $0x4a38] sm:$0xff]
        %v2727 = vld [vmem:[%s252 + $0x4a40] sm:$0xff]
        %v2728 = vld [vmem:[%s252 + $0x4a48] sm:$0xff]
        %v2729 = vld [vmem:[%s252 + $0x4a50] sm:$0xff]
        %v2730 = vld [vmem:[%s252 + $0x4a58] sm:$0xff]
        %v2731 = vld [vmem:[%s252 + $0x4a60] sm:$0xff]
        %v2732 = vld [vmem:[%s252 + $0x4a68] sm:$0xff]
        %v2733 = vld [vmem:[%s252 + $0x4a70] sm:$0xff]
        %v2734 = vld [vmem:[%s252 + $0x4a78] sm:$0xff]
        %v2735 = vld [vmem:[%s252 + $0x4a80] sm:$0xff]
        %v2736 = vld [vmem:[%s252 + $0x4a88] sm:$0xff]
        %v2737 = vld [vmem:[%s252 + $0x4a90] sm:$0xff]
        %v2738 = vld [vmem:[%s252 + $0x4a98] sm:$0xff]
        %v2739 = vld [vmem:[%s252 + $0x4aa0] sm:$0xff]
        %v2740 = vld [vmem:[%s252 + $0x4aa8] sm:$0xff]
        %v2741 = vld [vmem:[%s252 + $0x4ab0] sm:$0xff]
        %v2742 = vld [vmem:[%s252 + $0x4ab8] sm:$0xff]
        %v2743 = vld [vmem:[%s252 + $0x4ac0] sm:$0xff]
        %v2744 = vld [vmem:[%s252 + $0x4ac8] sm:$0xff]
        %v2745 = vld [vmem:[%s252 + $0x4ad0] sm:$0xff]
        %v2746 = vld [vmem:[%s252 + $0x4ad8] sm:$0xff]
        %v2747 = vld [vmem:[%s252 + $0x4ae0] sm:$0xff]
        %v2748 = vld [vmem:[%s252 + $0x4ae8] sm:$0xff]
        %v2749 = vld [vmem:[%s252 + $0x4af0] sm:$0xff]
        %v2750 = vld [vmem:[%s252 + $0x4af8] sm:$0xff]
        %v2751 = vld [vmem:[%s252 + $0x4b00] sm:$0xff]
        %v2752 = vld [vmem:[%s252 + $0x4b08] sm:$0xff]
        %v2753 = vld [vmem:[%s252 + $0x4b10] sm:$0xff]
        %v2754 = vld [vmem:[%s252 + $0x4b18] sm:$0xff]
        %v2755 = vld [vmem:[%s252 + $0x4b20] sm:$0xff]
        %v2756 = vld [vmem:[%s252 + $0x4b28] sm:$0xff]
        %v2757 = vld [vmem:[%s252 + $0x4b30] sm:$0xff]
        %v2758 = vld [vmem:[%s252 + $0x4b38] sm:$0xff]
        %v2759 = vld [vmem:[%s252 + $0x4b40] sm:$0xff]
        %v2760 = vld [vmem:[%s252 + $0x4b48] sm:$0xff]
        %v2761 = vld [vmem:[%s252 + $0x4b50] sm:$0xff]
        %v2762 = vld [vmem:[%s252 + $0x4b58] sm:$0xff]
        %v2763 = vld [vmem:[%s252 + $0x4b60] sm:$0xff]
        %v2764 = vld [vmem:[%s252 + $0x4b68] sm:$0xff]
        %v2765 = vld [vmem:[%s252 + $0x4b70] sm:$0xff]
        %v2766 = vld [vmem:[%s252 + $0x4b78] sm:$0xff]
        %v2767 = vld [vmem:[%s252 + $0x4b80] sm:$0xff]
        %v2768 = vld [vmem:[%s252 + $0x4b88] sm:$0xff]
        %v2769 = vld [vmem:[%s252 + $0x4b90] sm:$0xff]
        %v2770 = vld [vmem:[%s252 + $0x4b98] sm:$0xff]
        %v2771 = vld [vmem:[%s252 + $0x4ba0] sm:$0xff]
        %v2772 = vld [vmem:[%s252 + $0x4ba8] sm:$0xff]
        %v2773 = vld [vmem:[%s252 + $0x4bb0] sm:$0xff]
        %v2774 = vld [vmem:[%s252 + $0x4bb8] sm:$0xff]
        %v2775 = vld [vmem:[%s252 + $0x4bc0] sm:$0xff]
        %v2776 = vld [vmem:[%s252 + $0x4bc8] sm:$0xff]
        %v2777 = vld [vmem:[%s252 + $0x4bd0] sm:$0xff]
        %v2778 = vld [vmem:[%s252 + $0x4bd8] sm:$0xff]
        %v2779 = vld [vmem:[%s252 + $0x4be0] sm:$0xff]
        %v2780 = vld [vmem:[%s252 + $0x4be8] sm:$0xff]
        %v2781 = vld [vmem:[%s252 + $0x4bf0] sm:$0xff]
        %v2782 = vld [vmem:[%s252 + $0x4bf8] sm:$0xff]
        %v2783 = vld [vmem:[%s252 + $0x4c00] sm:$0xff]
        %v2784 = vld [vmem:[%s252 + $0x4c08] sm:$0xff]
        %v2785 = vld [vmem:[%s252 + $0x4c10] sm:$0xff]
        %v2786 = vld [vmem:[%s252 + $0x4c18] sm:$0xff]
        %v2787 = vld [vmem:[%s252 + $0x4c20] sm:$0xff]
        %v2788 = vld [vmem:[%s252 + $0x4c28] sm:$0xff]
        %v2789 = vld [vmem:[%s252 + $0x4c30] sm:$0xff]
        %v2790 = vld [vmem:[%s252 + $0x4c38] sm:$0xff]
        %v2791 = vld [vmem:[%s252 + $0x4c40] sm:$0xff]
        %v2792 = vld [vmem:[%s252 + $0x4c48] sm:$0xff]
        %v2793 = vld [vmem:[%s252 + $0x4c50] sm:$0xff]
        %v2794 = vld [vmem:[%s252 + $0x4c58] sm:$0xff]
        %v2795 = vld [vmem:[%s252 + $0x4c60] sm:$0xff]
        %v2796 = vld [vmem:[%s252 + $0x4c68] sm:$0xff]
        %v2797 = vld [vmem:[%s252 + $0x4c70] sm:$0xff]
        %v2798 = vld [vmem:[%s252 + $0x4c78] sm:$0xff]
        %v2799 = vld [vmem:[%s252 + $0x4c80] sm:$0xff]
        %v2800 = vld [vmem:[%s252 + $0x4c88] sm:$0xff]
        %v2801 = vld [vmem:[%s252 + $0x4c90] sm:$0xff]
        %v2802 = vld [vmem:[%s252 + $0x4c98] sm:$0xff]
        %v2803 = vld [vmem:[%s252 + $0x4ca0] sm:$0xff]
        %v2804 = vld [vmem:[%s252 + $0x4ca8] sm:$0xff]
        %v2805 = vld [vmem:[%s252 + $0x4cb0] sm:$0xff]
        %v2806 = vld [vmem:[%s252 + $0x4cb8] sm:$0xff]
        %v2807 = vld [vmem:[%s252 + $0x4cc0] sm:$0xff]
        %v2808 = vld [vmem:[%s252 + $0x4cc8] sm:$0xff]
        %v2809 = vld [vmem:[%s252 + $0x4cd0] sm:$0xff]
        %v2810 = vld [vmem:[%s252 + $0x4cd8] sm:$0xff]
        %v2811 = vld [vmem:[%s252 + $0x4ce0] sm:$0xff]
        %v2812 = vld [vmem:[%s252 + $0x4ce8] sm:$0xff]
        %v2813 = vld [vmem:[%s252 + $0x4cf0] sm:$0xff]
        %v2814 = vld [vmem:[%s252 + $0x4cf8] sm:$0xff]
        %v2815 = vld [vmem:[%s252 + $0x4d00] sm:$0xff]
        %v2816 = vld [vmem:[%s252 + $0x4d08] sm:$0xff]
        %v2817 = vld [vmem:[%s252 + $0x4d10] sm:$0xff]
        %v2818 = vld [vmem:[%s252 + $0x4d18] sm:$0xff]
        %v2819 = vld [vmem:[%s252 + $0x4d20] sm:$0xff]
        %v2820 = vld [vmem:[%s252 + $0x4d28] sm:$0xff]
        %v2821 = vld [vmem:[%s252 + $0x4d30] sm:$0xff]
        %v2822 = vld [vmem:[%s252 + $0x4d38] sm:$0xff]
        %v2823 = vld [vmem:[%s252 + $0x4d40] sm:$0xff]
        %v2824 = vld [vmem:[%s252 + $0x4d48] sm:$0xff]
        %v2825 = vld [vmem:[%s252 + $0x4d50] sm:$0xff]
        %v2826 = vld [vmem:[%s252 + $0x4d58] sm:$0xff]
        %v2827 = vld [vmem:[%s252 + $0x4d60] sm:$0xff]
        %v2828 = vld [vmem:[%s252 + $0x4d68] sm:$0xff]
        %v2829 = vld [vmem:[%s252 + $0x4d70] sm:$0xff]
        %v2830 = vld [vmem:[%s252 + $0x4d78] sm:$0xff]
        %v2831 = vld [vmem:[%s252 + $0x4d80] sm:$0xff]
        %v2832 = vld [vmem:[%s252 + $0x4d88] sm:$0xff]
        %v2833 = vld [vmem:[%s252 + $0x4d90] sm:$0xff]
        %v2834 = vld [vmem:[%s252 + $0x4d98] sm:$0xff]
        %v2835 = vld [vmem:[%s252 + $0x4da0] sm:$0xff]
        %v2836 = vld [vmem:[%s252 + $0x4da8] sm:$0xff]
        %v2837 = vld [vmem:[%s252 + $0x4db0] sm:$0xff]
        %v2838 = vld [vmem:[%s252 + $0x4db8] sm:$0xff]
        %v2839 = vld [vmem:[%s252 + $0x4dc0] sm:$0xff]
        %v2840 = vld [vmem:[%s252 + $0x4dc8] sm:$0xff]
        %v2841 = vld [vmem:[%s252 + $0x4dd0] sm:$0xff]
        %v2842 = vld [vmem:[%s252 + $0x4dd8] sm:$0xff]
        %v2843 = vld [vmem:[%s252 + $0x4de0] sm:$0xff]
        %v2844 = vld [vmem:[%s252 + $0x4de8] sm:$0xff]
        %v2845 = vld [vmem:[%s252 + $0x4df0] sm:$0xff]
        %v2846 = vld [vmem:[%s252 + $0x4df8] sm:$0xff]
        %v2847 = vld [vmem:[%s252 + $0x4e00] sm:$0xff]
        %v2848 = vld [vmem:[%s252 + $0x4e08] sm:$0xff]
        %v2849 = vld [vmem:[%s252 + $0x4e10] sm:$0xff]
        %v2850 = vld [vmem:[%s252 + $0x4e18] sm:$0xff]
        %v2851 = vld [vmem:[%s252 + $0x4e20] sm:$0xff]
        %v2852 = vld [vmem:[%s252 + $0x4e28] sm:$0xff]
        %v2853 = vld [vmem:[%s252 + $0x4e30] sm:$0xff]
        %v2854 = vld [vmem:[%s252 + $0x4e38] sm:$0xff]
        %v2855 = vld [vmem:[%s252 + $0x4e40] sm:$0xff]
        %v2856 = vld [vmem:[%s252 + $0x4e48] sm:$0xff]
        %v2857 = vld [vmem:[%s252 + $0x4e50] sm:$0xff]
        %v2858 = vld [vmem:[%s252 + $0x4e58] sm:$0xff]
        %v2859 = vld [vmem:[%s252 + $0x4e60] sm:$0xff]
        %v2860 = vld [vmem:[%s252 + $0x4e68] sm:$0xff]
        %v2861 = vld [vmem:[%s252 + $0x4e70] sm:$0xff]
        %v2862 = vld [vmem:[%s252 + $0x4e78] sm:$0xff]
        %v2863 = vld [vmem:[%s252 + $0x4e80] sm:$0xff]
        %v2864 = vld [vmem:[%s252 + $0x4e88] sm:$0xff]
        %v2865 = vld [vmem:[%s252 + $0x4e90] sm:$0xff]
        %v2866 = vld [vmem:[%s252 + $0x4e98] sm:$0xff]
        %v2867 = vld [vmem:[%s252 + $0x4ea0] sm:$0xff]
        %v2868 = vld [vmem:[%s252 + $0x4ea8] sm:$0xff]
        %v2869 = vld [vmem:[%s252 + $0x4eb0] sm:$0xff]
        %v2870 = vld [vmem:[%s252 + $0x4eb8] sm:$0xff]
        %v2871 = vld [vmem:[%s252 + $0x4ec0] sm:$0xff]
        %v2872 = vld [vmem:[%s252 + $0x4ec8] sm:$0xff]
        %v2873 = vld [vmem:[%s252 + $0x4ed0] sm:$0xff]
        %v2874 = vld [vmem:[%s252 + $0x4ed8] sm:$0xff]
        %v2875 = vld [vmem:[%s252 + $0x4ee0] sm:$0xff]
        %v2876 = vld [vmem:[%s252 + $0x4ee8] sm:$0xff]
        %v2877 = vld [vmem:[%s252 + $0x4ef0] sm:$0xff]
        %v2878 = vld [vmem:[%s252 + $0x4ef8] sm:$0xff]
        %v2879 = vld [vmem:[%s252 + $0x4f00] sm:$0xff]
        %v2880 = vld [vmem:[%s252 + $0x4f08] sm:$0xff]
        %v2881 = vld [vmem:[%s252 + $0x4f10] sm:$0xff]
        %v2882 = vld [vmem:[%s252 + $0x4f18] sm:$0xff]
        %v2883 = vld [vmem:[%s252 + $0x4f20] sm:$0xff]
        %v2884 = vld [vmem:[%s252 + $0x4f28] sm:$0xff]
        %v2885 = vld [vmem:[%s252 + $0x4f30] sm:$0xff]
        %v2886 = vld [vmem:[%s252 + $0x4f38] sm:$0xff]
        %v2887 = vld [vmem:[%s252 + $0x4f40] sm:$0xff]
        %v2888 = vld [vmem:[%s252 + $0x4f48] sm:$0xff]
        %v2889 = vld [vmem:[%s252 + $0x4f50] sm:$0xff]
        %v2890 = vld [vmem:[%s252 + $0x4f58] sm:$0xff]
        %v2891 = vld [vmem:[%s252 + $0x4f60] sm:$0xff]
        %v2892 = vld [vmem:[%s252 + $0x4f68] sm:$0xff]
        %v2893 = vld [vmem:[%s252 + $0x4f70] sm:$0xff]
        %v2894 = vld [vmem:[%s252 + $0x4f78] sm:$0xff]
        %v2895 = vld [vmem:[%s252 + $0x4f80] sm:$0xff]
        %v2896 = vld [vmem:[%s252 + $0x4f88] sm:$0xff]
        %v2897 = vld [vmem:[%s252 + $0x4f90] sm:$0xff]
        %v2898 = vld [vmem:[%s252 + $0x4f98] sm:$0xff]
        %v2899 = vld [vmem:[%s252 + $0x4fa0] sm:$0xff]
        %v2900 = vld [vmem:[%s252 + $0x4fa8] sm:$0xff]
        %v2901 = vld [vmem:[%s252 + $0x4fb0] sm:$0xff]
        %v2902 = vld [vmem:[%s252 + $0x4fb8] sm:$0xff]
        %v2903 = vld [vmem:[%s252 + $0x4fc0] sm:$0xff]
        %v2904 = vld [vmem:[%s252 + $0x4fc8] sm:$0xff]
        %v2905 = vld [vmem:[%s252 + $0x4fd0] sm:$0xff]
        %v2906 = vld [vmem:[%s252 + $0x4fd8] sm:$0xff]
        %v2907 = vld [vmem:[%s252 + $0x4fe0] sm:$0xff]
        %v2908 = vld [vmem:[%s252 + $0x4fe8] sm:$0xff]
        %v2909 = vld [vmem:[%s252 + $0x4ff0] sm:$0xff]
        %v2910 = vld [vmem:[%s252 + $0x4ff8] sm:$0xff]
        %v2911 = vld [vmem:[%s252 + $0x5000] sm:$0xff]
        %v2912 = vld [vmem:[%s252 + $0x5008] sm:$0xff]
        %v2913 = vld [vmem:[%s252 + $0x5010] sm:$0xff]
        %v2914 = vld [vmem:[%s252 + $0x5018] sm:$0xff]
        %v2915 = vld [vmem:[%s252 + $0x5020] sm:$0xff]
        %v2916 = vld [vmem:[%s252 + $0x5028] sm:$0xff]
        %v2917 = vld [vmem:[%s252 + $0x5030] sm:$0xff]
        %v2918 = vld [vmem:[%s252 + $0x5038] sm:$0xff]
        %v2919 = vld [vmem:[%s252 + $0x5040] sm:$0xff]
        %v2920 = vld [vmem:[%s252 + $0x5048] sm:$0xff]
        %v2921 = vld [vmem:[%s252 + $0x5050] sm:$0xff]
        %v2922 = vld [vmem:[%s252 + $0x5058] sm:$0xff]
        %v2923 = vld [vmem:[%s252 + $0x5060] sm:$0xff]
        %v2924 = vld [vmem:[%s252 + $0x5068] sm:$0xff]
        %v2925 = vld [vmem:[%s252 + $0x5070] sm:$0xff]
        %v2926 = vld [vmem:[%s252 + $0x5078] sm:$0xff]
        %v2927 = vld [vmem:[%s252 + $0x5080] sm:$0xff]
        %v2928 = vld [vmem:[%s252 + $0x5088] sm:$0xff]
        %v2929 = vld [vmem:[%s252 + $0x5090] sm:$0xff]
        %v2930 = vld [vmem:[%s252 + $0x5098] sm:$0xff]
        %v2931 = vld [vmem:[%s252 + $0x50a0] sm:$0xff]
        %v2932 = vld [vmem:[%s252 + $0x50a8] sm:$0xff]
        %v2933 = vld [vmem:[%s252 + $0x50b0] sm:$0xff]
        %v2934 = vld [vmem:[%s252 + $0x50b8] sm:$0xff]
        %v2935 = vld [vmem:[%s252 + $0x50c0] sm:$0xff]
        %v2936 = vld [vmem:[%s252 + $0x50c8] sm:$0xff]
        %v2937 = vld [vmem:[%s252 + $0x50d0] sm:$0xff]
        %v2938 = vld [vmem:[%s252 + $0x50d8] sm:$0xff]
        %v2939 = vld [vmem:[%s252 + $0x50e0] sm:$0xff]
        %v2940 = vld [vmem:[%s252 + $0x50e8] sm:$0xff]
        %v2941 = vld [vmem:[%s252 + $0x50f0] sm:$0xff]
        %v2942 = vld [vmem:[%s252 + $0x50f8] sm:$0xff]
        %v2943 = vld [vmem:[%s252 + $0x5100] sm:$0xff]
        %v2944 = vld [vmem:[%s252 + $0x5108] sm:$0xff]
        %v2945 = vld [vmem:[%s252 + $0x5110] sm:$0xff]
        %v2946 = vld [vmem:[%s252 + $0x5118] sm:$0xff]
        %v2947 = vld [vmem:[%s252 + $0x5120] sm:$0xff]
        %v2948 = vld [vmem:[%s252 + $0x5128] sm:$0xff]
        %v2949 = vld [vmem:[%s252 + $0x5130] sm:$0xff]
        %v2950 = vld [vmem:[%s252 + $0x5138] sm:$0xff]
        %v2951 = vld [vmem:[%s252 + $0x5140] sm:$0xff]
        %v2952 = vld [vmem:[%s252 + $0x5148] sm:$0xff]
        %v2953 = vld [vmem:[%s252 + $0x5150] sm:$0xff]
        %v2954 = vld [vmem:[%s252 + $0x5158] sm:$0xff]
        %v2955 = vld [vmem:[%s252 + $0x5160] sm:$0xff]
        %v2956 = vld [vmem:[%s252 + $0x5168] sm:$0xff]
        %v2957 = vld [vmem:[%s252 + $0x5170] sm:$0xff]
        %v2958 = vld [vmem:[%s252 + $0x5178] sm:$0xff]
        %v2959 = vld [vmem:[%s252 + $0x5180] sm:$0xff]
        %v2960 = vld [vmem:[%s252 + $0x5188] sm:$0xff]
        %v2961 = vld [vmem:[%s252 + $0x5190] sm:$0xff]
        %v2962 = vld [vmem:[%s252 + $0x5198] sm:$0xff]
        %v2963 = vld [vmem:[%s252 + $0x51a0] sm:$0xff]
        %v2964 = vld [vmem:[%s252 + $0x51a8] sm:$0xff]
        %v2965 = vld [vmem:[%s252 + $0x51b0] sm:$0xff]
        %v2966 = vld [vmem:[%s252 + $0x51b8] sm:$0xff]
        %v2967 = vld [vmem:[%s252 + $0x51c0] sm:$0xff]
        %v2968 = vld [vmem:[%s252 + $0x51c8] sm:$0xff]
        %v2969 = vld [vmem:[%s252 + $0x51d0] sm:$0xff]
        %v2970 = vld [vmem:[%s252 + $0x51d8] sm:$0xff]
        %v2971 = vld [vmem:[%s252 + $0x51e0] sm:$0xff]
        %v2972 = vld [vmem:[%s252 + $0x51e8] sm:$0xff]
        %v2973 = vld [vmem:[%s252 + $0x51f0] sm:$0xff]
        %v2974 = vld [vmem:[%s252 + $0x51f8] sm:$0xff]
        %v2975 = vld [vmem:[%s252 + $0x5200] sm:$0xff]
        %v2976 = vld [vmem:[%s252 + $0x5208] sm:$0xff]
        %v2977 = vld [vmem:[%s252 + $0x5210] sm:$0xff]
        %v2978 = vld [vmem:[%s252 + $0x5218] sm:$0xff]
        %v2979 = vld [vmem:[%s252 + $0x5220] sm:$0xff]
        %v2980 = vld [vmem:[%s252 + $0x5228] sm:$0xff]
        %v2981 = vld [vmem:[%s252 + $0x5230] sm:$0xff]
        %v2982 = vld [vmem:[%s252 + $0x5238] sm:$0xff]
        %v2983 = vld [vmem:[%s252 + $0x5240] sm:$0xff]
        %v2984 = vld [vmem:[%s252 + $0x5248] sm:$0xff]
        %v2985 = vld [vmem:[%s252 + $0x5250] sm:$0xff]
        %v2986 = vld [vmem:[%s252 + $0x5258] sm:$0xff]
        %v2987 = vld [vmem:[%s252 + $0x5260] sm:$0xff]
        %v2988 = vld [vmem:[%s252 + $0x5268] sm:$0xff]
        %v2989 = vld [vmem:[%s252 + $0x5270] sm:$0xff]
        %v2990 = vld [vmem:[%s252 + $0x5278] sm:$0xff]
        %v2991 = vld [vmem:[%s252 + $0x5280] sm:$0xff]
        %v2992 = vld [vmem:[%s252 + $0x5288] sm:$0xff]
        %v2993 = vld [vmem:[%s252 + $0x5290] sm:$0xff]
        %v2994 = vld [vmem:[%s252 + $0x5298] sm:$0xff]
        %v2995 = vld [vmem:[%s252 + $0x52a0] sm:$0xff]
        %v2996 = vld [vmem:[%s252 + $0x52a8] sm:$0xff]
        %v2997 = vld [vmem:[%s252 + $0x52b0] sm:$0xff]
        %v2998 = vld [vmem:[%s252 + $0x52b8] sm:$0xff]
        %v2999 = vld [vmem:[%s252 + $0x52c0] sm:$0xff]
        %v3000 = vld [vmem:[%s252 + $0x52c8] sm:$0xff]
        %v3001 = vld [vmem:[%s252 + $0x52d0] sm:$0xff]
        %v3002 = vld [vmem:[%s252 + $0x52d8] sm:$0xff]
        %v3003 = vld [vmem:[%s252 + $0x52e0] sm:$0xff]
        %v3004 = vld [vmem:[%s252 + $0x52e8] sm:$0xff]
        %v3005 = vld [vmem:[%s252 + $0x52f0] sm:$0xff]
        %v3006 = vld [vmem:[%s252 + $0x52f8] sm:$0xff]
        %v3007 = vld [vmem:[%s252 + $0x5300] sm:$0xff]
        %v3008 = vld [vmem:[%s252 + $0x5308] sm:$0xff]
        %v3009 = vld [vmem:[%s252 + $0x5310] sm:$0xff]
        %v3010 = vld [vmem:[%s252 + $0x5318] sm:$0xff]
        %v3011 = vld [vmem:[%s252 + $0x5320] sm:$0xff]
        %v3012 = vld [vmem:[%s252 + $0x5328] sm:$0xff]
        %v3013 = vld [vmem:[%s252 + $0x5330] sm:$0xff]
        %v3014 = vld [vmem:[%s252 + $0x5338] sm:$0xff]
        %v3015 = vld [vmem:[%s252 + $0x5340] sm:$0xff]
        %v3016 = vld [vmem:[%s252 + $0x5348] sm:$0xff]
        %v3017 = vld [vmem:[%s252 + $0x5350] sm:$0xff]
        %v3018 = vld [vmem:[%s252 + $0x5358] sm:$0xff]
        %v3019 = vld [vmem:[%s252 + $0x5360] sm:$0xff]
        %v3020 = vld [vmem:[%s252 + $0x5368] sm:$0xff]
        %v3021 = vld [vmem:[%s252 + $0x5370] sm:$0xff]
        %v3022 = vld [vmem:[%s252 + $0x5378] sm:$0xff]
        %v3023 = vld [vmem:[%s252 + $0x5380] sm:$0xff]
        %v3024 = vld [vmem:[%s252 + $0x5388] sm:$0xff]
        %v3025 = vld [vmem:[%s252 + $0x5390] sm:$0xff]
        %v3026 = vld [vmem:[%s252 + $0x5398] sm:$0xff]
        %v3027 = vld [vmem:[%s252 + $0x53a0] sm:$0xff]
        %v3028 = vld [vmem:[%s252 + $0x53a8] sm:$0xff]
        %v3029 = vld [vmem:[%s252 + $0x53b0] sm:$0xff]
        %v3030 = vld [vmem:[%s252 + $0x53b8] sm:$0xff]
        %v3031 = vld [vmem:[%s252 + $0x53c0] sm:$0xff]
        %v3032 = vld [vmem:[%s252 + $0x53c8] sm:$0xff]
        %v3033 = vld [vmem:[%s252 + $0x53d0] sm:$0xff]
        %v3034 = vld [vmem:[%s252 + $0x53d8] sm:$0xff]
        %v3035 = vld [vmem:[%s252 + $0x53e0] sm:$0xff]
        %v3036 = vld [vmem:[%s252 + $0x53e8] sm:$0xff]
        %v3037 = vld [vmem:[%s252 + $0x53f0] sm:$0xff]
        %v3038 = vld [vmem:[%s252 + $0x53f8] sm:$0xff]
        %v3039 = vld [vmem:[%s252 + $0x5400] sm:$0xff]
        %v3040 = vld [vmem:[%s252 + $0x5408] sm:$0xff]
        %v3041 = vld [vmem:[%s252 + $0x5410] sm:$0xff]
        %v3042 = vld [vmem:[%s252 + $0x5418] sm:$0xff]
        %v3043 = vld [vmem:[%s252 + $0x5420] sm:$0xff]
        %v3044 = vld [vmem:[%s252 + $0x5428] sm:$0xff]
        %v3045 = vld [vmem:[%s252 + $0x5430] sm:$0xff]
        %v3046 = vld [vmem:[%s252 + $0x5438] sm:$0xff]
        %v3047 = vld [vmem:[%s252 + $0x5440] sm:$0xff]
        %v3048 = vld [vmem:[%s252 + $0x5448] sm:$0xff]
        %v3049 = vld [vmem:[%s252 + $0x5450] sm:$0xff]
        %v3050 = vld [vmem:[%s252 + $0x5458] sm:$0xff]
        %v3051 = vld [vmem:[%s252 + $0x5460] sm:$0xff]
        %v3052 = vld [vmem:[%s252 + $0x5468] sm:$0xff]
        %v3053 = vld [vmem:[%s252 + $0x5470] sm:$0xff]
        %v3054 = vld [vmem:[%s252 + $0x5478] sm:$0xff]
        %v3055 = vld [vmem:[%s252 + $0x5480] sm:$0xff]
        %v3056 = vld [vmem:[%s252 + $0x5488] sm:$0xff]
        %v3057 = vld [vmem:[%s252 + $0x5490] sm:$0xff]
        %v3058 = vld [vmem:[%s252 + $0x5498] sm:$0xff]
        %v3059 = vld [vmem:[%s252 + $0x54a0] sm:$0xff]
        %v3060 = vld [vmem:[%s252 + $0x54a8] sm:$0xff]
        %v3061 = vld [vmem:[%s252 + $0x54b0] sm:$0xff]
        %v3062 = vld [vmem:[%s252 + $0x54b8] sm:$0xff]
        %v3063 = vld [vmem:[%s252 + $0x54c0] sm:$0xff]
        %v3064 = vld [vmem:[%s252 + $0x54c8] sm:$0xff]
        %v3065 = vld [vmem:[%s252 + $0x54d0] sm:$0xff]
        %v3066 = vld [vmem:[%s252 + $0x54d8] sm:$0xff]
        %v3067 = vld [vmem:[%s252 + $0x54e0] sm:$0xff]
        %v3068 = vld [vmem:[%s252 + $0x54e8] sm:$0xff]
        %v3069 = vld [vmem:[%s252 + $0x54f0] sm:$0xff]
        %v3070 = vld [vmem:[%s252 + $0x54f8] sm:$0xff]
        %v3071 = vld [vmem:[%s252 + $0x5500] sm:$0xff]
        %v3072 = vld [vmem:[%s252 + $0x5508] sm:$0xff]
        %v3073 = vld [vmem:[%s252 + $0x5510] sm:$0xff]
        %v3074 = vld [vmem:[%s252 + $0x5518] sm:$0xff]
        %v3075 = vld [vmem:[%s252 + $0x5520] sm:$0xff]
        %v3076 = vld [vmem:[%s252 + $0x5528] sm:$0xff]
        %v3077 = vld [vmem:[%s252 + $0x5530] sm:$0xff]
        %v3078 = vld [vmem:[%s252 + $0x5538] sm:$0xff]
        %v3079 = vld [vmem:[%s252 + $0x5540] sm:$0xff]
        %v3080 = vld [vmem:[%s252 + $0x5548] sm:$0xff]
        %v3081 = vld [vmem:[%s252 + $0x5550] sm:$0xff]
        %v3082 = vld [vmem:[%s252 + $0x5558] sm:$0xff]
        %v3083 = vld [vmem:[%s252 + $0x5560] sm:$0xff]
        %v3084 = vld [vmem:[%s252 + $0x5568] sm:$0xff]
        %v3085 = vld [vmem:[%s252 + $0x5570] sm:$0xff]
        %v3086 = vld [vmem:[%s252 + $0x5578] sm:$0xff]
        %v3087 = vld [vmem:[%s252 + $0x5580] sm:$0xff]
        %v3088 = vld [vmem:[%s252 + $0x5588] sm:$0xff]
        %v3089 = vld [vmem:[%s252 + $0x5590] sm:$0xff]
        %v3090 = vld [vmem:[%s252 + $0x5598] sm:$0xff]
        %v3091 = vld [vmem:[%s252 + $0x55a0] sm:$0xff]
        %v3092 = vld [vmem:[%s252 + $0x55a8] sm:$0xff]
        %v3093 = vld [vmem:[%s252 + $0x55b0] sm:$0xff]
        %v3094 = vld [vmem:[%s252 + $0x55b8] sm:$0xff]
        %v3095 = vld [vmem:[%s252 + $0x55c0] sm:$0xff]
        %v3096 = vld [vmem:[%s252 + $0x55c8] sm:$0xff]
        %v3097 = vld [vmem:[%s252 + $0x55d0] sm:$0xff]
        %v3098 = vld [vmem:[%s252 + $0x55d8] sm:$0xff]
        %v3099 = vld [vmem:[%s252 + $0x55e0] sm:$0xff]
        %v3100 = vld [vmem:[%s252 + $0x55e8] sm:$0xff]
        %v3101 = vld [vmem:[%s252 + $0x55f0] sm:$0xff]
        %v3102 = vld [vmem:[%s252 + $0x55f8] sm:$0xff]
        %v3103 = vld [vmem:[%s252 + $0x5600] sm:$0xff]
        %v3104 = vld [vmem:[%s252 + $0x5608] sm:$0xff]
        %v3105 = vld [vmem:[%s252 + $0x5610] sm:$0xff]
        %v3106 = vld [vmem:[%s252 + $0x5618] sm:$0xff]
        %v3107 = vld [vmem:[%s252 + $0x5620] sm:$0xff]
        %v3108 = vld [vmem:[%s252 + $0x5628] sm:$0xff]
        %v3109 = vld [vmem:[%s252 + $0x5630] sm:$0xff]
        %v3110 = vld [vmem:[%s252 + $0x5638] sm:$0xff]
        %v3111 = vld [vmem:[%s252 + $0x5640] sm:$0xff]
        %v3112 = vld [vmem:[%s252 + $0x5648] sm:$0xff]
        %v3113 = vld [vmem:[%s252 + $0x5650] sm:$0xff]
        %v3114 = vld [vmem:[%s252 + $0x5658] sm:$0xff]
        %v3115 = vld [vmem:[%s252 + $0x5660] sm:$0xff]
        %v3116 = vld [vmem:[%s252 + $0x5668] sm:$0xff]
        %v3117 = vld [vmem:[%s252 + $0x5670] sm:$0xff]
        %v3118 = vld [vmem:[%s252 + $0x5678] sm:$0xff]
        %v3119 = vld [vmem:[%s252 + $0x5680] sm:$0xff]
        %v3120 = vld [vmem:[%s252 + $0x5688] sm:$0xff]
        %v3121 = vld [vmem:[%s252 + $0x5690] sm:$0xff]
        %v3122 = vld [vmem:[%s252 + $0x5698] sm:$0xff]
        %v3123 = vld [vmem:[%s252 + $0x56a0] sm:$0xff]
        %v3124 = vld [vmem:[%s252 + $0x56a8] sm:$0xff]
        %v3125 = vld [vmem:[%s252 + $0x56b0] sm:$0xff]
        %v3126 = vld [vmem:[%s252 + $0x56b8] sm:$0xff]
        %v3127 = vld [vmem:[%s252 + $0x56c0] sm:$0xff]
        %v3128 = vld [vmem:[%s252 + $0x56c8] sm:$0xff]
        %v3129 = vld [vmem:[%s252 + $0x56d0] sm:$0xff]
        %v3130 = vld [vmem:[%s252 + $0x56d8] sm:$0xff]
        %v3131 = vld [vmem:[%s252 + $0x56e0] sm:$0xff]
        %v3132 = vld [vmem:[%s252 + $0x56e8] sm:$0xff]
        %v3133 = vld [vmem:[%s252 + $0x56f0] sm:$0xff]
        %v3134 = vld [vmem:[%s252 + $0x56f8] sm:$0xff]
        %v3135 = vld [vmem:[%s252 + $0x5700] sm:$0xff]
        %v3136 = vld [vmem:[%s252 + $0x5708] sm:$0xff]
        %v3137 = vld [vmem:[%s252 + $0x5710] sm:$0xff]
        %v3138 = vld [vmem:[%s252 + $0x5718] sm:$0xff]
        %v3139 = vld [vmem:[%s252 + $0x5720] sm:$0xff]
        %v3140 = vld [vmem:[%s252 + $0x5728] sm:$0xff]
        %v3141 = vld [vmem:[%s252 + $0x5730] sm:$0xff]
        %v3142 = vld [vmem:[%s252 + $0x5738] sm:$0xff]
        %v3143 = vld [vmem:[%s252 + $0x5740] sm:$0xff]
        %v3144 = vld [vmem:[%s252 + $0x5748] sm:$0xff]
        %v3145 = vld [vmem:[%s252 + $0x5750] sm:$0xff]
        %v3146 = vld [vmem:[%s252 + $0x5758] sm:$0xff]
        %v3147 = vld [vmem:[%s252 + $0x5760] sm:$0xff]
        %v3148 = vld [vmem:[%s252 + $0x5768] sm:$0xff]
        %v3149 = vld [vmem:[%s252 + $0x5770] sm:$0xff]
        %v3150 = vld [vmem:[%s252 + $0x5778] sm:$0xff]
        %v3151 = vld [vmem:[%s252 + $0x5780] sm:$0xff]
        %v3152 = vld [vmem:[%s252 + $0x5788] sm:$0xff]
        %v3153 = vld [vmem:[%s252 + $0x5790] sm:$0xff]
        %v3154 = vld [vmem:[%s252 + $0x5798] sm:$0xff]
        %v3155 = vld [vmem:[%s252 + $0x57a0] sm:$0xff]
        %v3156 = vld [vmem:[%s252 + $0x57a8] sm:$0xff]
        %v3157 = vld [vmem:[%s252 + $0x57b0] sm:$0xff]
        %v3158 = vld [vmem:[%s252 + $0x57b8] sm:$0xff]
        %v3159 = vld [vmem:[%s252 + $0x57c0] sm:$0xff]
        %v3160 = vld [vmem:[%s252 + $0x57c8] sm:$0xff]
        %v3161 = vld [vmem:[%s252 + $0x57d0] sm:$0xff]
        %v3162 = vld [vmem:[%s252 + $0x57d8] sm:$0xff]
        %v3163 = vld [vmem:[%s252 + $0x57e0] sm:$0xff]
        %v3164 = vld [vmem:[%s252 + $0x57e8] sm:$0xff]
        %v3165 = vld [vmem:[%s252 + $0x57f0] sm:$0xff]
        %v3166 = vld [vmem:[%s252 + $0x57f8] sm:$0xff]
        %v3167 = vld [vmem:[%s252 + $0x5800] sm:$0xff]
        %v3168 = vld [vmem:[%s252 + $0x5808] sm:$0xff]
        %v3169 = vld [vmem:[%s252 + $0x5810] sm:$0xff]
        %v3170 = vld [vmem:[%s252 + $0x5818] sm:$0xff]
        %v3171 = vld [vmem:[%s252 + $0x5820] sm:$0xff]
        %v3172 = vld [vmem:[%s252 + $0x5828] sm:$0xff]
        %v3173 = vld [vmem:[%s252 + $0x5830] sm:$0xff]
        %v3174 = vld [vmem:[%s252 + $0x5838] sm:$0xff]
        %v3175 = vld [vmem:[%s252 + $0x5840] sm:$0xff]
        %v3176 = vld [vmem:[%s252 + $0x5848] sm:$0xff]
        %v3177 = vld [vmem:[%s252 + $0x5850] sm:$0xff]
        %v3178 = vld [vmem:[%s252 + $0x5858] sm:$0xff]
        %v3179 = vld [vmem:[%s252 + $0x5860] sm:$0xff]
        %v3180 = vld [vmem:[%s252 + $0x5868] sm:$0xff]
        %v3181 = vld [vmem:[%s252 + $0x5870] sm:$0xff]
        %v3182 = vld [vmem:[%s252 + $0x5878] sm:$0xff]
        %v3183 = vld [vmem:[%s252 + $0x5880] sm:$0xff]
        %v3184 = vld [vmem:[%s252 + $0x5888] sm:$0xff]
        %v3185 = vld [vmem:[%s252 + $0x5890] sm:$0xff]
        %v3186 = vld [vmem:[%s252 + $0x5898] sm:$0xff]
        %v3187 = vld [vmem:[%s252 + $0x58a0] sm:$0xff]
        %v3188 = vld [vmem:[%s252 + $0x58a8] sm:$0xff]
        %v3189 = vld [vmem:[%s252 + $0x58b0] sm:$0xff]
        %v3190 = vld [vmem:[%s252 + $0x58b8] sm:$0xff]
        %v3191 = vld [vmem:[%s252 + $0x58c0] sm:$0xff]
        %v3192 = vld [vmem:[%s252 + $0x58c8] sm:$0xff]
        %v3193 = vld [vmem:[%s252 + $0x58d0] sm:$0xff]
        %v3194 = vld [vmem:[%s252 + $0x58d8] sm:$0xff]
        %v3195 = vld [vmem:[%s252 + $0x58e0] sm:$0xff]
        %v3196 = vld [vmem:[%s252 + $0x58e8] sm:$0xff]
        %v3197 = vld [vmem:[%s252 + $0x58f0] sm:$0xff]
        %v3198 = vld [vmem:[%s252 + $0x58f8] sm:$0xff]
        %v3199 = vld [vmem:[%s252 + $0x5900] sm:$0xff]
        %v3200 = vld [vmem:[%s252 + $0x5908] sm:$0xff]
        %v3201 = vld [vmem:[%s252 + $0x5910] sm:$0xff]
        %v3202 = vld [vmem:[%s252 + $0x5918] sm:$0xff]
        %v3203 = vld [vmem:[%s252 + $0x5920] sm:$0xff]
        %v3204 = vld [vmem:[%s252 + $0x5928] sm:$0xff]
        %v3205 = vld [vmem:[%s252 + $0x5930] sm:$0xff]
        %v3206 = vld [vmem:[%s252 + $0x5938] sm:$0xff]
        %v3207 = vld [vmem:[%s252 + $0x5940] sm:$0xff]
        %v3208 = vld [vmem:[%s252 + $0x5948] sm:$0xff]
        %v3209 = vld [vmem:[%s252 + $0x5950] sm:$0xff]
        %v3210 = vld [vmem:[%s252 + $0x5958] sm:$0xff]
        %v3211 = vld [vmem:[%s252 + $0x5960] sm:$0xff]
        %v3212 = vld [vmem:[%s252 + $0x5968] sm:$0xff]
        %v3213 = vld [vmem:[%s252 + $0x5970] sm:$0xff]
        %v3214 = vld [vmem:[%s252 + $0x5978] sm:$0xff]
        %v3215 = vld [vmem:[%s252 + $0x5980] sm:$0xff]
        %v3216 = vld [vmem:[%s252 + $0x5988] sm:$0xff]
        %v3217 = vld [vmem:[%s252 + $0x5990] sm:$0xff]
        %v3218 = vld [vmem:[%s252 + $0x5998] sm:$0xff]
        %v3219 = vld [vmem:[%s252 + $0x59a0] sm:$0xff]
        %v3220 = vld [vmem:[%s252 + $0x59a8] sm:$0xff]
        %v3221 = vld [vmem:[%s252 + $0x59b0] sm:$0xff]
        %v3222 = vld [vmem:[%s252 + $0x59b8] sm:$0xff]
        %v3223 = vld [vmem:[%s252 + $0x59c0] sm:$0xff]
        %v3224 = vld [vmem:[%s252 + $0x59c8] sm:$0xff]
        %v3225 = vld [vmem:[%s252 + $0x59d0] sm:$0xff]
        %v3226 = vld [vmem:[%s252 + $0x59d8] sm:$0xff]
        %v3227 = vld [vmem:[%s252 + $0x59e0] sm:$0xff]
        %v3228 = vld [vmem:[%s252 + $0x59e8] sm:$0xff]
        %v3229 = vld [vmem:[%s252 + $0x59f0] sm:$0xff]
        %v3230 = vld [vmem:[%s252 + $0x59f8] sm:$0xff]
        %v3231 = vld [vmem:[%s252 + $0x5a00] sm:$0xff]
        %v3232 = vld [vmem:[%s252 + $0x5a08] sm:$0xff]
        %v3233 = vld [vmem:[%s252 + $0x5a10] sm:$0xff]
        %v3234 = vld [vmem:[%s252 + $0x5a18] sm:$0xff]
        %v3235 = vld [vmem:[%s252 + $0x5a20] sm:$0xff]
        %v3236 = vld [vmem:[%s252 + $0x5a28] sm:$0xff]
        %v3237 = vld [vmem:[%s252 + $0x5a30] sm:$0xff]
        %v3238 = vld [vmem:[%s252 + $0x5a38] sm:$0xff]
        %v3239 = vld [vmem:[%s252 + $0x5a40] sm:$0xff]
        %v3240 = vld [vmem:[%s252 + $0x5a48] sm:$0xff]
        %v3241 = vld [vmem:[%s252 + $0x5a50] sm:$0xff]
        %v3242 = vld [vmem:[%s252 + $0x5a58] sm:$0xff]
        %v3243 = vld [vmem:[%s252 + $0x5a60] sm:$0xff]
        %v3244 = vld [vmem:[%s252 + $0x5a68] sm:$0xff]
        %v3245 = vld [vmem:[%s252 + $0x5a70] sm:$0xff]
        %v3246 = vld [vmem:[%s252 + $0x5a78] sm:$0xff]
        %v3247 = vld [vmem:[%s252 + $0x5a80] sm:$0xff]
        %v3248 = vld [vmem:[%s252 + $0x5a88] sm:$0xff]
        %v3249 = vld [vmem:[%s252 + $0x5a90] sm:$0xff]
        %v3250 = vld [vmem:[%s252 + $0x5a98] sm:$0xff]
        %v3251 = vld [vmem:[%s252 + $0x5aa0] sm:$0xff]
        %v3252 = vld [vmem:[%s252 + $0x5aa8] sm:$0xff]
        %v3253 = vld [vmem:[%s252 + $0x5ab0] sm:$0xff]
        %v3254 = vld [vmem:[%s252 + $0x5ab8] sm:$0xff]
        %v3255 = vld [vmem:[%s252 + $0x5ac0] sm:$0xff]
        %v3256 = vld [vmem:[%s252 + $0x5ac8] sm:$0xff]
        %v3257 = vld [vmem:[%s252 + $0x5ad0] sm:$0xff]
        %v3258 = vld [vmem:[%s252 + $0x5ad8] sm:$0xff]
        %v3259 = vld [vmem:[%s252 + $0x5ae0] sm:$0xff]
        %v3260 = vld [vmem:[%s252 + $0x5ae8] sm:$0xff]
        %v3261 = vld [vmem:[%s252 + $0x5af0] sm:$0xff]
        %v3262 = vld [vmem:[%s252 + $0x5af8] sm:$0xff]
        %v3263 = vld [vmem:[%s252 + $0x5b00] sm:$0xff]
        %v3264 = vld [vmem:[%s252 + $0x5b08] sm:$0xff]
        %v3265 = vld [vmem:[%s252 + $0x5b10] sm:$0xff]
        %v3266 = vld [vmem:[%s252 + $0x5b18] sm:$0xff]
        %v3267 = vld [vmem:[%s252 + $0x5b20] sm:$0xff]
        %v3268 = vld [vmem:[%s252 + $0x5b28] sm:$0xff]
        %v3269 = vld [vmem:[%s252 + $0x5b30] sm:$0xff]
        %v3270 = vld [vmem:[%s252 + $0x5b38] sm:$0xff]
        %v3271 = vld [vmem:[%s252 + $0x5b40] sm:$0xff]
        %v3272 = vld [vmem:[%s252 + $0x5b48] sm:$0xff]
        %v3273 = vld [vmem:[%s252 + $0x5b50] sm:$0xff]
        %v3274 = vld [vmem:[%s252 + $0x5b58] sm:$0xff]
        %v3275 = vld [vmem:[%s252 + $0x5b60] sm:$0xff]
        %v3276 = vld [vmem:[%s252 + $0x5b68] sm:$0xff]
        %v3277 = vld [vmem:[%s252 + $0x5b70] sm:$0xff]
        %v3278 = vld [vmem:[%s252 + $0x5b78] sm:$0xff]
        %v3279 = vld [vmem:[%s252 + $0x5b80] sm:$0xff]
        %v3280 = vld [vmem:[%s252 + $0x5b88] sm:$0xff]
        %v3281 = vld [vmem:[%s252 + $0x5b90] sm:$0xff]
        %v3282 = vld [vmem:[%s252 + $0x5b98] sm:$0xff]
        %v3283 = vld [vmem:[%s252 + $0x5ba0] sm:$0xff]
        %v3284 = vld [vmem:[%s252 + $0x5ba8] sm:$0xff]
        %v3285 = vld [vmem:[%s252 + $0x5bb0] sm:$0xff]
        %v3286 = vld [vmem:[%s252 + $0x5bb8] sm:$0xff]
        %v3287 = vld [vmem:[%s252 + $0x5bc0] sm:$0xff]
        %v3288 = vld [vmem:[%s252 + $0x5bc8] sm:$0xff]
        %v3289 = vld [vmem:[%s252 + $0x5bd0] sm:$0xff]
        %v3290 = vld [vmem:[%s252 + $0x5bd8] sm:$0xff]
        %v3291 = vld [vmem:[%s252 + $0x5be0] sm:$0xff]
        %v3292 = vld [vmem:[%s252 + $0x5be8] sm:$0xff]
        %v3293 = vld [vmem:[%s252 + $0x5bf0] sm:$0xff]
        %v3294 = vld [vmem:[%s252 + $0x5bf8] sm:$0xff]
        %v3295 = vld [vmem:[%s252 + $0x5c00] sm:$0xff]
        %v3296 = vld [vmem:[%s252 + $0x5c08] sm:$0xff]
        %v3297 = vld [vmem:[%s252 + $0x5c10] sm:$0xff]
        %v3298 = vld [vmem:[%s252 + $0x5c18] sm:$0xff]
        %v3299 = vld [vmem:[%s252 + $0x5c20] sm:$0xff]
        %v3300 = vld [vmem:[%s252 + $0x5c28] sm:$0xff]
        %v3301 = vld [vmem:[%s252 + $0x5c30] sm:$0xff]
        %v3302 = vld [vmem:[%s252 + $0x5c38] sm:$0xff]
        %v3303 = vld [vmem:[%s252 + $0x5c40] sm:$0xff]
        %v3304 = vld [vmem:[%s252 + $0x5c48] sm:$0xff]
        %v3305 = vld [vmem:[%s252 + $0x5c50] sm:$0xff]
        %v3306 = vld [vmem:[%s252 + $0x5c58] sm:$0xff]
        %v3307 = vld [vmem:[%s252 + $0x5c60] sm:$0xff]
        %v3308 = vld [vmem:[%s252 + $0x5c68] sm:$0xff]
        %v3309 = vld [vmem:[%s252 + $0x5c70] sm:$0xff]
        %v3310 = vld [vmem:[%s252 + $0x5c78] sm:$0xff]
        %v3311 = vld [vmem:[%s252 + $0x5c80] sm:$0xff]
        %v3312 = vld [vmem:[%s252 + $0x5c88] sm:$0xff]
        %v3313 = vld [vmem:[%s252 + $0x5c90] sm:$0xff]
        %v3314 = vld [vmem:[%s252 + $0x5c98] sm:$0xff]
        %v3315 = vld [vmem:[%s252 + $0x5ca0] sm:$0xff]
        %v3316 = vld [vmem:[%s252 + $0x5ca8] sm:$0xff]
        %v3317 = vld [vmem:[%s252 + $0x5cb0] sm:$0xff]
        %v3318 = vld [vmem:[%s252 + $0x5cb8] sm:$0xff]
        %v3319 = vld [vmem:[%s252 + $0x5cc0] sm:$0xff]
        %v3320 = vld [vmem:[%s252 + $0x5cc8] sm:$0xff]
        %v3321 = vld [vmem:[%s252 + $0x5cd0] sm:$0xff]
        %v3322 = vld [vmem:[%s252 + $0x5cd8] sm:$0xff]
        %v3323 = vld [vmem:[%s252 + $0x5ce0] sm:$0xff]
        %v3324 = vld [vmem:[%s252 + $0x5ce8] sm:$0xff]
        %v3325 = vld [vmem:[%s252 + $0x5cf0] sm:$0xff]
        %v3326 = vld [vmem:[%s252 + $0x5cf8] sm:$0xff]
        %v3327 = vld [vmem:[%s252 + $0x5d00] sm:$0xff]
        %v3328 = vld [vmem:[%s252 + $0x5d08] sm:$0xff]
        %v3329 = vld [vmem:[%s252 + $0x5d10] sm:$0xff]
        %v3330 = vld [vmem:[%s252 + $0x5d18] sm:$0xff]
        %v3331 = vld [vmem:[%s252 + $0x5d20] sm:$0xff]
        %v3332 = vld [vmem:[%s252 + $0x5d28] sm:$0xff]
        %v3333 = vld [vmem:[%s252 + $0x5d30] sm:$0xff]
        %v3334 = vld [vmem:[%s252 + $0x5d38] sm:$0xff]
        %v3335 = vld [vmem:[%s252 + $0x5d40] sm:$0xff]
        %v3336 = vld [vmem:[%s252 + $0x5d48] sm:$0xff]
        %v3337 = vld [vmem:[%s252 + $0x5d50] sm:$0xff]
        %v3338 = vld [vmem:[%s252 + $0x5d58] sm:$0xff]
        %v3339 = vld [vmem:[%s252 + $0x5d60] sm:$0xff]
        %v3340 = vld [vmem:[%s252 + $0x5d68] sm:$0xff]
        %v3341 = vld [vmem:[%s252 + $0x5d70] sm:$0xff]
        %v3342 = vld [vmem:[%s252 + $0x5d78] sm:$0xff]
        %v3343 = vld [vmem:[%s252 + $0x5d80] sm:$0xff]
        %v3344 = vld [vmem:[%s252 + $0x5d88] sm:$0xff]
        %v3345 = vld [vmem:[%s252 + $0x5d90] sm:$0xff]
        %v3346 = vld [vmem:[%s252 + $0x5d98] sm:$0xff]
        %v3347 = vld [vmem:[%s252 + $0x5da0] sm:$0xff]
        %v3348 = vld [vmem:[%s252 + $0x5da8] sm:$0xff]
        %v3349 = vld [vmem:[%s252 + $0x5db0] sm:$0xff]
        %v3350 = vld [vmem:[%s252 + $0x5db8] sm:$0xff]
        %v3351 = vld [vmem:[%s252 + $0x5dc0] sm:$0xff]
        %v3352 = vld [vmem:[%s252 + $0x5dc8] sm:$0xff]
        %v3353 = vld [vmem:[%s252 + $0x5dd0] sm:$0xff]
        %v3354 = vld [vmem:[%s252 + $0x5dd8] sm:$0xff]
        %v3355 = vld [vmem:[%s252 + $0x5de0] sm:$0xff]
        %v3356 = vld [vmem:[%s252 + $0x5de8] sm:$0xff]
        %v3357 = vld [vmem:[%s252 + $0x5df0] sm:$0xff]
        %v3358 = vld [vmem:[%s252 + $0x5df8] sm:$0xff]
        %v3359 = vld [vmem:[%s252 + $0x5e00] sm:$0xff]
        %v3360 = vld [vmem:[%s252 + $0x5e08] sm:$0xff]
        %v3361 = vld [vmem:[%s252 + $0x5e10] sm:$0xff]
        %v3362 = vld [vmem:[%s252 + $0x5e18] sm:$0xff]
        %v3363 = vld [vmem:[%s252 + $0x5e20] sm:$0xff]
        %v3364 = vld [vmem:[%s252 + $0x5e28] sm:$0xff]
        %v3365 = vld [vmem:[%s252 + $0x5e30] sm:$0xff]
        %v3366 = vld [vmem:[%s252 + $0x5e38] sm:$0xff]
        %v3367 = vld [vmem:[%s252 + $0x5e40] sm:$0xff]
        %v3368 = vld [vmem:[%s252 + $0x5e48] sm:$0xff]
        %v3369 = vld [vmem:[%s252 + $0x5e50] sm:$0xff]
        %v3370 = vld [vmem:[%s252 + $0x5e58] sm:$0xff]
        %v3371 = vld [vmem:[%s252 + $0x5e60] sm:$0xff]
        %v3372 = vld [vmem:[%s252 + $0x5e68] sm:$0xff]
        %v3373 = vld [vmem:[%s252 + $0x5e70] sm:$0xff]
        %v3374 = vld [vmem:[%s252 + $0x5e78] sm:$0xff]
        %v3375 = vld [vmem:[%s252 + $0x5e80] sm:$0xff]
        %v3376 = vld [vmem:[%s252 + $0x5e88] sm:$0xff]
        %v3377 = vld [vmem:[%s252 + $0x5e90] sm:$0xff]
        %v3378 = vld [vmem:[%s252 + $0x5e98] sm:$0xff]
        %v3379 = vld [vmem:[%s252 + $0x5ea0] sm:$0xff]
        %v3380 = vld [vmem:[%s252 + $0x5ea8] sm:$0xff]
        %v3381 = vld [vmem:[%s252 + $0x5eb0] sm:$0xff]
        %v3382 = vld [vmem:[%s252 + $0x5eb8] sm:$0xff]
        %v3383 = vld [vmem:[%s252 + $0x5ec0] sm:$0xff]
        %v3384 = vld [vmem:[%s252 + $0x5ec8] sm:$0xff]
        %v3385 = vld [vmem:[%s252 + $0x5ed0] sm:$0xff]
        %v3386 = vld [vmem:[%s252 + $0x5ed8] sm:$0xff]
        %v3387 = vld [vmem:[%s252 + $0x5ee0] sm:$0xff]
        %v3388 = vld [vmem:[%s252 + $0x5ee8] sm:$0xff]
        %v3389 = vld [vmem:[%s252 + $0x5ef0] sm:$0xff]
        %v3390 = vld [vmem:[%s252 + $0x5ef8] sm:$0xff]
        %v3391 = vld [vmem:[%s252 + $0x5f00] sm:$0xff]
        %v3392 = vld [vmem:[%s252 + $0x5f08] sm:$0xff]
        %v3393 = vld [vmem:[%s252 + $0x5f10] sm:$0xff]
        %v3394 = vld [vmem:[%s252 + $0x5f18] sm:$0xff]
        %v3395 = vld [vmem:[%s252 + $0x5f20] sm:$0xff]
        %v3396 = vld [vmem:[%s252 + $0x5f28] sm:$0xff]
        %v3397 = vld [vmem:[%s252 + $0x5f30] sm:$0xff]
        %v3398 = vld [vmem:[%s252 + $0x5f38] sm:$0xff]
        %v3399 = vld [vmem:[%s252 + $0x5f40] sm:$0xff]
        %v3400 = vld [vmem:[%s252 + $0x5f48] sm:$0xff]
        %v3401 = vld [vmem:[%s252 + $0x5f50] sm:$0xff]
        %v3402 = vld [vmem:[%s252 + $0x5f58] sm:$0xff]
        %v3403 = vld [vmem:[%s252 + $0x5f60] sm:$0xff]
        %v3404 = vld [vmem:[%s252 + $0x5f68] sm:$0xff]
        %v3405 = vld [vmem:[%s252 + $0x5f70] sm:$0xff]
        %v3406 = vld [vmem:[%s252 + $0x5f78] sm:$0xff]
        %v3407 = vld [vmem:[%s252 + $0x5f80] sm:$0xff]
        %v3408 = vld [vmem:[%s252 + $0x5f88] sm:$0xff]
        %v3409 = vld [vmem:[%s252 + $0x5f90] sm:$0xff]
        %v3410 = vld [vmem:[%s252 + $0x5f98] sm:$0xff]
        %v3411 = vld [vmem:[%s252 + $0x5fa0] sm:$0xff]
        %v3412 = vld [vmem:[%s252 + $0x5fa8] sm:$0xff]
        %v3413 = vld [vmem:[%s252 + $0x5fb0] sm:$0xff]
        %v3414 = vld [vmem:[%s252 + $0x5fb8] sm:$0xff]
        %v3415 = vld [vmem:[%s252 + $0x5fc0] sm:$0xff]
        %v3416 = vld [vmem:[%s252 + $0x5fc8] sm:$0xff]
        %v3417 = vld [vmem:[%s252 + $0x5fd0] sm:$0xff]
        %v3418 = vld [vmem:[%s252 + $0x5fd8] sm:$0xff]
        %v3419 = vld [vmem:[%s252 + $0x5fe0] sm:$0xff]
        %v3420 = vld [vmem:[%s252 + $0x5fe8] sm:$0xff]
        %v3421 = vld [vmem:[%s252 + $0x5ff0] sm:$0xff]
        %v3422 = vld [vmem:[%s252 + $0x5ff8] sm:$0xff]
        %v3423 = vld [vmem:[%s252 + $0x6000] sm:$0xff]
        %v3424 = vld [vmem:[%s252 + $0x6008] sm:$0xff]
        %v3425 = vld [vmem:[%s252 + $0x6010] sm:$0xff]
        %v3426 = vld [vmem:[%s252 + $0x6018] sm:$0xff]
        %v3427 = vld [vmem:[%s252 + $0x6020] sm:$0xff]
        %v3428 = vld [vmem:[%s252 + $0x6028] sm:$0xff]
        %v3429 = vld [vmem:[%s252 + $0x6030] sm:$0xff]
        %v3430 = vld [vmem:[%s252 + $0x6038] sm:$0xff]
        %v3431 = vld [vmem:[%s252 + $0x6040] sm:$0xff]
        %v3432 = vld [vmem:[%s252 + $0x6048] sm:$0xff]
        %v3433 = vld [vmem:[%s252 + $0x6050] sm:$0xff]
        %v3434 = vld [vmem:[%s252 + $0x6058] sm:$0xff]
        %v3435 = vld [vmem:[%s252 + $0x6060] sm:$0xff]
        %v3436 = vld [vmem:[%s252 + $0x6068] sm:$0xff]
        %v3437 = vld [vmem:[%s252 + $0x6070] sm:$0xff]
        %v3438 = vld [vmem:[%s252 + $0x6078] sm:$0xff]
        %v3439 = vld [vmem:[%s252 + $0x6080] sm:$0xff]
        %v3440 = vld [vmem:[%s252 + $0x6088] sm:$0xff]
        %v3441 = vld [vmem:[%s252 + $0x6090] sm:$0xff]
        %v3442 = vld [vmem:[%s252 + $0x6098] sm:$0xff]
        %v3443 = vld [vmem:[%s252 + $0x60a0] sm:$0xff]
        %v3444 = vld [vmem:[%s252 + $0x60a8] sm:$0xff]
        %v3445 = vld [vmem:[%s252 + $0x60b0] sm:$0xff]
        %v3446 = vld [vmem:[%s252 + $0x60b8] sm:$0xff]
        %v3447 = vld [vmem:[%s252 + $0x60c0] sm:$0xff]
        %v3448 = vld [vmem:[%s252 + $0x60c8] sm:$0xff]
        %v3449 = vld [vmem:[%s252 + $0x60d0] sm:$0xff]
        %v3450 = vld [vmem:[%s252 + $0x60d8] sm:$0xff]
        %v3451 = vld [vmem:[%s252 + $0x60e0] sm:$0xff]
        %v3452 = vld [vmem:[%s252 + $0x60e8] sm:$0xff]
        %v3453 = vld [vmem:[%s252 + $0x60f0] sm:$0xff]
        %v3454 = vld [vmem:[%s252 + $0x60f8] sm:$0xff]
        %v3455 = vld [vmem:[%s252 + $0x6100] sm:$0xff]
        %v3456 = vld [vmem:[%s252 + $0x6108] sm:$0xff]
        %v3457 = vld [vmem:[%s252 + $0x6110] sm:$0xff]
        %v3458 = vld [vmem:[%s252 + $0x6118] sm:$0xff]
        %v3459 = vld [vmem:[%s252 + $0x6120] sm:$0xff]
        %v3460 = vld [vmem:[%s252 + $0x6128] sm:$0xff]
        %v3461 = vld [vmem:[%s252 + $0x6130] sm:$0xff]
        %v3462 = vld [vmem:[%s252 + $0x6138] sm:$0xff]
        %v3463 = vld [vmem:[%s252 + $0x6140] sm:$0xff]
        %v3464 = vld [vmem:[%s252 + $0x6148] sm:$0xff]
        %v3465 = vld [vmem:[%s252 + $0x6150] sm:$0xff]
        %v3466 = vld [vmem:[%s252 + $0x6158] sm:$0xff]
        %v3467 = vld [vmem:[%s252 + $0x6160] sm:$0xff]
        %v3468 = vld [vmem:[%s252 + $0x6168] sm:$0xff]
        %v3469 = vld [vmem:[%s252 + $0x6170] sm:$0xff]
        %v3470 = vld [vmem:[%s252 + $0x6178] sm:$0xff]
        %v3471 = vld [vmem:[%s252 + $0x6180] sm:$0xff]
        %v3472 = vld [vmem:[%s252 + $0x6188] sm:$0xff]
        %v3473 = vld [vmem:[%s252 + $0x6190] sm:$0xff]
        %v3474 = vld [vmem:[%s252 + $0x6198] sm:$0xff]
        %v3475 = vld [vmem:[%s252 + $0x61a0] sm:$0xff]
        %v3476 = vld [vmem:[%s252 + $0x61a8] sm:$0xff]
        %v3477 = vld [vmem:[%s252 + $0x61b0] sm:$0xff]
        %v3478 = vld [vmem:[%s252 + $0x61b8] sm:$0xff]
        %v3479 = vld [vmem:[%s252 + $0x61c0] sm:$0xff]
        %v3480 = vld [vmem:[%s252 + $0x61c8] sm:$0xff]
        %v3481 = vld [vmem:[%s252 + $0x61d0] sm:$0xff]
        %v3482 = vld [vmem:[%s252 + $0x61d8] sm:$0xff]
        %v3483 = vld [vmem:[%s252 + $0x61e0] sm:$0xff]
        %v3484 = vld [vmem:[%s252 + $0x61e8] sm:$0xff]
        %v3485 = vld [vmem:[%s252 + $0x61f0] sm:$0xff]
        %v3486 = vld [vmem:[%s252 + $0x61f8] sm:$0xff]
        %v3487 = vld [vmem:[%s252 + $0x6200] sm:$0xff]
        %v3488 = vld [vmem:[%s252 + $0x6208] sm:$0xff]
        %v3489 = vld [vmem:[%s252 + $0x6210] sm:$0xff]
        %v3490 = vld [vmem:[%s252 + $0x6218] sm:$0xff]
        %v3491 = vld [vmem:[%s252 + $0x6220] sm:$0xff]
        %v3492 = vld [vmem:[%s252 + $0x6228] sm:$0xff]
        %v3493 = vld [vmem:[%s252 + $0x6230] sm:$0xff]
        %v3494 = vld [vmem:[%s252 + $0x6238] sm:$0xff]
        %v3495 = vld [vmem:[%s252 + $0x6240] sm:$0xff]
        %v3496 = vld [vmem:[%s252 + $0x6248] sm:$0xff]
        %v3497 = vld [vmem:[%s252 + $0x6250] sm:$0xff]
        %v3498 = vld [vmem:[%s252 + $0x6258] sm:$0xff]
        %v3499 = vld [vmem:[%s252 + $0x6260] sm:$0xff]
        %v3500 = vld [vmem:[%s252 + $0x6268] sm:$0xff]
        %v3501 = vld [vmem:[%s252 + $0x6270] sm:$0xff]
        %v3502 = vld [vmem:[%s252 + $0x6278] sm:$0xff]
        %v3503 = vld [vmem:[%s252 + $0x6280] sm:$0xff]
        %v3504 = vld [vmem:[%s252 + $0x6288] sm:$0xff]
        %v3505 = vld [vmem:[%s252 + $0x6290] sm:$0xff]
        %v3506 = vld [vmem:[%s252 + $0x6298] sm:$0xff]
        %v3507 = vld [vmem:[%s252 + $0x62a0] sm:$0xff]
        %v3508 = vld [vmem:[%s252 + $0x62a8] sm:$0xff]
        %v3509 = vld [vmem:[%s252 + $0x62b0] sm:$0xff]
        %v3510 = vld [vmem:[%s252 + $0x62b8] sm:$0xff]
        %v3511 = vld [vmem:[%s252 + $0x62c0] sm:$0xff]
        %v3512 = vld [vmem:[%s252 + $0x62c8] sm:$0xff]
        %v3513 = vld [vmem:[%s252 + $0x62d0] sm:$0xff]
        %v3514 = vld [vmem:[%s252 + $0x62d8] sm:$0xff]
        %v3515 = vld [vmem:[%s252 + $0x62e0] sm:$0xff]
        %v3516 = vld [vmem:[%s252 + $0x62e8] sm:$0xff]
        %v3517 = vld [vmem:[%s252 + $0x62f0] sm:$0xff]
        %v3518 = vld [vmem:[%s252 + $0x62f8] sm:$0xff]
        %v3519 = vld [vmem:[%s252 + $0x6300] sm:$0xff]
        %v3520 = vld [vmem:[%s252 + $0x6308] sm:$0xff]
        %v3521 = vld [vmem:[%s252 + $0x6310] sm:$0xff]
        %v3522 = vld [vmem:[%s252 + $0x6318] sm:$0xff]
        %v3523 = vld [vmem:[%s252 + $0x6320] sm:$0xff]
        %v3524 = vld [vmem:[%s252 + $0x6328] sm:$0xff]
        %v3525 = vld [vmem:[%s252 + $0x6330] sm:$0xff]
        %v3526 = vld [vmem:[%s252 + $0x6338] sm:$0xff]
        %v3527 = vld [vmem:[%s252 + $0x6340] sm:$0xff]
        %v3528 = vld [vmem:[%s252 + $0x6348] sm:$0xff]
        %v3529 = vld [vmem:[%s252 + $0x6350] sm:$0xff]
        %v3530 = vld [vmem:[%s252 + $0x6358] sm:$0xff]
        %v3531 = vld [vmem:[%s252 + $0x6360] sm:$0xff]
        %v3532 = vld [vmem:[%s252 + $0x6368] sm:$0xff]
        %v3533 = vld [vmem:[%s252 + $0x6370] sm:$0xff]
        %v3534 = vld [vmem:[%s252 + $0x6378] sm:$0xff]
        %v3535 = vld [vmem:[%s252 + $0x6380] sm:$0xff]
        %v3536 = vld [vmem:[%s252 + $0x6388] sm:$0xff]
        %v3537 = vld [vmem:[%s252 + $0x6390] sm:$0xff]
        %v3538 = vld [vmem:[%s252 + $0x6398] sm:$0xff]
        %v3539 = vld [vmem:[%s252 + $0x63a0] sm:$0xff]
        %v3540 = vld [vmem:[%s252 + $0x63a8] sm:$0xff]
        %v3541 = vld [vmem:[%s252 + $0x63b0] sm:$0xff]
        %v3542 = vld [vmem:[%s252 + $0x63b8] sm:$0xff]
        %v3543 = vld [vmem:[%s252 + $0x63c0] sm:$0xff]
        %v3544 = vld [vmem:[%s252 + $0x63c8] sm:$0xff]
        %v3545 = vld [vmem:[%s252 + $0x63d0] sm:$0xff]
        %v3546 = vld [vmem:[%s252 + $0x63d8] sm:$0xff]
        %v3547 = vld [vmem:[%s252 + $0x63e0] sm:$0xff]
        %v3548 = vld [vmem:[%s252 + $0x63e8] sm:$0xff]
        %v3549 = vld [vmem:[%s252 + $0x63f0] sm:$0xff]
        %v3550 = vld [vmem:[%s252 + $0x63f8] sm:$0xff]
        %v3551 = vld [vmem:[%s252 + $0x6400] sm:$0xff]
        %v3552 = vld [vmem:[%s252 + $0x6408] sm:$0xff]
        %v3553 = vld [vmem:[%s252 + $0x6410] sm:$0xff]
        %v3554 = vld [vmem:[%s252 + $0x6418] sm:$0xff]
        %v3555 = vld [vmem:[%s252 + $0x6420] sm:$0xff]
        %v3556 = vld [vmem:[%s252 + $0x6428] sm:$0xff]
        %v3557 = vld [vmem:[%s252 + $0x6430] sm:$0xff]
        %v3558 = vld [vmem:[%s252 + $0x6438] sm:$0xff]
        %v3559 = vld [vmem:[%s252 + $0x6440] sm:$0xff]
        %v3560 = vld [vmem:[%s252 + $0x6448] sm:$0xff]
        %v3561 = vld [vmem:[%s252 + $0x6450] sm:$0xff]
        %v3562 = vld [vmem:[%s252 + $0x6458] sm:$0xff]
        %v3563 = vld [vmem:[%s252 + $0x6460] sm:$0xff]
        %v3564 = vld [vmem:[%s252 + $0x6468] sm:$0xff]
        %v3565 = vld [vmem:[%s252 + $0x6470] sm:$0xff]
        %v3566 = vld [vmem:[%s252 + $0x6478] sm:$0xff]
        %v3567 = vld [vmem:[%s252 + $0x6480] sm:$0xff]
        %v3568 = vld [vmem:[%s252 + $0x6488] sm:$0xff]
        %v3569 = vld [vmem:[%s252 + $0x6490] sm:$0xff]
        %v3570 = vld [vmem:[%s252 + $0x6498] sm:$0xff]
        %v3571 = vld [vmem:[%s252 + $0x64a0] sm:$0xff]
        %v3572 = vld [vmem:[%s252 + $0x64a8] sm:$0xff]
        %v3573 = vld [vmem:[%s252 + $0x64b0] sm:$0xff]
        %v3574 = vld [vmem:[%s252 + $0x64b8] sm:$0xff]
        %v3575 = vld [vmem:[%s252 + $0x64c0] sm:$0xff]
        %v3576 = vld [vmem:[%s252 + $0x64c8] sm:$0xff]
        %v3577 = vld [vmem:[%s252 + $0x64d0] sm:$0xff]
        %v3578 = vld [vmem:[%s252 + $0x64d8] sm:$0xff]
        %v3579 = vld [vmem:[%s252 + $0x64e0] sm:$0xff]
        %v3580 = vld [vmem:[%s252 + $0x64e8] sm:$0xff]
        %v3581 = vld [vmem:[%s252 + $0x64f0] sm:$0xff]
        %v3582 = vld [vmem:[%s252 + $0x64f8] sm:$0xff]
        %v3583 = vld [vmem:[%s252 + $0x6500] sm:$0xff]
        %v3584 = vld [vmem:[%s252 + $0x6508] sm:$0xff]
        %v3585 = vld [vmem:[%s252 + $0x6510] sm:$0xff]
        %v3586 = vld [vmem:[%s252 + $0x6518] sm:$0xff]
        %v3587 = vld [vmem:[%s252 + $0x6520] sm:$0xff]
        %v3588 = vld [vmem:[%s252 + $0x6528] sm:$0xff]
        %v3589 = vld [vmem:[%s252 + $0x6530] sm:$0xff]
        %v3590 = vld [vmem:[%s252 + $0x6538] sm:$0xff]
        %v3591 = vld [vmem:[%s252 + $0x6540] sm:$0xff]
        %v3592 = vld [vmem:[%s252 + $0x6548] sm:$0xff]
        %v3593 = vld [vmem:[%s252 + $0x6550] sm:$0xff]
        %v3594 = vld [vmem:[%s252 + $0x6558] sm:$0xff]
        %v3595 = vld [vmem:[%s252 + $0x6560] sm:$0xff]
        %v3596 = vld [vmem:[%s252 + $0x6568] sm:$0xff]
        %v3597 = vld [vmem:[%s252 + $0x6570] sm:$0xff]
        %v3598 = vld [vmem:[%s252 + $0x6578] sm:$0xff]
        %v3599 = vld [vmem:[%s252 + $0x6580] sm:$0xff]
        %v3600 = vld [vmem:[%s252 + $0x6588] sm:$0xff]
        %v3601 = vld [vmem:[%s252 + $0x6590] sm:$0xff]
        %v3602 = vld [vmem:[%s252 + $0x6598] sm:$0xff]
        %v3603 = vld [vmem:[%s252 + $0x65a0] sm:$0xff]
        %v3604 = vld [vmem:[%s252 + $0x65a8] sm:$0xff]
        %v3605 = vld [vmem:[%s252 + $0x65b0] sm:$0xff]
        %v3606 = vld [vmem:[%s252 + $0x65b8] sm:$0xff]
        %v3607 = vld [vmem:[%s252 + $0x65c0] sm:$0xff]
        %v3608 = vld [vmem:[%s252 + $0x65c8] sm:$0xff]
        %v3609 = vld [vmem:[%s252 + $0x65d0] sm:$0xff]
        %v3610 = vld [vmem:[%s252 + $0x65d8] sm:$0xff]
        %v3611 = vld [vmem:[%s252 + $0x65e0] sm:$0xff]
        %v3612 = vld [vmem:[%s252 + $0x65e8] sm:$0xff]
        %v3613 = vld [vmem:[%s252 + $0x65f0] sm:$0xff]
        %v3614 = vld [vmem:[%s252 + $0x65f8] sm:$0xff]
        %v3615 = vld [vmem:[%s252 + $0x6600] sm:$0xff]
        %v3616 = vld [vmem:[%s252 + $0x6608] sm:$0xff]
        %v3617 = vld [vmem:[%s252 + $0x6610] sm:$0xff]
        %v3618 = vld [vmem:[%s252 + $0x6618] sm:$0xff]
        %v3619 = vld [vmem:[%s252 + $0x6620] sm:$0xff]
        %v3620 = vld [vmem:[%s252 + $0x6628] sm:$0xff]
        %v3621 = vld [vmem:[%s252 + $0x6630] sm:$0xff]
        %v3622 = vld [vmem:[%s252 + $0x6638] sm:$0xff]
        %v3623 = vld [vmem:[%s252 + $0x6640] sm:$0xff]
        %v3624 = vld [vmem:[%s252 + $0x6648] sm:$0xff]
        %v3625 = vld [vmem:[%s252 + $0x6650] sm:$0xff]
        %v3626 = vld [vmem:[%s252 + $0x6658] sm:$0xff]
        %v3627 = vld [vmem:[%s252 + $0x6660] sm:$0xff]
        %v3628 = vld [vmem:[%s252 + $0x6668] sm:$0xff]
        %v3629 = vld [vmem:[%s252 + $0x6670] sm:$0xff]
        %v3630 = vld [vmem:[%s252 + $0x6678] sm:$0xff]
        %v3631 = vld [vmem:[%s252 + $0x6680] sm:$0xff]
        %v3632 = vld [vmem:[%s252 + $0x6688] sm:$0xff]
        %v3633 = vld [vmem:[%s252 + $0x6690] sm:$0xff]
        %v3634 = vld [vmem:[%s252 + $0x6698] sm:$0xff]
        %v3635 = vld [vmem:[%s252 + $0x66a0] sm:$0xff]
        %v3636 = vld [vmem:[%s252 + $0x66a8] sm:$0xff]
        %v3637 = vld [vmem:[%s252 + $0x66b0] sm:$0xff]
        %v3638 = vld [vmem:[%s252 + $0x66b8] sm:$0xff]
        %v3639 = vld [vmem:[%s252 + $0x66c0] sm:$0xff]
        %v3640 = vld [vmem:[%s252 + $0x66c8] sm:$0xff]
        %v3641 = vld [vmem:[%s252 + $0x66d0] sm:$0xff]
        %v3642 = vld [vmem:[%s252 + $0x66d8] sm:$0xff]
        %v3643 = vld [vmem:[%s252 + $0x66e0] sm:$0xff]
        %v3644 = vld [vmem:[%s252 + $0x66e8] sm:$0xff]
        %v3645 = vld [vmem:[%s252 + $0x66f0] sm:$0xff]
        %v3646 = vld [vmem:[%s252 + $0x66f8] sm:$0xff]
        %v3647 = vld [vmem:[%s252 + $0x6700] sm:$0xff]
        %v3648 = vld [vmem:[%s252 + $0x6708] sm:$0xff]
        %v3649 = vld [vmem:[%s252 + $0x6710] sm:$0xff]
        %v3650 = vld [vmem:[%s252 + $0x6718] sm:$0xff]
        %v3651 = vld [vmem:[%s252 + $0x6720] sm:$0xff]
        %v3652 = vld [vmem:[%s252 + $0x6728] sm:$0xff]
        %v3653 = vld [vmem:[%s252 + $0x6730] sm:$0xff]
        %v3654 = vld [vmem:[%s252 + $0x6738] sm:$0xff]
        %v3655 = vld [vmem:[%s252 + $0x6740] sm:$0xff]
        %v3656 = vld [vmem:[%s252 + $0x6748] sm:$0xff]
        %v3657 = vld [vmem:[%s252 + $0x6750] sm:$0xff]
        %v3658 = vld [vmem:[%s252 + $0x6758] sm:$0xff]
        %v3659 = vld [vmem:[%s252 + $0x6760] sm:$0xff]
        %v3660 = vld [vmem:[%s252 + $0x6768] sm:$0xff]
        %v3661 = vld [vmem:[%s252 + $0x6770] sm:$0xff]
        %v3662 = vld [vmem:[%s252 + $0x6778] sm:$0xff]
        %v3663 = vld [vmem:[%s252 + $0x6780] sm:$0xff]
        %v3664 = vld [vmem:[%s252 + $0x6788] sm:$0xff]
        %v3665 = vld [vmem:[%s252 + $0x6790] sm:$0xff]
        %v3666 = vld [vmem:[%s252 + $0x6798] sm:$0xff]
        %v3667 = vld [vmem:[%s252 + $0x67a0] sm:$0xff]
        %v3668 = vld [vmem:[%s252 + $0x67a8] sm:$0xff]
        %v3669 = vld [vmem:[%s252 + $0x67b0] sm:$0xff]
        %v3670 = vld [vmem:[%s252 + $0x67b8] sm:$0xff]
        %v3671 = vld [vmem:[%s252 + $0x67c0] sm:$0xff]
        %v3672 = vld [vmem:[%s252 + $0x67c8] sm:$0xff]
        %v3673 = vld [vmem:[%s252 + $0x67d0] sm:$0xff]
        %v3674 = vld [vmem:[%s252 + $0x67d8] sm:$0xff]
        %v3675 = vld [vmem:[%s252 + $0x67e0] sm:$0xff]
        %v3676 = vld [vmem:[%s252 + $0x67e8] sm:$0xff]
        %v3677 = vld [vmem:[%s252 + $0x67f0] sm:$0xff]
        %v3678 = vld [vmem:[%s252 + $0x67f8] sm:$0xff]
        %v3679 = vld [vmem:[%s252 + $0x6800] sm:$0xff]
        %v3680 = vld [vmem:[%s252 + $0x6808] sm:$0xff]
        %v3681 = vld [vmem:[%s252 + $0x6810] sm:$0xff]
        %v3682 = vld [vmem:[%s252 + $0x6818] sm:$0xff]
        %v3683 = vld [vmem:[%s252 + $0x6820] sm:$0xff]
        %v3684 = vld [vmem:[%s252 + $0x6828] sm:$0xff]
        %v3685 = vld [vmem:[%s252 + $0x6830] sm:$0xff]
        %v3686 = vld [vmem:[%s252 + $0x6838] sm:$0xff]
        %v3687 = vld [vmem:[%s252 + $0x6840] sm:$0xff]
        %v3688 = vld [vmem:[%s252 + $0x6848] sm:$0xff]
        %v3689 = vld [vmem:[%s252 + $0x6850] sm:$0xff]
        %v3690 = vld [vmem:[%s252 + $0x6858] sm:$0xff]
        %v3691 = vld [vmem:[%s252 + $0x6860] sm:$0xff]
        %v3692 = vld [vmem:[%s252 + $0x6868] sm:$0xff]
        %v3693 = vld [vmem:[%s252 + $0x6870] sm:$0xff]
        %v3694 = vld [vmem:[%s252 + $0x6878] sm:$0xff]
        %v3695 = vld [vmem:[%s252 + $0x6880] sm:$0xff]
        %v3696 = vld [vmem:[%s252 + $0x6888] sm:$0xff]
        %v3697 = vld [vmem:[%s252 + $0x6890] sm:$0xff]
        %v3698 = vld [vmem:[%s252 + $0x6898] sm:$0xff]
        %v3699 = vld [vmem:[%s252 + $0x68a0] sm:$0xff]
        %v3700 = vld [vmem:[%s252 + $0x68a8] sm:$0xff]
        %v3701 = vld [vmem:[%s252 + $0x68b0] sm:$0xff]
        %v3702 = vld [vmem:[%s252 + $0x68b8] sm:$0xff]
        %v3703 = vld [vmem:[%s252 + $0x68c0] sm:$0xff]
        %v3704 = vld [vmem:[%s252 + $0x68c8] sm:$0xff]
        %v3705 = vld [vmem:[%s252 + $0x68d0] sm:$0xff]
        %v3706 = vld [vmem:[%s252 + $0x68d8] sm:$0xff]
        %v3707 = vld [vmem:[%s252 + $0x68e0] sm:$0xff]
        %v3708 = vld [vmem:[%s252 + $0x68e8] sm:$0xff]
        %v3709 = vld [vmem:[%s252 + $0x68f0] sm:$0xff]
        %v3710 = vld [vmem:[%s252 + $0x68f8] sm:$0xff]
        %v3711 = vld [vmem:[%s252 + $0x6900] sm:$0xff]
        %v3712 = vld [vmem:[%s252 + $0x6908] sm:$0xff]
        %v3713 = vld [vmem:[%s252 + $0x6910] sm:$0xff]
        %v3714 = vld [vmem:[%s252 + $0x6918] sm:$0xff]
        %v3715 = vld [vmem:[%s252 + $0x6920] sm:$0xff]
        %v3716 = vld [vmem:[%s252 + $0x6928] sm:$0xff]
        %v3717 = vld [vmem:[%s252 + $0x6930] sm:$0xff]
        %v3718 = vld [vmem:[%s252 + $0x6938] sm:$0xff]
        %v3719 = vld [vmem:[%s252 + $0x6940] sm:$0xff]
        %v3720 = vld [vmem:[%s252 + $0x6948] sm:$0xff]
        %v3721 = vld [vmem:[%s252 + $0x6950] sm:$0xff]
        %v3722 = vld [vmem:[%s252 + $0x6958] sm:$0xff]
        %v3723 = vld [vmem:[%s252 + $0x6960] sm:$0xff]
        %v3724 = vld [vmem:[%s252 + $0x6968] sm:$0xff]
        %v3725 = vld [vmem:[%s252 + $0x6970] sm:$0xff]
        %v3726 = vld [vmem:[%s252 + $0x6978] sm:$0xff]
        %v3727 = vld [vmem:[%s252 + $0x6980] sm:$0xff]
        %v3728 = vld [vmem:[%s252 + $0x6988] sm:$0xff]
        %v3729 = vld [vmem:[%s252 + $0x6990] sm:$0xff]
        %v3730 = vld [vmem:[%s252 + $0x6998] sm:$0xff]
        %v3731 = vld [vmem:[%s252 + $0x69a0] sm:$0xff]
        %v3732 = vld [vmem:[%s252 + $0x69a8] sm:$0xff]
        %v3733 = vld [vmem:[%s252 + $0x69b0] sm:$0xff]
        %v3734 = vld [vmem:[%s252 + $0x69b8] sm:$0xff]
        %v3735 = vld [vmem:[%s252 + $0x69c0] sm:$0xff]
        %v3736 = vld [vmem:[%s252 + $0x69c8] sm:$0xff]
        %v3737 = vld [vmem:[%s252 + $0x69d0] sm:$0xff]
        %v3738 = vld [vmem:[%s252 + $0x69d8] sm:$0xff]
        %v3739 = vld [vmem:[%s252 + $0x69e0] sm:$0xff]
        %v3740 = vld [vmem:[%s252 + $0x69e8] sm:$0xff]
        %v3741 = vld [vmem:[%s252 + $0x69f0] sm:$0xff]
        %v3742 = vld [vmem:[%s252 + $0x69f8] sm:$0xff]
        %v3743 = vld [vmem:[%s252 + $0x6a00] sm:$0xff]
        %v3744 = vld [vmem:[%s252 + $0x6a08] sm:$0xff]
        %v3745 = vld [vmem:[%s252 + $0x6a10] sm:$0xff]
        %v3746 = vld [vmem:[%s252 + $0x6a18] sm:$0xff]
        %v3747 = vld [vmem:[%s252 + $0x6a20] sm:$0xff]
        %v3748 = vld [vmem:[%s252 + $0x6a28] sm:$0xff]
        %v3749 = vld [vmem:[%s252 + $0x6a30] sm:$0xff]
        %v3750 = vld [vmem:[%s252 + $0x6a38] sm:$0xff]
        %v3751 = vld [vmem:[%s252 + $0x6a40] sm:$0xff]
        %v3752 = vld [vmem:[%s252 + $0x6a48] sm:$0xff]
        %v3753 = vld [vmem:[%s252 + $0x6a50] sm:$0xff]
        %v3754 = vld [vmem:[%s252 + $0x6a58] sm:$0xff]
        %v3755 = vld [vmem:[%s252 + $0x6a60] sm:$0xff]
        %v3756 = vld [vmem:[%s252 + $0x6a68] sm:$0xff]
        %v3757 = vld [vmem:[%s252 + $0x6a70] sm:$0xff]
        %v3758 = vld [vmem:[%s252 + $0x6a78] sm:$0xff]
        %v3759 = vld [vmem:[%s252 + $0x6a80] sm:$0xff]
        %v3760 = vld [vmem:[%s252 + $0x6a88] sm:$0xff]
        %v3761 = vld [vmem:[%s252 + $0x6a90] sm:$0xff]
        %v3762 = vld [vmem:[%s252 + $0x6a98] sm:$0xff]
        %v3763 = vld [vmem:[%s252 + $0x6aa0] sm:$0xff]
        %v3764 = vld [vmem:[%s252 + $0x6aa8] sm:$0xff]
        %v3765 = vld [vmem:[%s252 + $0x6ab0] sm:$0xff]
        %v3766 = vld [vmem:[%s252 + $0x6ab8] sm:$0xff]
        %v3767 = vld [vmem:[%s252 + $0x6ac0] sm:$0xff]
        %v3768 = vld [vmem:[%s252 + $0x6ac8] sm:$0xff]
        %v3769 = vld [vmem:[%s252 + $0x6ad0] sm:$0xff]
        %v3770 = vld [vmem:[%s252 + $0x6ad8] sm:$0xff]
        %v3771 = vld [vmem:[%s252 + $0x6ae0] sm:$0xff]
        %v3772 = vld [vmem:[%s252 + $0x6ae8] sm:$0xff]
        %v3773 = vld [vmem:[%s252 + $0x6af0] sm:$0xff]
        %v3774 = vld [vmem:[%s252 + $0x6af8] sm:$0xff]
        %v3775 = vld [vmem:[%s252 + $0x6b00] sm:$0xff]
        %v3776 = vld [vmem:[%s252 + $0x6b08] sm:$0xff]
        %v3777 = vld [vmem:[%s252 + $0x6b10] sm:$0xff]
        %v3778 = vld [vmem:[%s252 + $0x6b18] sm:$0xff]
        %v3779 = vld [vmem:[%s252 + $0x6b20] sm:$0xff]
        %v3780 = vld [vmem:[%s252 + $0x6b28] sm:$0xff]
        %v3781 = vld [vmem:[%s252 + $0x6b30] sm:$0xff]
        %v3782 = vld [vmem:[%s252 + $0x6b38] sm:$0xff]
        %v3783 = vld [vmem:[%s252 + $0x6b40] sm:$0xff]
        %v3784 = vld [vmem:[%s252 + $0x6b48] sm:$0xff]
        %v3785 = vld [vmem:[%s252 + $0x6b50] sm:$0xff]
        %v3786 = vld [vmem:[%s252 + $0x6b58] sm:$0xff]
        %v3787 = vld [vmem:[%s252 + $0x6b60] sm:$0xff]
        %v3788 = vld [vmem:[%s252 + $0x6b68] sm:$0xff]
        %v3789 = vld [vmem:[%s252 + $0x6b70] sm:$0xff]
        %v3790 = vld [vmem:[%s252 + $0x6b78] sm:$0xff]
        %v3791 = vld [vmem:[%s252 + $0x6b80] sm:$0xff]
        %v3792 = vld [vmem:[%s252 + $0x6b88] sm:$0xff]
        %v3793 = vld [vmem:[%s252 + $0x6b90] sm:$0xff]
        %v3794 = vld [vmem:[%s252 + $0x6b98] sm:$0xff]
        %v3795 = vld [vmem:[%s252 + $0x6ba0] sm:$0xff]
        %v3796 = vld [vmem:[%s252 + $0x6ba8] sm:$0xff]
        %v3797 = vld [vmem:[%s252 + $0x6bb0] sm:$0xff]
        %v3798 = vld [vmem:[%s252 + $0x6bb8] sm:$0xff]
        %v3799 = vld [vmem:[%s252 + $0x6bc0] sm:$0xff]
        %v3800 = vld [vmem:[%s252 + $0x6bc8] sm:$0xff]
        %v3801 = vld [vmem:[%s252 + $0x6bd0] sm:$0xff]
        %v3802 = vld [vmem:[%s252 + $0x6bd8] sm:$0xff]
        %v3803 = vld [vmem:[%s252 + $0x6be0] sm:$0xff]
        %v3804 = vld [vmem:[%s252 + $0x6be8] sm:$0xff]
        %v3805 = vld [vmem:[%s252 + $0x6bf0] sm:$0xff]
        %v3806 = vld [vmem:[%s252 + $0x6bf8] sm:$0xff]
        %v3807 = vld [vmem:[%s252 + $0x6c00] sm:$0xff]
        %v3808 = vld [vmem:[%s252 + $0x6c08] sm:$0xff]
        %v3809 = vld [vmem:[%s252 + $0x6c10] sm:$0xff]
        %v3810 = vld [vmem:[%s252 + $0x6c18] sm:$0xff]
        %v3811 = vld [vmem:[%s252 + $0x6c20] sm:$0xff]
        %v3812 = vld [vmem:[%s252 + $0x6c28] sm:$0xff]
        %v3813 = vld [vmem:[%s252 + $0x6c30] sm:$0xff]
        %v3814 = vld [vmem:[%s252 + $0x6c38] sm:$0xff]
        %v3815 = vld [vmem:[%s252 + $0x6c40] sm:$0xff]
        %v3816 = vld [vmem:[%s252 + $0x6c48] sm:$0xff]
        %v3817 = vld [vmem:[%s252 + $0x6c50] sm:$0xff]
        %v3818 = vld [vmem:[%s252 + $0x6c58] sm:$0xff]
        %v3819 = vld [vmem:[%s252 + $0x6c60] sm:$0xff]
        %v3820 = vld [vmem:[%s252 + $0x6c68] sm:$0xff]
        %v3821 = vld [vmem:[%s252 + $0x6c70] sm:$0xff]
        %v3822 = vld [vmem:[%s252 + $0x6c78] sm:$0xff]
        %v3823 = vld [vmem:[%s252 + $0x6c80] sm:$0xff]
        %v3824 = vld [vmem:[%s252 + $0x6c88] sm:$0xff]
        %v3825 = vld [vmem:[%s252 + $0x6c90] sm:$0xff]
        %v3826 = vld [vmem:[%s252 + $0x6c98] sm:$0xff]
        %v3827 = vld [vmem:[%s252 + $0x6ca0] sm:$0xff]
        %v3828 = vld [vmem:[%s252 + $0x6ca8] sm:$0xff]
        %v3829 = vld [vmem:[%s252 + $0x6cb0] sm:$0xff]
        %v3830 = vld [vmem:[%s252 + $0x6cb8] sm:$0xff]
        %v3831 = vld [vmem:[%s252 + $0x6cc0] sm:$0xff]
        %v3832 = vld [vmem:[%s252 + $0x6cc8] sm:$0xff]
        %v3833 = vld [vmem:[%s252 + $0x6cd0] sm:$0xff]
        %v3834 = vld [vmem:[%s252 + $0x6cd8] sm:$0xff]
        %v3835 = vld [vmem:[%s252 + $0x6ce0] sm:$0xff]
        %v3836 = vld [vmem:[%s252 + $0x6ce8] sm:$0xff]
        %v3837 = vld [vmem:[%s252 + $0x6cf0] sm:$0xff]
        %v3838 = vld [vmem:[%s252 + $0x6cf8] sm:$0xff]
        %v3839 = vld [vmem:[%s252 + $0x6d00] sm:$0xff]
        %v3840 = vld [vmem:[%s252 + $0x6d08] sm:$0xff]
        %v3841 = vld [vmem:[%s252 + $0x6d10] sm:$0xff]
        %v3842 = vld [vmem:[%s252 + $0x6d18] sm:$0xff]
        %v3843 = vld [vmem:[%s252 + $0x6d20] sm:$0xff]
        %v3844 = vld [vmem:[%s252 + $0x6d28] sm:$0xff]
        %v3845 = vld [vmem:[%s252 + $0x6d30] sm:$0xff]
        %v3846 = vld [vmem:[%s252 + $0x6d38] sm:$0xff]
        %v3847 = vld [vmem:[%s252 + $0x6d40] sm:$0xff]
        %v3848 = vld [vmem:[%s252 + $0x6d48] sm:$0xff]
        %v3849 = vld [vmem:[%s252 + $0x6d50] sm:$0xff]
        %v3850 = vld [vmem:[%s252 + $0x6d58] sm:$0xff]
        %v3851 = vld [vmem:[%s252 + $0x6d60] sm:$0xff]
        %v3852 = vld [vmem:[%s252 + $0x6d68] sm:$0xff]
        %v3853 = vld [vmem:[%s252 + $0x6d70] sm:$0xff]
        %v3854 = vld [vmem:[%s252 + $0x6d78] sm:$0xff]
        %v3855 = vld [vmem:[%s252 + $0x6d80] sm:$0xff]
        %v3856 = vld [vmem:[%s252 + $0x6d88] sm:$0xff]
        %v3857 = vld [vmem:[%s252 + $0x6d90] sm:$0xff]
        %v3858 = vld [vmem:[%s252 + $0x6d98] sm:$0xff]
        %v3859 = vld [vmem:[%s252 + $0x6da0] sm:$0xff]
        %v3860 = vld [vmem:[%s252 + $0x6da8] sm:$0xff]
        %v3861 = vld [vmem:[%s252 + $0x6db0] sm:$0xff]
        %v3862 = vld [vmem:[%s252 + $0x6db8] sm:$0xff]
        %v3863 = vld [vmem:[%s252 + $0x6dc0] sm:$0xff]
        %v3864 = vld [vmem:[%s252 + $0x6dc8] sm:$0xff]
        %v3865 = vld [vmem:[%s252 + $0x6dd0] sm:$0xff]
        %v3866 = vld [vmem:[%s252 + $0x6dd8] sm:$0xff]
        %v3867 = vld [vmem:[%s252 + $0x6de0] sm:$0xff]
        %v3868 = vld [vmem:[%s252 + $0x6de8] sm:$0xff]
        %v3869 = vld [vmem:[%s252 + $0x6df0] sm:$0xff]
        %v3870 = vld [vmem:[%s252 + $0x6df8] sm:$0xff]
        %v3871 = vld [vmem:[%s252 + $0x6e00] sm:$0xff]
        %v3872 = vld [vmem:[%s252 + $0x6e08] sm:$0xff]
        %v3873 = vld [vmem:[%s252 + $0x6e10] sm:$0xff]
        %v3874 = vld [vmem:[%s252 + $0x6e18] sm:$0xff]
        %v3875 = vld [vmem:[%s252 + $0x6e20] sm:$0xff]
        %v3876 = vld [vmem:[%s252 + $0x6e28] sm:$0xff]
        %v3877 = vld [vmem:[%s252 + $0x6e30] sm:$0xff]
        %v3878 = vld [vmem:[%s252 + $0x6e38] sm:$0xff]
        %v3879 = vld [vmem:[%s252 + $0x6e40] sm:$0xff]
        %v3880 = vld [vmem:[%s252 + $0x6e48] sm:$0xff]
        %v3881 = vld [vmem:[%s252 + $0x6e50] sm:$0xff]
        %v3882 = vld [vmem:[%s252 + $0x6e58] sm:$0xff]
        %v3883 = vld [vmem:[%s252 + $0x6e60] sm:$0xff]
        %v3884 = vld [vmem:[%s252 + $0x6e68] sm:$0xff]
        %v3885 = vld [vmem:[%s252 + $0x6e70] sm:$0xff]
        %v3886 = vld [vmem:[%s252 + $0x6e78] sm:$0xff]
        %v3887 = vld [vmem:[%s252 + $0x6e80] sm:$0xff]
        %v3888 = vld [vmem:[%s252 + $0x6e88] sm:$0xff]
        %v3889 = vld [vmem:[%s252 + $0x6e90] sm:$0xff]
        %v3890 = vld [vmem:[%s252 + $0x6e98] sm:$0xff]
        %v3891 = vld [vmem:[%s252 + $0x6ea0] sm:$0xff]
        %v3892 = vld [vmem:[%s252 + $0x6ea8] sm:$0xff]
        %v3893 = vld [vmem:[%s252 + $0x6eb0] sm:$0xff]
        %v3894 = vld [vmem:[%s252 + $0x6eb8] sm:$0xff]
        %v3895 = vld [vmem:[%s252 + $0x6ec0] sm:$0xff]
        %v3896 = vld [vmem:[%s252 + $0x6ec8] sm:$0xff]
        %v3897 = vld [vmem:[%s252 + $0x6ed0] sm:$0xff]
        %v3898 = vld [vmem:[%s252 + $0x6ed8] sm:$0xff]
        %v3899 = vld [vmem:[%s252 + $0x6ee0] sm:$0xff]
        %v3900 = vld [vmem:[%s252 + $0x6ee8] sm:$0xff]
        %v3901 = vld [vmem:[%s252 + $0x6ef0] sm:$0xff]
        %v3902 = vld [vmem:[%s252 + $0x6ef8] sm:$0xff]
        %v3903 = vld [vmem:[%s252 + $0x6f00] sm:$0xff]
        %v3904 = vld [vmem:[%s252 + $0x6f08] sm:$0xff]
        %v3905 = vld [vmem:[%s252 + $0x6f10] sm:$0xff]
        %v3906 = vld [vmem:[%s252 + $0x6f18] sm:$0xff]
        %v3907 = vld [vmem:[%s252 + $0x6f20] sm:$0xff]
        %v3908 = vld [vmem:[%s252 + $0x6f28] sm:$0xff]
        %v3909 = vld [vmem:[%s252 + $0x6f30] sm:$0xff]
        %v3910 = vld [vmem:[%s252 + $0x6f38] sm:$0xff]
        %v3911 = vld [vmem:[%s252 + $0x6f40] sm:$0xff]
        %v3912 = vld [vmem:[%s252 + $0x6f48] sm:$0xff]
        %v3913 = vld [vmem:[%s252 + $0x6f50] sm:$0xff]
        %v3914 = vld [vmem:[%s252 + $0x6f58] sm:$0xff]
        %v3915 = vld [vmem:[%s252 + $0x6f60] sm:$0xff]
        %v3916 = vld [vmem:[%s252 + $0x6f68] sm:$0xff]
        %v3917 = vld [vmem:[%s252 + $0x6f70] sm:$0xff]
        %v3918 = vld [vmem:[%s252 + $0x6f78] sm:$0xff]
        %v3919 = vld [vmem:[%s252 + $0x6f80] sm:$0xff]
        %v3920 = vld [vmem:[%s252 + $0x6f88] sm:$0xff]
        %v3921 = vld [vmem:[%s252 + $0x6f90] sm:$0xff]
        %v3922 = vld [vmem:[%s252 + $0x6f98] sm:$0xff]
        %v3923 = vld [vmem:[%s252 + $0x6fa0] sm:$0xff]
        %v3924 = vld [vmem:[%s252 + $0x6fa8] sm:$0xff]
        %v3925 = vld [vmem:[%s252 + $0x6fb0] sm:$0xff]
        %v3926 = vld [vmem:[%s252 + $0x6fb8] sm:$0xff]
        %v3927 = vld [vmem:[%s252 + $0x6fc0] sm:$0xff]
        %v3928 = vld [vmem:[%s252 + $0x6fc8] sm:$0xff]
        %v3929 = vld [vmem:[%s252 + $0x6fd0] sm:$0xff]
        %v3930 = vld [vmem:[%s252 + $0x6fd8] sm:$0xff]
        %v3931 = vld [vmem:[%s252 + $0x6fe0] sm:$0xff]
        %v3932 = vld [vmem:[%s252 + $0x6fe8] sm:$0xff]
        %v3933 = vld [vmem:[%s252 + $0x6ff0] sm:$0xff]
        %v3934 = vld [vmem:[%s252 + $0x6ff8] sm:$0xff]
        %3935 = vmatprep.subr.mxu0 %v352
        %3936 = vmatpush1.msra.mxu0 %v351
        %3937 = vmatprep.subr.mxu0 %v368
        %3938 = vmatpush1.msra.mxu0 %v367
        %3939 = vmatprep.subr.mxu0 %v384
        %3940 = vmatpush1.msra.mxu0 %v383
        %3941 = vmatprep.subr.mxu0 %v400
        %3942 = vmatpush1.msra.mxu0 %v399
        %3943 = vmatprep.subr.mxu0 %v416
        %3944 = vmatpush1.msra.mxu0 %v415
        %3945 = vmatprep.subr.mxu0 %v432
        %3946 = vmatpush1.msra.mxu0 %v431
        %3947 = vmatprep.subr.mxu0 %v448
        %3948 = vmatpush1.msra.mxu0 %v447
        %3949 = vmatprep.subr.mxu0 %v464
        %3950 = vmatpush1.msra.mxu0 %v463
        %3951 = vmatprep.subr.mxu0 %v480
        %3952 = vmatpush1.msra.mxu0 %v479
        %3953 = vmatprep.subr.mxu0 %v496
        %3954 = vmatpush1.msra.mxu0 %v495
        %3955 = vmatprep.subr.mxu0 %v512
        %3956 = vmatpush1.msra.mxu0 %v511
        %3957 = vmatprep.subr.mxu0 %v528
        %3958 = vmatpush1.msra.mxu0 %v527
        %3959 = vmatprep.subr.mxu0 %v544
        %3960 = vmatpush1.msra.mxu0 %v543
        %3961 = vmatprep.subr.mxu0 %v560
        %3962 = vmatpush1.msra.mxu0 %v559
        %3963 = vmatprep.subr.mxu0 %v576
        %3964 = vmatpush1.msra.mxu0 %v575
        %3965 = vmatprep.subr.mxu0 %v592
        %3966 = vmatpush1.msra.mxu0 %v591
        %3967 = vmatprep.subr.mxu0 %v608
        %3968 = vmatpush1.msra.mxu0 %v607
        %3969 = vmatprep.subr.mxu0 %v624
        %3970 = vmatpush1.msra.mxu0 %v623
        %3971 = vmatprep.subr.mxu0 %v640
        %3972 = vmatpush1.msra.mxu0 %v639
        %3973 = vmatprep.subr.mxu0 %v656
        %3974 = vmatpush1.msra.mxu0 %v655
        %3975 = vmatprep.subr.mxu0 %v672
        %3976 = vmatpush1.msra.mxu0 %v671
        %3977 = vmatprep.subr.mxu0 %v688
        %3978 = vmatpush1.msra.mxu0 %v687
        %3979 = vmatprep.subr.mxu0 %v704
        %3980 = vmatpush1.msra.mxu0 %v703
        %3981 = vmatprep.subr.mxu0 %v720
        %3982 = vmatpush1.msra.mxu0 %v719
        %3983 = vmatprep.subr.mxu0 %v736
        %3984 = vmatpush1.msra.mxu0 %v735
        %3985 = vmatprep.subr.mxu0 %v752
        %3986 = vmatpush1.msra.mxu0 %v751
        %3987 = vmatprep.subr.mxu0 %v768
        %3988 = vmatpush1.msra.mxu0 %v767
        %3989 = vmatprep.subr.mxu0 %v784
        %3990 = vmatpush1.msra.mxu0 %v783
        %3991 = vmatprep.subr.mxu0 %v800
        %3992 = vmatpush1.msra.mxu0 %v799
        %3993 = vmatprep.subr.mxu0 %v816
        %3994 = vmatpush1.msra.mxu0 %v815
        %3995 = vmatprep.subr.mxu0 %v832
        %3996 = vmatpush1.msra.mxu0 %v831
        %3997 = vmatprep.subr.mxu0 %v848
        %3998 = vmatpush1.msra.mxu0 %v847
        %3999 = vmatprep.mubr.f32.mxu0 %v338
        %4000 = vmatmul.mubr.f32.gmra.mrb[0].mxu0 %v337
        %v4001 = vpop.f32.mrb[0].mxu0
        %v4002 = vadd.f32 0.0, %v4001
        %v4003 = vpop.f32.mrb[0].mxu0
        %v4004 = vadd.f32 0.0, %v4003
        %4005 = vdwg.mxu0
        %4006 = vmatprep.subr.mxu0 %v864
        %4007 = vmatpush1.msra.mxu0 %v863
        %4008 = vmatprep.subr.mxu0 %v880
        %4009 = vmatpush1.msra.mxu0 %v879
        %4010 = vmatprep.subr.mxu0 %v896
        %4011 = vmatpush1.msra.mxu0 %v895
        %4012 = vmatprep.subr.mxu0 %v912
        %4013 = vmatpush1.msra.mxu0 %v911
        %4014 = vmatprep.subr.mxu0 %v928
        %4015 = vmatpush1.msra.mxu0 %v927
        %4016 = vmatprep.subr.mxu0 %v944
        %4017 = vmatpush1.msra.mxu0 %v943
        %4018 = vmatprep.subr.mxu0 %v960
        %4019 = vmatpush1.msra.mxu0 %v959
        %4020 = vmatprep.subr.mxu0 %v976
        %4021 = vmatpush1.msra.mxu0 %v975
        %4022 = vmatprep.subr.mxu0 %v992
        %4023 = vmatpush1.msra.mxu0 %v991
        %4024 = vmatprep.subr.mxu0 %v1008
        %4025 = vmatpush1.msra.mxu0 %v1007
        %4026 = vmatprep.subr.mxu0 %v1024
        %4027 = vmatpush1.msra.mxu0 %v1023
        %4028 = vmatprep.subr.mxu0 %v1040
        %4029 = vmatpush1.msra.mxu0 %v1039
        %4030 = vmatprep.subr.mxu0 %v1056
        %4031 = vmatpush1.msra.mxu0 %v1055
        %4032 = vmatprep.subr.mxu0 %v1072
        %4033 = vmatpush1.msra.mxu0 %v1071
        %4034 = vmatprep.subr.mxu0 %v1088
        %4035 = vmatpush1.msra.mxu0 %v1087
        %4036 = vmatprep.subr.mxu0 %v1104
        %4037 = vmatpush1.msra.mxu0 %v1103
        %4038 = vmatprep.subr.mxu0 %v1120
        %4039 = vmatpush1.msra.mxu0 %v1119
        %4040 = vmatprep.subr.mxu0 %v1136
        %4041 = vmatpush1.msra.mxu0 %v1135
        %4042 = vmatprep.subr.mxu0 %v1152
        %4043 = vmatpush1.msra.mxu0 %v1151
        %4044 = vmatprep.subr.mxu0 %v1168
        %4045 = vmatpush1.msra.mxu0 %v1167
        %4046 = vmatprep.subr.mxu0 %v1184
        %4047 = vmatpush1.msra.mxu0 %v1183
        %4048 = vmatprep.subr.mxu0 %v1200
        %4049 = vmatpush1.msra.mxu0 %v1199
        %4050 = vmatprep.subr.mxu0 %v1216
        %4051 = vmatpush1.msra.mxu0 %v1215
        %4052 = vmatprep.subr.mxu0 %v1232
        %4053 = vmatpush1.msra.mxu0 %v1231
        %4054 = vmatprep.subr.mxu0 %v1248
        %4055 = vmatpush1.msra.mxu0 %v1247
        %4056 = vmatprep.subr.mxu0 %v1264
        %4057 = vmatpush1.msra.mxu0 %v1263
        %4058 = vmatprep.subr.mxu0 %v1280
        %4059 = vmatpush1.msra.mxu0 %v1279
        %4060 = vmatprep.subr.mxu0 %v1296
        %4061 = vmatpush1.msra.mxu0 %v1295
        %4062 = vmatprep.subr.mxu0 %v1312
        %4063 = vmatpush1.msra.mxu0 %v1311
        %4064 = vmatprep.subr.mxu0 %v1328
        %4065 = vmatpush1.msra.mxu0 %v1327
        %4066 = vmatprep.subr.mxu0 %v1344
        %4067 = vmatpush1.msra.mxu0 %v1343
        %4068 = vmatprep.subr.mxu0 %v1360
        %4069 = vmatpush1.msra.mxu0 %v1359
        %4070 = vmatprep.mubr.f32.mxu0 %v340
        %4071 = vmatmul.mubr.f32.gmra.mrb[0].mxu0 %v339
        %v4072 = vpop.f32.mrb[0].mxu0
        %v4073 = vadd.f32 %v4002, %v4072
        %v4074 = vpop.f32.mrb[0].mxu0
        %v4075 = vadd.f32 %v4004, %v4074
        %4076 = vdwg.mxu0
        %4077 = vmatprep.subr.mxu0 %v1376
        %4078 = vmatpush1.msra.mxu0 %v1375
        %4079 = vmatprep.subr.mxu0 %v1392
        %4080 = vmatpush1.msra.mxu0 %v1391
        %4081 = vmatprep.subr.mxu0 %v1408
        %4082 = vmatpush1.msra.mxu0 %v1407
        %4083 = vmatprep.subr.mxu0 %v1424
        %4084 = vmatpush1.msra.mxu0 %v1423
        %4085 = vmatprep.subr.mxu0 %v1440
        %4086 = vmatpush1.msra.mxu0 %v1439
        %4087 = vmatprep.subr.mxu0 %v1456
        %4088 = vmatpush1.msra.mxu0 %v1455
        %4089 = vmatprep.subr.mxu0 %v1472
        %4090 = vmatpush1.msra.mxu0 %v1471
        %4091 = vmatprep.subr.mxu0 %v1488
        %4092 = vmatpush1.msra.mxu0 %v1487
        %4093 = vmatprep.subr.mxu0 %v1504
        %4094 = vmatpush1.msra.mxu0 %v1503
        %4095 = vmatprep.subr.mxu0 %v1520
        %4096 = vmatpush1.msra.mxu0 %v1519
        %4097 = vmatprep.subr.mxu0 %v1536
        %4098 = vmatpush1.msra.mxu0 %v1535
        %4099 = vmatprep.subr.mxu0 %v1552
        %4100 = vmatpush1.msra.mxu0 %v1551
        %4101 = vmatprep.subr.mxu0 %v1568
        %4102 = vmatpush1.msra.mxu0 %v1567
        %4103 = vmatprep.subr.mxu0 %v1584
        %4104 = vmatpush1.msra.mxu0 %v1583
        %4105 = vmatprep.subr.mxu0 %v1600
        %4106 = vmatpush1.msra.mxu0 %v1599
        %4107 = vmatprep.subr.mxu0 %v1616
        %4108 = vmatpush1.msra.mxu0 %v1615
        %4109 = vmatprep.subr.mxu0 %v1632
        %4110 = vmatpush1.msra.mxu0 %v1631
        %4111 = vmatprep.subr.mxu0 %v1648
        %4112 = vmatpush1.msra.mxu0 %v1647
        %4113 = vmatprep.subr.mxu0 %v1664
        %4114 = vmatpush1.msra.mxu0 %v1663
        %4115 = vmatprep.subr.mxu0 %v1680
        %4116 = vmatpush1.msra.mxu0 %v1679
        %4117 = vmatprep.subr.mxu0 %v1696
        %4118 = vmatpush1.msra.mxu0 %v1695
        %4119 = vmatprep.subr.mxu0 %v1712
        %4120 = vmatpush1.msra.mxu0 %v1711
        %4121 = vmatprep.subr.mxu0 %v1728
        %4122 = vmatpush1.msra.mxu0 %v1727
        %4123 = vmatprep.subr.mxu0 %v1744
        %4124 = vmatpush1.msra.mxu0 %v1743
        %4125 = vmatprep.subr.mxu0 %v1760
        %4126 = vmatpush1.msra.mxu0 %v1759
        %4127 = vmatprep.subr.mxu0 %v1776
        %4128 = vmatpush1.msra.mxu0 %v1775
        %4129 = vmatprep.subr.mxu0 %v1792
        %4130 = vmatpush1.msra.mxu0 %v1791
        %4131 = vmatprep.subr.mxu0 %v1808
        %4132 = vmatpush1.msra.mxu0 %v1807
        %4133 = vmatprep.subr.mxu0 %v1824
        %4134 = vmatpush1.msra.mxu0 %v1823
        %4135 = vmatprep.subr.mxu0 %v1840
        %4136 = vmatpush1.msra.mxu0 %v1839
        %4137 = vmatprep.subr.mxu0 %v1856
        %4138 = vmatpush1.msra.mxu0 %v1855
        %4139 = vmatprep.subr.mxu0 %v1872
        %4140 = vmatpush1.msra.mxu0 %v1871
        %4141 = vmatprep.mubr.f32.mxu0 %v342
        %4142 = vmatmul.mubr.f32.gmra.mrb[0].mxu0 %v341
        %v4143 = vpop.f32.mrb[0].mxu0
        %v4144 = vadd.f32 %v4073, %v4143
        %v4145 = vpop.f32.mrb[0].mxu0
        %v4146 = vadd.f32 %v4075, %v4145
        %4147 = vdwg.mxu0
        %4148 = vmatprep.subr.mxu0 %v1888
        %4149 = vmatpush1.msra.mxu0 %v1887
        %4150 = vmatprep.subr.mxu0 %v1904
        %4151 = vmatpush1.msra.mxu0 %v1903
        %4152 = vmatprep.subr.mxu0 %v1920
        %4153 = vmatpush1.msra.mxu0 %v1919
        %4154 = vmatprep.subr.mxu0 %v1936
        %4155 = vmatpush1.msra.mxu0 %v1935
        %4156 = vmatprep.subr.mxu0 %v1952
        %4157 = vmatpush1.msra.mxu0 %v1951
        %4158 = vmatprep.subr.mxu0 %v1968
        %4159 = vmatpush1.msra.mxu0 %v1967
        %4160 = vmatprep.subr.mxu0 %v1984
        %4161 = vmatpush1.msra.mxu0 %v1983
        %4162 = vmatprep.subr.mxu0 %v2000
        %4163 = vmatpush1.msra.mxu0 %v1999
        %4164 = vmatprep.subr.mxu0 %v2016
        %4165 = vmatpush1.msra.mxu0 %v2015
        %4166 = vmatprep.subr.mxu0 %v2032
        %4167 = vmatpush1.msra.mxu0 %v2031
        %4168 = vmatprep.subr.mxu0 %v2048
        %4169 = vmatpush1.msra.mxu0 %v2047
        %4170 = vmatprep.subr.mxu0 %v2064
        %4171 = vmatpush1.msra.mxu0 %v2063
        %4172 = vmatprep.subr.mxu0 %v2080
        %4173 = vmatpush1.msra.mxu0 %v2079
        %4174 = vmatprep.subr.mxu0 %v2096
        %4175 = vmatpush1.msra.mxu0 %v2095
        %4176 = vmatprep.subr.mxu0 %v2112
        %4177 = vmatpush1.msra.mxu0 %v2111
        %4178 = vmatprep.subr.mxu0 %v2128
        %4179 = vmatpush1.msra.mxu0 %v2127
        %4180 = vmatprep.subr.mxu0 %v2144
        %4181 = vmatpush1.msra.mxu0 %v2143
        %4182 = vmatprep.subr.mxu0 %v2160
        %4183 = vmatpush1.msra.mxu0 %v2159
        %4184 = vmatprep.subr.mxu0 %v2176
        %4185 = vmatpush1.msra.mxu0 %v2175
        %4186 = vmatprep.subr.mxu0 %v2192
        %4187 = vmatpush1.msra.mxu0 %v2191
        %4188 = vmatprep.subr.mxu0 %v2208
        %4189 = vmatpush1.msra.mxu0 %v2207
        %4190 = vmatprep.subr.mxu0 %v2224
        %4191 = vmatpush1.msra.mxu0 %v2223
        %4192 = vmatprep.subr.mxu0 %v2240
        %4193 = vmatpush1.msra.mxu0 %v2239
        %4194 = vmatprep.subr.mxu0 %v2256
        %4195 = vmatpush1.msra.mxu0 %v2255
        %4196 = vmatprep.subr.mxu0 %v2272
        %4197 = vmatpush1.msra.mxu0 %v2271
        %4198 = vmatprep.subr.mxu0 %v2288
        %4199 = vmatpush1.msra.mxu0 %v2287
        %4200 = vmatprep.subr.mxu0 %v2304
        %4201 = vmatpush1.msra.mxu0 %v2303
        %4202 = vmatprep.subr.mxu0 %v2320
        %4203 = vmatpush1.msra.mxu0 %v2319
        %4204 = vmatprep.subr.mxu0 %v2336
        %4205 = vmatpush1.msra.mxu0 %v2335
        %4206 = vmatprep.subr.mxu0 %v2352
        %4207 = vmatpush1.msra.mxu0 %v2351
        %4208 = vmatprep.subr.mxu0 %v2368
        %4209 = vmatpush1.msra.mxu0 %v2367
        %4210 = vmatprep.subr.mxu0 %v2384
        %4211 = vmatpush1.msra.mxu0 %v2383
        %4212 = vmatprep.mubr.f32.mxu0 %v344
        %4213 = vmatmul.mubr.f32.gmra.mrb[0].mxu0 %v343
        %v4214 = vpop.f32.mrb[0].mxu0
        %v4215 = vadd.f32 %v4144, %v4214
        %v4216 = vpop.f32.mrb[0].mxu0
        %v4217 = vadd.f32 %v4146, %v4216
        %4218 = vdwg.mxu0
        %4219 = vmatprep.subr.mxu0 %v2400
        %4220 = vmatpush1.msra.mxu0 %v2399
        %4221 = vmatprep.subr.mxu0 %v2416
        %4222 = vmatpush1.msra.mxu0 %v2415
        %4223 = vmatprep.subr.mxu0 %v2432
        %4224 = vmatpush1.msra.mxu0 %v2431
        %4225 = vmatprep.subr.mxu0 %v2448
        %4226 = vmatpush1.msra.mxu0 %v2447
        %4227 = vmatprep.subr.mxu0 %v2464
        %4228 = vmatpush1.msra.mxu0 %v2463
        %4229 = vmatprep.subr.mxu0 %v2480
        %4230 = vmatpush1.msra.mxu0 %v2479
        %4231 = vmatprep.subr.mxu0 %v2496
        %4232 = vmatpush1.msra.mxu0 %v2495
        %4233 = vmatprep.subr.mxu0 %v2512
        %4234 = vmatpush1.msra.mxu0 %v2511
        %4235 = vmatprep.subr.mxu0 %v2528
        %4236 = vmatpush1.msra.mxu0 %v2527
        %4237 = vmatprep.subr.mxu0 %v2544
        %4238 = vmatpush1.msra.mxu0 %v2543
        %4239 = vmatprep.subr.mxu0 %v2560
        %4240 = vmatpush1.msra.mxu0 %v2559
        %4241 = vmatprep.subr.mxu0 %v2576
        %4242 = vmatpush1.msra.mxu0 %v2575
        %4243 = vmatprep.subr.mxu0 %v2592
        %4244 = vmatpush1.msra.mxu0 %v2591
        %4245 = vmatprep.subr.mxu0 %v2608
        %4246 = vmatpush1.msra.mxu0 %v2607
        %4247 = vmatprep.subr.mxu0 %v2624
        %4248 = vmatpush1.msra.mxu0 %v2623
        %4249 = vmatprep.subr.mxu0 %v2640
        %4250 = vmatpush1.msra.mxu0 %v2639
        %4251 = vmatprep.subr.mxu0 %v2656
        %4252 = vmatpush1.msra.mxu0 %v2655
        %4253 = vmatprep.subr.mxu0 %v2672
        %4254 = vmatpush1.msra.mxu0 %v2671
        %4255 = vmatprep.subr.mxu0 %v2688
        %4256 = vmatpush1.msra.mxu0 %v2687
        %4257 = vmatprep.subr.mxu0 %v2704
        %4258 = vmatpush1.msra.mxu0 %v2703
        %4259 = vmatprep.subr.mxu0 %v2720
        %4260 = vmatpush1.msra.mxu0 %v2719
        %4261 = vmatprep.subr.mxu0 %v2736
        %4262 = vmatpush1.msra.mxu0 %v2735
        %4263 = vmatprep.subr.mxu0 %v2752
        %4264 = vmatpush1.msra.mxu0 %v2751
        %4265 = vmatprep.subr.mxu0 %v2768
        %4266 = vmatpush1.msra.mxu0 %v2767
        %4267 = vmatprep.subr.mxu0 %v2784
        %4268 = vmatpush1.msra.mxu0 %v2783
        %4269 = vmatprep.subr.mxu0 %v2800
        %4270 = vmatpush1.msra.mxu0 %v2799
        %4271 = vmatprep.subr.mxu0 %v2816
        %4272 = vmatpush1.msra.mxu0 %v2815
        %4273 = vmatprep.subr.mxu0 %v2832
        %4274 = vmatpush1.msra.mxu0 %v2831
        %4275 = vmatprep.subr.mxu0 %v2848
        %4276 = vmatpush1.msra.mxu0 %v2847
        %4277 = vmatprep.subr.mxu0 %v2864
        %4278 = vmatpush1.msra.mxu0 %v2863
        %4279 = vmatprep.subr.mxu0 %v2880
        %4280 = vmatpush1.msra.mxu0 %v2879
        %4281 = vmatprep.subr.mxu0 %v2896
        %4282 = vmatpush1.msra.mxu0 %v2895
        %4283 = vmatprep.mubr.f32.mxu0 %v346
        %4284 = vmatmul.mubr.f32.gmra.mrb[0].mxu0 %v345
        %v4285 = vpop.f32.mrb[0].mxu0
        %v4286 = vadd.f32 %v4215, %v4285
        %v4287 = vpop.f32.mrb[0].mxu0
        %v4288 = vadd.f32 %v4217, %v4287
        %4289 = vdwg.mxu0
        %4290 = vmatprep.subr.mxu0 %v2912
        %4291 = vmatpush1.msra.mxu0 %v2911
        %4292 = vmatprep.subr.mxu0 %v2928
        %4293 = vmatpush1.msra.mxu0 %v2927
        %4294 = vmatprep.subr.mxu0 %v2944
        %4295 = vmatpush1.msra.mxu0 %v2943
        %4296 = vmatprep.subr.mxu0 %v2960
        %4297 = vmatpush1.msra.mxu0 %v2959
        %4298 = vmatprep.subr.mxu0 %v2976
        %4299 = vmatpush1.msra.mxu0 %v2975
        %4300 = vmatprep.subr.mxu0 %v2992
        %4301 = vmatpush1.msra.mxu0 %v2991
        %4302 = vmatprep.subr.mxu0 %v3008
        %4303 = vmatpush1.msra.mxu0 %v3007
        %4304 = vmatprep.subr.mxu0 %v3024
        %4305 = vmatpush1.msra.mxu0 %v3023
        %4306 = vmatprep.subr.mxu0 %v3040
        %4307 = vmatpush1.msra.mxu0 %v3039
        %4308 = vmatprep.subr.mxu0 %v3056
        %4309 = vmatpush1.msra.mxu0 %v3055
        %4310 = vmatprep.subr.mxu0 %v3072
        %4311 = vmatpush1.msra.mxu0 %v3071
        %4312 = vmatprep.subr.mxu0 %v3088
        %4313 = vmatpush1.msra.mxu0 %v3087
        %4314 = vmatprep.subr.mxu0 %v3104
        %4315 = vmatpush1.msra.mxu0 %v3103
        %4316 = vmatprep.subr.mxu0 %v3120
        %4317 = vmatpush1.msra.mxu0 %v3119
        %4318 = vmatprep.subr.mxu0 %v3136
        %4319 = vmatpush1.msra.mxu0 %v3135
        %4320 = vmatprep.subr.mxu0 %v3152
        %4321 = vmatpush1.msra.mxu0 %v3151
        %4322 = vmatprep.subr.mxu0 %v3168
        %4323 = vmatpush1.msra.mxu0 %v3167
        %4324 = vmatprep.subr.mxu0 %v3184
        %4325 = vmatpush1.msra.mxu0 %v3183
        %4326 = vmatprep.subr.mxu0 %v3200
        %4327 = vmatpush1.msra.mxu0 %v3199
        %4328 = vmatprep.subr.mxu0 %v3216
        %4329 = vmatpush1.msra.mxu0 %v3215
        %4330 = vmatprep.subr.mxu0 %v3232
        %4331 = vmatpush1.msra.mxu0 %v3231
        %4332 = vmatprep.subr.mxu0 %v3248
        %4333 = vmatpush1.msra.mxu0 %v3247
        %4334 = vmatprep.subr.mxu0 %v3264
        %4335 = vmatpush1.msra.mxu0 %v3263
        %4336 = vmatprep.subr.mxu0 %v3280
        %4337 = vmatpush1.msra.mxu0 %v3279
        %4338 = vmatprep.subr.mxu0 %v3296
        %4339 = vmatpush1.msra.mxu0 %v3295
        %4340 = vmatprep.subr.mxu0 %v3312
        %4341 = vmatpush1.msra.mxu0 %v3311
        %4342 = vmatprep.subr.mxu0 %v3328
        %4343 = vmatpush1.msra.mxu0 %v3327
        %4344 = vmatprep.subr.mxu0 %v3344
        %4345 = vmatpush1.msra.mxu0 %v3343
        %4346 = vmatprep.subr.mxu0 %v3360
        %4347 = vmatpush1.msra.mxu0 %v3359
        %4348 = vmatprep.subr.mxu0 %v3376
        %4349 = vmatpush1.msra.mxu0 %v3375
        %4350 = vmatprep.subr.mxu0 %v3392
        %4351 = vmatpush1.msra.mxu0 %v3391
        %4352 = vmatprep.subr.mxu0 %v3408
        %4353 = vmatpush1.msra.mxu0 %v3407
        %4354 = vmatprep.mubr.f32.mxu0 %v348
        %4355 = vmatmul.mubr.f32.gmra.mrb[0].mxu0 %v347
        %v4356 = vpop.f32.mrb[0].mxu0
        %v4357 = vadd.f32 %v4286, %v4356
        %v4358 = vpop.f32.mrb[0].mxu0
        %v4359 = vadd.f32 %v4288, %v4358
        %4360 = vdwg.mxu0
        %4361 = vmatprep.subr.mxu0 %v3424
        %4362 = vmatpush1.msra.mxu0 %v3423
        %4363 = vmatprep.subr.mxu0 %v3440
        %4364 = vmatpush1.msra.mxu0 %v3439
        %4365 = vmatprep.subr.mxu0 %v3456
        %4366 = vmatpush1.msra.mxu0 %v3455
        %4367 = vmatprep.subr.mxu0 %v3472
        %4368 = vmatpush1.msra.mxu0 %v3471
        %4369 = vmatprep.subr.mxu0 %v3488
        %4370 = vmatpush1.msra.mxu0 %v3487
        %4371 = vmatprep.subr.mxu0 %v3504
        %4372 = vmatpush1.msra.mxu0 %v3503
        %4373 = vmatprep.subr.mxu0 %v3520
        %4374 = vmatpush1.msra.mxu0 %v3519
        %4375 = vmatprep.subr.mxu0 %v3536
        %4376 = vmatpush1.msra.mxu0 %v3535
        %4377 = vmatprep.subr.mxu0 %v3552
        %4378 = vmatpush1.msra.mxu0 %v3551
        %4379 = vmatprep.subr.mxu0 %v3568
        %4380 = vmatpush1.msra.mxu0 %v3567
        %4381 = vmatprep.subr.mxu0 %v3584
        %4382 = vmatpush1.msra.mxu0 %v3583
        %4383 = vmatprep.subr.mxu0 %v3600
        %4384 = vmatpush1.msra.mxu0 %v3599
        %4385 = vmatprep.subr.mxu0 %v3616
        %4386 = vmatpush1.msra.mxu0 %v3615
        %4387 = vmatprep.subr.mxu0 %v3632
        %4388 = vmatpush1.msra.mxu0 %v3631
        %4389 = vmatprep.subr.mxu0 %v3648
        %4390 = vmatpush1.msra.mxu0 %v3647
        %4391 = vmatprep.subr.mxu0 %v3664
        %4392 = vmatpush1.msra.mxu0 %v3663
        %4393 = vmatprep.subr.mxu0 %v3680
        %4394 = vmatpush1.msra.mxu0 %v3679
        %4395 = vmatprep.subr.mxu0 %v3696
        %4396 = vmatpush1.msra.mxu0 %v3695
        %4397 = vmatprep.subr.mxu0 %v3712
        %4398 = vmatpush1.msra.mxu0 %v3711
        %4399 = vmatprep.subr.mxu0 %v3728
        %4400 = vmatpush1.msra.mxu0 %v3727
        %4401 = vmatprep.subr.mxu0 %v3744
        %4402 = vmatpush1.msra.mxu0 %v3743
        %4403 = vmatprep.subr.mxu0 %v3760
        %4404 = vmatpush1.msra.mxu0 %v3759
        %4405 = vmatprep.subr.mxu0 %v3776
        %4406 = vmatpush1.msra.mxu0 %v3775
        %4407 = vmatprep.subr.mxu0 %v3792
        %4408 = vmatpush1.msra.mxu0 %v3791
        %4409 = vmatprep.subr.mxu0 %v3808
        %4410 = vmatpush1.msra.mxu0 %v3807
        %4411 = vmatprep.subr.mxu0 %v3824
        %4412 = vmatpush1.msra.mxu0 %v3823
        %4413 = vmatprep.subr.mxu0 %v3840
        %4414 = vmatpush1.msra.mxu0 %v3839
        %4415 = vmatprep.subr.mxu0 %v3856
        %4416 = vmatpush1.msra.mxu0 %v3855
        %4417 = vmatprep.subr.mxu0 %v3872
        %4418 = vmatpush1.msra.mxu0 %v3871
        %4419 = vmatprep.subr.mxu0 %v3888
        %4420 = vmatpush1.msra.mxu0 %v3887
        %4421 = vmatprep.subr.mxu0 %v3904
        %4422 = vmatpush1.msra.mxu0 %v3903
        %4423 = vmatprep.subr.mxu0 %v3920
        %4424 = vmatpush1.msra.mxu0 %v3919
        %4425 = vmatprep.mubr.f32.mxu0 %v350
        %4426 = vmatmul.mubr.f32.gmra.mrb[0].mxu0 %v349
        %v4427 = vpop.f32.mrb[0].mxu0
        %v4428 = vadd.f32 %v4357, %v4427
        %v4429 = vpop.f32.mrb[0].mxu0
        %v4430 = vadd.f32 %v4359, %v4429
        %4431 = vdwg.mxu0
        %4432 = vmatprep.subr.mxu0 %v354
        %4433 = vmatpush1.msra.mxu0 %v353
        %4434 = vmatprep.subr.mxu0 %v370
        %4435 = vmatpush1.msra.mxu0 %v369
        %4436 = vmatprep.subr.mxu0 %v386
        %4437 = vmatpush1.msra.mxu0 %v385
        %4438 = vmatprep.subr.mxu0 %v402
        %4439 = vmatpush1.msra.mxu0 %v401
        %4440 = vmatprep.subr.mxu0 %v418
        %4441 = vmatpush1.msra.mxu0 %v417
        %4442 = vmatprep.subr.mxu0 %v434
        %4443 = vmatpush1.msra.mxu0 %v433
        %4444 = vmatprep.subr.mxu0 %v450
        %4445 = vmatpush1.msra.mxu0 %v449
        %4446 = vmatprep.subr.mxu0 %v466
        %4447 = vmatpush1.msra.mxu0 %v465
        %4448 = vmatprep.subr.mxu0 %v482
        %4449 = vmatpush1.msra.mxu0 %v481
        %4450 = vmatprep.subr.mxu0 %v498
        %4451 = vmatpush1.msra.mxu0 %v497
        %4452 = vmatprep.subr.mxu0 %v514
        %4453 = vmatpush1.msra.mxu0 %v513
        %4454 = vmatprep.subr.mxu0 %v530
        %4455 = vmatpush1.msra.mxu0 %v529
        %4456 = vmatprep.subr.mxu0 %v546
        %4457 = vmatpush1.msra.mxu0 %v545
        %4458 = vmatprep.subr.mxu0 %v562
        %4459 = vmatpush1.msra.mxu0 %v561
        %4460 = vmatprep.subr.mxu0 %v578
        %4461 = vmatpush1.msra.mxu0 %v577
        %4462 = vmatprep.subr.mxu0 %v594
        %4463 = vmatpush1.msra.mxu0 %v593
        %4464 = vmatprep.subr.mxu0 %v610
        %4465 = vmatpush1.msra.mxu0 %v609
        %4466 = vmatprep.subr.mxu0 %v626
        %4467 = vmatpush1.msra.mxu0 %v625
        %4468 = vmatprep.subr.mxu0 %v642
        %4469 = vmatpush1.msra.mxu0 %v641
        %4470 = vmatprep.subr.mxu0 %v658
        %4471 = vmatpush1.msra.mxu0 %v657
        %4472 = vmatprep.subr.mxu0 %v674
        %4473 = vmatpush1.msra.mxu0 %v673
        %4474 = vmatprep.subr.mxu0 %v690
        %4475 = vmatpush1.msra.mxu0 %v689
        %4476 = vmatprep.subr.mxu0 %v706
        %4477 = vmatpush1.msra.mxu0 %v705
        %4478 = vmatprep.subr.mxu0 %v722
        %4479 = vmatpush1.msra.mxu0 %v721
        %4480 = vmatprep.subr.mxu0 %v738
        %4481 = vmatpush1.msra.mxu0 %v737
        %4482 = vmatprep.subr.mxu0 %v754
        %4483 = vmatpush1.msra.mxu0 %v753
        %4484 = vmatprep.subr.mxu0 %v770
        %4485 = vmatpush1.msra.mxu0 %v769
        %4486 = vmatprep.subr.mxu0 %v786
        %4487 = vmatpush1.msra.mxu0 %v785
        %4488 = vmatprep.subr.mxu0 %v802
        %4489 = vmatpush1.msra.mxu0 %v801
        %4490 = vmatprep.subr.mxu0 %v818
        %4491 = vmatpush1.msra.mxu0 %v817
        %4492 = vmatprep.subr.mxu0 %v834
        %4493 = vmatpush1.msra.mxu0 %v833
        %4494 = vmatprep.subr.mxu0 %v850
        %4495 = vmatpush1.msra.mxu0 %v849
        %4496 = vmatprep.mubr.f32.mxu0 %v338
        %4497 = vmatmul.mubr.f32.gmra.mrb[0].mxu0 %v337
        %v4498 = vpop.f32.mrb[0].mxu0
        %v4499 = vadd.f32 0.0, %v4498
        %v4500 = vpop.f32.mrb[0].mxu0
        %v4501 = vadd.f32 0.0, %v4500
        %4502 = vdwg.mxu0
        %4503 = vmatprep.subr.mxu0 %v866
        %4504 = vmatpush1.msra.mxu0 %v865
        %4505 = vmatprep.subr.mxu0 %v882
        %4506 = vmatpush1.msra.mxu0 %v881
        %4507 = vmatprep.subr.mxu0 %v898
        %4508 = vmatpush1.msra.mxu0 %v897
        %4509 = vmatprep.subr.mxu0 %v914
        %4510 = vmatpush1.msra.mxu0 %v913
        %4511 = vmatprep.subr.mxu0 %v930
        %4512 = vmatpush1.msra.mxu0 %v929
        %4513 = vmatprep.subr.mxu0 %v946
        %4514 = vmatpush1.msra.mxu0 %v945
        %4515 = vmatprep.subr.mxu0 %v962
        %4516 = vmatpush1.msra.mxu0 %v961
        %4517 = vmatprep.subr.mxu0 %v978
        %4518 = vmatpush1.msra.mxu0 %v977
        %4519 = vmatprep.subr.mxu0 %v994
        %4520 = vmatpush1.msra.mxu0 %v993
        %4521 = vmatprep.subr.mxu0 %v1010
        %4522 = vmatpush1.msra.mxu0 %v1009
        %4523 = vmatprep.subr.mxu0 %v1026
        %4524 = vmatpush1.msra.mxu0 %v1025
        %4525 = vmatprep.subr.mxu0 %v1042
        %4526 = vmatpush1.msra.mxu0 %v1041
        %4527 = vmatprep.subr.mxu0 %v1058
        %4528 = vmatpush1.msra.mxu0 %v1057
        %4529 = vmatprep.subr.mxu0 %v1074
        %4530 = vmatpush1.msra.mxu0 %v1073
        %4531 = vmatprep.subr.mxu0 %v1090
        %4532 = vmatpush1.msra.mxu0 %v1089
        %4533 = vmatprep.subr.mxu0 %v1106
        %4534 = vmatpush1.msra.mxu0 %v1105
        %4535 = vmatprep.subr.mxu0 %v1122
        %4536 = vmatpush1.msra.mxu0 %v1121
        %4537 = vmatprep.subr.mxu0 %v1138
        %4538 = vmatpush1.msra.mxu0 %v1137
        %4539 = vmatprep.subr.mxu0 %v1154
        %4540 = vmatpush1.msra.mxu0 %v1153
        %4541 = vmatprep.subr.mxu0 %v1170
        %4542 = vmatpush1.msra.mxu0 %v1169
        %4543 = vmatprep.subr.mxu0 %v1186
        %4544 = vmatpush1.msra.mxu0 %v1185
        %4545 = vmatprep.subr.mxu0 %v1202
        %4546 = vmatpush1.msra.mxu0 %v1201
        %4547 = vmatprep.subr.mxu0 %v1218
        %4548 = vmatpush1.msra.mxu0 %v1217
        %4549 = vmatprep.subr.mxu0 %v1234
        %4550 = vmatpush1.msra.mxu0 %v1233
        %4551 = vmatprep.subr.mxu0 %v1250
        %4552 = vmatpush1.msra.mxu0 %v1249
        %4553 = vmatprep.subr.mxu0 %v1266
        %4554 = vmatpush1.msra.mxu0 %v1265
        %4555 = vmatprep.subr.mxu0 %v1282
        %4556 = vmatpush1.msra.mxu0 %v1281
        %4557 = vmatprep.subr.mxu0 %v1298
        %4558 = vmatpush1.msra.mxu0 %v1297
        %4559 = vmatprep.subr.mxu0 %v1314
        %4560 = vmatpush1.msra.mxu0 %v1313
        %4561 = vmatprep.subr.mxu0 %v1330
        %4562 = vmatpush1.msra.mxu0 %v1329
        %4563 = vmatprep.subr.mxu0 %v1346
        %4564 = vmatpush1.msra.mxu0 %v1345
        %4565 = vmatprep.subr.mxu0 %v1362
        %4566 = vmatpush1.msra.mxu0 %v1361
        %4567 = vmatprep.mubr.f32.mxu0 %v340
        %4568 = vmatmul.mubr.f32.gmra.mrb[0].mxu0 %v339
        %v4569 = vpop.f32.mrb[0].mxu0
        %v4570 = vadd.f32 %v4499, %v4569
        %v4571 = vpop.f32.mrb[0].mxu0
        %v4572 = vadd.f32 %v4501, %v4571
        %4573 = vdwg.mxu0
        %4574 = vmatprep.subr.mxu0 %v1378
        %4575 = vmatpush1.msra.mxu0 %v1377
        %4576 = vmatprep.subr.mxu0 %v1394
        %4577 = vmatpush1.msra.mxu0 %v1393
        %4578 = vmatprep.subr.mxu0 %v1410
        %4579 = vmatpush1.msra.mxu0 %v1409
        %4580 = vmatprep.subr.mxu0 %v1426
        %4581 = vmatpush1.msra.mxu0 %v1425
        %4582 = vmatprep.subr.mxu0 %v1442
        %4583 = vmatpush1.msra.mxu0 %v1441
        %4584 = vmatprep.subr.mxu0 %v1458
        %4585 = vmatpush1.msra.mxu0 %v1457
        %4586 = vmatprep.subr.mxu0 %v1474
        %4587 = vmatpush1.msra.mxu0 %v1473
        %4588 = vmatprep.subr.mxu0 %v1490
        %4589 = vmatpush1.msra.mxu0 %v1489
        %4590 = vmatprep.subr.mxu0 %v1506
        %4591 = vmatpush1.msra.mxu0 %v1505
        %4592 = vmatprep.subr.mxu0 %v1522
        %4593 = vmatpush1.msra.mxu0 %v1521
        %4594 = vmatprep.subr.mxu0 %v1538
        %4595 = vmatpush1.msra.mxu0 %v1537
        %4596 = vmatprep.subr.mxu0 %v1554
        %4597 = vmatpush1.msra.mxu0 %v1553
        %4598 = vmatprep.subr.mxu0 %v1570
        %4599 = vmatpush1.msra.mxu0 %v1569
        %4600 = vmatprep.subr.mxu0 %v1586
        %4601 = vmatpush1.msra.mxu0 %v1585
        %4602 = vmatprep.subr.mxu0 %v1602
        %4603 = vmatpush1.msra.mxu0 %v1601
        %4604 = vmatprep.subr.mxu0 %v1618
        %4605 = vmatpush1.msra.mxu0 %v1617
        %4606 = vmatprep.subr.mxu0 %v1634
        %4607 = vmatpush1.msra.mxu0 %v1633
        %4608 = vmatprep.subr.mxu0 %v1650
        %4609 = vmatpush1.msra.mxu0 %v1649
        %4610 = vmatprep.subr.mxu0 %v1666
        %4611 = vmatpush1.msra.mxu0 %v1665
        %4612 = vmatprep.subr.mxu0 %v1682
        %4613 = vmatpush1.msra.mxu0 %v1681
        %4614 = vmatprep.subr.mxu0 %v1698
        %4615 = vmatpush1.msra.mxu0 %v1697
        %4616 = vmatprep.subr.mxu0 %v1714
        %4617 = vmatpush1.msra.mxu0 %v1713
        %4618 = vmatprep.subr.mxu0 %v1730
        %4619 = vmatpush1.msra.mxu0 %v1729
        %4620 = vmatprep.subr.mxu0 %v1746
        %4621 = vmatpush1.msra.mxu0 %v1745
        %4622 = vmatprep.subr.mxu0 %v1762
        %4623 = vmatpush1.msra.mxu0 %v1761
        %4624 = vmatprep.subr.mxu0 %v1778
        %4625 = vmatpush1.msra.mxu0 %v1777
        %4626 = vmatprep.subr.mxu0 %v1794
        %4627 = vmatpush1.msra.mxu0 %v1793
        %4628 = vmatprep.subr.mxu0 %v1810
        %4629 = vmatpush1.msra.mxu0 %v1809
        %4630 = vmatprep.subr.mxu0 %v1826
        %4631 = vmatpush1.msra.mxu0 %v1825
        %4632 = vmatprep.subr.mxu0 %v1842
        %4633 = vmatpush1.msra.mxu0 %v1841
        %4634 = vmatprep.subr.mxu0 %v1858
        %4635 = vmatpush1.msra.mxu0 %v1857
        %4636 = vmatprep.subr.mxu0 %v1874
        %4637 = vmatpush1.msra.mxu0 %v1873
        %4638 = vmatprep.mubr.f32.mxu0 %v342
        %4639 = vmatmul.mubr.f32.gmra.mrb[0].mxu0 %v341
        %v4640 = vpop.f32.mrb[0].mxu0
        %v4641 = vadd.f32 %v4570, %v4640
        %v4642 = vpop.f32.mrb[0].mxu0
        %v4643 = vadd.f32 %v4572, %v4642
        %4644 = vdwg.mxu0
        %4645 = vmatprep.subr.mxu0 %v1890
        %4646 = vmatpush1.msra.mxu0 %v1889
        %4647 = vmatprep.subr.mxu0 %v1906
        %4648 = vmatpush1.msra.mxu0 %v1905
        %4649 = vmatprep.subr.mxu0 %v1922
        %4650 = vmatpush1.msra.mxu0 %v1921
        %4651 = vmatprep.subr.mxu0 %v1938
        %4652 = vmatpush1.msra.mxu0 %v1937
        %4653 = vmatprep.subr.mxu0 %v1954
        %4654 = vmatpush1.msra.mxu0 %v1953
        %4655 = vmatprep.subr.mxu0 %v1970
        %4656 = vmatpush1.msra.mxu0 %v1969
        %4657 = vmatprep.subr.mxu0 %v1986
        %4658 = vmatpush1.msra.mxu0 %v1985
        %4659 = vmatprep.subr.mxu0 %v2002
        %4660 = vmatpush1.msra.mxu0 %v2001
        %4661 = vmatprep.subr.mxu0 %v2018
        %4662 = vmatpush1.msra.mxu0 %v2017
        %4663 = vmatprep.subr.mxu0 %v2034
        %4664 = vmatpush1.msra.mxu0 %v2033
        %4665 = vmatprep.subr.mxu0 %v2050
        %4666 = vmatpush1.msra.mxu0 %v2049
        %4667 = vmatprep.subr.mxu0 %v2066
        %4668 = vmatpush1.msra.mxu0 %v2065
        %4669 = vmatprep.subr.mxu0 %v2082
        %4670 = vmatpush1.msra.mxu0 %v2081
        %4671 = vmatprep.subr.mxu0 %v2098
        %4672 = vmatpush1.msra.mxu0 %v2097
        %4673 = vmatprep.subr.mxu0 %v2114
        %4674 = vmatpush1.msra.mxu0 %v2113
        %4675 = vmatprep.subr.mxu0 %v2130
        %4676 = vmatpush1.msra.mxu0 %v2129
        %4677 = vmatprep.subr.mxu0 %v2146
        %4678 = vmatpush1.msra.mxu0 %v2145
        %4679 = vmatprep.subr.mxu0 %v2162
        %4680 = vmatpush1.msra.mxu0 %v2161
        %4681 = vmatprep.subr.mxu0 %v2178
        %4682 = vmatpush1.msra.mxu0 %v2177
        %4683 = vmatprep.subr.mxu0 %v2194
        %4684 = vmatpush1.msra.mxu0 %v2193
        %4685 = vmatprep.subr.mxu0 %v2210
        %4686 = vmatpush1.msra.mxu0 %v2209
        %4687 = vmatprep.subr.mxu0 %v2226
        %4688 = vmatpush1.msra.mxu0 %v2225
        %4689 = vmatprep.subr.mxu0 %v2242
        %4690 = vmatpush1.msra.mxu0 %v2241
        %4691 = vmatprep.subr.mxu0 %v2258
        %4692 = vmatpush1.msra.mxu0 %v2257
        %4693 = vmatprep.subr.mxu0 %v2274
        %4694 = vmatpush1.msra.mxu0 %v2273
        %4695 = vmatprep.subr.mxu0 %v2290
        %4696 = vmatpush1.msra.mxu0 %v2289
        %4697 = vmatprep.subr.mxu0 %v2306
        %4698 = vmatpush1.msra.mxu0 %v2305
        %4699 = vmatprep.subr.mxu0 %v2322
        %4700 = vmatpush1.msra.mxu0 %v2321
        %4701 = vmatprep.subr.mxu0 %v2338
        %4702 = vmatpush1.msra.mxu0 %v2337
        %4703 = vmatprep.subr.mxu0 %v2354
        %4704 = vmatpush1.msra.mxu0 %v2353
        %4705 = vmatprep.subr.mxu0 %v2370
        %4706 = vmatpush1.msra.mxu0 %v2369
        %4707 = vmatprep.subr.mxu0 %v2386
        %4708 = vmatpush1.msra.mxu0 %v2385
        %4709 = vmatprep.mubr.f32.mxu0 %v344
        %4710 = vmatmul.mubr.f32.gmra.mrb[0].mxu0 %v343
        %v4711 = vpop.f32.mrb[0].mxu0
        %v4712 = vadd.f32 %v4641, %v4711
        %v4713 = vpop.f32.mrb[0].mxu0
        %v4714 = vadd.f32 %v4643, %v4713
        %4715 = vdwg.mxu0
        %4716 = vmatprep.subr.mxu0 %v2402
        %4717 = vmatpush1.msra.mxu0 %v2401
        %4718 = vmatprep.subr.mxu0 %v2418
        %4719 = vmatpush1.msra.mxu0 %v2417
        %4720 = vmatprep.subr.mxu0 %v2434
        %4721 = vmatpush1.msra.mxu0 %v2433
        %4722 = vmatprep.subr.mxu0 %v2450
        %4723 = vmatpush1.msra.mxu0 %v2449
        %4724 = vmatprep.subr.mxu0 %v2466
        %4725 = vmatpush1.msra.mxu0 %v2465
        %4726 = vmatprep.subr.mxu0 %v2482
        %4727 = vmatpush1.msra.mxu0 %v2481
        %4728 = vmatprep.subr.mxu0 %v2498
        %4729 = vmatpush1.msra.mxu0 %v2497
        %4730 = vmatprep.subr.mxu0 %v2514
        %4731 = vmatpush1.msra.mxu0 %v2513
        %4732 = vmatprep.subr.mxu0 %v2530
        %4733 = vmatpush1.msra.mxu0 %v2529
        %4734 = vmatprep.subr.mxu0 %v2546
        %4735 = vmatpush1.msra.mxu0 %v2545
        %4736 = vmatprep.subr.mxu0 %v2562
        %4737 = vmatpush1.msra.mxu0 %v2561
        %4738 = vmatprep.subr.mxu0 %v2578
        %4739 = vmatpush1.msra.mxu0 %v2577
        %4740 = vmatprep.subr.mxu0 %v2594
        %4741 = vmatpush1.msra.mxu0 %v2593
        %4742 = vmatprep.subr.mxu0 %v2610
        %4743 = vmatpush1.msra.mxu0 %v2609
        %4744 = vmatprep.subr.mxu0 %v2626
        %4745 = vmatpush1.msra.mxu0 %v2625
        %4746 = vmatprep.subr.mxu0 %v2642
        %4747 = vmatpush1.msra.mxu0 %v2641
        %4748 = vmatprep.subr.mxu0 %v2658
        %4749 = vmatpush1.msra.mxu0 %v2657
        %4750 = vmatprep.subr.mxu0 %v2674
        %4751 = vmatpush1.msra.mxu0 %v2673
        %4752 = vmatprep.subr.mxu0 %v2690
        %4753 = vmatpush1.msra.mxu0 %v2689
        %4754 = vmatprep.subr.mxu0 %v2706
        %4755 = vmatpush1.msra.mxu0 %v2705
        %4756 = vmatprep.subr.mxu0 %v2722
        %4757 = vmatpush1.msra.mxu0 %v2721
        %4758 = vmatprep.subr.mxu0 %v2738
        %4759 = vmatpush1.msra.mxu0 %v2737
        %4760 = vmatprep.subr.mxu0 %v2754
        %4761 = vmatpush1.msra.mxu0 %v2753
        %4762 = vmatprep.subr.mxu0 %v2770
        %4763 = vmatpush1.msra.mxu0 %v2769
        %4764 = vmatprep.subr.mxu0 %v2786
        %4765 = vmatpush1.msra.mxu0 %v2785
        %4766 = vmatprep.subr.mxu0 %v2802
        %4767 = vmatpush1.msra.mxu0 %v2801
        %4768 = vmatprep.subr.mxu0 %v2818
        %4769 = vmatpush1.msra.mxu0 %v2817
        %4770 = vmatprep.subr.mxu0 %v2834
        %4771 = vmatpush1.msra.mxu0 %v2833
        %4772 = vmatprep.subr.mxu0 %v2850
        %4773 = vmatpush1.msra.mxu0 %v2849
        %4774 = vmatprep.subr.mxu0 %v2866
        %4775 = vmatpush1.msra.mxu0 %v2865
        %4776 = vmatprep.subr.mxu0 %v2882
        %4777 = vmatpush1.msra.mxu0 %v2881
        %4778 = vmatprep.subr.mxu0 %v2898
        %4779 = vmatpush1.msra.mxu0 %v2897
        %4780 = vmatprep.mubr.f32.mxu0 %v346
        %4781 = vmatmul.mubr.f32.gmra.mrb[0].mxu0 %v345
        %v4782 = vpop.f32.mrb[0].mxu0
        %v4783 = vadd.f32 %v4712, %v4782
        %v4784 = vpop.f32.mrb[0].mxu0
        %v4785 = vadd.f32 %v4714, %v4784
        %4786 = vdwg.mxu0
        %4787 = vmatprep.subr.mxu0 %v2914
        %4788 = vmatpush1.msra.mxu0 %v2913
        %4789 = vmatprep.subr.mxu0 %v2930
        %4790 = vmatpush1.msra.mxu0 %v2929
        %4791 = vmatprep.subr.mxu0 %v2946
        %4792 = vmatpush1.msra.mxu0 %v2945
        %4793 = vmatprep.subr.mxu0 %v2962
        %4794 = vmatpush1.msra.mxu0 %v2961
        %4795 = vmatprep.subr.mxu0 %v2978
        %4796 = vmatpush1.msra.mxu0 %v2977
        %4797 = vmatprep.subr.mxu0 %v2994
        %4798 = vmatpush1.msra.mxu0 %v2993
        %4799 = vmatprep.subr.mxu0 %v3010
        %4800 = vmatpush1.msra.mxu0 %v3009
        %4801 = vmatprep.subr.mxu0 %v3026
        %4802 = vmatpush1.msra.mxu0 %v3025
        %4803 = vmatprep.subr.mxu0 %v3042
        %4804 = vmatpush1.msra.mxu0 %v3041
        %4805 = vmatprep.subr.mxu0 %v3058
        %4806 = vmatpush1.msra.mxu0 %v3057
        %4807 = vmatprep.subr.mxu0 %v3074
        %4808 = vmatpush1.msra.mxu0 %v3073
        %4809 = vmatprep.subr.mxu0 %v3090
        %4810 = vmatpush1.msra.mxu0 %v3089
        %4811 = vmatprep.subr.mxu0 %v3106
        %4812 = vmatpush1.msra.mxu0 %v3105
        %4813 = vmatprep.subr.mxu0 %v3122
        %4814 = vmatpush1.msra.mxu0 %v3121
        %4815 = vmatprep.subr.mxu0 %v3138
        %4816 = vmatpush1.msra.mxu0 %v3137
        %4817 = vmatprep.subr.mxu0 %v3154
        %4818 = vmatpush1.msra.mxu0 %v3153
        %4819 = vmatprep.subr.mxu0 %v3170
        %4820 = vmatpush1.msra.mxu0 %v3169
        %4821 = vmatprep.subr.mxu0 %v3186
        %4822 = vmatpush1.msra.mxu0 %v3185
        %4823 = vmatprep.subr.mxu0 %v3202
        %4824 = vmatpush1.msra.mxu0 %v3201
        %4825 = vmatprep.subr.mxu0 %v3218
        %4826 = vmatpush1.msra.mxu0 %v3217
        %4827 = vmatprep.subr.mxu0 %v3234
        %4828 = vmatpush1.msra.mxu0 %v3233
        %4829 = vmatprep.subr.mxu0 %v3250
        %4830 = vmatpush1.msra.mxu0 %v3249
        %4831 = vmatprep.subr.mxu0 %v3266
        %4832 = vmatpush1.msra.mxu0 %v3265
        %4833 = vmatprep.subr.mxu0 %v3282
        %4834 = vmatpush1.msra.mxu0 %v3281
        %4835 = vmatprep.subr.mxu0 %v3298
        %4836 = vmatpush1.msra.mxu0 %v3297
        %4837 = vmatprep.subr.mxu0 %v3314
        %4838 = vmatpush1.msra.mxu0 %v3313
        %4839 = vmatprep.subr.mxu0 %v3330
        %4840 = vmatpush1.msra.mxu0 %v3329
        %4841 = vmatprep.subr.mxu0 %v3346
        %4842 = vmatpush1.msra.mxu0 %v3345
        %4843 = vmatprep.subr.mxu0 %v3362
        %4844 = vmatpush1.msra.mxu0 %v3361
        %4845 = vmatprep.subr.mxu0 %v3378
        %4846 = vmatpush1.msra.mxu0 %v3377
        %4847 = vmatprep.subr.mxu0 %v3394
        %4848 = vmatpush1.msra.mxu0 %v3393
        %4849 = vmatprep.subr.mxu0 %v3410
        %4850 = vmatpush1.msra.mxu0 %v3409
        %4851 = vmatprep.mubr.f32.mxu0 %v348
        %4852 = vmatmul.mubr.f32.gmra.mrb[0].mxu0 %v347
        %v4853 = vpop.f32.mrb[0].mxu0
        %v4854 = vadd.f32 %v4783, %v4853
        %v4855 = vpop.f32.mrb[0].mxu0
        %v4856 = vadd.f32 %v4785, %v4855
        %4857 = vdwg.mxu0
        %4858 = vmatprep.subr.mxu0 %v3426
        %4859 = vmatpush1.msra.mxu0 %v3425
        %4860 = vmatprep.subr.mxu0 %v3442
        %4861 = vmatpush1.msra.mxu0 %v3441
        %4862 = vmatprep.subr.mxu0 %v3458
        %4863 = vmatpush1.msra.mxu0 %v3457
        %4864 = vmatprep.subr.mxu0 %v3474
        %4865 = vmatpush1.msra.mxu0 %v3473
        %4866 = vmatprep.subr.mxu0 %v3490
        %4867 = vmatpush1.msra.mxu0 %v3489
        %4868 = vmatprep.subr.mxu0 %v3506
        %4869 = vmatpush1.msra.mxu0 %v3505
        %4870 = vmatprep.subr.mxu0 %v3522
        %4871 = vmatpush1.msra.mxu0 %v3521
        %4872 = vmatprep.subr.mxu0 %v3538
        %4873 = vmatpush1.msra.mxu0 %v3537
        %4874 = vmatprep.subr.mxu0 %v3554
        %4875 = vmatpush1.msra.mxu0 %v3553
        %4876 = vmatprep.subr.mxu0 %v3570
        %4877 = vmatpush1.msra.mxu0 %v3569
        %4878 = vmatprep.subr.mxu0 %v3586
        %4879 = vmatpush1.msra.mxu0 %v3585
        %4880 = vmatprep.subr.mxu0 %v3602
        %4881 = vmatpush1.msra.mxu0 %v3601
        %4882 = vmatprep.subr.mxu0 %v3618
        %4883 = vmatpush1.msra.mxu0 %v3617
        %4884 = vmatprep.subr.mxu0 %v3634
        %4885 = vmatpush1.msra.mxu0 %v3633
        %4886 = vmatprep.subr.mxu0 %v3650
        %4887 = vmatpush1.msra.mxu0 %v3649
        %4888 = vmatprep.subr.mxu0 %v3666
        %4889 = vmatpush1.msra.mxu0 %v3665
        %4890 = vmatprep.subr.mxu0 %v3682
        %4891 = vmatpush1.msra.mxu0 %v3681
        %4892 = vmatprep.subr.mxu0 %v3698
        %4893 = vmatpush1.msra.mxu0 %v3697
        %4894 = vmatprep.subr.mxu0 %v3714
        %4895 = vmatpush1.msra.mxu0 %v3713
        %4896 = vmatprep.subr.mxu0 %v3730
        %4897 = vmatpush1.msra.mxu0 %v3729
        %4898 = vmatprep.subr.mxu0 %v3746
        %4899 = vmatpush1.msra.mxu0 %v3745
        %4900 = vmatprep.subr.mxu0 %v3762
        %4901 = vmatpush1.msra.mxu0 %v3761
        %4902 = vmatprep.subr.mxu0 %v3778
        %4903 = vmatpush1.msra.mxu0 %v3777
        %4904 = vmatprep.subr.mxu0 %v3794
        %4905 = vmatpush1.msra.mxu0 %v3793
        %4906 = vmatprep.subr.mxu0 %v3810
        %4907 = vmatpush1.msra.mxu0 %v3809
        %4908 = vmatprep.subr.mxu0 %v3826
        %4909 = vmatpush1.msra.mxu0 %v3825
        %4910 = vmatprep.subr.mxu0 %v3842
        %4911 = vmatpush1.msra.mxu0 %v3841
        %4912 = vmatprep.subr.mxu0 %v3858
        %4913 = vmatpush1.msra.mxu0 %v3857
        %4914 = vmatprep.subr.mxu0 %v3874
        %4915 = vmatpush1.msra.mxu0 %v3873
        %4916 = vmatprep.subr.mxu0 %v3890
        %4917 = vmatpush1.msra.mxu0 %v3889
        %4918 = vmatprep.subr.mxu0 %v3906
        %4919 = vmatpush1.msra.mxu0 %v3905
        %4920 = vmatprep.subr.mxu0 %v3922
        %4921 = vmatpush1.msra.mxu0 %v3921
        %4922 = vmatprep.mubr.f32.mxu0 %v350
        %4923 = vmatmul.mubr.f32.gmra.mrb[0].mxu0 %v349
        %v4924 = vpop.f32.mrb[0].mxu0
        %v4925 = vadd.f32 %v4854, %v4924
        %v4926 = vpop.f32.mrb[0].mxu0
        %v4927 = vadd.f32 %v4856, %v4926
        %4928 = vdwg.mxu0
        %4929 = vmatprep.subr.mxu0 %v356
        %4930 = vmatpush1.msra.mxu0 %v355
        %4931 = vmatprep.subr.mxu0 %v372
        %4932 = vmatpush1.msra.mxu0 %v371
        %4933 = vmatprep.subr.mxu0 %v388
        %4934 = vmatpush1.msra.mxu0 %v387
        %4935 = vmatprep.subr.mxu0 %v404
        %4936 = vmatpush1.msra.mxu0 %v403
        %4937 = vmatprep.subr.mxu0 %v420
        %4938 = vmatpush1.msra.mxu0 %v419
        %4939 = vmatprep.subr.mxu0 %v436
        %4940 = vmatpush1.msra.mxu0 %v435
        %4941 = vmatprep.subr.mxu0 %v452
        %4942 = vmatpush1.msra.mxu0 %v451
        %4943 = vmatprep.subr.mxu0 %v468
        %4944 = vmatpush1.msra.mxu0 %v467
        %4945 = vmatprep.subr.mxu0 %v484
        %4946 = vmatpush1.msra.mxu0 %v483
        %4947 = vmatprep.subr.mxu0 %v500
        %4948 = vmatpush1.msra.mxu0 %v499
        %4949 = vmatprep.subr.mxu0 %v516
        %4950 = vmatpush1.msra.mxu0 %v515
        %4951 = vmatprep.subr.mxu0 %v532
        %4952 = vmatpush1.msra.mxu0 %v531
        %4953 = vmatprep.subr.mxu0 %v548
        %4954 = vmatpush1.msra.mxu0 %v547
        %4955 = vmatprep.subr.mxu0 %v564
        %4956 = vmatpush1.msra.mxu0 %v563
        %4957 = vmatprep.subr.mxu0 %v580
        %4958 = vmatpush1.msra.mxu0 %v579
        %4959 = vmatprep.subr.mxu0 %v596
        %4960 = vmatpush1.msra.mxu0 %v595
        %4961 = vmatprep.subr.mxu0 %v612
        %4962 = vmatpush1.msra.mxu0 %v611
        %4963 = vmatprep.subr.mxu0 %v628
        %4964 = vmatpush1.msra.mxu0 %v627
        %4965 = vmatprep.subr.mxu0 %v644
        %4966 = vmatpush1.msra.mxu0 %v643
        %4967 = vmatprep.subr.mxu0 %v660
        %4968 = vmatpush1.msra.mxu0 %v659
        %4969 = vmatprep.subr.mxu0 %v676
        %4970 = vmatpush1.msra.mxu0 %v675
        %4971 = vmatprep.subr.mxu0 %v692
        %4972 = vmatpush1.msra.mxu0 %v691
        %4973 = vmatprep.subr.mxu0 %v708
        %4974 = vmatpush1.msra.mxu0 %v707
        %4975 = vmatprep.subr.mxu0 %v724
        %4976 = vmatpush1.msra.mxu0 %v723
        %4977 = vmatprep.subr.mxu0 %v740
        %4978 = vmatpush1.msra.mxu0 %v739
        %4979 = vmatprep.subr.mxu0 %v756
        %4980 = vmatpush1.msra.mxu0 %v755
        %4981 = vmatprep.subr.mxu0 %v772
        %4982 = vmatpush1.msra.mxu0 %v771
        %4983 = vmatprep.subr.mxu0 %v788
        %4984 = vmatpush1.msra.mxu0 %v787
        %4985 = vmatprep.subr.mxu0 %v804
        %4986 = vmatpush1.msra.mxu0 %v803
        %4987 = vmatprep.subr.mxu0 %v820
        %4988 = vmatpush1.msra.mxu0 %v819
        %4989 = vmatprep.subr.mxu0 %v836
        %4990 = vmatpush1.msra.mxu0 %v835
        %4991 = vmatprep.subr.mxu0 %v852
        %4992 = vmatpush1.msra.mxu0 %v851
        %4993 = vmatprep.mubr.f32.mxu0 %v338
        %4994 = vmatmul.mubr.f32.gmra.mrb[0].mxu0 %v337
        %v4995 = vpop.f32.mrb[0].mxu0
        %v4996 = vadd.f32 0.0, %v4995
        %v4997 = vpop.f32.mrb[0].mxu0
        %v4998 = vadd.f32 0.0, %v4997
        %4999 = vdwg.mxu0
        %5000 = vmatprep.subr.mxu0 %v868
        %5001 = vmatpush1.msra.mxu0 %v867
        %5002 = vmatprep.subr.mxu0 %v884
        %5003 = vmatpush1.msra.mxu0 %v883
        %5004 = vmatprep.subr.mxu0 %v900
        %5005 = vmatpush1.msra.mxu0 %v899
        %5006 = vmatprep.subr.mxu0 %v916
        %5007 = vmatpush1.msra.mxu0 %v915
        %5008 = vmatprep.subr.mxu0 %v932
        %5009 = vmatpush1.msra.mxu0 %v931
        %5010 = vmatprep.subr.mxu0 %v948
        %5011 = vmatpush1.msra.mxu0 %v947
        %5012 = vmatprep.subr.mxu0 %v964
        %5013 = vmatpush1.msra.mxu0 %v963
        %5014 = vmatprep.subr.mxu0 %v980
        %5015 = vmatpush1.msra.mxu0 %v979
        %5016 = vmatprep.subr.mxu0 %v996
        %5017 = vmatpush1.msra.mxu0 %v995
        %5018 = vmatprep.subr.mxu0 %v1012
        %5019 = vmatpush1.msra.mxu0 %v1011
        %5020 = vmatprep.subr.mxu0 %v1028
        %5021 = vmatpush1.msra.mxu0 %v1027
        %5022 = vmatprep.subr.mxu0 %v1044
        %5023 = vmatpush1.msra.mxu0 %v1043
        %5024 = vmatprep.subr.mxu0 %v1060
        %5025 = vmatpush1.msra.mxu0 %v1059
        %5026 = vmatprep.subr.mxu0 %v1076
        %5027 = vmatpush1.msra.mxu0 %v1075
        %5028 = vmatprep.subr.mxu0 %v1092
        %5029 = vmatpush1.msra.mxu0 %v1091
        %5030 = vmatprep.subr.mxu0 %v1108
        %5031 = vmatpush1.msra.mxu0 %v1107
        %5032 = vmatprep.subr.mxu0 %v1124
        %5033 = vmatpush1.msra.mxu0 %v1123
        %5034 = vmatprep.subr.mxu0 %v1140
        %5035 = vmatpush1.msra.mxu0 %v1139
        %5036 = vmatprep.subr.mxu0 %v1156
        %5037 = vmatpush1.msra.mxu0 %v1155
        %5038 = vmatprep.subr.mxu0 %v1172
        %5039 = vmatpush1.msra.mxu0 %v1171
        %5040 = vmatprep.subr.mxu0 %v1188
        %5041 = vmatpush1.msra.mxu0 %v1187
        %5042 = vmatprep.subr.mxu0 %v1204
        %5043 = vmatpush1.msra.mxu0 %v1203
        %5044 = vmatprep.subr.mxu0 %v1220
        %5045 = vmatpush1.msra.mxu0 %v1219
        %5046 = vmatprep.subr.mxu0 %v1236
        %5047 = vmatpush1.msra.mxu0 %v1235
        %5048 = vmatprep.subr.mxu0 %v1252
        %5049 = vmatpush1.msra.mxu0 %v1251
        %5050 = vmatprep.subr.mxu0 %v1268
        %5051 = vmatpush1.msra.mxu0 %v1267
        %5052 = vmatprep.subr.mxu0 %v1284
        %5053 = vmatpush1.msra.mxu0 %v1283
        %5054 = vmatprep.subr.mxu0 %v1300
        %5055 = vmatpush1.msra.mxu0 %v1299
        %5056 = vmatprep.subr.mxu0 %v1316
        %5057 = vmatpush1.msra.mxu0 %v1315
        %5058 = vmatprep.subr.mxu0 %v1332
        %5059 = vmatpush1.msra.mxu0 %v1331
        %5060 = vmatprep.subr.mxu0 %v1348
        %5061 = vmatpush1.msra.mxu0 %v1347
        %5062 = vmatprep.subr.mxu0 %v1364
        %5063 = vmatpush1.msra.mxu0 %v1363
        %5064 = vmatprep.mubr.f32.mxu0 %v340
        %5065 = vmatmul.mubr.f32.gmra.mrb[0].mxu0 %v339
        %v5066 = vpop.f32.mrb[0].mxu0
        %v5067 = vadd.f32 %v4996, %v5066
        %v5068 = vpop.f32.mrb[0].mxu0
        %v5069 = vadd.f32 %v4998, %v5068
        %5070 = vdwg.mxu0
        %5071 = vmatprep.subr.mxu0 %v1380
        %5072 = vmatpush1.msra.mxu0 %v1379
        %5073 = vmatprep.subr.mxu0 %v1396
        %5074 = vmatpush1.msra.mxu0 %v1395
        %5075 = vmatprep.subr.mxu0 %v1412
        %5076 = vmatpush1.msra.mxu0 %v1411
        %5077 = vmatprep.subr.mxu0 %v1428
        %5078 = vmatpush1.msra.mxu0 %v1427
        %5079 = vmatprep.subr.mxu0 %v1444
        %5080 = vmatpush1.msra.mxu0 %v1443
        %5081 = vmatprep.subr.mxu0 %v1460
        %5082 = vmatpush1.msra.mxu0 %v1459
        %5083 = vmatprep.subr.mxu0 %v1476
        %5084 = vmatpush1.msra.mxu0 %v1475
        %5085 = vmatprep.subr.mxu0 %v1492
        %5086 = vmatpush1.msra.mxu0 %v1491
        %5087 = vmatprep.subr.mxu0 %v1508
        %5088 = vmatpush1.msra.mxu0 %v1507
        %5089 = vmatprep.subr.mxu0 %v1524
        %5090 = vmatpush1.msra.mxu0 %v1523
        %5091 = vmatprep.subr.mxu0 %v1540
        %5092 = vmatpush1.msra.mxu0 %v1539
        %5093 = vmatprep.subr.mxu0 %v1556
        %5094 = vmatpush1.msra.mxu0 %v1555
        %5095 = vmatprep.subr.mxu0 %v1572
        %5096 = vmatpush1.msra.mxu0 %v1571
        %5097 = vmatprep.subr.mxu0 %v1588
        %5098 = vmatpush1.msra.mxu0 %v1587
        %5099 = vmatprep.subr.mxu0 %v1604
        %5100 = vmatpush1.msra.mxu0 %v1603
        %5101 = vmatprep.subr.mxu0 %v1620
        %5102 = vmatpush1.msra.mxu0 %v1619
        %5103 = vmatprep.subr.mxu0 %v1636
        %5104 = vmatpush1.msra.mxu0 %v1635
        %5105 = vmatprep.subr.mxu0 %v1652
        %5106 = vmatpush1.msra.mxu0 %v1651
        %5107 = vmatprep.subr.mxu0 %v1668
        %5108 = vmatpush1.msra.mxu0 %v1667
        %5109 = vmatprep.subr.mxu0 %v1684
        %5110 = vmatpush1.msra.mxu0 %v1683
        %5111 = vmatprep.subr.mxu0 %v1700
        %5112 = vmatpush1.msra.mxu0 %v1699
        %5113 = vmatprep.subr.mxu0 %v1716
        %5114 = vmatpush1.msra.mxu0 %v1715
        %5115 = vmatprep.subr.mxu0 %v1732
        %5116 = vmatpush1.msra.mxu0 %v1731
        %5117 = vmatprep.subr.mxu0 %v1748
        %5118 = vmatpush1.msra.mxu0 %v1747
        %5119 = vmatprep.subr.mxu0 %v1764
        %5120 = vmatpush1.msra.mxu0 %v1763
        %5121 = vmatprep.subr.mxu0 %v1780
        %5122 = vmatpush1.msra.mxu0 %v1779
        %5123 = vmatprep.subr.mxu0 %v1796
        %5124 = vmatpush1.msra.mxu0 %v1795
        %5125 = vmatprep.subr.mxu0 %v1812
        %5126 = vmatpush1.msra.mxu0 %v1811
        %5127 = vmatprep.subr.mxu0 %v1828
        %5128 = vmatpush1.msra.mxu0 %v1827
        %5129 = vmatprep.subr.mxu0 %v1844
        %5130 = vmatpush1.msra.mxu0 %v1843
        %5131 = vmatprep.subr.mxu0 %v1860
        %5132 = vmatpush1.msra.mxu0 %v1859
        %5133 = vmatprep.subr.mxu0 %v1876
        %5134 = vmatpush1.msra.mxu0 %v1875
        %5135 = vmatprep.mubr.f32.mxu0 %v342
        %5136 = vmatmul.mubr.f32.gmra.mrb[0].mxu0 %v341
        %v5137 = vpop.f32.mrb[0].mxu0
        %v5138 = vadd.f32 %v5067, %v5137
        %v5139 = vpop.f32.mrb[0].mxu0
        %v5140 = vadd.f32 %v5069, %v5139
        %5141 = vdwg.mxu0
        %5142 = vmatprep.subr.mxu0 %v1892
        %5143 = vmatpush1.msra.mxu0 %v1891
        %5144 = vmatprep.subr.mxu0 %v1908
        %5145 = vmatpush1.msra.mxu0 %v1907
        %5146 = vmatprep.subr.mxu0 %v1924
        %5147 = vmatpush1.msra.mxu0 %v1923
        %5148 = vmatprep.subr.mxu0 %v1940
        %5149 = vmatpush1.msra.mxu0 %v1939
        %5150 = vmatprep.subr.mxu0 %v1956
        %5151 = vmatpush1.msra.mxu0 %v1955
        %5152 = vmatprep.subr.mxu0 %v1972
        %5153 = vmatpush1.msra.mxu0 %v1971
        %5154 = vmatprep.subr.mxu0 %v1988
        %5155 = vmatpush1.msra.mxu0 %v1987
        %5156 = vmatprep.subr.mxu0 %v2004
        %5157 = vmatpush1.msra.mxu0 %v2003
        %5158 = vmatprep.subr.mxu0 %v2020
        %5159 = vmatpush1.msra.mxu0 %v2019
        %5160 = vmatprep.subr.mxu0 %v2036
        %5161 = vmatpush1.msra.mxu0 %v2035
        %5162 = vmatprep.subr.mxu0 %v2052
        %5163 = vmatpush1.msra.mxu0 %v2051
        %5164 = vmatprep.subr.mxu0 %v2068
        %5165 = vmatpush1.msra.mxu0 %v2067
        %5166 = vmatprep.subr.mxu0 %v2084
        %5167 = vmatpush1.msra.mxu0 %v2083
        %5168 = vmatprep.subr.mxu0 %v2100
        %5169 = vmatpush1.msra.mxu0 %v2099
        %5170 = vmatprep.subr.mxu0 %v2116
        %5171 = vmatpush1.msra.mxu0 %v2115
        %5172 = vmatprep.subr.mxu0 %v2132
        %5173 = vmatpush1.msra.mxu0 %v2131
        %5174 = vmatprep.subr.mxu0 %v2148
        %5175 = vmatpush1.msra.mxu0 %v2147
        %5176 = vmatprep.subr.mxu0 %v2164
        %5177 = vmatpush1.msra.mxu0 %v2163
        %5178 = vmatprep.subr.mxu0 %v2180
        %5179 = vmatpush1.msra.mxu0 %v2179
        %5180 = vmatprep.subr.mxu0 %v2196
        %5181 = vmatpush1.msra.mxu0 %v2195
        %5182 = vmatprep.subr.mxu0 %v2212
        %5183 = vmatpush1.msra.mxu0 %v2211
        %5184 = vmatprep.subr.mxu0 %v2228
        %5185 = vmatpush1.msra.mxu0 %v2227
        %5186 = vmatprep.subr.mxu0 %v2244
        %5187 = vmatpush1.msra.mxu0 %v2243
        %5188 = vmatprep.subr.mxu0 %v2260
        %5189 = vmatpush1.msra.mxu0 %v2259
        %5190 = vmatprep.subr.mxu0 %v2276
        %5191 = vmatpush1.msra.mxu0 %v2275
        %5192 = vmatprep.subr.mxu0 %v2292
        %5193 = vmatpush1.msra.mxu0 %v2291
        %5194 = vmatprep.subr.mxu0 %v2308
        %5195 = vmatpush1.msra.mxu0 %v2307
        %5196 = vmatprep.subr.mxu0 %v2324
        %5197 = vmatpush1.msra.mxu0 %v2323
        %5198 = vmatprep.subr.mxu0 %v2340
        %5199 = vmatpush1.msra.mxu0 %v2339
        %5200 = vmatprep.subr.mxu0 %v2356
        %5201 = vmatpush1.msra.mxu0 %v2355
        %5202 = vmatprep.subr.mxu0 %v2372
        %5203 = vmatpush1.msra.mxu0 %v2371
        %5204 = vmatprep.subr.mxu0 %v2388
        %5205 = vmatpush1.msra.mxu0 %v2387
        %5206 = vmatprep.mubr.f32.mxu0 %v344
        %5207 = vmatmul.mubr.f32.gmra.mrb[0].mxu0 %v343
        %v5208 = vpop.f32.mrb[0].mxu0
        %v5209 = vadd.f32 %v5138, %v5208
        %v5210 = vpop.f32.mrb[0].mxu0
        %v5211 = vadd.f32 %v5140, %v5210
        %5212 = vdwg.mxu0
        %5213 = vmatprep.subr.mxu0 %v2404
        %5214 = vmatpush1.msra.mxu0 %v2403
        %5215 = vmatprep.subr.mxu0 %v2420
        %5216 = vmatpush1.msra.mxu0 %v2419
        %5217 = vmatprep.subr.mxu0 %v2436
        %5218 = vmatpush1.msra.mxu0 %v2435
        %5219 = vmatprep.subr.mxu0 %v2452
        %5220 = vmatpush1.msra.mxu0 %v2451
        %5221 = vmatprep.subr.mxu0 %v2468
        %5222 = vmatpush1.msra.mxu0 %v2467
        %5223 = vmatprep.subr.mxu0 %v2484
        %5224 = vmatpush1.msra.mxu0 %v2483
        %5225 = vmatprep.subr.mxu0 %v2500
        %5226 = vmatpush1.msra.mxu0 %v2499
        %5227 = vmatprep.subr.mxu0 %v2516
        %5228 = vmatpush1.msra.mxu0 %v2515
        %5229 = vmatprep.subr.mxu0 %v2532
        %5230 = vmatpush1.msra.mxu0 %v2531
        %5231 = vmatprep.subr.mxu0 %v2548
        %5232 = vmatpush1.msra.mxu0 %v2547
        %5233 = vmatprep.subr.mxu0 %v2564
        %5234 = vmatpush1.msra.mxu0 %v2563
        %5235 = vmatprep.subr.mxu0 %v2580
        %5236 = vmatpush1.msra.mxu0 %v2579
        %5237 = vmatprep.subr.mxu0 %v2596
        %5238 = vmatpush1.msra.mxu0 %v2595
        %5239 = vmatprep.subr.mxu0 %v2612
        %5240 = vmatpush1.msra.mxu0 %v2611
        %5241 = vmatprep.subr.mxu0 %v2628
        %5242 = vmatpush1.msra.mxu0 %v2627
        %5243 = vmatprep.subr.mxu0 %v2644
        %5244 = vmatpush1.msra.mxu0 %v2643
        %5245 = vmatprep.subr.mxu0 %v2660
        %5246 = vmatpush1.msra.mxu0 %v2659
        %5247 = vmatprep.subr.mxu0 %v2676
        %5248 = vmatpush1.msra.mxu0 %v2675
        %5249 = vmatprep.subr.mxu0 %v2692
        %5250 = vmatpush1.msra.mxu0 %v2691
        %5251 = vmatprep.subr.mxu0 %v2708
        %5252 = vmatpush1.msra.mxu0 %v2707
        %5253 = vmatprep.subr.mxu0 %v2724
        %5254 = vmatpush1.msra.mxu0 %v2723
        %5255 = vmatprep.subr.mxu0 %v2740
        %5256 = vmatpush1.msra.mxu0 %v2739
        %5257 = vmatprep.subr.mxu0 %v2756
        %5258 = vmatpush1.msra.mxu0 %v2755
        %5259 = vmatprep.subr.mxu0 %v2772
        %5260 = vmatpush1.msra.mxu0 %v2771
        %5261 = vmatprep.subr.mxu0 %v2788
        %5262 = vmatpush1.msra.mxu0 %v2787
        %5263 = vmatprep.subr.mxu0 %v2804
        %5264 = vmatpush1.msra.mxu0 %v2803
        %5265 = vmatprep.subr.mxu0 %v2820
        %5266 = vmatpush1.msra.mxu0 %v2819
        %5267 = vmatprep.subr.mxu0 %v2836
        %5268 = vmatpush1.msra.mxu0 %v2835
        %5269 = vmatprep.subr.mxu0 %v2852
        %5270 = vmatpush1.msra.mxu0 %v2851
        %5271 = vmatprep.subr.mxu0 %v2868
        %5272 = vmatpush1.msra.mxu0 %v2867
        %5273 = vmatprep.subr.mxu0 %v2884
        %5274 = vmatpush1.msra.mxu0 %v2883
        %5275 = vmatprep.subr.mxu0 %v2900
        %5276 = vmatpush1.msra.mxu0 %v2899
        %5277 = vmatprep.mubr.f32.mxu0 %v346
        %5278 = vmatmul.mubr.f32.gmra.mrb[0].mxu0 %v345
        %v5279 = vpop.f32.mrb[0].mxu0
        %v5280 = vadd.f32 %v5209, %v5279
        %v5281 = vpop.f32.mrb[0].mxu0
        %v5282 = vadd.f32 %v5211, %v5281
        %5283 = vdwg.mxu0
        %5284 = vmatprep.subr.mxu0 %v2916
        %5285 = vmatpush1.msra.mxu0 %v2915
        %5286 = vmatprep.subr.mxu0 %v2932
        %5287 = vmatpush1.msra.mxu0 %v2931
        %5288 = vmatprep.subr.mxu0 %v2948
        %5289 = vmatpush1.msra.mxu0 %v2947
        %5290 = vmatprep.subr.mxu0 %v2964
        %5291 = vmatpush1.msra.mxu0 %v2963
        %5292 = vmatprep.subr.mxu0 %v2980
        %5293 = vmatpush1.msra.mxu0 %v2979
        %5294 = vmatprep.subr.mxu0 %v2996
        %5295 = vmatpush1.msra.mxu0 %v2995
        %5296 = vmatprep.subr.mxu0 %v3012
        %5297 = vmatpush1.msra.mxu0 %v3011
        %5298 = vmatprep.subr.mxu0 %v3028
        %5299 = vmatpush1.msra.mxu0 %v3027
        %5300 = vmatprep.subr.mxu0 %v3044
        %5301 = vmatpush1.msra.mxu0 %v3043
        %5302 = vmatprep.subr.mxu0 %v3060
        %5303 = vmatpush1.msra.mxu0 %v3059
        %5304 = vmatprep.subr.mxu0 %v3076
        %5305 = vmatpush1.msra.mxu0 %v3075
        %5306 = vmatprep.subr.mxu0 %v3092
        %5307 = vmatpush1.msra.mxu0 %v3091
        %5308 = vmatprep.subr.mxu0 %v3108
        %5309 = vmatpush1.msra.mxu0 %v3107
        %5310 = vmatprep.subr.mxu0 %v3124
        %5311 = vmatpush1.msra.mxu0 %v3123
        %5312 = vmatprep.subr.mxu0 %v3140
        %5313 = vmatpush1.msra.mxu0 %v3139
        %5314 = vmatprep.subr.mxu0 %v3156
        %5315 = vmatpush1.msra.mxu0 %v3155
        %5316 = vmatprep.subr.mxu0 %v3172
        %5317 = vmatpush1.msra.mxu0 %v3171
        %5318 = vmatprep.subr.mxu0 %v3188
        %5319 = vmatpush1.msra.mxu0 %v3187
        %5320 = vmatprep.subr.mxu0 %v3204
        %5321 = vmatpush1.msra.mxu0 %v3203
        %5322 = vmatprep.subr.mxu0 %v3220
        %5323 = vmatpush1.msra.mxu0 %v3219
        %5324 = vmatprep.subr.mxu0 %v3236
        %5325 = vmatpush1.msra.mxu0 %v3235
        %5326 = vmatprep.subr.mxu0 %v3252
        %5327 = vmatpush1.msra.mxu0 %v3251
        %5328 = vmatprep.subr.mxu0 %v3268
        %5329 = vmatpush1.msra.mxu0 %v3267
        %5330 = vmatprep.subr.mxu0 %v3284
        %5331 = vmatpush1.msra.mxu0 %v3283
        %5332 = vmatprep.subr.mxu0 %v3300
        %5333 = vmatpush1.msra.mxu0 %v3299
        %5334 = vmatprep.subr.mxu0 %v3316
        %5335 = vmatpush1.msra.mxu0 %v3315
        %5336 = vmatprep.subr.mxu0 %v3332
        %5337 = vmatpush1.msra.mxu0 %v3331
        %5338 = vmatprep.subr.mxu0 %v3348
        %5339 = vmatpush1.msra.mxu0 %v3347
        %5340 = vmatprep.subr.mxu0 %v3364
        %5341 = vmatpush1.msra.mxu0 %v3363
        %5342 = vmatprep.subr.mxu0 %v3380
        %5343 = vmatpush1.msra.mxu0 %v3379
        %5344 = vmatprep.subr.mxu0 %v3396
        %5345 = vmatpush1.msra.mxu0 %v3395
        %5346 = vmatprep.subr.mxu0 %v3412
        %5347 = vmatpush1.msra.mxu0 %v3411
        %5348 = vmatprep.mubr.f32.mxu0 %v348
        %5349 = vmatmul.mubr.f32.gmra.mrb[0].mxu0 %v347
        %v5350 = vpop.f32.mrb[0].mxu0
        %v5351 = vadd.f32 %v5280, %v5350
        %v5352 = vpop.f32.mrb[0].mxu0
        %v5353 = vadd.f32 %v5282, %v5352
        %5354 = vdwg.mxu0
        %5355 = vmatprep.subr.mxu0 %v3428
        %5356 = vmatpush1.msra.mxu0 %v3427
        %5357 = vmatprep.subr.mxu0 %v3444
        %5358 = vmatpush1.msra.mxu0 %v3443
        %5359 = vmatprep.subr.mxu0 %v3460
        %5360 = vmatpush1.msra.mxu0 %v3459
        %5361 = vmatprep.subr.mxu0 %v3476
        %5362 = vmatpush1.msra.mxu0 %v3475
        %5363 = vmatprep.subr.mxu0 %v3492
        %5364 = vmatpush1.msra.mxu0 %v3491
        %5365 = vmatprep.subr.mxu0 %v3508
        %5366 = vmatpush1.msra.mxu0 %v3507
        %5367 = vmatprep.subr.mxu0 %v3524
        %5368 = vmatpush1.msra.mxu0 %v3523
        %5369 = vmatprep.subr.mxu0 %v3540
        %5370 = vmatpush1.msra.mxu0 %v3539
        %5371 = vmatprep.subr.mxu0 %v3556
        %5372 = vmatpush1.msra.mxu0 %v3555
        %5373 = vmatprep.subr.mxu0 %v3572
        %5374 = vmatpush1.msra.mxu0 %v3571
        %5375 = vmatprep.subr.mxu0 %v3588
        %5376 = vmatpush1.msra.mxu0 %v3587
        %5377 = vmatprep.subr.mxu0 %v3604
        %5378 = vmatpush1.msra.mxu0 %v3603
        %5379 = vmatprep.subr.mxu0 %v3620
        %5380 = vmatpush1.msra.mxu0 %v3619
        %5381 = vmatprep.subr.mxu0 %v3636
        %5382 = vmatpush1.msra.mxu0 %v3635
        %5383 = vmatprep.subr.mxu0 %v3652
        %5384 = vmatpush1.msra.mxu0 %v3651
        %5385 = vmatprep.subr.mxu0 %v3668
        %5386 = vmatpush1.msra.mxu0 %v3667
        %5387 = vmatprep.subr.mxu0 %v3684
        %5388 = vmatpush1.msra.mxu0 %v3683
        %5389 = vmatprep.subr.mxu0 %v3700
        %5390 = vmatpush1.msra.mxu0 %v3699
        %5391 = vmatprep.subr.mxu0 %v3716
        %5392 = vmatpush1.msra.mxu0 %v3715
        %5393 = vmatprep.subr.mxu0 %v3732
        %5394 = vmatpush1.msra.mxu0 %v3731
        %5395 = vmatprep.subr.mxu0 %v3748
        %5396 = vmatpush1.msra.mxu0 %v3747
        %5397 = vmatprep.subr.mxu0 %v3764
        %5398 = vmatpush1.msra.mxu0 %v3763
        %5399 = vmatprep.subr.mxu0 %v3780
        %5400 = vmatpush1.msra.mxu0 %v3779
        %5401 = vmatprep.subr.mxu0 %v3796
        %5402 = vmatpush1.msra.mxu0 %v3795
        %5403 = vmatprep.subr.mxu0 %v3812
        %5404 = vmatpush1.msra.mxu0 %v3811
        %5405 = vmatprep.subr.mxu0 %v3828
        %5406 = vmatpush1.msra.mxu0 %v3827
        %5407 = vmatprep.subr.mxu0 %v3844
        %5408 = vmatpush1.msra.mxu0 %v3843
        %5409 = vmatprep.subr.mxu0 %v3860
        %5410 = vmatpush1.msra.mxu0 %v3859
        %5411 = vmatprep.subr.mxu0 %v3876
        %5412 = vmatpush1.msra.mxu0 %v3875
        %5413 = vmatprep.subr.mxu0 %v3892
        %5414 = vmatpush1.msra.mxu0 %v3891
        %5415 = vmatprep.subr.mxu0 %v3908
        %5416 = vmatpush1.msra.mxu0 %v3907
        %5417 = vmatprep.subr.mxu0 %v3924
        %5418 = vmatpush1.msra.mxu0 %v3923
        %5419 = vmatprep.mubr.f32.mxu0 %v350
        %5420 = vmatmul.mubr.f32.gmra.mrb[0].mxu0 %v349
        %v5421 = vpop.f32.mrb[0].mxu0
        %v5422 = vadd.f32 %v5351, %v5421
        %v5423 = vpop.f32.mrb[0].mxu0
        %v5424 = vadd.f32 %v5353, %v5423
        %5425 = vdwg.mxu0
        %5426 = vmatprep.subr.mxu0 %v358
        %5427 = vmatpush1.msra.mxu0 %v357
        %5428 = vmatprep.subr.mxu0 %v374
        %5429 = vmatpush1.msra.mxu0 %v373
        %5430 = vmatprep.subr.mxu0 %v390
        %5431 = vmatpush1.msra.mxu0 %v389
        %5432 = vmatprep.subr.mxu0 %v406
        %5433 = vmatpush1.msra.mxu0 %v405
        %5434 = vmatprep.subr.mxu0 %v422
        %5435 = vmatpush1.msra.mxu0 %v421
        %5436 = vmatprep.subr.mxu0 %v438
        %5437 = vmatpush1.msra.mxu0 %v437
        %5438 = vmatprep.subr.mxu0 %v454
        %5439 = vmatpush1.msra.mxu0 %v453
        %5440 = vmatprep.subr.mxu0 %v470
        %5441 = vmatpush1.msra.mxu0 %v469
        %5442 = vmatprep.subr.mxu0 %v486
        %5443 = vmatpush1.msra.mxu0 %v485
        %5444 = vmatprep.subr.mxu0 %v502
        %5445 = vmatpush1.msra.mxu0 %v501
        %5446 = vmatprep.subr.mxu0 %v518
        %5447 = vmatpush1.msra.mxu0 %v517
        %5448 = vmatprep.subr.mxu0 %v534
        %5449 = vmatpush1.msra.mxu0 %v533
        %5450 = vmatprep.subr.mxu0 %v550
        %5451 = vmatpush1.msra.mxu0 %v549
        %5452 = vmatprep.subr.mxu0 %v566
        %5453 = vmatpush1.msra.mxu0 %v565
        %5454 = vmatprep.subr.mxu0 %v582
        %5455 = vmatpush1.msra.mxu0 %v581
        %5456 = vmatprep.subr.mxu0 %v598
        %5457 = vmatpush1.msra.mxu0 %v597
        %5458 = vmatprep.subr.mxu0 %v614
        %5459 = vmatpush1.msra.mxu0 %v613
        %5460 = vmatprep.subr.mxu0 %v630
        %5461 = vmatpush1.msra.mxu0 %v629
        %5462 = vmatprep.subr.mxu0 %v646
        %5463 = vmatpush1.msra.mxu0 %v645
        %5464 = vmatprep.subr.mxu0 %v662
        %5465 = vmatpush1.msra.mxu0 %v661
        %5466 = vmatprep.subr.mxu0 %v678
        %5467 = vmatpush1.msra.mxu0 %v677
        %5468 = vmatprep.subr.mxu0 %v694
        %5469 = vmatpush1.msra.mxu0 %v693
        %5470 = vmatprep.subr.mxu0 %v710
        %5471 = vmatpush1.msra.mxu0 %v709
        %5472 = vmatprep.subr.mxu0 %v726
        %5473 = vmatpush1.msra.mxu0 %v725
        %5474 = vmatprep.subr.mxu0 %v742
        %5475 = vmatpush1.msra.mxu0 %v741
        %5476 = vmatprep.subr.mxu0 %v758
        %5477 = vmatpush1.msra.mxu0 %v757
        %5478 = vmatprep.subr.mxu0 %v774
        %5479 = vmatpush1.msra.mxu0 %v773
        %5480 = vmatprep.subr.mxu0 %v790
        %5481 = vmatpush1.msra.mxu0 %v789
        %5482 = vmatprep.subr.mxu0 %v806
        %5483 = vmatpush1.msra.mxu0 %v805
        %5484 = vmatprep.subr.mxu0 %v822
        %5485 = vmatpush1.msra.mxu0 %v821
        %5486 = vmatprep.subr.mxu0 %v838
        %5487 = vmatpush1.msra.mxu0 %v837
        %5488 = vmatprep.subr.mxu0 %v854
        %5489 = vmatpush1.msra.mxu0 %v853
        %5490 = vmatprep.mubr.f32.mxu0 %v338
        %5491 = vmatmul.mubr.f32.gmra.mrb[0].mxu0 %v337
        %v5492 = vpop.f32.mrb[0].mxu0
        %v5493 = vadd.f32 0.0, %v5492
        %v5494 = vpop.f32.mrb[0].mxu0
        %v5495 = vadd.f32 0.0, %v5494
        %5496 = vdwg.mxu0
        %5497 = vmatprep.subr.mxu0 %v870
        %5498 = vmatpush1.msra.mxu0 %v869
        %5499 = vmatprep.subr.mxu0 %v886
        %5500 = vmatpush1.msra.mxu0 %v885
        %5501 = vmatprep.subr.mxu0 %v902
        %5502 = vmatpush1.msra.mxu0 %v901
        %5503 = vmatprep.subr.mxu0 %v918
        %5504 = vmatpush1.msra.mxu0 %v917
        %5505 = vmatprep.subr.mxu0 %v934
        %5506 = vmatpush1.msra.mxu0 %v933
        %5507 = vmatprep.subr.mxu0 %v950
        %5508 = vmatpush1.msra.mxu0 %v949
        %5509 = vmatprep.subr.mxu0 %v966
        %5510 = vmatpush1.msra.mxu0 %v965
        %5511 = vmatprep.subr.mxu0 %v982
        %5512 = vmatpush1.msra.mxu0 %v981
        %5513 = vmatprep.subr.mxu0 %v998
        %5514 = vmatpush1.msra.mxu0 %v997
        %5515 = vmatprep.subr.mxu0 %v1014
        %5516 = vmatpush1.msra.mxu0 %v1013
        %5517 = vmatprep.subr.mxu0 %v1030
        %5518 = vmatpush1.msra.mxu0 %v1029
        %5519 = vmatprep.subr.mxu0 %v1046
        %5520 = vmatpush1.msra.mxu0 %v1045
        %5521 = vmatprep.subr.mxu0 %v1062
        %5522 = vmatpush1.msra.mxu0 %v1061
        %5523 = vmatprep.subr.mxu0 %v1078
        %5524 = vmatpush1.msra.mxu0 %v1077
        %5525 = vmatprep.subr.mxu0 %v1094
        %5526 = vmatpush1.msra.mxu0 %v1093
        %5527 = vmatprep.subr.mxu0 %v1110
        %5528 = vmatpush1.msra.mxu0 %v1109
        %5529 = vmatprep.subr.mxu0 %v1126
        %5530 = vmatpush1.msra.mxu0 %v1125
        %5531 = vmatprep.subr.mxu0 %v1142
        %5532 = vmatpush1.msra.mxu0 %v1141
        %5533 = vmatprep.subr.mxu0 %v1158
        %5534 = vmatpush1.msra.mxu0 %v1157
        %5535 = vmatprep.subr.mxu0 %v1174
        %5536 = vmatpush1.msra.mxu0 %v1173
        %5537 = vmatprep.subr.mxu0 %v1190
        %5538 = vmatpush1.msra.mxu0 %v1189
        %5539 = vmatprep.subr.mxu0 %v1206
        %5540 = vmatpush1.msra.mxu0 %v1205
        %5541 = vmatprep.subr.mxu0 %v1222
        %5542 = vmatpush1.msra.mxu0 %v1221
        %5543 = vmatprep.subr.mxu0 %v1238
        %5544 = vmatpush1.msra.mxu0 %v1237
        %5545 = vmatprep.subr.mxu0 %v1254
        %5546 = vmatpush1.msra.mxu0 %v1253
        %5547 = vmatprep.subr.mxu0 %v1270
        %5548 = vmatpush1.msra.mxu0 %v1269
        %5549 = vmatprep.subr.mxu0 %v1286
        %5550 = vmatpush1.msra.mxu0 %v1285
        %5551 = vmatprep.subr.mxu0 %v1302
        %5552 = vmatpush1.msra.mxu0 %v1301
        %5553 = vmatprep.subr.mxu0 %v1318
        %5554 = vmatpush1.msra.mxu0 %v1317
        %5555 = vmatprep.subr.mxu0 %v1334
        %5556 = vmatpush1.msra.mxu0 %v1333
        %5557 = vmatprep.subr.mxu0 %v1350
        %5558 = vmatpush1.msra.mxu0 %v1349
        %5559 = vmatprep.subr.mxu0 %v1366
        %5560 = vmatpush1.msra.mxu0 %v1365
        %5561 = vmatprep.mubr.f32.mxu0 %v340
        %5562 = vmatmul.mubr.f32.gmra.mrb[0].mxu0 %v339
        %v5563 = vpop.f32.mrb[0].mxu0
        %v5564 = vadd.f32 %v5493, %v5563
        %v5565 = vpop.f32.mrb[0].mxu0
        %v5566 = vadd.f32 %v5495, %v5565
        %5567 = vdwg.mxu0
        %5568 = vmatprep.subr.mxu0 %v1382
        %5569 = vmatpush1.msra.mxu0 %v1381
        %5570 = vmatprep.subr.mxu0 %v1398
        %5571 = vmatpush1.msra.mxu0 %v1397
        %5572 = vmatprep.subr.mxu0 %v1414
        %5573 = vmatpush1.msra.mxu0 %v1413
        %5574 = vmatprep.subr.mxu0 %v1430
        %5575 = vmatpush1.msra.mxu0 %v1429
        %5576 = vmatprep.subr.mxu0 %v1446
        %5577 = vmatpush1.msra.mxu0 %v1445
        %5578 = vmatprep.subr.mxu0 %v1462
        %5579 = vmatpush1.msra.mxu0 %v1461
        %5580 = vmatprep.subr.mxu0 %v1478
        %5581 = vmatpush1.msra.mxu0 %v1477
        %5582 = vmatprep.subr.mxu0 %v1494
        %5583 = vmatpush1.msra.mxu0 %v1493
        %5584 = vmatprep.subr.mxu0 %v1510
        %5585 = vmatpush1.msra.mxu0 %v1509
        %5586 = vmatprep.subr.mxu0 %v1526
        %5587 = vmatpush1.msra.mxu0 %v1525
        %5588 = vmatprep.subr.mxu0 %v1542
        %5589 = vmatpush1.msra.mxu0 %v1541
        %5590 = vmatprep.subr.mxu0 %v1558
        %5591 = vmatpush1.msra.mxu0 %v1557
        %5592 = vmatprep.subr.mxu0 %v1574
        %5593 = vmatpush1.msra.mxu0 %v1573
        %5594 = vmatprep.subr.mxu0 %v1590
        %5595 = vmatpush1.msra.mxu0 %v1589
        %5596 = vmatprep.subr.mxu0 %v1606
        %5597 = vmatpush1.msra.mxu0 %v1605
        %5598 = vmatprep.subr.mxu0 %v1622
        %5599 = vmatpush1.msra.mxu0 %v1621
        %5600 = vmatprep.subr.mxu0 %v1638
        %5601 = vmatpush1.msra.mxu0 %v1637
        %5602 = vmatprep.subr.mxu0 %v1654
        %5603 = vmatpush1.msra.mxu0 %v1653
        %5604 = vmatprep.subr.mxu0 %v1670
        %5605 = vmatpush1.msra.mxu0 %v1669
        %5606 = vmatprep.subr.mxu0 %v1686
        %5607 = vmatpush1.msra.mxu0 %v1685
        %5608 = vmatprep.subr.mxu0 %v1702
        %5609 = vmatpush1.msra.mxu0 %v1701
        %5610 = vmatprep.subr.mxu0 %v1718
        %5611 = vmatpush1.msra.mxu0 %v1717
        %5612 = vmatprep.subr.mxu0 %v1734
        %5613 = vmatpush1.msra.mxu0 %v1733
        %5614 = vmatprep.subr.mxu0 %v1750
        %5615 = vmatpush1.msra.mxu0 %v1749
        %5616 = vmatprep.subr.mxu0 %v1766
        %5617 = vmatpush1.msra.mxu0 %v1765
        %5618 = vmatprep.subr.mxu0 %v1782
        %5619 = vmatpush1.msra.mxu0 %v1781
        %5620 = vmatprep.subr.mxu0 %v1798
        %5621 = vmatpush1.msra.mxu0 %v1797
        %5622 = vmatprep.subr.mxu0 %v1814
        %5623 = vmatpush1.msra.mxu0 %v1813
        %5624 = vmatprep.subr.mxu0 %v1830
        %5625 = vmatpush1.msra.mxu0 %v1829
        %5626 = vmatprep.subr.mxu0 %v1846
        %5627 = vmatpush1.msra.mxu0 %v1845
        %5628 = vmatprep.subr.mxu0 %v1862
        %5629 = vmatpush1.msra.mxu0 %v1861
        %5630 = vmatprep.subr.mxu0 %v1878
        %5631 = vmatpush1.msra.mxu0 %v1877
        %5632 = vmatprep.mubr.f32.mxu0 %v342
        %5633 = vmatmul.mubr.f32.gmra.mrb[0].mxu0 %v341
        %v5634 = vpop.f32.mrb[0].mxu0
        %v5635 = vadd.f32 %v5564, %v5634
        %v5636 = vpop.f32.mrb[0].mxu0
        %v5637 = vadd.f32 %v5566, %v5636
        %5638 = vdwg.mxu0
        %5639 = vmatprep.subr.mxu0 %v1894
        %5640 = vmatpush1.msra.mxu0 %v1893
        %5641 = vmatprep.subr.mxu0 %v1910
        %5642 = vmatpush1.msra.mxu0 %v1909
        %5643 = vmatprep.subr.mxu0 %v1926
        %5644 = vmatpush1.msra.mxu0 %v1925
        %5645 = vmatprep.subr.mxu0 %v1942
        %5646 = vmatpush1.msra.mxu0 %v1941
        %5647 = vmatprep.subr.mxu0 %v1958
        %5648 = vmatpush1.msra.mxu0 %v1957
        %5649 = vmatprep.subr.mxu0 %v1974
        %5650 = vmatpush1.msra.mxu0 %v1973
        %5651 = vmatprep.subr.mxu0 %v1990
        %5652 = vmatpush1.msra.mxu0 %v1989
        %5653 = vmatprep.subr.mxu0 %v2006
        %5654 = vmatpush1.msra.mxu0 %v2005
        %5655 = vmatprep.subr.mxu0 %v2022
        %5656 = vmatpush1.msra.mxu0 %v2021
        %5657 = vmatprep.subr.mxu0 %v2038
        %5658 = vmatpush1.msra.mxu0 %v2037
        %5659 = vmatprep.subr.mxu0 %v2054
        %5660 = vmatpush1.msra.mxu0 %v2053
        %5661 = vmatprep.subr.mxu0 %v2070
        %5662 = vmatpush1.msra.mxu0 %v2069
        %5663 = vmatprep.subr.mxu0 %v2086
        %5664 = vmatpush1.msra.mxu0 %v2085
        %5665 = vmatprep.subr.mxu0 %v2102
        %5666 = vmatpush1.msra.mxu0 %v2101
        %5667 = vmatprep.subr.mxu0 %v2118
        %5668 = vmatpush1.msra.mxu0 %v2117
        %5669 = vmatprep.subr.mxu0 %v2134
        %5670 = vmatpush1.msra.mxu0 %v2133
        %5671 = vmatprep.subr.mxu0 %v2150
        %5672 = vmatpush1.msra.mxu0 %v2149
        %5673 = vmatprep.subr.mxu0 %v2166
        %5674 = vmatpush1.msra.mxu0 %v2165
        %5675 = vmatprep.subr.mxu0 %v2182
        %5676 = vmatpush1.msra.mxu0 %v2181
        %5677 = vmatprep.subr.mxu0 %v2198
        %5678 = vmatpush1.msra.mxu0 %v2197
        %5679 = vmatprep.subr.mxu0 %v2214
        %5680 = vmatpush1.msra.mxu0 %v2213
        %5681 = vmatprep.subr.mxu0 %v2230
        %5682 = vmatpush1.msra.mxu0 %v2229
        %5683 = vmatprep.subr.mxu0 %v2246
        %5684 = vmatpush1.msra.mxu0 %v2245
        %5685 = vmatprep.subr.mxu0 %v2262
        %5686 = vmatpush1.msra.mxu0 %v2261
        %5687 = vmatprep.subr.mxu0 %v2278
        %5688 = vmatpush1.msra.mxu0 %v2277
        %5689 = vmatprep.subr.mxu0 %v2294
        %5690 = vmatpush1.msra.mxu0 %v2293
        %5691 = vmatprep.subr.mxu0 %v2310
        %5692 = vmatpush1.msra.mxu0 %v2309
        %5693 = vmatprep.subr.mxu0 %v2326
        %5694 = vmatpush1.msra.mxu0 %v2325
        %5695 = vmatprep.subr.mxu0 %v2342
        %5696 = vmatpush1.msra.mxu0 %v2341
        %5697 = vmatprep.subr.mxu0 %v2358
        %5698 = vmatpush1.msra.mxu0 %v2357
        %5699 = vmatprep.subr.mxu0 %v2374
        %5700 = vmatpush1.msra.mxu0 %v2373
        %5701 = vmatprep.subr.mxu0 %v2390
        %5702 = vmatpush1.msra.mxu0 %v2389
        %5703 = vmatprep.mubr.f32.mxu0 %v344
        %5704 = vmatmul.mubr.f32.gmra.mrb[0].mxu0 %v343
        %v5705 = vpop.f32.mrb[0].mxu0
        %v5706 = vadd.f32 %v5635, %v5705
        %v5707 = vpop.f32.mrb[0].mxu0
        %v5708 = vadd.f32 %v5637, %v5707
        %5709 = vdwg.mxu0
        %5710 = vmatprep.subr.mxu0 %v2406
        %5711 = vmatpush1.msra.mxu0 %v2405
        %5712 = vmatprep.subr.mxu0 %v2422
        %5713 = vmatpush1.msra.mxu0 %v2421
        %5714 = vmatprep.subr.mxu0 %v2438
        %5715 = vmatpush1.msra.mxu0 %v2437
        %5716 = vmatprep.subr.mxu0 %v2454
        %5717 = vmatpush1.msra.mxu0 %v2453
        %5718 = vmatprep.subr.mxu0 %v2470
        %5719 = vmatpush1.msra.mxu0 %v2469
        %5720 = vmatprep.subr.mxu0 %v2486
        %5721 = vmatpush1.msra.mxu0 %v2485
        %5722 = vmatprep.subr.mxu0 %v2502
        %5723 = vmatpush1.msra.mxu0 %v2501
        %5724 = vmatprep.subr.mxu0 %v2518
        %5725 = vmatpush1.msra.mxu0 %v2517
        %5726 = vmatprep.subr.mxu0 %v2534
        %5727 = vmatpush1.msra.mxu0 %v2533
        %5728 = vmatprep.subr.mxu0 %v2550
        %5729 = vmatpush1.msra.mxu0 %v2549
        %5730 = vmatprep.subr.mxu0 %v2566
        %5731 = vmatpush1.msra.mxu0 %v2565
        %5732 = vmatprep.subr.mxu0 %v2582
        %5733 = vmatpush1.msra.mxu0 %v2581
        %5734 = vmatprep.subr.mxu0 %v2598
        %5735 = vmatpush1.msra.mxu0 %v2597
        %5736 = vmatprep.subr.mxu0 %v2614
        %5737 = vmatpush1.msra.mxu0 %v2613
        %5738 = vmatprep.subr.mxu0 %v2630
        %5739 = vmatpush1.msra.mxu0 %v2629
        %5740 = vmatprep.subr.mxu0 %v2646
        %5741 = vmatpush1.msra.mxu0 %v2645
        %5742 = vmatprep.subr.mxu0 %v2662
        %5743 = vmatpush1.msra.mxu0 %v2661
        %5744 = vmatprep.subr.mxu0 %v2678
        %5745 = vmatpush1.msra.mxu0 %v2677
        %5746 = vmatprep.subr.mxu0 %v2694
        %5747 = vmatpush1.msra.mxu0 %v2693
        %5748 = vmatprep.subr.mxu0 %v2710
        %5749 = vmatpush1.msra.mxu0 %v2709
        %5750 = vmatprep.subr.mxu0 %v2726
        %5751 = vmatpush1.msra.mxu0 %v2725
        %5752 = vmatprep.subr.mxu0 %v2742
        %5753 = vmatpush1.msra.mxu0 %v2741
        %5754 = vmatprep.subr.mxu0 %v2758
        %5755 = vmatpush1.msra.mxu0 %v2757
        %5756 = vmatprep.subr.mxu0 %v2774
        %5757 = vmatpush1.msra.mxu0 %v2773
        %5758 = vmatprep.subr.mxu0 %v2790
        %5759 = vmatpush1.msra.mxu0 %v2789
        %5760 = vmatprep.subr.mxu0 %v2806
        %5761 = vmatpush1.msra.mxu0 %v2805
        %5762 = vmatprep.subr.mxu0 %v2822
        %5763 = vmatpush1.msra.mxu0 %v2821
        %5764 = vmatprep.subr.mxu0 %v2838
        %5765 = vmatpush1.msra.mxu0 %v2837
        %5766 = vmatprep.subr.mxu0 %v2854
        %5767 = vmatpush1.msra.mxu0 %v2853
        %5768 = vmatprep.subr.mxu0 %v2870
        %5769 = vmatpush1.msra.mxu0 %v2869
        %5770 = vmatprep.subr.mxu0 %v2886
        %5771 = vmatpush1.msra.mxu0 %v2885
        %5772 = vmatprep.subr.mxu0 %v2902
        %5773 = vmatpush1.msra.mxu0 %v2901
        %5774 = vmatprep.mubr.f32.mxu0 %v346
        %5775 = vmatmul.mubr.f32.gmra.mrb[0].mxu0 %v345
        %v5776 = vpop.f32.mrb[0].mxu0
        %v5777 = vadd.f32 %v5706, %v5776
        %v5778 = vpop.f32.mrb[0].mxu0
        %v5779 = vadd.f32 %v5708, %v5778
        %5780 = vdwg.mxu0
        %5781 = vmatprep.subr.mxu0 %v2918
        %5782 = vmatpush1.msra.mxu0 %v2917
        %5783 = vmatprep.subr.mxu0 %v2934
        %5784 = vmatpush1.msra.mxu0 %v2933
        %5785 = vmatprep.subr.mxu0 %v2950
        %5786 = vmatpush1.msra.mxu0 %v2949
        %5787 = vmatprep.subr.mxu0 %v2966
        %5788 = vmatpush1.msra.mxu0 %v2965
        %5789 = vmatprep.subr.mxu0 %v2982
        %5790 = vmatpush1.msra.mxu0 %v2981
        %5791 = vmatprep.subr.mxu0 %v2998
        %5792 = vmatpush1.msra.mxu0 %v2997
        %5793 = vmatprep.subr.mxu0 %v3014
        %5794 = vmatpush1.msra.mxu0 %v3013
        %5795 = vmatprep.subr.mxu0 %v3030
        %5796 = vmatpush1.msra.mxu0 %v3029
        %5797 = vmatprep.subr.mxu0 %v3046
        %5798 = vmatpush1.msra.mxu0 %v3045
        %5799 = vmatprep.subr.mxu0 %v3062
        %5800 = vmatpush1.msra.mxu0 %v3061
        %5801 = vmatprep.subr.mxu0 %v3078
        %5802 = vmatpush1.msra.mxu0 %v3077
        %5803 = vmatprep.subr.mxu0 %v3094
        %5804 = vmatpush1.msra.mxu0 %v3093
        %5805 = vmatprep.subr.mxu0 %v3110
        %5806 = vmatpush1.msra.mxu0 %v3109
        %5807 = vmatprep.subr.mxu0 %v3126
        %5808 = vmatpush1.msra.mxu0 %v3125
        %5809 = vmatprep.subr.mxu0 %v3142
        %5810 = vmatpush1.msra.mxu0 %v3141
        %5811 = vmatprep.subr.mxu0 %v3158
        %5812 = vmatpush1.msra.mxu0 %v3157
        %5813 = vmatprep.subr.mxu0 %v3174
        %5814 = vmatpush1.msra.mxu0 %v3173
        %5815 = vmatprep.subr.mxu0 %v3190
        %5816 = vmatpush1.msra.mxu0 %v3189
        %5817 = vmatprep.subr.mxu0 %v3206
        %5818 = vmatpush1.msra.mxu0 %v3205
        %5819 = vmatprep.subr.mxu0 %v3222
        %5820 = vmatpush1.msra.mxu0 %v3221
        %5821 = vmatprep.subr.mxu0 %v3238
        %5822 = vmatpush1.msra.mxu0 %v3237
        %5823 = vmatprep.subr.mxu0 %v3254
        %5824 = vmatpush1.msra.mxu0 %v3253
        %5825 = vmatprep.subr.mxu0 %v3270
        %5826 = vmatpush1.msra.mxu0 %v3269
        %5827 = vmatprep.subr.mxu0 %v3286
        %5828 = vmatpush1.msra.mxu0 %v3285
        %5829 = vmatprep.subr.mxu0 %v3302
        %5830 = vmatpush1.msra.mxu0 %v3301
        %5831 = vmatprep.subr.mxu0 %v3318
        %5832 = vmatpush1.msra.mxu0 %v3317
        %5833 = vmatprep.subr.mxu0 %v3334
        %5834 = vmatpush1.msra.mxu0 %v3333
        %5835 = vmatprep.subr.mxu0 %v3350
        %5836 = vmatpush1.msra.mxu0 %v3349
        %5837 = vmatprep.subr.mxu0 %v3366
        %5838 = vmatpush1.msra.mxu0 %v3365
        %5839 = vmatprep.subr.mxu0 %v3382
        %5840 = vmatpush1.msra.mxu0 %v3381
        %5841 = vmatprep.subr.mxu0 %v3398
        %5842 = vmatpush1.msra.mxu0 %v3397
        %5843 = vmatprep.subr.mxu0 %v3414
        %5844 = vmatpush1.msra.mxu0 %v3413
        %5845 = vmatprep.mubr.f32.mxu0 %v348
        %5846 = vmatmul.mubr.f32.gmra.mrb[0].mxu0 %v347
        %v5847 = vpop.f32.mrb[0].mxu0
        %v5848 = vadd.f32 %v5777, %v5847
        %v5849 = vpop.f32.mrb[0].mxu0
        %v5850 = vadd.f32 %v5779, %v5849
        %5851 = vdwg.mxu0
        %5852 = vmatprep.subr.mxu0 %v3430
        %5853 = vmatpush1.msra.mxu0 %v3429
        %5854 = vmatprep.subr.mxu0 %v3446
        %5855 = vmatpush1.msra.mxu0 %v3445
        %5856 = vmatprep.subr.mxu0 %v3462
        %5857 = vmatpush1.msra.mxu0 %v3461
        %5858 = vmatprep.subr.mxu0 %v3478
        %5859 = vmatpush1.msra.mxu0 %v3477
        %5860 = vmatprep.subr.mxu0 %v3494
        %5861 = vmatpush1.msra.mxu0 %v3493
        %5862 = vmatprep.subr.mxu0 %v3510
        %5863 = vmatpush1.msra.mxu0 %v3509
        %5864 = vmatprep.subr.mxu0 %v3526
        %5865 = vmatpush1.msra.mxu0 %v3525
        %5866 = vmatprep.subr.mxu0 %v3542
        %5867 = vmatpush1.msra.mxu0 %v3541
        %5868 = vmatprep.subr.mxu0 %v3558
        %5869 = vmatpush1.msra.mxu0 %v3557
        %5870 = vmatprep.subr.mxu0 %v3574
        %5871 = vmatpush1.msra.mxu0 %v3573
        %5872 = vmatprep.subr.mxu0 %v3590
        %5873 = vmatpush1.msra.mxu0 %v3589
        %5874 = vmatprep.subr.mxu0 %v3606
        %5875 = vmatpush1.msra.mxu0 %v3605
        %5876 = vmatprep.subr.mxu0 %v3622
        %5877 = vmatpush1.msra.mxu0 %v3621
        %5878 = vmatprep.subr.mxu0 %v3638
        %5879 = vmatpush1.msra.mxu0 %v3637
        %5880 = vmatprep.subr.mxu0 %v3654
        %5881 = vmatpush1.msra.mxu0 %v3653
        %5882 = vmatprep.subr.mxu0 %v3670
        %5883 = vmatpush1.msra.mxu0 %v3669
        %5884 = vmatprep.subr.mxu0 %v3686
        %5885 = vmatpush1.msra.mxu0 %v3685
        %5886 = vmatprep.subr.mxu0 %v3702
        %5887 = vmatpush1.msra.mxu0 %v3701
        %5888 = vmatprep.subr.mxu0 %v3718
        %5889 = vmatpush1.msra.mxu0 %v3717
        %5890 = vmatprep.subr.mxu0 %v3734
        %5891 = vmatpush1.msra.mxu0 %v3733
        %5892 = vmatprep.subr.mxu0 %v3750
        %5893 = vmatpush1.msra.mxu0 %v3749
        %5894 = vmatprep.subr.mxu0 %v3766
        %5895 = vmatpush1.msra.mxu0 %v3765
        %5896 = vmatprep.subr.mxu0 %v3782
        %5897 = vmatpush1.msra.mxu0 %v3781
        %5898 = vmatprep.subr.mxu0 %v3798
        %5899 = vmatpush1.msra.mxu0 %v3797
        %5900 = vmatprep.subr.mxu0 %v3814
        %5901 = vmatpush1.msra.mxu0 %v3813
        %5902 = vmatprep.subr.mxu0 %v3830
        %5903 = vmatpush1.msra.mxu0 %v3829
        %5904 = vmatprep.subr.mxu0 %v3846
        %5905 = vmatpush1.msra.mxu0 %v3845
        %5906 = vmatprep.subr.mxu0 %v3862
        %5907 = vmatpush1.msra.mxu0 %v3861
        %5908 = vmatprep.subr.mxu0 %v3878
        %5909 = vmatpush1.msra.mxu0 %v3877
        %5910 = vmatprep.subr.mxu0 %v3894
        %5911 = vmatpush1.msra.mxu0 %v3893
        %5912 = vmatprep.subr.mxu0 %v3910
        %5913 = vmatpush1.msra.mxu0 %v3909
        %5914 = vmatprep.subr.mxu0 %v3926
        %5915 = vmatpush1.msra.mxu0 %v3925
        %5916 = vmatprep.mubr.f32.mxu0 %v350
        %5917 = vmatmul.mubr.f32.gmra.mrb[0].mxu0 %v349
        %v5918 = vpop.f32.mrb[0].mxu0
        %v5919 = vadd.f32 %v5848, %v5918
        %v5920 = vpop.f32.mrb[0].mxu0
        %v5921 = vadd.f32 %v5850, %v5920
        %5922 = vdwg.mxu0
        %5923 = vmatprep.subr.mxu0 %v360
        %5924 = vmatpush1.msra.mxu0 %v359
        %5925 = vmatprep.subr.mxu0 %v376
        %5926 = vmatpush1.msra.mxu0 %v375
        %5927 = vmatprep.subr.mxu0 %v392
        %5928 = vmatpush1.msra.mxu0 %v391
        %5929 = vmatprep.subr.mxu0 %v408
        %5930 = vmatpush1.msra.mxu0 %v407
        %5931 = vmatprep.subr.mxu0 %v424
        %5932 = vmatpush1.msra.mxu0 %v423
        %5933 = vmatprep.subr.mxu0 %v440
        %5934 = vmatpush1.msra.mxu0 %v439
        %5935 = vmatprep.subr.mxu0 %v456
        %5936 = vmatpush1.msra.mxu0 %v455
        %5937 = vmatprep.subr.mxu0 %v472
        %5938 = vmatpush1.msra.mxu0 %v471
        %5939 = vmatprep.subr.mxu0 %v488
        %5940 = vmatpush1.msra.mxu0 %v487
        %5941 = vmatprep.subr.mxu0 %v504
        %5942 = vmatpush1.msra.mxu0 %v503
        %5943 = vmatprep.subr.mxu0 %v520
        %5944 = vmatpush1.msra.mxu0 %v519
        %5945 = vmatprep.subr.mxu0 %v536
        %5946 = vmatpush1.msra.mxu0 %v535
        %5947 = vmatprep.subr.mxu0 %v552
        %5948 = vmatpush1.msra.mxu0 %v551
        %5949 = vmatprep.subr.mxu0 %v568
        %5950 = vmatpush1.msra.mxu0 %v567
        %5951 = vmatprep.subr.mxu0 %v584
        %5952 = vmatpush1.msra.mxu0 %v583
        %5953 = vmatprep.subr.mxu0 %v600
        %5954 = vmatpush1.msra.mxu0 %v599
        %5955 = vmatprep.subr.mxu0 %v616
        %5956 = vmatpush1.msra.mxu0 %v615
        %5957 = vmatprep.subr.mxu0 %v632
        %5958 = vmatpush1.msra.mxu0 %v631
        %5959 = vmatprep.subr.mxu0 %v648
        %5960 = vmatpush1.msra.mxu0 %v647
        %5961 = vmatprep.subr.mxu0 %v664
        %5962 = vmatpush1.msra.mxu0 %v663
        %5963 = vmatprep.subr.mxu0 %v680
        %5964 = vmatpush1.msra.mxu0 %v679
        %5965 = vmatprep.subr.mxu0 %v696
        %5966 = vmatpush1.msra.mxu0 %v695
        %5967 = vmatprep.subr.mxu0 %v712
        %5968 = vmatpush1.msra.mxu0 %v711
        %5969 = vmatprep.subr.mxu0 %v728
        %5970 = vmatpush1.msra.mxu0 %v727
        %5971 = vmatprep.subr.mxu0 %v744
        %5972 = vmatpush1.msra.mxu0 %v743
        %5973 = vmatprep.subr.mxu0 %v760
        %5974 = vmatpush1.msra.mxu0 %v759
        %5975 = vmatprep.subr.mxu0 %v776
        %5976 = vmatpush1.msra.mxu0 %v775
        %5977 = vmatprep.subr.mxu0 %v792
        %5978 = vmatpush1.msra.mxu0 %v791
        %5979 = vmatprep.subr.mxu0 %v808
        %5980 = vmatpush1.msra.mxu0 %v807
        %5981 = vmatprep.subr.mxu0 %v824
        %5982 = vmatpush1.msra.mxu0 %v823
        %5983 = vmatprep.subr.mxu0 %v840
        %5984 = vmatpush1.msra.mxu0 %v839
        %5985 = vmatprep.subr.mxu0 %v856
        %5986 = vmatpush1.msra.mxu0 %v855
        %5987 = vmatprep.mubr.f32.mxu0 %v338
        %5988 = vmatmul.mubr.f32.gmra.mrb[0].mxu0 %v337
        %v5989 = vpop.f32.mrb[0].mxu0
        %v5990 = vadd.f32 0.0, %v5989
        %v5991 = vpop.f32.mrb[0].mxu0
        %v5992 = vadd.f32 0.0, %v5991
        %5993 = vdwg.mxu0
        %5994 = vmatprep.subr.mxu0 %v872
        %5995 = vmatpush1.msra.mxu0 %v871
        %5996 = vmatprep.subr.mxu0 %v888
        %5997 = vmatpush1.msra.mxu0 %v887
        %5998 = vmatprep.subr.mxu0 %v904
        %5999 = vmatpush1.msra.mxu0 %v903
        %6000 = vmatprep.subr.mxu0 %v920
        %6001 = vmatpush1.msra.mxu0 %v919
        %6002 = vmatprep.subr.mxu0 %v936
        %6003 = vmatpush1.msra.mxu0 %v935
        %6004 = vmatprep.subr.mxu0 %v952
        %6005 = vmatpush1.msra.mxu0 %v951
        %6006 = vmatprep.subr.mxu0 %v968
        %6007 = vmatpush1.msra.mxu0 %v967
        %6008 = vmatprep.subr.mxu0 %v984
        %6009 = vmatpush1.msra.mxu0 %v983
        %6010 = vmatprep.subr.mxu0 %v1000
        %6011 = vmatpush1.msra.mxu0 %v999
        %6012 = vmatprep.subr.mxu0 %v1016
        %6013 = vmatpush1.msra.mxu0 %v1015
        %6014 = vmatprep.subr.mxu0 %v1032
        %6015 = vmatpush1.msra.mxu0 %v1031
        %6016 = vmatprep.subr.mxu0 %v1048
        %6017 = vmatpush1.msra.mxu0 %v1047
        %6018 = vmatprep.subr.mxu0 %v1064
        %6019 = vmatpush1.msra.mxu0 %v1063
        %6020 = vmatprep.subr.mxu0 %v1080
        %6021 = vmatpush1.msra.mxu0 %v1079
        %6022 = vmatprep.subr.mxu0 %v1096
        %6023 = vmatpush1.msra.mxu0 %v1095
        %6024 = vmatprep.subr.mxu0 %v1112
        %6025 = vmatpush1.msra.mxu0 %v1111
        %6026 = vmatprep.subr.mxu0 %v1128
        %6027 = vmatpush1.msra.mxu0 %v1127
        %6028 = vmatprep.subr.mxu0 %v1144
        %6029 = vmatpush1.msra.mxu0 %v1143
        %6030 = vmatprep.subr.mxu0 %v1160
        %6031 = vmatpush1.msra.mxu0 %v1159
        %6032 = vmatprep.subr.mxu0 %v1176
        %6033 = vmatpush1.msra.mxu0 %v1175
        %6034 = vmatprep.subr.mxu0 %v1192
        %6035 = vmatpush1.msra.mxu0 %v1191
        %6036 = vmatprep.subr.mxu0 %v1208
        %6037 = vmatpush1.msra.mxu0 %v1207
        %6038 = vmatprep.subr.mxu0 %v1224
        %6039 = vmatpush1.msra.mxu0 %v1223
        %6040 = vmatprep.subr.mxu0 %v1240
        %6041 = vmatpush1.msra.mxu0 %v1239
        %6042 = vmatprep.subr.mxu0 %v1256
        %6043 = vmatpush1.msra.mxu0 %v1255
        %6044 = vmatprep.subr.mxu0 %v1272
        %6045 = vmatpush1.msra.mxu0 %v1271
        %6046 = vmatprep.subr.mxu0 %v1288
        %6047 = vmatpush1.msra.mxu0 %v1287
        %6048 = vmatprep.subr.mxu0 %v1304
        %6049 = vmatpush1.msra.mxu0 %v1303
        %6050 = vmatprep.subr.mxu0 %v1320
        %6051 = vmatpush1.msra.mxu0 %v1319
        %6052 = vmatprep.subr.mxu0 %v1336
        %6053 = vmatpush1.msra.mxu0 %v1335
        %6054 = vmatprep.subr.mxu0 %v1352
        %6055 = vmatpush1.msra.mxu0 %v1351
        %6056 = vmatprep.subr.mxu0 %v1368
        %6057 = vmatpush1.msra.mxu0 %v1367
        %6058 = vmatprep.mubr.f32.mxu0 %v340
        %6059 = vmatmul.mubr.f32.gmra.mrb[0].mxu0 %v339
        %v6060 = vpop.f32.mrb[0].mxu0
        %v6061 = vadd.f32 %v5990, %v6060
        %v6062 = vpop.f32.mrb[0].mxu0
        %v6063 = vadd.f32 %v5992, %v6062
        %6064 = vdwg.mxu0
        %6065 = vmatprep.subr.mxu0 %v1384
        %6066 = vmatpush1.msra.mxu0 %v1383
        %6067 = vmatprep.subr.mxu0 %v1400
        %6068 = vmatpush1.msra.mxu0 %v1399
        %6069 = vmatprep.subr.mxu0 %v1416
        %6070 = vmatpush1.msra.mxu0 %v1415
        %6071 = vmatprep.subr.mxu0 %v1432
        %6072 = vmatpush1.msra.mxu0 %v1431
        %6073 = vmatprep.subr.mxu0 %v1448
        %6074 = vmatpush1.msra.mxu0 %v1447
        %6075 = vmatprep.subr.mxu0 %v1464
        %6076 = vmatpush1.msra.mxu0 %v1463
        %6077 = vmatprep.subr.mxu0 %v1480
        %6078 = vmatpush1.msra.mxu0 %v1479
        %6079 = vmatprep.subr.mxu0 %v1496
        %6080 = vmatpush1.msra.mxu0 %v1495
        %6081 = vmatprep.subr.mxu0 %v1512
        %6082 = vmatpush1.msra.mxu0 %v1511
        %6083 = vmatprep.subr.mxu0 %v1528
        %6084 = vmatpush1.msra.mxu0 %v1527
        %6085 = vmatprep.subr.mxu0 %v1544
        %6086 = vmatpush1.msra.mxu0 %v1543
        %6087 = vmatprep.subr.mxu0 %v1560
        %6088 = vmatpush1.msra.mxu0 %v1559
        %6089 = vmatprep.subr.mxu0 %v1576
        %6090 = vmatpush1.msra.mxu0 %v1575
        %6091 = vmatprep.subr.mxu0 %v1592
        %6092 = vmatpush1.msra.mxu0 %v1591
        %6093 = vmatprep.subr.mxu0 %v1608
        %6094 = vmatpush1.msra.mxu0 %v1607
        %6095 = vmatprep.subr.mxu0 %v1624
        %6096 = vmatpush1.msra.mxu0 %v1623
        %6097 = vmatprep.subr.mxu0 %v1640
        %6098 = vmatpush1.msra.mxu0 %v1639
        %6099 = vmatprep.subr.mxu0 %v1656
        %6100 = vmatpush1.msra.mxu0 %v1655
        %6101 = vmatprep.subr.mxu0 %v1672
        %6102 = vmatpush1.msra.mxu0 %v1671
        %6103 = vmatprep.subr.mxu0 %v1688
        %6104 = vmatpush1.msra.mxu0 %v1687
        %6105 = vmatprep.subr.mxu0 %v1704
        %6106 = vmatpush1.msra.mxu0 %v1703
        %6107 = vmatprep.subr.mxu0 %v1720
        %6108 = vmatpush1.msra.mxu0 %v1719
        %6109 = vmatprep.subr.mxu0 %v1736
        %6110 = vmatpush1.msra.mxu0 %v1735
        %6111 = vmatprep.subr.mxu0 %v1752
        %6112 = vmatpush1.msra.mxu0 %v1751
        %6113 = vmatprep.subr.mxu0 %v1768
        %6114 = vmatpush1.msra.mxu0 %v1767
        %6115 = vmatprep.subr.mxu0 %v1784
        %6116 = vmatpush1.msra.mxu0 %v1783
        %6117 = vmatprep.subr.mxu0 %v1800
        %6118 = vmatpush1.msra.mxu0 %v1799
        %6119 = vmatprep.subr.mxu0 %v1816
        %6120 = vmatpush1.msra.mxu0 %v1815
        %6121 = vmatprep.subr.mxu0 %v1832
        %6122 = vmatpush1.msra.mxu0 %v1831
        %6123 = vmatprep.subr.mxu0 %v1848
        %6124 = vmatpush1.msra.mxu0 %v1847
        %6125 = vmatprep.subr.mxu0 %v1864
        %6126 = vmatpush1.msra.mxu0 %v1863
        %6127 = vmatprep.subr.mxu0 %v1880
        %6128 = vmatpush1.msra.mxu0 %v1879
        %6129 = vmatprep.mubr.f32.mxu0 %v342
        %6130 = vmatmul.mubr.f32.gmra.mrb[0].mxu0 %v341
        %v6131 = vpop.f32.mrb[0].mxu0
        %v6132 = vadd.f32 %v6061, %v6131
        %v6133 = vpop.f32.mrb[0].mxu0
        %v6134 = vadd.f32 %v6063, %v6133
        %6135 = vdwg.mxu0
        %6136 = vmatprep.subr.mxu0 %v1896
        %6137 = vmatpush1.msra.mxu0 %v1895
        %6138 = vmatprep.subr.mxu0 %v1912
        %6139 = vmatpush1.msra.mxu0 %v1911
        %6140 = vmatprep.subr.mxu0 %v1928
        %6141 = vmatpush1.msra.mxu0 %v1927
        %6142 = vmatprep.subr.mxu0 %v1944
        %6143 = vmatpush1.msra.mxu0 %v1943
        %6144 = vmatprep.subr.mxu0 %v1960
        %6145 = vmatpush1.msra.mxu0 %v1959
        %6146 = vmatprep.subr.mxu0 %v1976
        %6147 = vmatpush1.msra.mxu0 %v1975
        %6148 = vmatprep.subr.mxu0 %v1992
        %6149 = vmatpush1.msra.mxu0 %v1991
        %6150 = vmatprep.subr.mxu0 %v2008
        %6151 = vmatpush1.msra.mxu0 %v2007
        %6152 = vmatprep.subr.mxu0 %v2024
        %6153 = vmatpush1.msra.mxu0 %v2023
        %6154 = vmatprep.subr.mxu0 %v2040
        %6155 = vmatpush1.msra.mxu0 %v2039
        %6156 = vmatprep.subr.mxu0 %v2056
        %6157 = vmatpush1.msra.mxu0 %v2055
        %6158 = vmatprep.subr.mxu0 %v2072
        %6159 = vmatpush1.msra.mxu0 %v2071
        %6160 = vmatprep.subr.mxu0 %v2088
        %6161 = vmatpush1.msra.mxu0 %v2087
        %6162 = vmatprep.subr.mxu0 %v2104
        %6163 = vmatpush1.msra.mxu0 %v2103
        %6164 = vmatprep.subr.mxu0 %v2120
        %6165 = vmatpush1.msra.mxu0 %v2119
        %6166 = vmatprep.subr.mxu0 %v2136
        %6167 = vmatpush1.msra.mxu0 %v2135
        %6168 = vmatprep.subr.mxu0 %v2152
        %6169 = vmatpush1.msra.mxu0 %v2151
        %6170 = vmatprep.subr.mxu0 %v2168
        %6171 = vmatpush1.msra.mxu0 %v2167
        %6172 = vmatprep.subr.mxu0 %v2184
        %6173 = vmatpush1.msra.mxu0 %v2183
        %6174 = vmatprep.subr.mxu0 %v2200
        %6175 = vmatpush1.msra.mxu0 %v2199
        %6176 = vmatprep.subr.mxu0 %v2216
        %6177 = vmatpush1.msra.mxu0 %v2215
        %6178 = vmatprep.subr.mxu0 %v2232
        %6179 = vmatpush1.msra.mxu0 %v2231
        %6180 = vmatprep.subr.mxu0 %v2248
        %6181 = vmatpush1.msra.mxu0 %v2247
        %6182 = vmatprep.subr.mxu0 %v2264
        %6183 = vmatpush1.msra.mxu0 %v2263
        %6184 = vmatprep.subr.mxu0 %v2280
        %6185 = vmatpush1.msra.mxu0 %v2279
        %6186 = vmatprep.subr.mxu0 %v2296
        %6187 = vmatpush1.msra.mxu0 %v2295
        %6188 = vmatprep.subr.mxu0 %v2312
        %6189 = vmatpush1.msra.mxu0 %v2311
        %6190 = vmatprep.subr.mxu0 %v2328
        %6191 = vmatpush1.msra.mxu0 %v2327
        %6192 = vmatprep.subr.mxu0 %v2344
        %6193 = vmatpush1.msra.mxu0 %v2343
        %6194 = vmatprep.subr.mxu0 %v2360
        %6195 = vmatpush1.msra.mxu0 %v2359
        %6196 = vmatprep.subr.mxu0 %v2376
        %6197 = vmatpush1.msra.mxu0 %v2375
        %6198 = vmatprep.subr.mxu0 %v2392
        %6199 = vmatpush1.msra.mxu0 %v2391
        %6200 = vmatprep.mubr.f32.mxu0 %v344
        %6201 = vmatmul.mubr.f32.gmra.mrb[0].mxu0 %v343
        %v6202 = vpop.f32.mrb[0].mxu0
        %v6203 = vadd.f32 %v6132, %v6202
        %v6204 = vpop.f32.mrb[0].mxu0
        %v6205 = vadd.f32 %v6134, %v6204
        %6206 = vdwg.mxu0
        %6207 = vmatprep.subr.mxu0 %v2408
        %6208 = vmatpush1.msra.mxu0 %v2407
        %6209 = vmatprep.subr.mxu0 %v2424
        %6210 = vmatpush1.msra.mxu0 %v2423
        %6211 = vmatprep.subr.mxu0 %v2440
        %6212 = vmatpush1.msra.mxu0 %v2439
        %6213 = vmatprep.subr.mxu0 %v2456
        %6214 = vmatpush1.msra.mxu0 %v2455
        %6215 = vmatprep.subr.mxu0 %v2472
        %6216 = vmatpush1.msra.mxu0 %v2471
        %6217 = vmatprep.subr.mxu0 %v2488
        %6218 = vmatpush1.msra.mxu0 %v2487
        %6219 = vmatprep.subr.mxu0 %v2504
        %6220 = vmatpush1.msra.mxu0 %v2503
        %6221 = vmatprep.subr.mxu0 %v2520
        %6222 = vmatpush1.msra.mxu0 %v2519
        %6223 = vmatprep.subr.mxu0 %v2536
        %6224 = vmatpush1.msra.mxu0 %v2535
        %6225 = vmatprep.subr.mxu0 %v2552
        %6226 = vmatpush1.msra.mxu0 %v2551
        %6227 = vmatprep.subr.mxu0 %v2568
        %6228 = vmatpush1.msra.mxu0 %v2567
        %6229 = vmatprep.subr.mxu0 %v2584
        %6230 = vmatpush1.msra.mxu0 %v2583
        %6231 = vmatprep.subr.mxu0 %v2600
        %6232 = vmatpush1.msra.mxu0 %v2599
        %6233 = vmatprep.subr.mxu0 %v2616
        %6234 = vmatpush1.msra.mxu0 %v2615
        %6235 = vmatprep.subr.mxu0 %v2632
        %6236 = vmatpush1.msra.mxu0 %v2631
        %6237 = vmatprep.subr.mxu0 %v2648
        %6238 = vmatpush1.msra.mxu0 %v2647
        %6239 = vmatprep.subr.mxu0 %v2664
        %6240 = vmatpush1.msra.mxu0 %v2663
        %6241 = vmatprep.subr.mxu0 %v2680
        %6242 = vmatpush1.msra.mxu0 %v2679
        %6243 = vmatprep.subr.mxu0 %v2696
        %6244 = vmatpush1.msra.mxu0 %v2695
        %6245 = vmatprep.subr.mxu0 %v2712
        %6246 = vmatpush1.msra.mxu0 %v2711
        %6247 = vmatprep.subr.mxu0 %v2728
        %6248 = vmatpush1.msra.mxu0 %v2727
        %6249 = vmatprep.subr.mxu0 %v2744
        %6250 = vmatpush1.msra.mxu0 %v2743
        %6251 = vmatprep.subr.mxu0 %v2760
        %6252 = vmatpush1.msra.mxu0 %v2759
        %6253 = vmatprep.subr.mxu0 %v2776
        %6254 = vmatpush1.msra.mxu0 %v2775
        %6255 = vmatprep.subr.mxu0 %v2792
        %6256 = vmatpush1.msra.mxu0 %v2791
        %6257 = vmatprep.subr.mxu0 %v2808
        %6258 = vmatpush1.msra.mxu0 %v2807
        %6259 = vmatprep.subr.mxu0 %v2824
        %6260 = vmatpush1.msra.mxu0 %v2823
        %6261 = vmatprep.subr.mxu0 %v2840
        %6262 = vmatpush1.msra.mxu0 %v2839
        %6263 = vmatprep.subr.mxu0 %v2856
        %6264 = vmatpush1.msra.mxu0 %v2855
        %6265 = vmatprep.subr.mxu0 %v2872
        %6266 = vmatpush1.msra.mxu0 %v2871
        %6267 = vmatprep.subr.mxu0 %v2888
        %6268 = vmatpush1.msra.mxu0 %v2887
        %6269 = vmatprep.subr.mxu0 %v2904
        %6270 = vmatpush1.msra.mxu0 %v2903
        %6271 = vmatprep.mubr.f32.mxu0 %v346
        %6272 = vmatmul.mubr.f32.gmra.mrb[0].mxu0 %v345
        %v6273 = vpop.f32.mrb[0].mxu0
        %v6274 = vadd.f32 %v6203, %v6273
        %v6275 = vpop.f32.mrb[0].mxu0
        %v6276 = vadd.f32 %v6205, %v6275
        %6277 = vdwg.mxu0
        %6278 = vmatprep.subr.mxu0 %v2920
        %6279 = vmatpush1.msra.mxu0 %v2919
        %6280 = vmatprep.subr.mxu0 %v2936
        %6281 = vmatpush1.msra.mxu0 %v2935
        %6282 = vmatprep.subr.mxu0 %v2952
        %6283 = vmatpush1.msra.mxu0 %v2951
        %6284 = vmatprep.subr.mxu0 %v2968
        %6285 = vmatpush1.msra.mxu0 %v2967
        %6286 = vmatprep.subr.mxu0 %v2984
        %6287 = vmatpush1.msra.mxu0 %v2983
        %6288 = vmatprep.subr.mxu0 %v3000
        %6289 = vmatpush1.msra.mxu0 %v2999
        %6290 = vmatprep.subr.mxu0 %v3016
        %6291 = vmatpush1.msra.mxu0 %v3015
        %6292 = vmatprep.subr.mxu0 %v3032
        %6293 = vmatpush1.msra.mxu0 %v3031
        %6294 = vmatprep.subr.mxu0 %v3048
        %6295 = vmatpush1.msra.mxu0 %v3047
        %6296 = vmatprep.subr.mxu0 %v3064
        %6297 = vmatpush1.msra.mxu0 %v3063
        %6298 = vmatprep.subr.mxu0 %v3080
        %6299 = vmatpush1.msra.mxu0 %v3079
        %6300 = vmatprep.subr.mxu0 %v3096
        %6301 = vmatpush1.msra.mxu0 %v3095
        %6302 = vmatprep.subr.mxu0 %v3112
        %6303 = vmatpush1.msra.mxu0 %v3111
        %6304 = vmatprep.subr.mxu0 %v3128
        %6305 = vmatpush1.msra.mxu0 %v3127
        %6306 = vmatprep.subr.mxu0 %v3144
        %6307 = vmatpush1.msra.mxu0 %v3143
        %6308 = vmatprep.subr.mxu0 %v3160
        %6309 = vmatpush1.msra.mxu0 %v3159
        %6310 = vmatprep.subr.mxu0 %v3176
        %6311 = vmatpush1.msra.mxu0 %v3175
        %6312 = vmatprep.subr.mxu0 %v3192
        %6313 = vmatpush1.msra.mxu0 %v3191
        %6314 = vmatprep.subr.mxu0 %v3208
        %6315 = vmatpush1.msra.mxu0 %v3207
        %6316 = vmatprep.subr.mxu0 %v3224
        %6317 = vmatpush1.msra.mxu0 %v3223
        %6318 = vmatprep.subr.mxu0 %v3240
        %6319 = vmatpush1.msra.mxu0 %v3239
        %6320 = vmatprep.subr.mxu0 %v3256
        %6321 = vmatpush1.msra.mxu0 %v3255
        %6322 = vmatprep.subr.mxu0 %v3272
        %6323 = vmatpush1.msra.mxu0 %v3271
        %6324 = vmatprep.subr.mxu0 %v3288
        %6325 = vmatpush1.msra.mxu0 %v3287
        %6326 = vmatprep.subr.mxu0 %v3304
        %6327 = vmatpush1.msra.mxu0 %v3303
        %6328 = vmatprep.subr.mxu0 %v3320
        %6329 = vmatpush1.msra.mxu0 %v3319
        %6330 = vmatprep.subr.mxu0 %v3336
        %6331 = vmatpush1.msra.mxu0 %v3335
        %6332 = vmatprep.subr.mxu0 %v3352
        %6333 = vmatpush1.msra.mxu0 %v3351
        %6334 = vmatprep.subr.mxu0 %v3368
        %6335 = vmatpush1.msra.mxu0 %v3367
        %6336 = vmatprep.subr.mxu0 %v3384
        %6337 = vmatpush1.msra.mxu0 %v3383
        %6338 = vmatprep.subr.mxu0 %v3400
        %6339 = vmatpush1.msra.mxu0 %v3399
        %6340 = vmatprep.subr.mxu0 %v3416
        %6341 = vmatpush1.msra.mxu0 %v3415
        %6342 = vmatprep.mubr.f32.mxu0 %v348
        %6343 = vmatmul.mubr.f32.gmra.mrb[0].mxu0 %v347
        %v6344 = vpop.f32.mrb[0].mxu0
        %v6345 = vadd.f32 %v6274, %v6344
        %v6346 = vpop.f32.mrb[0].mxu0
        %v6347 = vadd.f32 %v6276, %v6346
        %6348 = vdwg.mxu0
        %6349 = vmatprep.subr.mxu0 %v3432
        %6350 = vmatpush1.msra.mxu0 %v3431
        %6351 = vmatprep.subr.mxu0 %v3448
        %6352 = vmatpush1.msra.mxu0 %v3447
        %6353 = vmatprep.subr.mxu0 %v3464
        %6354 = vmatpush1.msra.mxu0 %v3463
        %6355 = vmatprep.subr.mxu0 %v3480
        %6356 = vmatpush1.msra.mxu0 %v3479
        %6357 = vmatprep.subr.mxu0 %v3496
        %6358 = vmatpush1.msra.mxu0 %v3495
        %6359 = vmatprep.subr.mxu0 %v3512
        %6360 = vmatpush1.msra.mxu0 %v3511
        %6361 = vmatprep.subr.mxu0 %v3528
        %6362 = vmatpush1.msra.mxu0 %v3527
        %6363 = vmatprep.subr.mxu0 %v3544
        %6364 = vmatpush1.msra.mxu0 %v3543
        %6365 = vmatprep.subr.mxu0 %v3560
        %6366 = vmatpush1.msra.mxu0 %v3559
        %6367 = vmatprep.subr.mxu0 %v3576
        %6368 = vmatpush1.msra.mxu0 %v3575
        %6369 = vmatprep.subr.mxu0 %v3592
        %6370 = vmatpush1.msra.mxu0 %v3591
        %6371 = vmatprep.subr.mxu0 %v3608
        %6372 = vmatpush1.msra.mxu0 %v3607
        %6373 = vmatprep.subr.mxu0 %v3624
        %6374 = vmatpush1.msra.mxu0 %v3623
        %6375 = vmatprep.subr.mxu0 %v3640
        %6376 = vmatpush1.msra.mxu0 %v3639
        %6377 = vmatprep.subr.mxu0 %v3656
        %6378 = vmatpush1.msra.mxu0 %v3655
        %6379 = vmatprep.subr.mxu0 %v3672
        %6380 = vmatpush1.msra.mxu0 %v3671
        %6381 = vmatprep.subr.mxu0 %v3688
        %6382 = vmatpush1.msra.mxu0 %v3687
        %6383 = vmatprep.subr.mxu0 %v3704
        %6384 = vmatpush1.msra.mxu0 %v3703
        %6385 = vmatprep.subr.mxu0 %v3720
        %6386 = vmatpush1.msra.mxu0 %v3719
        %6387 = vmatprep.subr.mxu0 %v3736
        %6388 = vmatpush1.msra.mxu0 %v3735
        %6389 = vmatprep.subr.mxu0 %v3752
        %6390 = vmatpush1.msra.mxu0 %v3751
        %6391 = vmatprep.subr.mxu0 %v3768
        %6392 = vmatpush1.msra.mxu0 %v3767
        %6393 = vmatprep.subr.mxu0 %v3784
        %6394 = vmatpush1.msra.mxu0 %v3783
        %6395 = vmatprep.subr.mxu0 %v3800
        %6396 = vmatpush1.msra.mxu0 %v3799
        %6397 = vmatprep.subr.mxu0 %v3816
        %6398 = vmatpush1.msra.mxu0 %v3815
        %6399 = vmatprep.subr.mxu0 %v3832
        %6400 = vmatpush1.msra.mxu0 %v3831
        %6401 = vmatprep.subr.mxu0 %v3848
        %6402 = vmatpush1.msra.mxu0 %v3847
        %6403 = vmatprep.subr.mxu0 %v3864
        %6404 = vmatpush1.msra.mxu0 %v3863
        %6405 = vmatprep.subr.mxu0 %v3880
        %6406 = vmatpush1.msra.mxu0 %v3879
        %6407 = vmatprep.subr.mxu0 %v3896
        %6408 = vmatpush1.msra.mxu0 %v3895
        %6409 = vmatprep.subr.mxu0 %v3912
        %6410 = vmatpush1.msra.mxu0 %v3911
        %6411 = vmatprep.subr.mxu0 %v3928
        %6412 = vmatpush1.msra.mxu0 %v3927
        %6413 = vmatprep.mubr.f32.mxu0 %v350
        %6414 = vmatmul.mubr.f32.gmra.mrb[0].mxu0 %v349
        %v6415 = vpop.f32.mrb[0].mxu0
        %v6416 = vadd.f32 %v6345, %v6415
        %v6417 = vpop.f32.mrb[0].mxu0
        %v6418 = vadd.f32 %v6347, %v6417
        %6419 = vdwg.mxu0
        %6420 = vmatprep.subr.mxu0 %v362
        %6421 = vmatpush1.msra.mxu0 %v361
        %6422 = vmatprep.subr.mxu0 %v378
        %6423 = vmatpush1.msra.mxu0 %v377
        %6424 = vmatprep.subr.mxu0 %v394
        %6425 = vmatpush1.msra.mxu0 %v393
        %6426 = vmatprep.subr.mxu0 %v410
        %6427 = vmatpush1.msra.mxu0 %v409
        %6428 = vmatprep.subr.mxu0 %v426
        %6429 = vmatpush1.msra.mxu0 %v425
        %6430 = vmatprep.subr.mxu0 %v442
        %6431 = vmatpush1.msra.mxu0 %v441
        %6432 = vmatprep.subr.mxu0 %v458
        %6433 = vmatpush1.msra.mxu0 %v457
        %6434 = vmatprep.subr.mxu0 %v474
        %6435 = vmatpush1.msra.mxu0 %v473
        %6436 = vmatprep.subr.mxu0 %v490
        %6437 = vmatpush1.msra.mxu0 %v489
        %6438 = vmatprep.subr.mxu0 %v506
        %6439 = vmatpush1.msra.mxu0 %v505
        %6440 = vmatprep.subr.mxu0 %v522
        %6441 = vmatpush1.msra.mxu0 %v521
        %6442 = vmatprep.subr.mxu0 %v538
        %6443 = vmatpush1.msra.mxu0 %v537
        %6444 = vmatprep.subr.mxu0 %v554
        %6445 = vmatpush1.msra.mxu0 %v553
        %6446 = vmatprep.subr.mxu0 %v570
        %6447 = vmatpush1.msra.mxu0 %v569
        %6448 = vmatprep.subr.mxu0 %v586
        %6449 = vmatpush1.msra.mxu0 %v585
        %6450 = vmatprep.subr.mxu0 %v602
        %6451 = vmatpush1.msra.mxu0 %v601
        %6452 = vmatprep.subr.mxu0 %v618
        %6453 = vmatpush1.msra.mxu0 %v617
        %6454 = vmatprep.subr.mxu0 %v634
        %6455 = vmatpush1.msra.mxu0 %v633
        %6456 = vmatprep.subr.mxu0 %v650
        %6457 = vmatpush1.msra.mxu0 %v649
        %6458 = vmatprep.subr.mxu0 %v666
        %6459 = vmatpush1.msra.mxu0 %v665
        %6460 = vmatprep.subr.mxu0 %v682
        %6461 = vmatpush1.msra.mxu0 %v681
        %6462 = vmatprep.subr.mxu0 %v698
        %6463 = vmatpush1.msra.mxu0 %v697
        %6464 = vmatprep.subr.mxu0 %v714
        %6465 = vmatpush1.msra.mxu0 %v713
        %6466 = vmatprep.subr.mxu0 %v730
        %6467 = vmatpush1.msra.mxu0 %v729
        %6468 = vmatprep.subr.mxu0 %v746
        %6469 = vmatpush1.msra.mxu0 %v745
        %6470 = vmatprep.subr.mxu0 %v762
        %6471 = vmatpush1.msra.mxu0 %v761
        %6472 = vmatprep.subr.mxu0 %v778
        %6473 = vmatpush1.msra.mxu0 %v777
        %6474 = vmatprep.subr.mxu0 %v794
        %6475 = vmatpush1.msra.mxu0 %v793
        %6476 = vmatprep.subr.mxu0 %v810
        %6477 = vmatpush1.msra.mxu0 %v809
        %6478 = vmatprep.subr.mxu0 %v826
        %6479 = vmatpush1.msra.mxu0 %v825
        %6480 = vmatprep.subr.mxu0 %v842
        %6481 = vmatpush1.msra.mxu0 %v841
        %6482 = vmatprep.subr.mxu0 %v858
        %6483 = vmatpush1.msra.mxu0 %v857
        %6484 = vmatprep.mubr.f32.mxu0 %v338
        %6485 = vmatmul.mubr.f32.gmra.mrb[0].mxu0 %v337
        %v6486 = vpop.f32.mrb[0].mxu0
        %v6487 = vadd.f32 0.0, %v6486
        %v6488 = vpop.f32.mrb[0].mxu0
        %v6489 = vadd.f32 0.0, %v6488
        %6490 = vdwg.mxu0
        %6491 = vmatprep.subr.mxu0 %v874
        %6492 = vmatpush1.msra.mxu0 %v873
        %6493 = vmatprep.subr.mxu0 %v890
        %6494 = vmatpush1.msra.mxu0 %v889
        %6495 = vmatprep.subr.mxu0 %v906
        %6496 = vmatpush1.msra.mxu0 %v905
        %6497 = vmatprep.subr.mxu0 %v922
        %6498 = vmatpush1.msra.mxu0 %v921
        %6499 = vmatprep.subr.mxu0 %v938
        %6500 = vmatpush1.msra.mxu0 %v937
        %6501 = vmatprep.subr.mxu0 %v954
        %6502 = vmatpush1.msra.mxu0 %v953
        %6503 = vmatprep.subr.mxu0 %v970
        %6504 = vmatpush1.msra.mxu0 %v969
        %6505 = vmatprep.subr.mxu0 %v986
        %6506 = vmatpush1.msra.mxu0 %v985
        %6507 = vmatprep.subr.mxu0 %v1002
        %6508 = vmatpush1.msra.mxu0 %v1001
        %6509 = vmatprep.subr.mxu0 %v1018
        %6510 = vmatpush1.msra.mxu0 %v1017
        %6511 = vmatprep.subr.mxu0 %v1034
        %6512 = vmatpush1.msra.mxu0 %v1033
        %6513 = vmatprep.subr.mxu0 %v1050
        %6514 = vmatpush1.msra.mxu0 %v1049
        %6515 = vmatprep.subr.mxu0 %v1066
        %6516 = vmatpush1.msra.mxu0 %v1065
        %6517 = vmatprep.subr.mxu0 %v1082
        %6518 = vmatpush1.msra.mxu0 %v1081
        %6519 = vmatprep.subr.mxu0 %v1098
        %6520 = vmatpush1.msra.mxu0 %v1097
        %6521 = vmatprep.subr.mxu0 %v1114
        %6522 = vmatpush1.msra.mxu0 %v1113
        %6523 = vmatprep.subr.mxu0 %v1130
        %6524 = vmatpush1.msra.mxu0 %v1129
        %6525 = vmatprep.subr.mxu0 %v1146
        %6526 = vmatpush1.msra.mxu0 %v1145
        %6527 = vmatprep.subr.mxu0 %v1162
        %6528 = vmatpush1.msra.mxu0 %v1161
        %6529 = vmatprep.subr.mxu0 %v1178
        %6530 = vmatpush1.msra.mxu0 %v1177
        %6531 = vmatprep.subr.mxu0 %v1194
        %6532 = vmatpush1.msra.mxu0 %v1193
        %6533 = vmatprep.subr.mxu0 %v1210
        %6534 = vmatpush1.msra.mxu0 %v1209
        %6535 = vmatprep.subr.mxu0 %v1226
        %6536 = vmatpush1.msra.mxu0 %v1225
        %6537 = vmatprep.subr.mxu0 %v1242
        %6538 = vmatpush1.msra.mxu0 %v1241
        %6539 = vmatprep.subr.mxu0 %v1258
        %6540 = vmatpush1.msra.mxu0 %v1257
        %6541 = vmatprep.subr.mxu0 %v1274
        %6542 = vmatpush1.msra.mxu0 %v1273
        %6543 = vmatprep.subr.mxu0 %v1290
        %6544 = vmatpush1.msra.mxu0 %v1289
        %6545 = vmatprep.subr.mxu0 %v1306
        %6546 = vmatpush1.msra.mxu0 %v1305
        %6547 = vmatprep.subr.mxu0 %v1322
        %6548 = vmatpush1.msra.mxu0 %v1321
        %6549 = vmatprep.subr.mxu0 %v1338
        %6550 = vmatpush1.msra.mxu0 %v1337
        %6551 = vmatprep.subr.mxu0 %v1354
        %6552 = vmatpush1.msra.mxu0 %v1353
        %6553 = vmatprep.subr.mxu0 %v1370
        %6554 = vmatpush1.msra.mxu0 %v1369
        %6555 = vmatprep.mubr.f32.mxu0 %v340
        %6556 = vmatmul.mubr.f32.gmra.mrb[0].mxu0 %v339
        %v6557 = vpop.f32.mrb[0].mxu0
        %v6558 = vadd.f32 %v6487, %v6557
        %v6559 = vpop.f32.mrb[0].mxu0
        %v6560 = vadd.f32 %v6489, %v6559
        %6561 = vdwg.mxu0
        %6562 = vmatprep.subr.mxu0 %v1386
        %6563 = vmatpush1.msra.mxu0 %v1385
        %6564 = vmatprep.subr.mxu0 %v1402
        %6565 = vmatpush1.msra.mxu0 %v1401
        %6566 = vmatprep.subr.mxu0 %v1418
        %6567 = vmatpush1.msra.mxu0 %v1417
        %6568 = vmatprep.subr.mxu0 %v1434
        %6569 = vmatpush1.msra.mxu0 %v1433
        %6570 = vmatprep.subr.mxu0 %v1450
        %6571 = vmatpush1.msra.mxu0 %v1449
        %6572 = vmatprep.subr.mxu0 %v1466
        %6573 = vmatpush1.msra.mxu0 %v1465
        %6574 = vmatprep.subr.mxu0 %v1482
        %6575 = vmatpush1.msra.mxu0 %v1481
        %6576 = vmatprep.subr.mxu0 %v1498
        %6577 = vmatpush1.msra.mxu0 %v1497
        %6578 = vmatprep.subr.mxu0 %v1514
        %6579 = vmatpush1.msra.mxu0 %v1513
        %6580 = vmatprep.subr.mxu0 %v1530
        %6581 = vmatpush1.msra.mxu0 %v1529
        %6582 = vmatprep.subr.mxu0 %v1546
        %6583 = vmatpush1.msra.mxu0 %v1545
        %6584 = vmatprep.subr.mxu0 %v1562
        %6585 = vmatpush1.msra.mxu0 %v1561
        %6586 = vmatprep.subr.mxu0 %v1578
        %6587 = vmatpush1.msra.mxu0 %v1577
        %6588 = vmatprep.subr.mxu0 %v1594
        %6589 = vmatpush1.msra.mxu0 %v1593
        %6590 = vmatprep.subr.mxu0 %v1610
        %6591 = vmatpush1.msra.mxu0 %v1609
        %6592 = vmatprep.subr.mxu0 %v1626
        %6593 = vmatpush1.msra.mxu0 %v1625
        %6594 = vmatprep.subr.mxu0 %v1642
        %6595 = vmatpush1.msra.mxu0 %v1641
        %6596 = vmatprep.subr.mxu0 %v1658
        %6597 = vmatpush1.msra.mxu0 %v1657
        %6598 = vmatprep.subr.mxu0 %v1674
        %6599 = vmatpush1.msra.mxu0 %v1673
        %6600 = vmatprep.subr.mxu0 %v1690
        %6601 = vmatpush1.msra.mxu0 %v1689
        %6602 = vmatprep.subr.mxu0 %v1706
        %6603 = vmatpush1.msra.mxu0 %v1705
        %6604 = vmatprep.subr.mxu0 %v1722
        %6605 = vmatpush1.msra.mxu0 %v1721
        %6606 = vmatprep.subr.mxu0 %v1738
        %6607 = vmatpush1.msra.mxu0 %v1737
        %6608 = vmatprep.subr.mxu0 %v1754
        %6609 = vmatpush1.msra.mxu0 %v1753
        %6610 = vmatprep.subr.mxu0 %v1770
        %6611 = vmatpush1.msra.mxu0 %v1769
        %6612 = vmatprep.subr.mxu0 %v1786
        %6613 = vmatpush1.msra.mxu0 %v1785
        %6614 = vmatprep.subr.mxu0 %v1802
        %6615 = vmatpush1.msra.mxu0 %v1801
        %6616 = vmatprep.subr.mxu0 %v1818
        %6617 = vmatpush1.msra.mxu0 %v1817
        %6618 = vmatprep.subr.mxu0 %v1834
        %6619 = vmatpush1.msra.mxu0 %v1833
        %6620 = vmatprep.subr.mxu0 %v1850
        %6621 = vmatpush1.msra.mxu0 %v1849
        %6622 = vmatprep.subr.mxu0 %v1866
        %6623 = vmatpush1.msra.mxu0 %v1865
        %6624 = vmatprep.subr.mxu0 %v1882
        %6625 = vmatpush1.msra.mxu0 %v1881
        %6626 = vmatprep.mubr.f32.mxu0 %v342
        %6627 = vmatmul.mubr.f32.gmra.mrb[0].mxu0 %v341
        %v6628 = vpop.f32.mrb[0].mxu0
        %v6629 = vadd.f32 %v6558, %v6628
        %v6630 = vpop.f32.mrb[0].mxu0
        %v6631 = vadd.f32 %v6560, %v6630
        %6632 = vdwg.mxu0
        %6633 = vmatprep.subr.mxu0 %v1898
        %6634 = vmatpush1.msra.mxu0 %v1897
        %6635 = vmatprep.subr.mxu0 %v1914
        %6636 = vmatpush1.msra.mxu0 %v1913
        %6637 = vmatprep.subr.mxu0 %v1930
        %6638 = vmatpush1.msra.mxu0 %v1929
        %6639 = vmatprep.subr.mxu0 %v1946
        %6640 = vmatpush1.msra.mxu0 %v1945
        %6641 = vmatprep.subr.mxu0 %v1962
        %6642 = vmatpush1.msra.mxu0 %v1961
        %6643 = vmatprep.subr.mxu0 %v1978
        %6644 = vmatpush1.msra.mxu0 %v1977
        %6645 = vmatprep.subr.mxu0 %v1994
        %6646 = vmatpush1.msra.mxu0 %v1993
        %6647 = vmatprep.subr.mxu0 %v2010
        %6648 = vmatpush1.msra.mxu0 %v2009
        %6649 = vmatprep.subr.mxu0 %v2026
        %6650 = vmatpush1.msra.mxu0 %v2025
        %6651 = vmatprep.subr.mxu0 %v2042
        %6652 = vmatpush1.msra.mxu0 %v2041
        %6653 = vmatprep.subr.mxu0 %v2058
        %6654 = vmatpush1.msra.mxu0 %v2057
        %6655 = vmatprep.subr.mxu0 %v2074
        %6656 = vmatpush1.msra.mxu0 %v2073
        %6657 = vmatprep.subr.mxu0 %v2090
        %6658 = vmatpush1.msra.mxu0 %v2089
        %6659 = vmatprep.subr.mxu0 %v2106
        %6660 = vmatpush1.msra.mxu0 %v2105
        %6661 = vmatprep.subr.mxu0 %v2122
        %6662 = vmatpush1.msra.mxu0 %v2121
        %6663 = vmatprep.subr.mxu0 %v2138
        %6664 = vmatpush1.msra.mxu0 %v2137
        %6665 = vmatprep.subr.mxu0 %v2154
        %6666 = vmatpush1.msra.mxu0 %v2153
        %6667 = vmatprep.subr.mxu0 %v2170
        %6668 = vmatpush1.msra.mxu0 %v2169
        %6669 = vmatprep.subr.mxu0 %v2186
        %6670 = vmatpush1.msra.mxu0 %v2185
        %6671 = vmatprep.subr.mxu0 %v2202
        %6672 = vmatpush1.msra.mxu0 %v2201
        %6673 = vmatprep.subr.mxu0 %v2218
        %6674 = vmatpush1.msra.mxu0 %v2217
        %6675 = vmatprep.subr.mxu0 %v2234
        %6676 = vmatpush1.msra.mxu0 %v2233
        %6677 = vmatprep.subr.mxu0 %v2250
        %6678 = vmatpush1.msra.mxu0 %v2249
        %6679 = vmatprep.subr.mxu0 %v2266
        %6680 = vmatpush1.msra.mxu0 %v2265
        %6681 = vmatprep.subr.mxu0 %v2282
        %6682 = vmatpush1.msra.mxu0 %v2281
        %6683 = vmatprep.subr.mxu0 %v2298
        %6684 = vmatpush1.msra.mxu0 %v2297
        %6685 = vmatprep.subr.mxu0 %v2314
        %6686 = vmatpush1.msra.mxu0 %v2313
        %6687 = vmatprep.subr.mxu0 %v2330
        %6688 = vmatpush1.msra.mxu0 %v2329
        %6689 = vmatprep.subr.mxu0 %v2346
        %6690 = vmatpush1.msra.mxu0 %v2345
        %6691 = vmatprep.subr.mxu0 %v2362
        %6692 = vmatpush1.msra.mxu0 %v2361
        %6693 = vmatprep.subr.mxu0 %v2378
        %6694 = vmatpush1.msra.mxu0 %v2377
        %6695 = vmatprep.subr.mxu0 %v2394
        %6696 = vmatpush1.msra.mxu0 %v2393
        %6697 = vmatprep.mubr.f32.mxu0 %v344
        %6698 = vmatmul.mubr.f32.gmra.mrb[0].mxu0 %v343
        %v6699 = vpop.f32.mrb[0].mxu0
        %v6700 = vadd.f32 %v6629, %v6699
        %v6701 = vpop.f32.mrb[0].mxu0
        %v6702 = vadd.f32 %v6631, %v6701
        %6703 = vdwg.mxu0
        %6704 = vmatprep.subr.mxu0 %v2410
        %6705 = vmatpush1.msra.mxu0 %v2409
        %6706 = vmatprep.subr.mxu0 %v2426
        %6707 = vmatpush1.msra.mxu0 %v2425
        %6708 = vmatprep.subr.mxu0 %v2442
        %6709 = vmatpush1.msra.mxu0 %v2441
        %6710 = vmatprep.subr.mxu0 %v2458
        %6711 = vmatpush1.msra.mxu0 %v2457
        %6712 = vmatprep.subr.mxu0 %v2474
        %6713 = vmatpush1.msra.mxu0 %v2473
        %6714 = vmatprep.subr.mxu0 %v2490
        %6715 = vmatpush1.msra.mxu0 %v2489
        %6716 = vmatprep.subr.mxu0 %v2506
        %6717 = vmatpush1.msra.mxu0 %v2505
        %6718 = vmatprep.subr.mxu0 %v2522
        %6719 = vmatpush1.msra.mxu0 %v2521
        %6720 = vmatprep.subr.mxu0 %v2538
        %6721 = vmatpush1.msra.mxu0 %v2537
        %6722 = vmatprep.subr.mxu0 %v2554
        %6723 = vmatpush1.msra.mxu0 %v2553
        %6724 = vmatprep.subr.mxu0 %v2570
        %6725 = vmatpush1.msra.mxu0 %v2569
        %6726 = vmatprep.subr.mxu0 %v2586
        %6727 = vmatpush1.msra.mxu0 %v2585
        %6728 = vmatprep.subr.mxu0 %v2602
        %6729 = vmatpush1.msra.mxu0 %v2601
        %6730 = vmatprep.subr.mxu0 %v2618
        %6731 = vmatpush1.msra.mxu0 %v2617
        %6732 = vmatprep.subr.mxu0 %v2634
        %6733 = vmatpush1.msra.mxu0 %v2633
        %6734 = vmatprep.subr.mxu0 %v2650
        %6735 = vmatpush1.msra.mxu0 %v2649
        %6736 = vmatprep.subr.mxu0 %v2666
        %6737 = vmatpush1.msra.mxu0 %v2665
        %6738 = vmatprep.subr.mxu0 %v2682
        %6739 = vmatpush1.msra.mxu0 %v2681
        %6740 = vmatprep.subr.mxu0 %v2698
        %6741 = vmatpush1.msra.mxu0 %v2697
        %6742 = vmatprep.subr.mxu0 %v2714
        %6743 = vmatpush1.msra.mxu0 %v2713
        %6744 = vmatprep.subr.mxu0 %v2730
        %6745 = vmatpush1.msra.mxu0 %v2729
        %6746 = vmatprep.subr.mxu0 %v2746
        %6747 = vmatpush1.msra.mxu0 %v2745
        %6748 = vmatprep.subr.mxu0 %v2762
        %6749 = vmatpush1.msra.mxu0 %v2761
        %6750 = vmatprep.subr.mxu0 %v2778
        %6751 = vmatpush1.msra.mxu0 %v2777
        %6752 = vmatprep.subr.mxu0 %v2794
        %6753 = vmatpush1.msra.mxu0 %v2793
        %6754 = vmatprep.subr.mxu0 %v2810
        %6755 = vmatpush1.msra.mxu0 %v2809
        %6756 = vmatprep.subr.mxu0 %v2826
        %6757 = vmatpush1.msra.mxu0 %v2825
        %6758 = vmatprep.subr.mxu0 %v2842
        %6759 = vmatpush1.msra.mxu0 %v2841
        %6760 = vmatprep.subr.mxu0 %v2858
        %6761 = vmatpush1.msra.mxu0 %v2857
        %6762 = vmatprep.subr.mxu0 %v2874
        %6763 = vmatpush1.msra.mxu0 %v2873
        %6764 = vmatprep.subr.mxu0 %v2890
        %6765 = vmatpush1.msra.mxu0 %v2889
        %6766 = vmatprep.subr.mxu0 %v2906
        %6767 = vmatpush1.msra.mxu0 %v2905
        %6768 = vmatprep.mubr.f32.mxu0 %v346
        %6769 = vmatmul.mubr.f32.gmra.mrb[0].mxu0 %v345
        %v6770 = vpop.f32.mrb[0].mxu0
        %v6771 = vadd.f32 %v6700, %v6770
        %v6772 = vpop.f32.mrb[0].mxu0
        %v6773 = vadd.f32 %v6702, %v6772
        %6774 = vdwg.mxu0
        %6775 = vmatprep.subr.mxu0 %v2922
        %6776 = vmatpush1.msra.mxu0 %v2921
        %6777 = vmatprep.subr.mxu0 %v2938
        %6778 = vmatpush1.msra.mxu0 %v2937
        %6779 = vmatprep.subr.mxu0 %v2954
        %6780 = vmatpush1.msra.mxu0 %v2953
        %6781 = vmatprep.subr.mxu0 %v2970
        %6782 = vmatpush1.msra.mxu0 %v2969
        %6783 = vmatprep.subr.mxu0 %v2986
        %6784 = vmatpush1.msra.mxu0 %v2985
        %6785 = vmatprep.subr.mxu0 %v3002
        %6786 = vmatpush1.msra.mxu0 %v3001
        %6787 = vmatprep.subr.mxu0 %v3018
        %6788 = vmatpush1.msra.mxu0 %v3017
        %6789 = vmatprep.subr.mxu0 %v3034
        %6790 = vmatpush1.msra.mxu0 %v3033
        %6791 = vmatprep.subr.mxu0 %v3050
        %6792 = vmatpush1.msra.mxu0 %v3049
        %6793 = vmatprep.subr.mxu0 %v3066
        %6794 = vmatpush1.msra.mxu0 %v3065
        %6795 = vmatprep.subr.mxu0 %v3082
        %6796 = vmatpush1.msra.mxu0 %v3081
        %6797 = vmatprep.subr.mxu0 %v3098
        %6798 = vmatpush1.msra.mxu0 %v3097
        %6799 = vmatprep.subr.mxu0 %v3114
        %6800 = vmatpush1.msra.mxu0 %v3113
        %6801 = vmatprep.subr.mxu0 %v3130
        %6802 = vmatpush1.msra.mxu0 %v3129
        %6803 = vmatprep.subr.mxu0 %v3146
        %6804 = vmatpush1.msra.mxu0 %v3145
        %6805 = vmatprep.subr.mxu0 %v3162
        %6806 = vmatpush1.msra.mxu0 %v3161
        %6807 = vmatprep.subr.mxu0 %v3178
        %6808 = vmatpush1.msra.mxu0 %v3177
        %6809 = vmatprep.subr.mxu0 %v3194
        %6810 = vmatpush1.msra.mxu0 %v3193
        %6811 = vmatprep.subr.mxu0 %v3210
        %6812 = vmatpush1.msra.mxu0 %v3209
        %6813 = vmatprep.subr.mxu0 %v3226
        %6814 = vmatpush1.msra.mxu0 %v3225
        %6815 = vmatprep.subr.mxu0 %v3242
        %6816 = vmatpush1.msra.mxu0 %v3241
        %6817 = vmatprep.subr.mxu0 %v3258
        %6818 = vmatpush1.msra.mxu0 %v3257
        %6819 = vmatprep.subr.mxu0 %v3274
        %6820 = vmatpush1.msra.mxu0 %v3273
        %6821 = vmatprep.subr.mxu0 %v3290
        %6822 = vmatpush1.msra.mxu0 %v3289
        %6823 = vmatprep.subr.mxu0 %v3306
        %6824 = vmatpush1.msra.mxu0 %v3305
        %6825 = vmatprep.subr.mxu0 %v3322
        %6826 = vmatpush1.msra.mxu0 %v3321
        %6827 = vmatprep.subr.mxu0 %v3338
        %6828 = vmatpush1.msra.mxu0 %v3337
        %6829 = vmatprep.subr.mxu0 %v3354
        %6830 = vmatpush1.msra.mxu0 %v3353
        %6831 = vmatprep.subr.mxu0 %v3370
        %6832 = vmatpush1.msra.mxu0 %v3369
        %6833 = vmatprep.subr.mxu0 %v3386
        %6834 = vmatpush1.msra.mxu0 %v3385
        %6835 = vmatprep.subr.mxu0 %v3402
        %6836 = vmatpush1.msra.mxu0 %v3401
        %6837 = vmatprep.subr.mxu0 %v3418
        %6838 = vmatpush1.msra.mxu0 %v3417
        %6839 = vmatprep.mubr.f32.mxu0 %v348
        %6840 = vmatmul.mubr.f32.gmra.mrb[0].mxu0 %v347
        %v6841 = vpop.f32.mrb[0].mxu0
        %v6842 = vadd.f32 %v6771, %v6841
        %v6843 = vpop.f32.mrb[0].mxu0
        %v6844 = vadd.f32 %v6773, %v6843
        %6845 = vdwg.mxu0
        %6846 = vmatprep.subr.mxu0 %v3434
        %6847 = vmatpush1.msra.mxu0 %v3433
        %6848 = vmatprep.subr.mxu0 %v3450
        %6849 = vmatpush1.msra.mxu0 %v3449
        %6850 = vmatprep.subr.mxu0 %v3466
        %6851 = vmatpush1.msra.mxu0 %v3465
        %6852 = vmatprep.subr.mxu0 %v3482
        %6853 = vmatpush1.msra.mxu0 %v3481
        %6854 = vmatprep.subr.mxu0 %v3498
        %6855 = vmatpush1.msra.mxu0 %v3497
        %6856 = vmatprep.subr.mxu0 %v3514
        %6857 = vmatpush1.msra.mxu0 %v3513
        %6858 = vmatprep.subr.mxu0 %v3530
        %6859 = vmatpush1.msra.mxu0 %v3529
        %6860 = vmatprep.subr.mxu0 %v3546
        %6861 = vmatpush1.msra.mxu0 %v3545
        %6862 = vmatprep.subr.mxu0 %v3562
        %6863 = vmatpush1.msra.mxu0 %v3561
        %6864 = vmatprep.subr.mxu0 %v3578
        %6865 = vmatpush1.msra.mxu0 %v3577
        %6866 = vmatprep.subr.mxu0 %v3594
        %6867 = vmatpush1.msra.mxu0 %v3593
        %6868 = vmatprep.subr.mxu0 %v3610
        %6869 = vmatpush1.msra.mxu0 %v3609
        %6870 = vmatprep.subr.mxu0 %v3626
        %6871 = vmatpush1.msra.mxu0 %v3625
        %6872 = vmatprep.subr.mxu0 %v3642
        %6873 = vmatpush1.msra.mxu0 %v3641
        %6874 = vmatprep.subr.mxu0 %v3658
        %6875 = vmatpush1.msra.mxu0 %v3657
        %6876 = vmatprep.subr.mxu0 %v3674
        %6877 = vmatpush1.msra.mxu0 %v3673
        %6878 = vmatprep.subr.mxu0 %v3690
        %6879 = vmatpush1.msra.mxu0 %v3689
        %6880 = vmatprep.subr.mxu0 %v3706
        %6881 = vmatpush1.msra.mxu0 %v3705
        %6882 = vmatprep.subr.mxu0 %v3722
        %6883 = vmatpush1.msra.mxu0 %v3721
        %6884 = vmatprep.subr.mxu0 %v3738
        %6885 = vmatpush1.msra.mxu0 %v3737
        %6886 = vmatprep.subr.mxu0 %v3754
        %6887 = vmatpush1.msra.mxu0 %v3753
        %6888 = vmatprep.subr.mxu0 %v3770
        %6889 = vmatpush1.msra.mxu0 %v3769
        %6890 = vmatprep.subr.mxu0 %v3786
        %6891 = vmatpush1.msra.mxu0 %v3785
        %6892 = vmatprep.subr.mxu0 %v3802
        %6893 = vmatpush1.msra.mxu0 %v3801
        %6894 = vmatprep.subr.mxu0 %v3818
        %6895 = vmatpush1.msra.mxu0 %v3817
        %6896 = vmatprep.subr.mxu0 %v3834
        %6897 = vmatpush1.msra.mxu0 %v3833
        %6898 = vmatprep.subr.mxu0 %v3850
        %6899 = vmatpush1.msra.mxu0 %v3849
        %6900 = vmatprep.subr.mxu0 %v3866
        %6901 = vmatpush1.msra.mxu0 %v3865
        %6902 = vmatprep.subr.mxu0 %v3882
        %6903 = vmatpush1.msra.mxu0 %v3881
        %6904 = vmatprep.subr.mxu0 %v3898
        %6905 = vmatpush1.msra.mxu0 %v3897
        %6906 = vmatprep.subr.mxu0 %v3914
        %6907 = vmatpush1.msra.mxu0 %v3913
        %6908 = vmatprep.subr.mxu0 %v3930
        %6909 = vmatpush1.msra.mxu0 %v3929
        %6910 = vmatprep.mubr.f32.mxu0 %v350
        %6911 = vmatmul.mubr.f32.gmra.mrb[0].mxu0 %v349
        %v6912 = vpop.f32.mrb[0].mxu0
        %v6913 = vadd.f32 %v6842, %v6912
        %v6914 = vpop.f32.mrb[0].mxu0
        %v6915 = vadd.f32 %v6844, %v6914
        %6916 = vdwg.mxu0
        %6917 = vmatprep.subr.mxu0 %v364
        %6918 = vmatpush1.msra.mxu0 %v363
        %6919 = vmatprep.subr.mxu0 %v380
        %6920 = vmatpush1.msra.mxu0 %v379
        %6921 = vmatprep.subr.mxu0 %v396
        %6922 = vmatpush1.msra.mxu0 %v395
        %6923 = vmatprep.subr.mxu0 %v412
        %6924 = vmatpush1.msra.mxu0 %v411
        %6925 = vmatprep.subr.mxu0 %v428
        %6926 = vmatpush1.msra.mxu0 %v427
        %6927 = vmatprep.subr.mxu0 %v444
        %6928 = vmatpush1.msra.mxu0 %v443
        %6929 = vmatprep.subr.mxu0 %v460
        %6930 = vmatpush1.msra.mxu0 %v459
        %6931 = vmatprep.subr.mxu0 %v476
        %6932 = vmatpush1.msra.mxu0 %v475
        %6933 = vmatprep.subr.mxu0 %v492
        %6934 = vmatpush1.msra.mxu0 %v491
        %6935 = vmatprep.subr.mxu0 %v508
        %6936 = vmatpush1.msra.mxu0 %v507
        %6937 = vmatprep.subr.mxu0 %v524
        %6938 = vmatpush1.msra.mxu0 %v523
        %6939 = vmatprep.subr.mxu0 %v540
        %6940 = vmatpush1.msra.mxu0 %v539
        %6941 = vmatprep.subr.mxu0 %v556
        %6942 = vmatpush1.msra.mxu0 %v555
        %6943 = vmatprep.subr.mxu0 %v572
        %6944 = vmatpush1.msra.mxu0 %v571
        %6945 = vmatprep.subr.mxu0 %v588
        %6946 = vmatpush1.msra.mxu0 %v587
        %6947 = vmatprep.subr.mxu0 %v604
        %6948 = vmatpush1.msra.mxu0 %v603
        %6949 = vmatprep.subr.mxu0 %v620
        %6950 = vmatpush1.msra.mxu0 %v619
        %6951 = vmatprep.subr.mxu0 %v636
        %6952 = vmatpush1.msra.mxu0 %v635
        %6953 = vmatprep.subr.mxu0 %v652
        %6954 = vmatpush1.msra.mxu0 %v651
        %6955 = vmatprep.subr.mxu0 %v668
        %6956 = vmatpush1.msra.mxu0 %v667
        %6957 = vmatprep.subr.mxu0 %v684
        %6958 = vmatpush1.msra.mxu0 %v683
        %6959 = vmatprep.subr.mxu0 %v700
        %6960 = vmatpush1.msra.mxu0 %v699
        %6961 = vmatprep.subr.mxu0 %v716
        %6962 = vmatpush1.msra.mxu0 %v715
        %6963 = vmatprep.subr.mxu0 %v732
        %6964 = vmatpush1.msra.mxu0 %v731
        %6965 = vmatprep.subr.mxu0 %v748
        %6966 = vmatpush1.msra.mxu0 %v747
        %6967 = vmatprep.subr.mxu0 %v764
        %6968 = vmatpush1.msra.mxu0 %v763
        %6969 = vmatprep.subr.mxu0 %v780
        %6970 = vmatpush1.msra.mxu0 %v779
        %6971 = vmatprep.subr.mxu0 %v796
        %6972 = vmatpush1.msra.mxu0 %v795
        %6973 = vmatprep.subr.mxu0 %v812
        %6974 = vmatpush1.msra.mxu0 %v811
        %6975 = vmatprep.subr.mxu0 %v828
        %6976 = vmatpush1.msra.mxu0 %v827
        %6977 = vmatprep.subr.mxu0 %v844
        %6978 = vmatpush1.msra.mxu0 %v843
        %6979 = vmatprep.subr.mxu0 %v860
        %6980 = vmatpush1.msra.mxu0 %v859
        %6981 = vmatprep.mubr.f32.mxu0 %v338
        %6982 = vmatmul.mubr.f32.gmra.mrb[0].mxu0 %v337
        %v6983 = vpop.f32.mrb[0].mxu0
        %v6984 = vadd.f32 0.0, %v6983
        %v6985 = vpop.f32.mrb[0].mxu0
        %v6986 = vadd.f32 0.0, %v6985
        %6987 = vdwg.mxu0
        %6988 = vmatprep.subr.mxu0 %v876
        %6989 = vmatpush1.msra.mxu0 %v875
        %6990 = vmatprep.subr.mxu0 %v892
        %6991 = vmatpush1.msra.mxu0 %v891
        %6992 = vmatprep.subr.mxu0 %v908
        %6993 = vmatpush1.msra.mxu0 %v907
        %6994 = vmatprep.subr.mxu0 %v924
        %6995 = vmatpush1.msra.mxu0 %v923
        %6996 = vmatprep.subr.mxu0 %v940
        %6997 = vmatpush1.msra.mxu0 %v939
        %6998 = vmatprep.subr.mxu0 %v956
        %6999 = vmatpush1.msra.mxu0 %v955
        %7000 = vmatprep.subr.mxu0 %v972
        %7001 = vmatpush1.msra.mxu0 %v971
        %7002 = vmatprep.subr.mxu0 %v988
        %7003 = vmatpush1.msra.mxu0 %v987
        %7004 = vmatprep.subr.mxu0 %v1004
        %7005 = vmatpush1.msra.mxu0 %v1003
        %7006 = vmatprep.subr.mxu0 %v1020
        %7007 = vmatpush1.msra.mxu0 %v1019
        %7008 = vmatprep.subr.mxu0 %v1036
        %7009 = vmatpush1.msra.mxu0 %v1035
        %7010 = vmatprep.subr.mxu0 %v1052
        %7011 = vmatpush1.msra.mxu0 %v1051
        %7012 = vmatprep.subr.mxu0 %v1068
        %7013 = vmatpush1.msra.mxu0 %v1067
        %7014 = vmatprep.subr.mxu0 %v1084
        %7015 = vmatpush1.msra.mxu0 %v1083
        %7016 = vmatprep.subr.mxu0 %v1100
        %7017 = vmatpush1.msra.mxu0 %v1099
        %7018 = vmatprep.subr.mxu0 %v1116
        %7019 = vmatpush1.msra.mxu0 %v1115
        %7020 = vmatprep.subr.mxu0 %v1132
        %7021 = vmatpush1.msra.mxu0 %v1131
        %7022 = vmatprep.subr.mxu0 %v1148
        %7023 = vmatpush1.msra.mxu0 %v1147
        %7024 = vmatprep.subr.mxu0 %v1164
        %7025 = vmatpush1.msra.mxu0 %v1163
        %7026 = vmatprep.subr.mxu0 %v1180
        %7027 = vmatpush1.msra.mxu0 %v1179
        %7028 = vmatprep.subr.mxu0 %v1196
        %7029 = vmatpush1.msra.mxu0 %v1195
        %7030 = vmatprep.subr.mxu0 %v1212
        %7031 = vmatpush1.msra.mxu0 %v1211
        %7032 = vmatprep.subr.mxu0 %v1228
        %7033 = vmatpush1.msra.mxu0 %v1227
        %7034 = vmatprep.subr.mxu0 %v1244
        %7035 = vmatpush1.msra.mxu0 %v1243
        %7036 = vmatprep.subr.mxu0 %v1260
        %7037 = vmatpush1.msra.mxu0 %v1259
        %7038 = vmatprep.subr.mxu0 %v1276
        %7039 = vmatpush1.msra.mxu0 %v1275
        %7040 = vmatprep.subr.mxu0 %v1292
        %7041 = vmatpush1.msra.mxu0 %v1291
        %7042 = vmatprep.subr.mxu0 %v1308
        %7043 = vmatpush1.msra.mxu0 %v1307
        %7044 = vmatprep.subr.mxu0 %v1324
        %7045 = vmatpush1.msra.mxu0 %v1323
        %7046 = vmatprep.subr.mxu0 %v1340
        %7047 = vmatpush1.msra.mxu0 %v1339
        %7048 = vmatprep.subr.mxu0 %v1356
        %7049 = vmatpush1.msra.mxu0 %v1355
        %7050 = vmatprep.subr.mxu0 %v1372
        %7051 = vmatpush1.msra.mxu0 %v1371
        %7052 = vmatprep.mubr.f32.mxu0 %v340
        %7053 = vmatmul.mubr.f32.gmra.mrb[0].mxu0 %v339
        %v7054 = vpop.f32.mrb[0].mxu0
        %v7055 = vadd.f32 %v6984, %v7054
        %v7056 = vpop.f32.mrb[0].mxu0
        %v7057 = vadd.f32 %v6986, %v7056
        %7058 = vdwg.mxu0
        %7059 = vmatprep.subr.mxu0 %v1388
        %7060 = vmatpush1.msra.mxu0 %v1387
        %7061 = vmatprep.subr.mxu0 %v1404
        %7062 = vmatpush1.msra.mxu0 %v1403
        %7063 = vmatprep.subr.mxu0 %v1420
        %7064 = vmatpush1.msra.mxu0 %v1419
        %7065 = vmatprep.subr.mxu0 %v1436
        %7066 = vmatpush1.msra.mxu0 %v1435
        %7067 = vmatprep.subr.mxu0 %v1452
        %7068 = vmatpush1.msra.mxu0 %v1451
        %7069 = vmatprep.subr.mxu0 %v1468
        %7070 = vmatpush1.msra.mxu0 %v1467
        %7071 = vmatprep.subr.mxu0 %v1484
        %7072 = vmatpush1.msra.mxu0 %v1483
        %7073 = vmatprep.subr.mxu0 %v1500
        %7074 = vmatpush1.msra.mxu0 %v1499
        %7075 = vmatprep.subr.mxu0 %v1516
        %7076 = vmatpush1.msra.mxu0 %v1515
        %7077 = vmatprep.subr.mxu0 %v1532
        %7078 = vmatpush1.msra.mxu0 %v1531
        %7079 = vmatprep.subr.mxu0 %v1548
        %7080 = vmatpush1.msra.mxu0 %v1547
        %7081 = vmatprep.subr.mxu0 %v1564
        %7082 = vmatpush1.msra.mxu0 %v1563
        %7083 = vmatprep.subr.mxu0 %v1580
        %7084 = vmatpush1.msra.mxu0 %v1579
        %7085 = vmatprep.subr.mxu0 %v1596
        %7086 = vmatpush1.msra.mxu0 %v1595
        %7087 = vmatprep.subr.mxu0 %v1612
        %7088 = vmatpush1.msra.mxu0 %v1611
        %7089 = vmatprep.subr.mxu0 %v1628
        %7090 = vmatpush1.msra.mxu0 %v1627
        %7091 = vmatprep.subr.mxu0 %v1644
        %7092 = vmatpush1.msra.mxu0 %v1643
        %7093 = vmatprep.subr.mxu0 %v1660
        %7094 = vmatpush1.msra.mxu0 %v1659
        %7095 = vmatprep.subr.mxu0 %v1676
        %7096 = vmatpush1.msra.mxu0 %v1675
        %7097 = vmatprep.subr.mxu0 %v1692
        %7098 = vmatpush1.msra.mxu0 %v1691
        %7099 = vmatprep.subr.mxu0 %v1708
        %7100 = vmatpush1.msra.mxu0 %v1707
        %7101 = vmatprep.subr.mxu0 %v1724
        %7102 = vmatpush1.msra.mxu0 %v1723
        %7103 = vmatprep.subr.mxu0 %v1740
        %7104 = vmatpush1.msra.mxu0 %v1739
        %7105 = vmatprep.subr.mxu0 %v1756
        %7106 = vmatpush1.msra.mxu0 %v1755
        %7107 = vmatprep.subr.mxu0 %v1772
        %7108 = vmatpush1.msra.mxu0 %v1771
        %7109 = vmatprep.subr.mxu0 %v1788
        %7110 = vmatpush1.msra.mxu0 %v1787
        %7111 = vmatprep.subr.mxu0 %v1804
        %7112 = vmatpush1.msra.mxu0 %v1803
        %7113 = vmatprep.subr.mxu0 %v1820
        %7114 = vmatpush1.msra.mxu0 %v1819
        %7115 = vmatprep.subr.mxu0 %v1836
        %7116 = vmatpush1.msra.mxu0 %v1835
        %7117 = vmatprep.subr.mxu0 %v1852
        %7118 = vmatpush1.msra.mxu0 %v1851
        %7119 = vmatprep.subr.mxu0 %v1868
        %7120 = vmatpush1.msra.mxu0 %v1867
        %7121 = vmatprep.subr.mxu0 %v1884
        %7122 = vmatpush1.msra.mxu0 %v1883
        %7123 = vmatprep.mubr.f32.mxu0 %v342
        %7124 = vmatmul.mubr.f32.gmra.mrb[0].mxu0 %v341
        %v7125 = vpop.f32.mrb[0].mxu0
        %v7126 = vadd.f32 %v7055, %v7125
        %v7127 = vpop.f32.mrb[0].mxu0
        %v7128 = vadd.f32 %v7057, %v7127
        %7129 = vdwg.mxu0
        %7130 = vmatprep.subr.mxu0 %v1900
        %7131 = vmatpush1.msra.mxu0 %v1899
        %7132 = vmatprep.subr.mxu0 %v1916
        %7133 = vmatpush1.msra.mxu0 %v1915
        %7134 = vmatprep.subr.mxu0 %v1932
        %7135 = vmatpush1.msra.mxu0 %v1931
        %7136 = vmatprep.subr.mxu0 %v1948
        %7137 = vmatpush1.msra.mxu0 %v1947
        %7138 = vmatprep.subr.mxu0 %v1964
        %7139 = vmatpush1.msra.mxu0 %v1963
        %7140 = vmatprep.subr.mxu0 %v1980
        %7141 = vmatpush1.msra.mxu0 %v1979
        %7142 = vmatprep.subr.mxu0 %v1996
        %7143 = vmatpush1.msra.mxu0 %v1995
        %7144 = vmatprep.subr.mxu0 %v2012
        %7145 = vmatpush1.msra.mxu0 %v2011
        %7146 = vmatprep.subr.mxu0 %v2028
        %7147 = vmatpush1.msra.mxu0 %v2027
        %7148 = vmatprep.subr.mxu0 %v2044
        %7149 = vmatpush1.msra.mxu0 %v2043
        %7150 = vmatprep.subr.mxu0 %v2060
        %7151 = vmatpush1.msra.mxu0 %v2059
        %7152 = vmatprep.subr.mxu0 %v2076
        %7153 = vmatpush1.msra.mxu0 %v2075
        %7154 = vmatprep.subr.mxu0 %v2092
        %7155 = vmatpush1.msra.mxu0 %v2091
        %7156 = vmatprep.subr.mxu0 %v2108
        %7157 = vmatpush1.msra.mxu0 %v2107
        %7158 = vmatprep.subr.mxu0 %v2124
        %7159 = vmatpush1.msra.mxu0 %v2123
        %7160 = vmatprep.subr.mxu0 %v2140
        %7161 = vmatpush1.msra.mxu0 %v2139
        %7162 = vmatprep.subr.mxu0 %v2156
        %7163 = vmatpush1.msra.mxu0 %v2155
        %7164 = vmatprep.subr.mxu0 %v2172
        %7165 = vmatpush1.msra.mxu0 %v2171
        %7166 = vmatprep.subr.mxu0 %v2188
        %7167 = vmatpush1.msra.mxu0 %v2187
        %7168 = vmatprep.subr.mxu0 %v2204
        %7169 = vmatpush1.msra.mxu0 %v2203
        %7170 = vmatprep.subr.mxu0 %v2220
        %7171 = vmatpush1.msra.mxu0 %v2219
        %7172 = vmatprep.subr.mxu0 %v2236
        %7173 = vmatpush1.msra.mxu0 %v2235
        %7174 = vmatprep.subr.mxu0 %v2252
        %7175 = vmatpush1.msra.mxu0 %v2251
        %7176 = vmatprep.subr.mxu0 %v2268
        %7177 = vmatpush1.msra.mxu0 %v2267
        %7178 = vmatprep.subr.mxu0 %v2284
        %7179 = vmatpush1.msra.mxu0 %v2283
        %7180 = vmatprep.subr.mxu0 %v2300
        %7181 = vmatpush1.msra.mxu0 %v2299
        %7182 = vmatprep.subr.mxu0 %v2316
        %7183 = vmatpush1.msra.mxu0 %v2315
        %7184 = vmatprep.subr.mxu0 %v2332
        %7185 = vmatpush1.msra.mxu0 %v2331
        %7186 = vmatprep.subr.mxu0 %v2348
        %7187 = vmatpush1.msra.mxu0 %v2347
        %7188 = vmatprep.subr.mxu0 %v2364
        %7189 = vmatpush1.msra.mxu0 %v2363
        %7190 = vmatprep.subr.mxu0 %v2380
        %7191 = vmatpush1.msra.mxu0 %v2379
        %7192 = vmatprep.subr.mxu0 %v2396
        %7193 = vmatpush1.msra.mxu0 %v2395
        %7194 = vmatprep.mubr.f32.mxu0 %v344
        %7195 = vmatmul.mubr.f32.gmra.mrb[0].mxu0 %v343
        %v7196 = vpop.f32.mrb[0].mxu0
        %v7197 = vadd.f32 %v7126, %v7196
        %v7198 = vpop.f32.mrb[0].mxu0
        %v7199 = vadd.f32 %v7128, %v7198
        %7200 = vdwg.mxu0
        %7201 = vmatprep.subr.mxu0 %v2412
        %7202 = vmatpush1.msra.mxu0 %v2411
        %7203 = vmatprep.subr.mxu0 %v2428
        %7204 = vmatpush1.msra.mxu0 %v2427
        %7205 = vmatprep.subr.mxu0 %v2444
        %7206 = vmatpush1.msra.mxu0 %v2443
        %7207 = vmatprep.subr.mxu0 %v2460
        %7208 = vmatpush1.msra.mxu0 %v2459
        %7209 = vmatprep.subr.mxu0 %v2476
        %7210 = vmatpush1.msra.mxu0 %v2475
        %7211 = vmatprep.subr.mxu0 %v2492
        %7212 = vmatpush1.msra.mxu0 %v2491
        %7213 = vmatprep.subr.mxu0 %v2508
        %7214 = vmatpush1.msra.mxu0 %v2507
        %7215 = vmatprep.subr.mxu0 %v2524
        %7216 = vmatpush1.msra.mxu0 %v2523
        %7217 = vmatprep.subr.mxu0 %v2540
        %7218 = vmatpush1.msra.mxu0 %v2539
        %7219 = vmatprep.subr.mxu0 %v2556
        %7220 = vmatpush1.msra.mxu0 %v2555
        %7221 = vmatprep.subr.mxu0 %v2572
        %7222 = vmatpush1.msra.mxu0 %v2571
        %7223 = vmatprep.subr.mxu0 %v2588
        %7224 = vmatpush1.msra.mxu0 %v2587
        %7225 = vmatprep.subr.mxu0 %v2604
        %7226 = vmatpush1.msra.mxu0 %v2603
        %7227 = vmatprep.subr.mxu0 %v2620
        %7228 = vmatpush1.msra.mxu0 %v2619
        %7229 = vmatprep.subr.mxu0 %v2636
        %7230 = vmatpush1.msra.mxu0 %v2635
        %7231 = vmatprep.subr.mxu0 %v2652
        %7232 = vmatpush1.msra.mxu0 %v2651
        %7233 = vmatprep.subr.mxu0 %v2668
        %7234 = vmatpush1.msra.mxu0 %v2667
        %7235 = vmatprep.subr.mxu0 %v2684
        %7236 = vmatpush1.msra.mxu0 %v2683
        %7237 = vmatprep.subr.mxu0 %v2700
        %7238 = vmatpush1.msra.mxu0 %v2699
        %7239 = vmatprep.subr.mxu0 %v2716
        %7240 = vmatpush1.msra.mxu0 %v2715
        %7241 = vmatprep.subr.mxu0 %v2732
        %7242 = vmatpush1.msra.mxu0 %v2731
        %7243 = vmatprep.subr.mxu0 %v2748
        %7244 = vmatpush1.msra.mxu0 %v2747
        %7245 = vmatprep.subr.mxu0 %v2764
        %7246 = vmatpush1.msra.mxu0 %v2763
        %7247 = vmatprep.subr.mxu0 %v2780
        %7248 = vmatpush1.msra.mxu0 %v2779
        %7249 = vmatprep.subr.mxu0 %v2796
        %7250 = vmatpush1.msra.mxu0 %v2795
        %7251 = vmatprep.subr.mxu0 %v2812
        %7252 = vmatpush1.msra.mxu0 %v2811
        %7253 = vmatprep.subr.mxu0 %v2828
        %7254 = vmatpush1.msra.mxu0 %v2827
        %7255 = vmatprep.subr.mxu0 %v2844
        %7256 = vmatpush1.msra.mxu0 %v2843
        %7257 = vmatprep.subr.mxu0 %v2860
        %7258 = vmatpush1.msra.mxu0 %v2859
        %7259 = vmatprep.subr.mxu0 %v2876
        %7260 = vmatpush1.msra.mxu0 %v2875
        %7261 = vmatprep.subr.mxu0 %v2892
        %7262 = vmatpush1.msra.mxu0 %v2891
        %7263 = vmatprep.subr.mxu0 %v2908
        %7264 = vmatpush1.msra.mxu0 %v2907
        %7265 = vmatprep.mubr.f32.mxu0 %v346
        %7266 = vmatmul.mubr.f32.gmra.mrb[0].mxu0 %v345
        %v7267 = vpop.f32.mrb[0].mxu0
        %v7268 = vadd.f32 %v7197, %v7267
        %v7269 = vpop.f32.mrb[0].mxu0
        %v7270 = vadd.f32 %v7199, %v7269
        %7271 = vdwg.mxu0
        %7272 = vmatprep.subr.mxu0 %v2924
        %7273 = vmatpush1.msra.mxu0 %v2923
        %7274 = vmatprep.subr.mxu0 %v2940
        %7275 = vmatpush1.msra.mxu0 %v2939
        %7276 = vmatprep.subr.mxu0 %v2956
        %7277 = vmatpush1.msra.mxu0 %v2955
        %7278 = vmatprep.subr.mxu0 %v2972
        %7279 = vmatpush1.msra.mxu0 %v2971
        %7280 = vmatprep.subr.mxu0 %v2988
        %7281 = vmatpush1.msra.mxu0 %v2987
        %7282 = vmatprep.subr.mxu0 %v3004
        %7283 = vmatpush1.msra.mxu0 %v3003
        %7284 = vmatprep.subr.mxu0 %v3020
        %7285 = vmatpush1.msra.mxu0 %v3019
        %7286 = vmatprep.subr.mxu0 %v3036
        %7287 = vmatpush1.msra.mxu0 %v3035
        %7288 = vmatprep.subr.mxu0 %v3052
        %7289 = vmatpush1.msra.mxu0 %v3051
        %7290 = vmatprep.subr.mxu0 %v3068
        %7291 = vmatpush1.msra.mxu0 %v3067
        %7292 = vmatprep.subr.mxu0 %v3084
        %7293 = vmatpush1.msra.mxu0 %v3083
        %7294 = vmatprep.subr.mxu0 %v3100
        %7295 = vmatpush1.msra.mxu0 %v3099
        %7296 = vmatprep.subr.mxu0 %v3116
        %7297 = vmatpush1.msra.mxu0 %v3115
        %7298 = vmatprep.subr.mxu0 %v3132
        %7299 = vmatpush1.msra.mxu0 %v3131
        %7300 = vmatprep.subr.mxu0 %v3148
        %7301 = vmatpush1.msra.mxu0 %v3147
        %7302 = vmatprep.subr.mxu0 %v3164
        %7303 = vmatpush1.msra.mxu0 %v3163
        %7304 = vmatprep.subr.mxu0 %v3180
        %7305 = vmatpush1.msra.mxu0 %v3179
        %7306 = vmatprep.subr.mxu0 %v3196
        %7307 = vmatpush1.msra.mxu0 %v3195
        %7308 = vmatprep.subr.mxu0 %v3212
        %7309 = vmatpush1.msra.mxu0 %v3211
        %7310 = vmatprep.subr.mxu0 %v3228
        %7311 = vmatpush1.msra.mxu0 %v3227
        %7312 = vmatprep.subr.mxu0 %v3244
        %7313 = vmatpush1.msra.mxu0 %v3243
        %7314 = vmatprep.subr.mxu0 %v3260
        %7315 = vmatpush1.msra.mxu0 %v3259
        %7316 = vmatprep.subr.mxu0 %v3276
        %7317 = vmatpush1.msra.mxu0 %v3275
        %7318 = vmatprep.subr.mxu0 %v3292
        %7319 = vmatpush1.msra.mxu0 %v3291
        %7320 = vmatprep.subr.mxu0 %v3308
        %7321 = vmatpush1.msra.mxu0 %v3307
        %7322 = vmatprep.subr.mxu0 %v3324
        %7323 = vmatpush1.msra.mxu0 %v3323
        %7324 = vmatprep.subr.mxu0 %v3340
        %7325 = vmatpush1.msra.mxu0 %v3339
        %7326 = vmatprep.subr.mxu0 %v3356
        %7327 = vmatpush1.msra.mxu0 %v3355
        %7328 = vmatprep.subr.mxu0 %v3372
        %7329 = vmatpush1.msra.mxu0 %v3371
        %7330 = vmatprep.subr.mxu0 %v3388
        %7331 = vmatpush1.msra.mxu0 %v3387
        %7332 = vmatprep.subr.mxu0 %v3404
        %7333 = vmatpush1.msra.mxu0 %v3403
        %7334 = vmatprep.subr.mxu0 %v3420
        %7335 = vmatpush1.msra.mxu0 %v3419
        %7336 = vmatprep.mubr.f32.mxu0 %v348
        %7337 = vmatmul.mubr.f32.gmra.mrb[0].mxu0 %v347
        %v7338 = vpop.f32.mrb[0].mxu0
        %v7339 = vadd.f32 %v7268, %v7338
        %v7340 = vpop.f32.mrb[0].mxu0
        %v7341 = vadd.f32 %v7270, %v7340
        %7342 = vdwg.mxu0
        %7343 = vmatprep.subr.mxu0 %v3436
        %7344 = vmatpush1.msra.mxu0 %v3435
        %7345 = vmatprep.subr.mxu0 %v3452
        %7346 = vmatpush1.msra.mxu0 %v3451
        %7347 = vmatprep.subr.mxu0 %v3468
        %7348 = vmatpush1.msra.mxu0 %v3467
        %7349 = vmatprep.subr.mxu0 %v3484
        %7350 = vmatpush1.msra.mxu0 %v3483
        %7351 = vmatprep.subr.mxu0 %v3500
        %7352 = vmatpush1.msra.mxu0 %v3499
        %7353 = vmatprep.subr.mxu0 %v3516
        %7354 = vmatpush1.msra.mxu0 %v3515
        %7355 = vmatprep.subr.mxu0 %v3532
        %7356 = vmatpush1.msra.mxu0 %v3531
        %7357 = vmatprep.subr.mxu0 %v3548
        %7358 = vmatpush1.msra.mxu0 %v3547
        %7359 = vmatprep.subr.mxu0 %v3564
        %7360 = vmatpush1.msra.mxu0 %v3563
        %7361 = vmatprep.subr.mxu0 %v3580
        %7362 = vmatpush1.msra.mxu0 %v3579
        %7363 = vmatprep.subr.mxu0 %v3596
        %7364 = vmatpush1.msra.mxu0 %v3595
        %7365 = vmatprep.subr.mxu0 %v3612
        %7366 = vmatpush1.msra.mxu0 %v3611
        %7367 = vmatprep.subr.mxu0 %v3628
        %7368 = vmatpush1.msra.mxu0 %v3627
        %7369 = vmatprep.subr.mxu0 %v3644
        %7370 = vmatpush1.msra.mxu0 %v3643
        %7371 = vmatprep.subr.mxu0 %v3660
        %7372 = vmatpush1.msra.mxu0 %v3659
        %7373 = vmatprep.subr.mxu0 %v3676
        %7374 = vmatpush1.msra.mxu0 %v3675
        %7375 = vmatprep.subr.mxu0 %v3692
        %7376 = vmatpush1.msra.mxu0 %v3691
        %7377 = vmatprep.subr.mxu0 %v3708
        %7378 = vmatpush1.msra.mxu0 %v3707
        %7379 = vmatprep.subr.mxu0 %v3724
        %7380 = vmatpush1.msra.mxu0 %v3723
        %7381 = vmatprep.subr.mxu0 %v3740
        %7382 = vmatpush1.msra.mxu0 %v3739
        %7383 = vmatprep.subr.mxu0 %v3756
        %7384 = vmatpush1.msra.mxu0 %v3755
        %7385 = vmatprep.subr.mxu0 %v3772
        %7386 = vmatpush1.msra.mxu0 %v3771
        %7387 = vmatprep.subr.mxu0 %v3788
        %7388 = vmatpush1.msra.mxu0 %v3787
        %7389 = vmatprep.subr.mxu0 %v3804
        %7390 = vmatpush1.msra.mxu0 %v3803
        %7391 = vmatprep.subr.mxu0 %v3820
        %7392 = vmatpush1.msra.mxu0 %v3819
        %7393 = vmatprep.subr.mxu0 %v3836
        %7394 = vmatpush1.msra.mxu0 %v3835
        %7395 = vmatprep.subr.mxu0 %v3852
        %7396 = vmatpush1.msra.mxu0 %v3851
        %7397 = vmatprep.subr.mxu0 %v3868
        %7398 = vmatpush1.msra.mxu0 %v3867
        %7399 = vmatprep.subr.mxu0 %v3884
        %7400 = vmatpush1.msra.mxu0 %v3883
        %7401 = vmatprep.subr.mxu0 %v3900
        %7402 = vmatpush1.msra.mxu0 %v3899
        %7403 = vmatprep.subr.mxu0 %v3916
        %7404 = vmatpush1.msra.mxu0 %v3915
        %7405 = vmatprep.subr.mxu0 %v3932
        %7406 = vmatpush1.msra.mxu0 %v3931
        %7407 = vmatprep.mubr.f32.mxu0 %v350
        %7408 = vmatmul.mubr.f32.gmra.mrb[0].mxu0 %v349
        %v7409 = vpop.f32.mrb[0].mxu0
        %v7410 = vadd.f32 %v7339, %v7409
        %v7411 = vpop.f32.mrb[0].mxu0
        %v7412 = vadd.f32 %v7341, %v7411
        %7413 = vdwg.mxu0
        %7414 = vmatprep.subr.mxu0 %v366
        %7415 = vmatpush1.msra.mxu0 %v365
        %7416 = vmatprep.subr.mxu0 %v382
        %7417 = vmatpush1.msra.mxu0 %v381
        %7418 = vmatprep.subr.mxu0 %v398
        %7419 = vmatpush1.msra.mxu0 %v397
        %7420 = vmatprep.subr.mxu0 %v414
        %7421 = vmatpush1.msra.mxu0 %v413
        %7422 = vmatprep.subr.mxu0 %v430
        %7423 = vmatpush1.msra.mxu0 %v429
        %7424 = vmatprep.subr.mxu0 %v446
        %7425 = vmatpush1.msra.mxu0 %v445
        %7426 = vmatprep.subr.mxu0 %v462
        %7427 = vmatpush1.msra.mxu0 %v461
        %7428 = vmatprep.subr.mxu0 %v478
        %7429 = vmatpush1.msra.mxu0 %v477
        %7430 = vmatprep.subr.mxu0 %v494
        %7431 = vmatpush1.msra.mxu0 %v493
        %7432 = vmatprep.subr.mxu0 %v510
        %7433 = vmatpush1.msra.mxu0 %v509
        %7434 = vmatprep.subr.mxu0 %v526
        %7435 = vmatpush1.msra.mxu0 %v525
        %7436 = vmatprep.subr.mxu0 %v542
        %7437 = vmatpush1.msra.mxu0 %v541
        %7438 = vmatprep.subr.mxu0 %v558
        %7439 = vmatpush1.msra.mxu0 %v557
        %7440 = vmatprep.subr.mxu0 %v574
        %7441 = vmatpush1.msra.mxu0 %v573
        %7442 = vmatprep.subr.mxu0 %v590
        %7443 = vmatpush1.msra.mxu0 %v589
        %7444 = vmatprep.subr.mxu0 %v606
        %7445 = vmatpush1.msra.mxu0 %v605
        %7446 = vmatprep.subr.mxu0 %v622
        %7447 = vmatpush1.msra.mxu0 %v621
        %7448 = vmatprep.subr.mxu0 %v638
        %7449 = vmatpush1.msra.mxu0 %v637
        %7450 = vmatprep.subr.mxu0 %v654
        %7451 = vmatpush1.msra.mxu0 %v653
        %7452 = vmatprep.subr.mxu0 %v670
        %7453 = vmatpush1.msra.mxu0 %v669
        %7454 = vmatprep.subr.mxu0 %v686
        %7455 = vmatpush1.msra.mxu0 %v685
        %7456 = vmatprep.subr.mxu0 %v702
        %7457 = vmatpush1.msra.mxu0 %v701
        %7458 = vmatprep.subr.mxu0 %v718
        %7459 = vmatpush1.msra.mxu0 %v717
        %7460 = vmatprep.subr.mxu0 %v734
        %7461 = vmatpush1.msra.mxu0 %v733
        %7462 = vmatprep.subr.mxu0 %v750
        %7463 = vmatpush1.msra.mxu0 %v749
        %7464 = vmatprep.subr.mxu0 %v766
        %7465 = vmatpush1.msra.mxu0 %v765
        %7466 = vmatprep.subr.mxu0 %v782
        %7467 = vmatpush1.msra.mxu0 %v781
        %7468 = vmatprep.subr.mxu0 %v798
        %7469 = vmatpush1.msra.mxu0 %v797
        %7470 = vmatprep.subr.mxu0 %v814
        %7471 = vmatpush1.msra.mxu0 %v813
        %7472 = vmatprep.subr.mxu0 %v830
        %7473 = vmatpush1.msra.mxu0 %v829
        %7474 = vmatprep.subr.mxu0 %v846
        %7475 = vmatpush1.msra.mxu0 %v845
        %7476 = vmatprep.subr.mxu0 %v862
        %7477 = vmatpush1.msra.mxu0 %v861
        %7478 = vmatprep.mubr.f32.mxu0 %v338
        %7479 = vmatmul.mubr.f32.gmra.mrb[0].mxu0 %v337
        %v7480 = vpop.f32.mrb[0].mxu0
        %v7481 = vadd.f32 0.0, %v7480
        %v7482 = vpop.f32.mrb[0].mxu0
        %v7483 = vadd.f32 0.0, %v7482
        %7484 = vdwg.mxu0
        %7485 = vmatprep.subr.mxu0 %v878
        %7486 = vmatpush1.msra.mxu0 %v877
        %7487 = vmatprep.subr.mxu0 %v894
        %7488 = vmatpush1.msra.mxu0 %v893
        %7489 = vmatprep.subr.mxu0 %v910
        %7490 = vmatpush1.msra.mxu0 %v909
        %7491 = vmatprep.subr.mxu0 %v926
        %7492 = vmatpush1.msra.mxu0 %v925
        %7493 = vmatprep.subr.mxu0 %v942
        %7494 = vmatpush1.msra.mxu0 %v941
        %7495 = vmatprep.subr.mxu0 %v958
        %7496 = vmatpush1.msra.mxu0 %v957
        %7497 = vmatprep.subr.mxu0 %v974
        %7498 = vmatpush1.msra.mxu0 %v973
        %7499 = vmatprep.subr.mxu0 %v990
        %7500 = vmatpush1.msra.mxu0 %v989
        %7501 = vmatprep.subr.mxu0 %v1006
        %7502 = vmatpush1.msra.mxu0 %v1005
        %7503 = vmatprep.subr.mxu0 %v1022
        %7504 = vmatpush1.msra.mxu0 %v1021
        %7505 = vmatprep.subr.mxu0 %v1038
        %7506 = vmatpush1.msra.mxu0 %v1037
        %7507 = vmatprep.subr.mxu0 %v1054
        %7508 = vmatpush1.msra.mxu0 %v1053
        %7509 = vmatprep.subr.mxu0 %v1070
        %7510 = vmatpush1.msra.mxu0 %v1069
        %7511 = vmatprep.subr.mxu0 %v1086
        %7512 = vmatpush1.msra.mxu0 %v1085
        %7513 = vmatprep.subr.mxu0 %v1102
        %7514 = vmatpush1.msra.mxu0 %v1101
        %7515 = vmatprep.subr.mxu0 %v1118
        %7516 = vmatpush1.msra.mxu0 %v1117
        %7517 = vmatprep.subr.mxu0 %v1134
        %7518 = vmatpush1.msra.mxu0 %v1133
        %7519 = vmatprep.subr.mxu0 %v1150
        %7520 = vmatpush1.msra.mxu0 %v1149
        %7521 = vmatprep.subr.mxu0 %v1166
        %7522 = vmatpush1.msra.mxu0 %v1165
        %7523 = vmatprep.subr.mxu0 %v1182
        %7524 = vmatpush1.msra.mxu0 %v1181
        %7525 = vmatprep.subr.mxu0 %v1198
        %7526 = vmatpush1.msra.mxu0 %v1197
        %7527 = vmatprep.subr.mxu0 %v1214
        %7528 = vmatpush1.msra.mxu0 %v1213
        %7529 = vmatprep.subr.mxu0 %v1230
        %7530 = vmatpush1.msra.mxu0 %v1229
        %7531 = vmatprep.subr.mxu0 %v1246
        %7532 = vmatpush1.msra.mxu0 %v1245
        %7533 = vmatprep.subr.mxu0 %v1262
        %7534 = vmatpush1.msra.mxu0 %v1261
        %7535 = vmatprep.subr.mxu0 %v1278
        %7536 = vmatpush1.msra.mxu0 %v1277
        %7537 = vmatprep.subr.mxu0 %v1294
        %7538 = vmatpush1.msra.mxu0 %v1293
        %7539 = vmatprep.subr.mxu0 %v1310
        %7540 = vmatpush1.msra.mxu0 %v1309
        %7541 = vmatprep.subr.mxu0 %v1326
        %7542 = vmatpush1.msra.mxu0 %v1325
        %7543 = vmatprep.subr.mxu0 %v1342
        %7544 = vmatpush1.msra.mxu0 %v1341
        %7545 = vmatprep.subr.mxu0 %v1358
        %7546 = vmatpush1.msra.mxu0 %v1357
        %7547 = vmatprep.subr.mxu0 %v1374
        %7548 = vmatpush1.msra.mxu0 %v1373
        %7549 = vmatprep.mubr.f32.mxu0 %v340
        %7550 = vmatmul.mubr.f32.gmra.mrb[0].mxu0 %v339
        %v7551 = vpop.f32.mrb[0].mxu0
        %v7552 = vadd.f32 %v7481, %v7551
        %v7553 = vpop.f32.mrb[0].mxu0
        %v7554 = vadd.f32 %v7483, %v7553
        %7555 = vdwg.mxu0
        %7556 = vmatprep.subr.mxu0 %v1390
        %7557 = vmatpush1.msra.mxu0 %v1389
        %7558 = vmatprep.subr.mxu0 %v1406
        %7559 = vmatpush1.msra.mxu0 %v1405
        %7560 = vmatprep.subr.mxu0 %v1422
        %7561 = vmatpush1.msra.mxu0 %v1421
        %7562 = vmatprep.subr.mxu0 %v1438
        %7563 = vmatpush1.msra.mxu0 %v1437
        %7564 = vmatprep.subr.mxu0 %v1454
        %7565 = vmatpush1.msra.mxu0 %v1453
        %7566 = vmatprep.subr.mxu0 %v1470
        %7567 = vmatpush1.msra.mxu0 %v1469
        %7568 = vmatprep.subr.mxu0 %v1486
        %7569 = vmatpush1.msra.mxu0 %v1485
        %7570 = vmatprep.subr.mxu0 %v1502
        %7571 = vmatpush1.msra.mxu0 %v1501
        %7572 = vmatprep.subr.mxu0 %v1518
        %7573 = vmatpush1.msra.mxu0 %v1517
        %7574 = vmatprep.subr.mxu0 %v1534
        %7575 = vmatpush1.msra.mxu0 %v1533
        %7576 = vmatprep.subr.mxu0 %v1550
        %7577 = vmatpush1.msra.mxu0 %v1549
        %7578 = vmatprep.subr.mxu0 %v1566
        %7579 = vmatpush1.msra.mxu0 %v1565
        %7580 = vmatprep.subr.mxu0 %v1582
        %7581 = vmatpush1.msra.mxu0 %v1581
        %7582 = vmatprep.subr.mxu0 %v1598
        %7583 = vmatpush1.msra.mxu0 %v1597
        %7584 = vmatprep.subr.mxu0 %v1614
        %7585 = vmatpush1.msra.mxu0 %v1613
        %7586 = vmatprep.subr.mxu0 %v1630
        %7587 = vmatpush1.msra.mxu0 %v1629
        %7588 = vmatprep.subr.mxu0 %v1646
        %7589 = vmatpush1.msra.mxu0 %v1645
        %7590 = vmatprep.subr.mxu0 %v1662
        %7591 = vmatpush1.msra.mxu0 %v1661
        %7592 = vmatprep.subr.mxu0 %v1678
        %7593 = vmatpush1.msra.mxu0 %v1677
        %7594 = vmatprep.subr.mxu0 %v1694
        %7595 = vmatpush1.msra.mxu0 %v1693
        %7596 = vmatprep.subr.mxu0 %v1710
        %7597 = vmatpush1.msra.mxu0 %v1709
        %7598 = vmatprep.subr.mxu0 %v1726
        %7599 = vmatpush1.msra.mxu0 %v1725
        %7600 = vmatprep.subr.mxu0 %v1742
        %7601 = vmatpush1.msra.mxu0 %v1741
        %7602 = vmatprep.subr.mxu0 %v1758
        %7603 = vmatpush1.msra.mxu0 %v1757
        %7604 = vmatprep.subr.mxu0 %v1774
        %7605 = vmatpush1.msra.mxu0 %v1773
        %7606 = vmatprep.subr.mxu0 %v1790
        %7607 = vmatpush1.msra.mxu0 %v1789
        %7608 = vmatprep.subr.mxu0 %v1806
        %7609 = vmatpush1.msra.mxu0 %v1805
        %7610 = vmatprep.subr.mxu0 %v1822
        %7611 = vmatpush1.msra.mxu0 %v1821
        %7612 = vmatprep.subr.mxu0 %v1838
        %7613 = vmatpush1.msra.mxu0 %v1837
        %7614 = vmatprep.subr.mxu0 %v1854
        %7615 = vmatpush1.msra.mxu0 %v1853
        %7616 = vmatprep.subr.mxu0 %v1870
        %7617 = vmatpush1.msra.mxu0 %v1869
        %7618 = vmatprep.subr.mxu0 %v1886
        %7619 = vmatpush1.msra.mxu0 %v1885
        %7620 = vmatprep.mubr.f32.mxu0 %v342
        %7621 = vmatmul.mubr.f32.gmra.mrb[0].mxu0 %v341
        %v7622 = vpop.f32.mrb[0].mxu0
        %v7623 = vadd.f32 %v7552, %v7622
        %v7624 = vpop.f32.mrb[0].mxu0
        %v7625 = vadd.f32 %v7554, %v7624
        %7626 = vdwg.mxu0
        %7627 = vmatprep.subr.mxu0 %v1902
        %7628 = vmatpush1.msra.mxu0 %v1901
        %7629 = vmatprep.subr.mxu0 %v1918
        %7630 = vmatpush1.msra.mxu0 %v1917
        %7631 = vmatprep.subr.mxu0 %v1934
        %7632 = vmatpush1.msra.mxu0 %v1933
        %7633 = vmatprep.subr.mxu0 %v1950
        %7634 = vmatpush1.msra.mxu0 %v1949
        %7635 = vmatprep.subr.mxu0 %v1966
        %7636 = vmatpush1.msra.mxu0 %v1965
        %7637 = vmatprep.subr.mxu0 %v1982
        %7638 = vmatpush1.msra.mxu0 %v1981
        %7639 = vmatprep.subr.mxu0 %v1998
        %7640 = vmatpush1.msra.mxu0 %v1997
        %7641 = vmatprep.subr.mxu0 %v2014
        %7642 = vmatpush1.msra.mxu0 %v2013
        %7643 = vmatprep.subr.mxu0 %v2030
        %7644 = vmatpush1.msra.mxu0 %v2029
        %7645 = vmatprep.subr.mxu0 %v2046
        %7646 = vmatpush1.msra.mxu0 %v2045
        %7647 = vmatprep.subr.mxu0 %v2062
        %7648 = vmatpush1.msra.mxu0 %v2061
        %7649 = vmatprep.subr.mxu0 %v2078
        %7650 = vmatpush1.msra.mxu0 %v2077
        %7651 = vmatprep.subr.mxu0 %v2094
        %7652 = vmatpush1.msra.mxu0 %v2093
        %7653 = vmatprep.subr.mxu0 %v2110
        %7654 = vmatpush1.msra.mxu0 %v2109
        %7655 = vmatprep.subr.mxu0 %v2126
        %7656 = vmatpush1.msra.mxu0 %v2125
        %7657 = vmatprep.subr.mxu0 %v2142
        %7658 = vmatpush1.msra.mxu0 %v2141
        %7659 = vmatprep.subr.mxu0 %v2158
        %7660 = vmatpush1.msra.mxu0 %v2157
        %7661 = vmatprep.subr.mxu0 %v2174
        %7662 = vmatpush1.msra.mxu0 %v2173
        %7663 = vmatprep.subr.mxu0 %v2190
        %7664 = vmatpush1.msra.mxu0 %v2189
        %7665 = vmatprep.subr.mxu0 %v2206
        %7666 = vmatpush1.msra.mxu0 %v2205
        %7667 = vmatprep.subr.mxu0 %v2222
        %7668 = vmatpush1.msra.mxu0 %v2221
        %7669 = vmatprep.subr.mxu0 %v2238
        %7670 = vmatpush1.msra.mxu0 %v2237
        %7671 = vmatprep.subr.mxu0 %v2254
        %7672 = vmatpush1.msra.mxu0 %v2253
        %7673 = vmatprep.subr.mxu0 %v2270
        %7674 = vmatpush1.msra.mxu0 %v2269
        %7675 = vmatprep.subr.mxu0 %v2286
        %7676 = vmatpush1.msra.mxu0 %v2285
        %7677 = vmatprep.subr.mxu0 %v2302
        %7678 = vmatpush1.msra.mxu0 %v2301
        %7679 = vmatprep.subr.mxu0 %v2318
        %7680 = vmatpush1.msra.mxu0 %v2317
        %7681 = vmatprep.subr.mxu0 %v2334
        %7682 = vmatpush1.msra.mxu0 %v2333
        %7683 = vmatprep.subr.mxu0 %v2350
        %7684 = vmatpush1.msra.mxu0 %v2349
        %7685 = vmatprep.subr.mxu0 %v2366
        %7686 = vmatpush1.msra.mxu0 %v2365
        %7687 = vmatprep.subr.mxu0 %v2382
        %7688 = vmatpush1.msra.mxu0 %v2381
        %7689 = vmatprep.subr.mxu0 %v2398
        %7690 = vmatpush1.msra.mxu0 %v2397
        %7691 = vmatprep.mubr.f32.mxu0 %v344
        %7692 = vmatmul.mubr.f32.gmra.mrb[0].mxu0 %v343
        %v7693 = vpop.f32.mrb[0].mxu0
        %v7694 = vadd.f32 %v7623, %v7693
        %v7695 = vpop.f32.mrb[0].mxu0
        %v7696 = vadd.f32 %v7625, %v7695
        %7697 = vdwg.mxu0
        %7698 = vmatprep.subr.mxu0 %v2414
        %7699 = vmatpush1.msra.mxu0 %v2413
        %7700 = vmatprep.subr.mxu0 %v2430
        %7701 = vmatpush1.msra.mxu0 %v2429
        %7702 = vmatprep.subr.mxu0 %v2446
        %7703 = vmatpush1.msra.mxu0 %v2445
        %7704 = vmatprep.subr.mxu0 %v2462
        %7705 = vmatpush1.msra.mxu0 %v2461
        %7706 = vmatprep.subr.mxu0 %v2478
        %7707 = vmatpush1.msra.mxu0 %v2477
        %7708 = vmatprep.subr.mxu0 %v2494
        %7709 = vmatpush1.msra.mxu0 %v2493
        %7710 = vmatprep.subr.mxu0 %v2510
        %7711 = vmatpush1.msra.mxu0 %v2509
        %7712 = vmatprep.subr.mxu0 %v2526
        %7713 = vmatpush1.msra.mxu0 %v2525
        %7714 = vmatprep.subr.mxu0 %v2542
        %7715 = vmatpush1.msra.mxu0 %v2541
        %7716 = vmatprep.subr.mxu0 %v2558
        %7717 = vmatpush1.msra.mxu0 %v2557
        %7718 = vmatprep.subr.mxu0 %v2574
        %7719 = vmatpush1.msra.mxu0 %v2573
        %7720 = vmatprep.subr.mxu0 %v2590
        %7721 = vmatpush1.msra.mxu0 %v2589
        %7722 = vmatprep.subr.mxu0 %v2606
        %7723 = vmatpush1.msra.mxu0 %v2605
        %7724 = vmatprep.subr.mxu0 %v2622
        %7725 = vmatpush1.msra.mxu0 %v2621
        %7726 = vmatprep.subr.mxu0 %v2638
        %7727 = vmatpush1.msra.mxu0 %v2637
        %7728 = vmatprep.subr.mxu0 %v2654
        %7729 = vmatpush1.msra.mxu0 %v2653
        %7730 = vmatprep.subr.mxu0 %v2670
        %7731 = vmatpush1.msra.mxu0 %v2669
        %7732 = vmatprep.subr.mxu0 %v2686
        %7733 = vmatpush1.msra.mxu0 %v2685
        %7734 = vmatprep.subr.mxu0 %v2702
        %7735 = vmatpush1.msra.mxu0 %v2701
        %7736 = vmatprep.subr.mxu0 %v2718
        %7737 = vmatpush1.msra.mxu0 %v2717
        %7738 = vmatprep.subr.mxu0 %v2734
        %7739 = vmatpush1.msra.mxu0 %v2733
        %7740 = vmatprep.subr.mxu0 %v2750
        %7741 = vmatpush1.msra.mxu0 %v2749
        %7742 = vmatprep.subr.mxu0 %v2766
        %7743 = vmatpush1.msra.mxu0 %v2765
        %7744 = vmatprep.subr.mxu0 %v2782
        %7745 = vmatpush1.msra.mxu0 %v2781
        %7746 = vmatprep.subr.mxu0 %v2798
        %7747 = vmatpush1.msra.mxu0 %v2797
        %7748 = vmatprep.subr.mxu0 %v2814
        %7749 = vmatpush1.msra.mxu0 %v2813
        %7750 = vmatprep.subr.mxu0 %v2830
        %7751 = vmatpush1.msra.mxu0 %v2829
        %7752 = vmatprep.subr.mxu0 %v2846
        %7753 = vmatpush1.msra.mxu0 %v2845
        %7754 = vmatprep.subr.mxu0 %v2862
        %7755 = vmatpush1.msra.mxu0 %v2861
        %7756 = vmatprep.subr.mxu0 %v2878
        %7757 = vmatpush1.msra.mxu0 %v2877
        %7758 = vmatprep.subr.mxu0 %v2894
        %7759 = vmatpush1.msra.mxu0 %v2893
        %7760 = vmatprep.subr.mxu0 %v2910
        %7761 = vmatpush1.msra.mxu0 %v2909
        %7762 = vmatprep.mubr.f32.mxu0 %v346
        %7763 = vmatmul.mubr.f32.gmra.mrb[0].mxu0 %v345
        %v7764 = vpop.f32.mrb[0].mxu0
        %v7765 = vadd.f32 %v7694, %v7764
        %v7766 = vpop.f32.mrb[0].mxu0
        %v7767 = vadd.f32 %v7696, %v7766
        %7768 = vdwg.mxu0
        %7769 = vmatprep.subr.mxu0 %v2926
        %7770 = vmatpush1.msra.mxu0 %v2925
        %7771 = vmatprep.subr.mxu0 %v2942
        %7772 = vmatpush1.msra.mxu0 %v2941
        %7773 = vmatprep.subr.mxu0 %v2958
        %7774 = vmatpush1.msra.mxu0 %v2957
        %7775 = vmatprep.subr.mxu0 %v2974
        %7776 = vmatpush1.msra.mxu0 %v2973
        %7777 = vmatprep.subr.mxu0 %v2990
        %7778 = vmatpush1.msra.mxu0 %v2989
        %7779 = vmatprep.subr.mxu0 %v3006
        %7780 = vmatpush1.msra.mxu0 %v3005
        %7781 = vmatprep.subr.mxu0 %v3022
        %7782 = vmatpush1.msra.mxu0 %v3021
        %7783 = vmatprep.subr.mxu0 %v3038
        %7784 = vmatpush1.msra.mxu0 %v3037
        %7785 = vmatprep.subr.mxu0 %v3054
        %7786 = vmatpush1.msra.mxu0 %v3053
        %7787 = vmatprep.subr.mxu0 %v3070
        %7788 = vmatpush1.msra.mxu0 %v3069
        %7789 = vmatprep.subr.mxu0 %v3086
        %7790 = vmatpush1.msra.mxu0 %v3085
        %7791 = vmatprep.subr.mxu0 %v3102
        %7792 = vmatpush1.msra.mxu0 %v3101
        %7793 = vmatprep.subr.mxu0 %v3118
        %7794 = vmatpush1.msra.mxu0 %v3117
        %7795 = vmatprep.subr.mxu0 %v3134
        %7796 = vmatpush1.msra.mxu0 %v3133
        %7797 = vmatprep.subr.mxu0 %v3150
        %7798 = vmatpush1.msra.mxu0 %v3149
        %7799 = vmatprep.subr.mxu0 %v3166
        %7800 = vmatpush1.msra.mxu0 %v3165
        %7801 = vmatprep.subr.mxu0 %v3182
        %7802 = vmatpush1.msra.mxu0 %v3181
        %7803 = vmatprep.subr.mxu0 %v3198
        %7804 = vmatpush1.msra.mxu0 %v3197
        %7805 = vmatprep.subr.mxu0 %v3214
        %7806 = vmatpush1.msra.mxu0 %v3213
        %7807 = vmatprep.subr.mxu0 %v3230
        %7808 = vmatpush1.msra.mxu0 %v3229
        %7809 = vmatprep.subr.mxu0 %v3246
        %7810 = vmatpush1.msra.mxu0 %v3245
        %7811 = vmatprep.subr.mxu0 %v3262
        %7812 = vmatpush1.msra.mxu0 %v3261
        %7813 = vmatprep.subr.mxu0 %v3278
        %7814 = vmatpush1.msra.mxu0 %v3277
        %7815 = vmatprep.subr.mxu0 %v3294
        %7816 = vmatpush1.msra.mxu0 %v3293
        %7817 = vmatprep.subr.mxu0 %v3310
        %7818 = vmatpush1.msra.mxu0 %v3309
        %7819 = vmatprep.subr.mxu0 %v3326
        %7820 = vmatpush1.msra.mxu0 %v3325
        %7821 = vmatprep.subr.mxu0 %v3342
        %7822 = vmatpush1.msra.mxu0 %v3341
        %7823 = vmatprep.subr.mxu0 %v3358
        %7824 = vmatpush1.msra.mxu0 %v3357
        %7825 = vmatprep.subr.mxu0 %v3374
        %7826 = vmatpush1.msra.mxu0 %v3373
        %7827 = vmatprep.subr.mxu0 %v3390
        %7828 = vmatpush1.msra.mxu0 %v3389
        %7829 = vmatprep.subr.mxu0 %v3406
        %7830 = vmatpush1.msra.mxu0 %v3405
        %7831 = vmatprep.subr.mxu0 %v3422
        %7832 = vmatpush1.msra.mxu0 %v3421
        %7833 = vmatprep.mubr.f32.mxu0 %v348
        %7834 = vmatmul.mubr.f32.gmra.mrb[0].mxu0 %v347
        %v7835 = vpop.f32.mrb[0].mxu0
        %v7836 = vadd.f32 %v7765, %v7835
        %v7837 = vpop.f32.mrb[0].mxu0
        %v7838 = vadd.f32 %v7767, %v7837
        %7839 = vdwg.mxu0
        %7840 = vmatprep.subr.mxu0 %v3438
        %7841 = vmatpush1.msra.mxu0 %v3437
        %7842 = vmatprep.subr.mxu0 %v3454
        %7843 = vmatpush1.msra.mxu0 %v3453
        %7844 = vmatprep.subr.mxu0 %v3470
        %7845 = vmatpush1.msra.mxu0 %v3469
        %7846 = vmatprep.subr.mxu0 %v3486
        %7847 = vmatpush1.msra.mxu0 %v3485
        %7848 = vmatprep.subr.mxu0 %v3502
        %7849 = vmatpush1.msra.mxu0 %v3501
        %7850 = vmatprep.subr.mxu0 %v3518
        %7851 = vmatpush1.msra.mxu0 %v3517
        %7852 = vmatprep.subr.mxu0 %v3534
        %7853 = vmatpush1.msra.mxu0 %v3533
        %7854 = vmatprep.subr.mxu0 %v3550
        %7855 = vmatpush1.msra.mxu0 %v3549
        %7856 = vmatprep.subr.mxu0 %v3566
        %7857 = vmatpush1.msra.mxu0 %v3565
        %7858 = vmatprep.subr.mxu0 %v3582
        %7859 = vmatpush1.msra.mxu0 %v3581
        %7860 = vmatprep.subr.mxu0 %v3598
        %7861 = vmatpush1.msra.mxu0 %v3597
        %7862 = vmatprep.subr.mxu0 %v3614
        %7863 = vmatpush1.msra.mxu0 %v3613
        %7864 = vmatprep.subr.mxu0 %v3630
        %7865 = vmatpush1.msra.mxu0 %v3629
        %7866 = vmatprep.subr.mxu0 %v3646
        %7867 = vmatpush1.msra.mxu0 %v3645
        %7868 = vmatprep.subr.mxu0 %v3662
        %7869 = vmatpush1.msra.mxu0 %v3661
        %7870 = vmatprep.subr.mxu0 %v3678
        %7871 = vmatpush1.msra.mxu0 %v3677
        %7872 = vmatprep.subr.mxu0 %v3694
        %7873 = vmatpush1.msra.mxu0 %v3693
        %7874 = vmatprep.subr.mxu0 %v3710
        %7875 = vmatpush1.msra.mxu0 %v3709
        %7876 = vmatprep.subr.mxu0 %v3726
        %7877 = vmatpush1.msra.mxu0 %v3725
        %7878 = vmatprep.subr.mxu0 %v3742
        %7879 = vmatpush1.msra.mxu0 %v3741
        %7880 = vmatprep.subr.mxu0 %v3758
        %7881 = vmatpush1.msra.mxu0 %v3757
        %7882 = vmatprep.subr.mxu0 %v3774
        %7883 = vmatpush1.msra.mxu0 %v3773
        %7884 = vmatprep.subr.mxu0 %v3790
        %7885 = vmatpush1.msra.mxu0 %v3789
        %7886 = vmatprep.subr.mxu0 %v3806
        %7887 = vmatpush1.msra.mxu0 %v3805
        %7888 = vmatprep.subr.mxu0 %v3822
        %7889 = vmatpush1.msra.mxu0 %v3821
        %7890 = vmatprep.subr.mxu0 %v3838
        %7891 = vmatpush1.msra.mxu0 %v3837
        %7892 = vmatprep.subr.mxu0 %v3854
        %7893 = vmatpush1.msra.mxu0 %v3853
        %7894 = vmatprep.subr.mxu0 %v3870
        %7895 = vmatpush1.msra.mxu0 %v3869
        %7896 = vmatprep.subr.mxu0 %v3886
        %7897 = vmatpush1.msra.mxu0 %v3885
        %7898 = vmatprep.subr.mxu0 %v3902
        %7899 = vmatpush1.msra.mxu0 %v3901
        %7900 = vmatprep.subr.mxu0 %v3918
        %7901 = vmatpush1.msra.mxu0 %v3917
        %7902 = vmatprep.subr.mxu0 %v3934
        %7903 = vmatpush1.msra.mxu0 %v3933
        %7904 = vmatprep.mubr.f32.mxu0 %v350
        %7905 = vmatmul.mubr.f32.gmra.mrb[0].mxu0 %v349
        %v7906 = vpop.f32.mrb[0].mxu0
        %v7907 = vadd.f32 %v7836, %v7906
        %v7908 = vpop.f32.mrb[0].mxu0
        %v7909 = vadd.f32 %v7838, %v7908
        %7910 = vdwg.mxu0
        %v7911 = vadd.f32 %v321, %v4428
        %v7912 = vadd.f32 %v322, %v4430
        %v7913 = vadd.f32 %v323, %v4925
        %v7914 = vadd.f32 %v324, %v4927
        %v7915 = vadd.f32 %v325, %v5422
        %v7916 = vadd.f32 %v326, %v5424
        %v7917 = vadd.f32 %v327, %v5919
        %v7918 = vadd.f32 %v328, %v5921
        %v7919 = vadd.f32 %v329, %v6416
        %v7920 = vadd.f32 %v330, %v6418
        %v7921 = vadd.f32 %v331, %v6913
        %v7922 = vadd.f32 %v332, %v6915
        %v7923 = vadd.f32 %v333, %v7410
        %v7924 = vadd.f32 %v334, %v7412
        %v7925 = vadd.f32 %v335, %v7907
        %v7926 = vadd.f32 %v336, %v7909
        %7927 = vst [vmem:[#allocation2] sm:$0xff] %v7911
        %7928 = vst [vmem:[#allocation2 + $0x8] sm:$0xff] %v7912
        %7929 = vst [vmem:[#allocation2 + $0x10] sm:$0xff] %v7913
        %7930 = vst [vmem:[#allocation2 + $0x18] sm:$0xff] %v7914
        %7931 = vst [vmem:[#allocation2 + $0x20] sm:$0xff] %v7915
        %7932 = vst [vmem:[#allocation2 + $0x28] sm:$0xff] %v7916
        %7933 = vst [vmem:[#allocation2 + $0x30] sm:$0xff] %v7917
        %7934 = vst [vmem:[#allocation2 + $0x38] sm:$0xff] %v7918
        %7935 = vst [vmem:[#allocation2 + $0x40] sm:$0xff] %v7919
        %7936 = vst [vmem:[#allocation2 + $0x48] sm:$0xff] %v7920
        %7937 = vst [vmem:[#allocation2 + $0x50] sm:$0xff] %v7921
        %7938 = vst [vmem:[#allocation2 + $0x58] sm:$0xff] %v7922
        %7939 = vst [vmem:[#allocation2 + $0x60] sm:$0xff] %v7923
        %7940 = vst [vmem:[#allocation2 + $0x68] sm:$0xff] %v7924
        %7941 = vst [vmem:[#allocation2 + $0x70] sm:$0xff] %v7925
        %7942 = vst [vmem:[#allocation2 + $0x78] sm:$0xff] %v7926
        %p7943 = scmp.eq.s32.totalorder %s32, 13
        // Predicated region
        $region49: #{linear_relu_dropout.1} parent=31 // pred_check
          %p7944 = pneg %p7943
        $region50: #{linear_relu_dropout.1} parent=31 // pred_check_branch
          %7946 = sbr.rel (%p7944) target = $region52
        $region51: #{linear_relu_dropout.1} parent=31 // pred_region
          %v7947 = vld [vmem:[#allocation2] sm:$0xff]
          %v7948 = vld [vmem:[#allocation2 + $0x8] sm:$0xff]
          %v7949 = vld [vmem:[#allocation2 + $0x10] sm:$0xff]
          %v7950 = vld [vmem:[#allocation2 + $0x18] sm:$0xff]
          %v7951 = vld [vmem:[#allocation2 + $0x20] sm:$0xff]
          %v7952 = vld [vmem:[#allocation2 + $0x28] sm:$0xff]
          %v7953 = vld [vmem:[#allocation2 + $0x30] sm:$0xff]
          %v7954 = vld [vmem:[#allocation2 + $0x38] sm:$0xff]
          %v7955 = vld [vmem:[#allocation2 + $0x40] sm:$0xff]
          %v7956 = vld [vmem:[#allocation2 + $0x48] sm:$0xff]
          %v7957 = vld [vmem:[#allocation2 + $0x50] sm:$0xff]
          %v7958 = vld [vmem:[#allocation2 + $0x58] sm:$0xff]
          %v7959 = vld [vmem:[#allocation2 + $0x60] sm:$0xff]
          %v7960 = vld [vmem:[#allocation2 + $0x68] sm:$0xff]
          %v7961 = vld [vmem:[#allocation2 + $0x70] sm:$0xff]
          %v7962 = vld [vmem:[#allocation2 + $0x78] sm:$0xff]
          %v7963 = vld [vmem:[%s261] sm:$0xff]
          %v7964 = vld [vmem:[%s261 + $0x8] sm:$0xff]
          %v7967 = vlaneseq
          %v7968 = vshrl.u32 %v7967, 7
          %v7969 = vsub.s32 0, %v7968
          %v7970 = vrot.slane %v7963, %v7969
          %v7971 = vlaneseq
          %v7972 = vshrl.u32 %v7971, 7
          %v7973 = vsub.s32 1, %v7972
          %v7974 = vrot.slane %v7963, %v7973
          %v7975 = vlaneseq
          %v7976 = vshrl.u32 %v7975, 7
          %v7977 = vsub.s32 2, %v7976
          %v7978 = vrot.slane %v7963, %v7977
          %v7979 = vlaneseq
          %v7980 = vshrl.u32 %v7979, 7
          %v7981 = vsub.s32 3, %v7980
          %v7982 = vrot.slane %v7963, %v7981
          %v7983 = vlaneseq
          %v7984 = vshrl.u32 %v7983, 7
          %v7985 = vsub.s32 4, %v7984
          %v7986 = vrot.slane %v7963, %v7985
          %v7987 = vlaneseq
          %v7988 = vshrl.u32 %v7987, 7
          %v7989 = vsub.s32 5, %v7988
          %v7990 = vrot.slane %v7963, %v7989
          %v7991 = vlaneseq
          %v7992 = vshrl.u32 %v7991, 7
          %v7993 = vsub.s32 6, %v7992
          %v7994 = vrot.slane %v7963, %v7993
          %v7995 = vlaneseq
          %v7996 = vshrl.u32 %v7995, 7
          %v7997 = vsub.s32 7, %v7996
          %v7998 = vrot.slane %v7963, %v7997
          %v7999 = vlaneseq
          %v8000 = vshrl.u32 %v7999, 7
          %v8001 = vsub.s32 0, %v8000
          %v8002 = vrot.slane %v7964, %v8001
          %v8003 = vlaneseq
          %v8004 = vshrl.u32 %v8003, 7
          %v8005 = vsub.s32 1, %v8004
          %v8006 = vrot.slane %v7964, %v8005
          %v8007 = vlaneseq
          %v8008 = vshrl.u32 %v8007, 7
          %v8009 = vsub.s32 2, %v8008
          %v8010 = vrot.slane %v7964, %v8009
          %v8011 = vlaneseq
          %v8012 = vshrl.u32 %v8011, 7
          %v8013 = vsub.s32 3, %v8012
          %v8014 = vrot.slane %v7964, %v8013
          %v8015 = vlaneseq
          %v8016 = vshrl.u32 %v8015, 7
          %v8017 = vsub.s32 4, %v8016
          %v8018 = vrot.slane %v7964, %v8017
          %v8019 = vlaneseq
          %v8020 = vshrl.u32 %v8019, 7
          %v8021 = vsub.s32 5, %v8020
          %v8022 = vrot.slane %v7964, %v8021
          %v8023 = vlaneseq
          %v8024 = vshrl.u32 %v8023, 7
          %v8025 = vsub.s32 6, %v8024
          %v8026 = vrot.slane %v7964, %v8025
          %v8027 = vlaneseq
          %v8028 = vshrl.u32 %v8027, 7
          %v8029 = vsub.s32 7, %v8028
          %v8030 = vrot.slane %v7964, %v8029
          %v8047 = vadd.f32 %v7947, %v7970
          %v8048 = vadd.f32 %v7948, %v7974
          %v8049 = vadd.f32 %v7949, %v7978
          %v8050 = vadd.f32 %v7950, %v7982
          %v8051 = vadd.f32 %v7951, %v7986
          %v8052 = vadd.f32 %v7952, %v7990
          %v8053 = vadd.f32 %v7953, %v7994
          %v8054 = vadd.f32 %v7954, %v7998
          %v8055 = vadd.f32 %v7955, %v8002
          %v8056 = vadd.f32 %v7956, %v8006
          %v8057 = vadd.f32 %v7957, %v8010
          %v8058 = vadd.f32 %v7958, %v8014
          %v8059 = vadd.f32 %v7959, %v8018
          %v8060 = vadd.f32 %v7960, %v8022
          %v8061 = vadd.f32 %v7961, %v8026
          %v8062 = vadd.f32 %v7962, %v8030
          %v8063 = vmax.f32 %v8047, 0.0
          %v8064 = vmax.f32 %v8048, 0.0
          %v8065 = vmax.f32 %v8049, 0.0
          %v8066 = vmax.f32 %v8050, 0.0
          %v8067 = vmax.f32 %v8051, 0.0
          %v8068 = vmax.f32 %v8052, 0.0
          %v8069 = vmax.f32 %v8053, 0.0
          %v8070 = vmax.f32 %v8054, 0.0
          %v8071 = vmax.f32 %v8055, 0.0
          %v8072 = vmax.f32 %v8056, 0.0
          %v8073 = vmax.f32 %v8057, 0.0
          %v8074 = vmax.f32 %v8058, 0.0
          %v8075 = vmax.f32 %v8059, 0.0
          %v8076 = vmax.f32 %v8060, 0.0
          %v8077 = vmax.f32 %v8061, 0.0
          %v8078 = vmax.f32 %v8062, 0.0
          %v8079 = vlaneseq
          %v8080 = vshrl.u32 %v8079, 7
          %s8081 = smul.u32 %s30, 8
          %v8082 = vstv %s8081
          %v8083 = vadd.s32 %v8080, %v8082
          %v8084 = vlaneseq
          %v8085 = vand.u32 %v8084, 127
          %v8086 = vadd.s32 %v8085, 128
          %v8087 = vadd.s32 %v8085, 256
          %v8088 = vadd.s32 %v8085, 384
          %v8089 = vadd.s32 %v8085, 512
          %v8090 = vadd.s32 %v8085, 640
          %v8091 = vadd.s32 %v8085, 768
          %v8092 = vadd.s32 %v8085, 896
          %v8093 = vadd.s32 %v8085, 1024
          %v8094 = vadd.s32 %v8085, 1152
          %v8095 = vadd.s32 %v8085, 1280
          %v8096 = vadd.s32 %v8085, 1408
          %v8097 = vadd.s32 %v8085, 1536
          %v8098 = vadd.s32 %v8085, 1664
          %v8099 = vadd.s32 %v8085, 1792
          %v8100 = vadd.s32 %v8085, 1920
          %s8101 = smul.u32 %s31, 2048
          %v8102 = vstv %s8101
          %v8103 = vadd.s32 %v8085, %v8102
          %v8104 = vadd.s32 %v8086, %v8102
          %v8105 = vadd.s32 %v8087, %v8102
          %v8106 = vadd.s32 %v8088, %v8102
          %v8107 = vadd.s32 %v8089, %v8102
          %v8108 = vadd.s32 %v8090, %v8102
          %v8109 = vadd.s32 %v8091, %v8102
          %v8110 = vadd.s32 %v8092, %v8102
          %v8111 = vadd.s32 %v8093, %v8102
          %v8112 = vadd.s32 %v8094, %v8102
          %v8113 = vadd.s32 %v8095, %v8102
          %v8114 = vadd.s32 %v8096, %v8102
          %v8115 = vadd.s32 %v8097, %v8102
          %v8116 = vadd.s32 %v8098, %v8102
          %v8117 = vadd.s32 %v8099, %v8102
          %v8118 = vadd.s32 %v8100, %v8102
          %v8119 = vmul.u32 %v8083, 4096
          %v8120 = vadd.s32 %v8119, %v8103
          %v8121 = vadd.s32 %v8119, %v8104
          %v8122 = vadd.s32 %v8119, %v8105
          %v8123 = vadd.s32 %v8119, %v8106
          %v8124 = vadd.s32 %v8119, %v8107
          %v8125 = vadd.s32 %v8119, %v8108
          %v8126 = vadd.s32 %v8119, %v8109
          %v8127 = vadd.s32 %v8119, %v8110
          %v8128 = vadd.s32 %v8119, %v8111
          %v8129 = vadd.s32 %v8119, %v8112
          %v8130 = vadd.s32 %v8119, %v8113
          %v8131 = vadd.s32 %v8119, %v8114
          %v8132 = vadd.s32 %v8119, %v8115
          %v8133 = vadd.s32 %v8119, %v8116
          %v8134 = vadd.s32 %v8119, %v8117
          %v8135 = vadd.s32 %v8119, %v8118
          %v8136 = vstv %s300
          %v8137 = vxor.u32 %v8120, %v8136
          %v8138 = vxor.u32 %v8121, %v8136
          %v8139 = vxor.u32 %v8122, %v8136
          %v8140 = vxor.u32 %v8123, %v8136
          %v8141 = vxor.u32 %v8124, %v8136
          %v8142 = vxor.u32 %v8125, %v8136
          %v8143 = vxor.u32 %v8126, %v8136
          %v8144 = vxor.u32 %v8127, %v8136
          %v8145 = vxor.u32 %v8128, %v8136
          %v8146 = vxor.u32 %v8129, %v8136
          %v8147 = vxor.u32 %v8130, %v8136
          %v8148 = vxor.u32 %v8131, %v8136
          %v8149 = vxor.u32 %v8132, %v8136
          %v8150 = vxor.u32 %v8133, %v8136
          %v8151 = vxor.u32 %v8134, %v8136
          %v8152 = vxor.u32 %v8135, %v8136
          %v8153 = vshrl.u32 %v8137, 16
          %v8154 = vshrl.u32 %v8138, 16
          %v8155 = vshrl.u32 %v8139, 16
          %v8156 = vshrl.u32 %v8140, 16
          %v8157 = vshrl.u32 %v8141, 16
          %v8158 = vshrl.u32 %v8142, 16
          %v8159 = vshrl.u32 %v8143, 16
          %v8160 = vshrl.u32 %v8144, 16
          %v8161 = vshrl.u32 %v8145, 16
          %v8162 = vshrl.u32 %v8146, 16
          %v8163 = vshrl.u32 %v8147, 16
          %v8164 = vshrl.u32 %v8148, 16
          %v8165 = vshrl.u32 %v8149, 16
          %v8166 = vshrl.u32 %v8150, 16
          %v8167 = vshrl.u32 %v8151, 16
          %v8168 = vshrl.u32 %v8152, 16
          %v8169 = vxor.u32 %v8137, %v8153
          %v8170 = vxor.u32 %v8138, %v8154
          %v8171 = vxor.u32 %v8139, %v8155
          %v8172 = vxor.u32 %v8140, %v8156
          %v8173 = vxor.u32 %v8141, %v8157
          %v8174 = vxor.u32 %v8142, %v8158
          %v8175 = vxor.u32 %v8143, %v8159
          %v8176 = vxor.u32 %v8144, %v8160
          %v8177 = vxor.u32 %v8145, %v8161
          %v8178 = vxor.u32 %v8146, %v8162
          %v8179 = vxor.u32 %v8147, %v8163
          %v8180 = vxor.u32 %v8148, %v8164
          %v8181 = vxor.u32 %v8149, %v8165
          %v8182 = vxor.u32 %v8150, %v8166
          %v8183 = vxor.u32 %v8151, %v8167
          %v8184 = vxor.u32 %v8152, %v8168
          %v8185 = vmul.u32 %v8169, 2146121005
          %v8186 = vmul.u32 %v8170, 2146121005
          %v8187 = vmul.u32 %v8171, 2146121005
          %v8188 = vmul.u32 %v8172, 2146121005
          %v8189 = vmul.u32 %v8173, 2146121005
          %v8190 = vmul.u32 %v8174, 2146121005
          %v8191 = vmul.u32 %v8175, 2146121005
          %v8192 = vmul.u32 %v8176, 2146121005
          %v8193 = vmul.u32 %v8177, 2146121005
          %v8194 = vmul.u32 %v8178, 2146121005
          %v8195 = vmul.u32 %v8179, 2146121005
          %v8196 = vmul.u32 %v8180, 2146121005
          %v8197 = vmul.u32 %v8181, 2146121005
          %v8198 = vmul.u32 %v8182, 2146121005
          %v8199 = vmul.u32 %v8183, 2146121005
          %v8200 = vmul.u32 %v8184, 2146121005
          %v8201 = vshrl.u32 %v8185, 15
          %v8202 = vshrl.u32 %v8186, 15
          %v8203 = vshrl.u32 %v8187, 15
          %v8204 = vshrl.u32 %v8188, 15
          %v8205 = vshrl.u32 %v8189, 15
          %v8206 = vshrl.u32 %v8190, 15
          %v8207 = vshrl.u32 %v8191, 15
          %v8208 = vshrl.u32 %v8192, 15
          %v8209 = vshrl.u32 %v8193, 15
          %v8210 = vshrl.u32 %v8194, 15
          %v8211 = vshrl.u32 %v8195, 15
          %v8212 = vshrl.u32 %v8196, 15
          %v8213 = vshrl.u32 %v8197, 15
          %v8214 = vshrl.u32 %v8198, 15
          %v8215 = vshrl.u32 %v8199, 15
          %v8216 = vshrl.u32 %v8200, 15
          %v8217 = vxor.u32 %v8185, %v8201
          %v8218 = vxor.u32 %v8186, %v8202
          %v8219 = vxor.u32 %v8187, %v8203
          %v8220 = vxor.u32 %v8188, %v8204
          %v8221 = vxor.u32 %v8189, %v8205
          %v8222 = vxor.u32 %v8190, %v8206
          %v8223 = vxor.u32 %v8191, %v8207
          %v8224 = vxor.u32 %v8192, %v8208
          %v8225 = vxor.u32 %v8193, %v8209
          %v8226 = vxor.u32 %v8194, %v8210
          %v8227 = vxor.u32 %v8195, %v8211
          %v8228 = vxor.u32 %v8196, %v8212
          %v8229 = vxor.u32 %v8197, %v8213
          %v8230 = vxor.u32 %v8198, %v8214
          %v8231 = vxor.u32 %v8199, %v8215
          %v8232 = vxor.u32 %v8200, %v8216
          %v8233 = vmul.u32 %v8217, 2221713035
          %v8234 = vmul.u32 %v8218, 2221713035
          %v8235 = vmul.u32 %v8219, 2221713035
          %v8236 = vmul.u32 %v8220, 2221713035
          %v8237 = vmul.u32 %v8221, 2221713035
          %v8238 = vmul.u32 %v8222, 2221713035
          %v8239 = vmul.u32 %v8223, 2221713035
          %v8240 = vmul.u32 %v8224, 2221713035
          %v8241 = vmul.u32 %v8225, 2221713035
          %v8242 = vmul.u32 %v8226, 2221713035
          %v8243 = vmul.u32 %v8227, 2221713035
          %v8244 = vmul.u32 %v8228, 2221713035
          %v8245 = vmul.u32 %v8229, 2221713035
          %v8246 = vmul.u32 %v8230, 2221713035
          %v8247 = vmul.u32 %v8231, 2221713035
          %v8248 = vmul.u32 %v8232, 2221713035
          %v8249 = vshrl.u32 %v8233, 16
          %v8250 = vshrl.u32 %v8234, 16
          %v8251 = vshrl.u32 %v8235, 16
          %v8252 = vshrl.u32 %v8236, 16
          %v8253 = vshrl.u32 %v8237, 16
          %v8254 = vshrl.u32 %v8238, 16
          %v8255 = vshrl.u32 %v8239, 16
          %v8256 = vshrl.u32 %v8240, 16
          %v8257 = vshrl.u32 %v8241, 16
          %v8258 = vshrl.u32 %v8242, 16
          %v8259 = vshrl.u32 %v8243, 16
          %v8260 = vshrl.u32 %v8244, 16
          %v8261 = vshrl.u32 %v8245, 16
          %v8262 = vshrl.u32 %v8246, 16
          %v8263 = vshrl.u32 %v8247, 16
          %v8264 = vshrl.u32 %v8248, 16
          %v8265 = vxor.u32 %v8233, %v8249
          %v8266 = vxor.u32 %v8234, %v8250
          %v8267 = vxor.u32 %v8235, %v8251
          %v8268 = vxor.u32 %v8236, %v8252
          %v8269 = vxor.u32 %v8237, %v8253
          %v8270 = vxor.u32 %v8238, %v8254
          %v8271 = vxor.u32 %v8239, %v8255
          %v8272 = vxor.u32 %v8240, %v8256
          %v8273 = vxor.u32 %v8241, %v8257
          %v8274 = vxor.u32 %v8242, %v8258
          %v8275 = vxor.u32 %v8243, %v8259
          %v8276 = vxor.u32 %v8244, %v8260
          %v8277 = vxor.u32 %v8245, %v8261
          %v8278 = vxor.u32 %v8246, %v8262
          %v8279 = vxor.u32 %v8247, %v8263
          %v8280 = vxor.u32 %v8248, %v8264
          %v8281 = vshrl.u32 %v8265, 1
          %v8282 = vshrl.u32 %v8266, 1
          %v8283 = vshrl.u32 %v8267, 1
          %v8284 = vshrl.u32 %v8268, 1
          %v8285 = vshrl.u32 %v8269, 1
          %v8286 = vshrl.u32 %v8270, 1
          %v8287 = vshrl.u32 %v8271, 1
          %v8288 = vshrl.u32 %v8272, 1
          %v8289 = vshrl.u32 %v8273, 1
          %v8290 = vshrl.u32 %v8274, 1
          %v8291 = vshrl.u32 %v8275, 1
          %v8292 = vshrl.u32 %v8276, 1
          %v8293 = vshrl.u32 %v8277, 1
          %v8294 = vshrl.u32 %v8278, 1
          %v8295 = vshrl.u32 %v8279, 1
          %v8296 = vshrl.u32 %v8280, 1
          %vm8297 = vcmp.lt.s32.totalorder %v8281, 1073741824
          %vm8298 = vcmp.lt.s32.totalorder %v8282, 1073741824
          %vm8299 = vcmp.lt.s32.totalorder %v8283, 1073741824
          %vm8300 = vcmp.lt.s32.totalorder %v8284, 1073741824
          %vm8301 = vcmp.lt.s32.totalorder %v8285, 1073741824
          %vm8302 = vcmp.lt.s32.totalorder %v8286, 1073741824
          %vm8303 = vcmp.lt.s32.totalorder %v8287, 1073741824
          %vm8304 = vcmp.lt.s32.totalorder %v8288, 1073741824
          %vm8305 = vcmp.lt.s32.totalorder %v8289, 1073741824
          %vm8306 = vcmp.lt.s32.totalorder %v8290, 1073741824
          %vm8307 = vcmp.lt.s32.totalorder %v8291, 1073741824
          %vm8308 = vcmp.lt.s32.totalorder %v8292, 1073741824
          %vm8309 = vcmp.lt.s32.totalorder %v8293, 1073741824
          %vm8310 = vcmp.lt.s32.totalorder %v8294, 1073741824
          %vm8311 = vcmp.lt.s32.totalorder %v8295, 1073741824
          %vm8312 = vcmp.lt.s32.totalorder %v8296, 1073741824
          %v8313 = vmul.f32 %v8063, 2.0
          %v8314 = vmul.f32 %v8064, 2.0
          %v8315 = vmul.f32 %v8065, 2.0
          %v8316 = vmul.f32 %v8066, 2.0
          %v8317 = vmul.f32 %v8067, 2.0
          %v8318 = vmul.f32 %v8068, 2.0
          %v8319 = vmul.f32 %v8069, 2.0
          %v8320 = vmul.f32 %v8070, 2.0
          %v8321 = vmul.f32 %v8071, 2.0
          %v8322 = vmul.f32 %v8072, 2.0
          %v8323 = vmul.f32 %v8073, 2.0
          %v8324 = vmul.f32 %v8074, 2.0
          %v8325 = vmul.f32 %v8075, 2.0
          %v8326 = vmul.f32 %v8076, 2.0
          %v8327 = vmul.f32 %v8077, 2.0
          %v8328 = vmul.f32 %v8078, 2.0
          %v8329 = vsel %vm8297, %v8313, 0.0
          %v8330 = vsel %vm8298, %v8314, 0.0
          %v8331 = vsel %vm8299, %v8315, 0.0
          %v8332 = vsel %vm8300, %v8316, 0.0
          %v8333 = vsel %vm8301, %v8317, 0.0
          %v8334 = vsel %vm8302, %v8318, 0.0
          %v8335 = vsel %vm8303, %v8319, 0.0
          %v8336 = vsel %vm8304, %v8320, 0.0
          %v8337 = vsel %vm8305, %v8321, 0.0
          %v8338 = vsel %vm8306, %v8322, 0.0
          %v8339 = vsel %vm8307, %v8323, 0.0
          %v8340 = vsel %vm8308, %v8324, 0.0
          %v8341 = vsel %vm8309, %v8325, 0.0
          %v8342 = vsel %vm8310, %v8326, 0.0
          %v8343 = vsel %vm8311, %v8327, 0.0
          %v8344 = vsel %vm8312, %v8328, 0.0
          %8345 = vst [vmem:[%s293] sm:$0xff] %v8329
          %8346 = vst [vmem:[%s293 + $0x8] sm:$0xff] %v8330
          %8347 = vst [vmem:[%s293 + $0x10] sm:$0xff] %v8331
          %8348 = vst [vmem:[%s293 + $0x18] sm:$0xff] %v8332
          %8349 = vst [vmem:[%s293 + $0x20] sm:$0xff] %v8333
          %8350 = vst [vmem:[%s293 + $0x28] sm:$0xff] %v8334
          %8351 = vst [vmem:[%s293 + $0x30] sm:$0xff] %v8335
          %8352 = vst [vmem:[%s293 + $0x38] sm:$0xff] %v8336
          %8353 = vst [vmem:[%s293 + $0x40] sm:$0xff] %v8337
          %8354 = vst [vmem:[%s293 + $0x48] sm:$0xff] %v8338
          %8355 = vst [vmem:[%s293 + $0x50] sm:$0xff] %v8339
          %8356 = vst [vmem:[%s293 + $0x58] sm:$0xff] %v8340
          %8357 = vst [vmem:[%s293 + $0x60] sm:$0xff] %v8341
          %8358 = vst [vmem:[%s293 + $0x68] sm:$0xff] %v8342
          %8359 = vst [vmem:[%s293 + $0x70] sm:$0xff] %v8343
          %8360 = vst [vmem:[%s293 + $0x78] sm:$0xff] %v8344
        $region52: #{linear_relu_dropout.1} parent=31 // pred_fallthru
          _
        %s8361 = sand.u32 %s136, 1
        %s8362 = scalar_lea.sflag [#allocation7], %s8361
        %s8363 = sand.u32 %s136, 1
        %s8364 = smul.addr %s8363, 128
        %s8365 = scalar_lea.vmem [#allocation11], %s8364
        // Predicated region
        $region53: #{linear_relu_dropout.1} parent=31 // pred_check
          %p8366 = pneg %p146
        $region54: #{linear_relu_dropout.1} parent=31 // pred_check_branch
          %8368 = sbr.rel (%p8366) target = $region56
        $region55: #{linear_relu_dropout.1} parent=31 // pred_region
          %s8369 = smul.u32 16, %s31
          %s8371 = ssub.s32 2048, 2048
          %8372 = vsyncadd %s8362, %s8371
          %s8373 = smul.addr %s30, 32
          %s8374 = sadd.s32 %s8369, %s8373
          %s8375 = smul.addr %s8374, 128
          %s8376 = scalar_lea.hbm %s4, %s8375
          %s8378 = sshll.u32 %s8365, 4
          %s8379 = int_to_ptr.vmem [resolvable:$true] %s8378
          %8381 = dma.vmem_to_hbm [thread:$0]  %s8379, 2048, %s8376, %s8362
        $region56: #{linear_relu_dropout.1} parent=31 // pred_fallthru
          _
      $region32: #{linear_relu_dropout.1} parent=5 // pred_fallthru
        _
      %p8382 = scmp.le.s32.totalorder 2, %s20
      // Predicated region
      $region57: #{linear_relu_dropout.1} parent=5 // pred_check
        %p8383 = pneg %p8382
      $region58: #{linear_relu_dropout.1} parent=5 // pred_check_branch
        %8385 = sbr.rel (%p8383) target = $region60
      $region59: #{linear_relu_dropout.1} parent=5 // pred_region
        %s8386 = ssub.s32 %s20, 2
        // Predicated region
        $region61: #{linear_relu_dropout.1} parent=59 // pred_check
          %p8387 = pneg %p152
        $region62: #{linear_relu_dropout.1} parent=59 // pred_check_branch
          %8389 = sbr.rel (%p8387) target = $region64
        $region63: #{linear_relu_dropout.1} parent=59 // pred_region
          %s8390 = sand.u32 %s137, 1
          %s8391 = scalar_lea.sflag [#allocation7], %s8390
          %s8392 = sand.u32 %s137, 1
          %s8393 = smul.addr %s8392, 128
          %s8394 = scalar_lea.vmem [#allocation11], %s8393
          %8395 = dma.done %s8391, 2048
        $region64: #{linear_relu_dropout.1} parent=59 // pred_fallthru
          _
      $region60: #{linear_relu_dropout.1} parent=5 // pred_fallthru
        _
    $region6: #{linear_relu_dropout.1} parent=1 // loop_footer
      %s24 = sadd.s32 1, %s20
    $region7: #{linear_relu_dropout.1} parent=1 // loop_footer_branch
      %19 = sbr.rel target = $region3
    $region8: #{linear_relu_dropout.1} parent=1 // loop_exit
      _
    %8396 = vsyncpa [#allocation6], 1
    %s8397 = scalar_lea.sflag [#allocation6], 1
    %8398 = vsyncpa %s8397, 1
    %8399 = vsyncpa [#allocation9], 1
    %s8400 = scalar_lea.sflag [#allocation9], 1
    %8401 = vsyncpa %s8400, 1
    %8402 = vsyncpa [#allocation7], 1
    %s8403 = scalar_lea.sflag [#allocation7], 1
    %8404 = vsyncpa %s8403, 1

</llo_original>
